<compile_context>
chip_gen: v7x
topology: tpu7x:2x2x1
jax: 0.10.0
libtpu: 0.0.40
codegen_flags: <defaults>
</compile_context>

<pallas_src>
import functools
import math

import jax
import jax.numpy as jnp
from jax import lax
from jax.experimental import pallas as pl
from jax.experimental.pallas import tpu as pltpu

EPS = 1e-5                       # torch.nn.LayerNorm default eps
INV_SQRT2 = 1.0 / math.sqrt(2.0)


def _layer_norm(x, gamma, beta):
    mu = jnp.mean(x, axis=-1, keepdims=True)
    var = jnp.mean((x - mu) ** 2, axis=-1, keepdims=True)
    return (x - mu) * lax.rsqrt(var + EPS) * gamma + beta


# ------------------------------------------------------------------------------------
# Fused kernel: one grid step handles TB batch elements (N = TB*nq token rows).
# ------------------------------------------------------------------------------------
def fused_foveal_kernel(q_ref, xq_ref,
                        w1a_ref, b1a_ref, w1b_ref, b1b_ref,
                        w2a_ref, b2a_ref, w2bp_ref, b2bp_ref,
                        wfc_ref, bfc_ref, gfc_ref, befc_ref,
                        wq_ref, bq_ref, wk_ref, bk_ref,
                        wv_ref, bv_ref, wo_ref, bo_ref,
                        g1_ref, be1_ref,
                        wm1_ref, bm1_ref, wm2_ref, bm2_ref,
                        g2_ref, be2_ref,
                        out_ref,
                        qk_scr, qvt_scr, g_scr, qh_scr, kh_scr, vh_scr, at_scr,
                        *, num_heads, d0, d1, tb, nq):
    f32, bf16 = jnp.float32, jnp.bfloat16
    C = out_ref.shape[-1]
    hd = C // num_heads
    scale = 1.0 / math.sqrt(hd)

    def mm(x, w_ref, b_ref):
        # bf16 operands on the MXU, f32 accumulation, f32 bias add.
        return jnp.dot(x.astype(bf16), w_ref[...],
                       preferred_element_type=f32) + b_ref[...]

    x_q = q_ref[...]      # (N, C) rows of q
    x_x = xq_ref[...]     # (N, C) rows of xq

    # ----- mlp1 / mlp2 (token-wise) -----
    t1 = jnp.maximum(mm(x_q, w1a_ref, b1a_ref), 0.0)          # (N, H)
    h1 = mm(t1, w1b_ref, b1b_ref)                              # (N, d0*C)   q_key rows
    t2 = jnp.maximum(mm(x_x, w2a_ref, b2a_ref), 0.0)          # (N, H)
    h2p = mm(t2, w2bp_ref, b2bp_ref)                           # (N, d1*C)   q_value^T rows
    # (w2bp / b2bp are permuted in the wrapper so h2p[:, j*C+c] == q_value[:, c, j])

    # ----- bilinear relu(q_key @ q_value), fused (no HBM round trip) -----
    for i in range(d0):
        qk_scr[:, i, :] = h1[:, i * C:(i + 1) * C]             # (N, d0, C)
    for j in range(d1):
        qvt_scr[:, j, :] = h2p[:, j * C:(j + 1) * C]           # (N, d1, C)
    # P[n, i, j] = sum_c q_key[n, i, c] * q_value[n, c, j]   (batched over tokens)
    prod = jnp.einsum("nic,njc->nij",
                      qk_scr[...].astype(bf16), qvt_scr[...].astype(bf16),
                      preferred_element_type=f32)              # (N, d0, d1)
    prod = jnp.maximum(prod, 0.0)
    for i in range(d0):                                        # flatten(2) -> (N, C)
        g_scr[:, i * d1:(i + 1) * d1] = prod[:, i, :]
    g = g_scr[...]

    # ----- fc: Linear + LayerNorm -----
    q2 = _layer_norm(mm(g, wfc_ref, bfc_ref), gfc_ref[...], befc_ref[...])

    # ----- multi-head self-attention, batched over (tb * num_heads) -----
    qp = mm(q2, wq_ref, bq_ref)
    kp = mm(q2, wk_ref, bk_ref)
    vp = mm(q2, wv_ref, bv_ref)
    for b in range(tb):
        r0, r1 = b * nq, (b + 1) * nq
        for h in range(num_heads):
            c0, c1 = h * hd, (h + 1) * hd
            s = b * num_heads + h
            qh_scr[s] = qp[r0:r1, c0:c1]
            kh_scr[s] = kp[r0:r1, c0:c1]
            vh_scr[s] = vp[r0:r1, c0:c1]
    qh = qh_scr[...].astype(bf16)
    kh = kh_scr[...].astype(bf16)
    vh = vh_scr[...].astype(bf16)
    sc = jnp.einsum("bqd,bkd->bqk", qh, kh,
                    preferred_element_type=f32) * scale        # (tb*nh, nq, nq)
    sc = sc - jnp.max(sc, axis=-1, keepdims=True)
    e = jnp.exp(sc)
    p_attn = e * pl.reciprocal(jnp.sum(e, axis=-1, keepdims=True), approx=True)
    o = jnp.einsum("bqk,bkd->bqd", p_attn.astype(bf16), vh,
                   preferred_element_type=f32)                 # (tb*nh, nq, hd)
    for b in range(tb):                                        # concat heads -> (N, C)
        for h in range(num_heads):
            at_scr[b * nq:(b + 1) * nq, h * hd:(h + 1) * hd] = o[b * num_heads + h]
    attn_out = mm(at_scr[...], wo_ref, bo_ref)                 # single (N,C)@(C,C) proj

    q3 = _layer_norm(q2 + attn_out, g1_ref[...], be1_ref[...])

    # ----- MLPBlock: Linear -> exact-erf GELU -> Linear -----
    m = mm(q3, wm1_ref, bm1_ref)
    m = 0.5 * m * (1.0 + lax.erf(m * INV_SQRT2))
    m = mm(m, wm2_ref, bm2_ref)

    out_ref[...] = _layer_norm(q3 + m, g2_ref[...], be2_ref[...])


# ------------------------------------------------------------------------------------
# Wrapper: one pallas_call; only free reshapes / dtype casts / weight permutation here.
# ------------------------------------------------------------------------------------
def _pick_batch_tile(B, nq, target_rows=256):
    # Feed the MXU >= ~256 rows per grid step when the batch allows it.
    tb = max(1, min(B, max(1, target_rows // max(nq, 1))))
    while B % tb:
        tb -= 1
    return tb


def foveal_step(q, xq, params, *, num_heads):
    B, nq, C = q.shape
    H = params["w1a"].shape[1]
    d0 = params["w1b"].shape[1] // C
    d1 = params["w2b"].shape[1] // C
    assert d0 * d1 == C and C % num_heads == 0
    f32, bf16 = jnp.float32, jnp.bfloat16
    nh = num_heads
    hd = C // nh

    tb = _pick_batch_tile(B, nq)
    N = tb * nq

    # Permute mlp2's second weight (free, wrapper-side) so the kernel gets q_value
    # already "transposed" (d1-major) and the bilinear is a lane-contracting matmul.
    w2bp = params["w2b"].reshape(H, C, d1).transpose(0, 2, 1).reshape(H, d1 * C)
    b2bp = params["b2b"].reshape(1, C, d1).transpose(0, 2, 1).reshape(1, d1 * C)

    # Matmul weights in bf16 (halves weight DMA / VMEM); biases + LN params stay f32.
    weight_arrays = [
        params["w1a"].astype(bf16), params["b1a"],
        params["w1b"].astype(bf16), params["b1b"],
        params["w2a"].astype(bf16), params["b2a"],
        w2bp.astype(bf16), b2bp,
        params["wfc"].astype(bf16), params["bfc"], params["gfc"], params["befc"],
        params["wq"].astype(bf16), params["bq"],
        params["wk"].astype(bf16), params["bk"],
        params["wv"].astype(bf16), params["bv"],
        params["wo"].astype(bf16), params["bo"],
        params["g1"], params["be1"],
        params["wm1"].astype(bf16), params["bm1"],
        params["wm2"].astype(bf16), params["bm2"],
        params["g2"], params["be2"],
    ]

    act_spec = pl.BlockSpec((N, C), lambda i: (i, 0))

    def rep(a):  # replicated full-array weight block
        return pl.BlockSpec(a.shape, lambda i: (0, 0))

    # TODO(synk): at production C/H on v7x, single-buffer the replicated weight specs
    # and raise vmem_limit_bytes (v6e) so the large w1b/w2b fit the scoped VMEM budget.
    out2d = pl.pallas_call(
        functools.partial(fused_foveal_kernel,
                          num_heads=nh, d0=d0, d1=d1, tb=tb, nq=nq),
        out_shape=jax.ShapeDtypeStruct((B * nq, C), f32),
        grid_spec=pltpu.PrefetchScalarGridSpec(
            num_scalar_prefetch=0,
            grid=(B // tb,),
            in_specs=[act_spec, act_spec] + [rep(a) for a in weight_arrays],
            out_specs=act_spec,
            scratch_shapes=[
                pltpu.VMEM((N, d0, C), f32),          # q_key, token-batched 3D
                pltpu.VMEM((N, d1, C), f32),          # q_value^T, token-batched 3D
                pltpu.VMEM((N, C), f32),              # flattened bilinear output
                pltpu.VMEM((tb * nh, nq, hd), f32),   # per-head q
                pltpu.VMEM((tb * nh, nq, hd), f32),   # per-head k
                pltpu.VMEM((tb * nh, nq, hd), f32),   # per-head v
                pltpu.VMEM((N, C), f32),              # concat(heads)
            ]),
        compiler_params=pltpu.CompilerParams(
            dimension_semantics=("parallel",)),
    )(q.reshape(B * nq, C), xq.reshape(B * nq, C), *weight_arrays)
    return out2d.reshape(B, nq, C)


# ------------------------------------------------------------------------------------
# Deterministic parameter init (synthetic; shapes follow the module __init__).
# ------------------------------------------------------------------------------------
def init_params(key, C, H, fix_dim=16):
    d0, d1 = C // fix_dim, fix_dim
    keys = iter(jax.random.split(key, 32))

    def lin(din, dout, scale=0.05):
        w = scale * jax.random.normal(next(keys), (din, dout), jnp.float32)
        b = scale * jax.random.normal(next(keys), (1, dout), jnp.float32)
        return w, b

    p = {}
    p["w1a"], p["b1a"] = lin(C, H)              # mlp1
    p["w1b"], p["b1b"] = lin(H, d0 * C)
    p["w2a"], p["b2a"] = lin(C, H)              # mlp2
    p["w2b"], p["b2b"] = lin(H, C * d1)
    p["wfc"], p["bfc"] = lin(C, C)              # fc: Linear + LayerNorm
    p["gfc"], p["befc"] = jnp.ones((1, C), jnp.float32), jnp.zeros((1, C), jnp.float32)
    p["wq"], p["bq"] = lin(C, C)                # Attention projections
    p["wk"], p["bk"] = lin(C, C)
    p["wv"], p["bv"] = lin(C, C)
    p["wo"], p["bo"] = lin(C, C)
    p["g1"], p["be1"] = jnp.ones((1, C), jnp.float32), jnp.zeros((1, C), jnp.float32)
    p["wm1"], p["bm1"] = lin(C, H)              # MLPBlock
    p["wm2"], p["bm2"] = lin(H, C)
    p["g2"], p["be2"] = jnp.ones((1, C), jnp.float32), jnp.zeros((1, C), jnp.float32)
    return p


# ------------------------------------------------------------------------------------
# Pure-JAX f32 reference (same math, no Pallas) for a correctness sanity check.
# ------------------------------------------------------------------------------------
def reference_forward(q, xq, p, num_heads, fix_dim=16):
    B, nq, C = q.shape
    d0, d1 = C // fix_dim, fix_dim

    def ln(x, g, b):
        mu = x.mean(-1, keepdims=True)
        var = ((x - mu) ** 2).mean(-1, keepdims=True)
        return (x - mu) / jnp.sqrt(var + EPS) * g + b

    relu = lambda v: jnp.maximum(v, 0.0)
    h1 = relu(q @ p["w1a"] + p["b1a"]) @ p["w1b"] + p["b1b"]
    h2 = relu(xq @ p["w2a"] + p["b2a"]) @ p["w2b"] + p["b2b"]
    qk = h1.reshape(B, nq, d0, C)
    qv = h2.reshape(B, nq, C, d1)
    g = relu(jnp.einsum("bnij,bnjk->bnik", qk, qv)).reshape(B, nq, d0 * d1)
    q2 = ln(g @ p["wfc"] + p["bfc"], p["gfc"], p["befc"])

    hd = C // num_heads
    split = lambda x: x.reshape(B, nq, num_heads, hd).transpose(0, 2, 1, 3)
    qp = split(q2 @ p["wq"] + p["bq"])
    kp = split(q2 @ p["wk"] + p["bk"])
    vp = split(q2 @ p["wv"] + p["bv"])
    s = jnp.einsum("bhqd,bhkd->bhqk", qp, kp) / math.sqrt(hd)
    a = jax.nn.softmax(s, axis=-1)
    o = jnp.einsum("bhqk,bhkd->bhqd", a, vp).transpose(0, 2, 1, 3).reshape(B, nq, C)
    o = o @ p["wo"] + p["bo"]
    q3 = ln(q2 + o, p["g1"], p["be1"])

    m = q3 @ p["wm1"] + p["bm1"]
    m = 0.5 * m * (1.0 + lax.erf(m * INV_SQRT2))
    m = m @ p["wm2"] + p["bm2"]
    return ln(q3 + m, p["g2"], p["be2"])


if __name__ == "__main__":
    # Small config consistent with the module: embed_dim % 16 == 0, heads | embed_dim.
    # C=128 keeps every kernel output block lane-dense (last dim = 128).
    B, NQ, C, H, HEADS = 2, 8, 128, 256, 8

    key = jax.random.PRNGKey(0)
    kq, kx, kp = jax.random.split(key, 3)
    q = jax.random.normal(kq, (B, NQ, C), jnp.float32)
    xq = jax.random.normal(kx, (B, NQ, C), jnp.float32)
    params = init_params(kp, C, H)

    fwd = jax.jit(functools.partial(foveal_step, num_heads=HEADS))
    out = jax.block_until_ready(fwd(q, xq, params))

    assert out.shape == (B, NQ, C)
    assert bool(jnp.isfinite(out).all())

    ref = reference_forward(q, xq, params, HEADS)
    max_err = float(jnp.max(jnp.abs(out - ref)))
    assert bool(jnp.allclose(out, ref, rtol=5e-2, atol=5e-2)), max_err

    print("KERNEL_OK")
</pallas_src>

<mosaic_0001>
module attributes {stable_mosaic.version = 11 : i64} {
  func.func @fused_foveal_kernel(%arg0: i32, %arg1: memref<16x128xf32, #tpu.memory_space<vmem>>, %arg2: memref<16x128xf32, #tpu.memory_space<vmem>>, %arg3: memref<128x256xbf16, #tpu.memory_space<vmem>>, %arg4: memref<1x256xf32, #tpu.memory_space<vmem>>, %arg5: memref<256x1024xbf16, #tpu.memory_space<vmem>>, %arg6: memref<1x1024xf32, #tpu.memory_space<vmem>>, %arg7: memref<128x256xbf16, #tpu.memory_space<vmem>>, %arg8: memref<1x256xf32, #tpu.memory_space<vmem>>, %arg9: memref<256x2048xbf16, #tpu.memory_space<vmem>>, %arg10: memref<1x2048xf32, #tpu.memory_space<vmem>>, %arg11: memref<128x128xbf16, #tpu.memory_space<vmem>>, %arg12: memref<1x128xf32, #tpu.memory_space<vmem>>, %arg13: memref<1x128xf32, #tpu.memory_space<vmem>>, %arg14: memref<1x128xf32, #tpu.memory_space<vmem>>, %arg15: memref<128x128xbf16, #tpu.memory_space<vmem>>, %arg16: memref<1x128xf32, #tpu.memory_space<vmem>>, %arg17: memref<128x128xbf16, #tpu.memory_space<vmem>>, %arg18: memref<1x128xf32, #tpu.memory_space<vmem>>, %arg19: memref<128x128xbf16, #tpu.memory_space<vmem>>, %arg20: memref<1x128xf32, #tpu.memory_space<vmem>>, %arg21: memref<128x128xbf16, #tpu.memory_space<vmem>>, %arg22: memref<1x128xf32, #tpu.memory_space<vmem>>, %arg23: memref<1x128xf32, #tpu.memory_space<vmem>>, %arg24: memref<1x128xf32, #tpu.memory_space<vmem>>, %arg25: memref<128x256xbf16, #tpu.memory_space<vmem>>, %arg26: memref<1x256xf32, #tpu.memory_space<vmem>>, %arg27: memref<256x128xbf16, #tpu.memory_space<vmem>>, %arg28: memref<1x128xf32, #tpu.memory_space<vmem>>, %arg29: memref<1x128xf32, #tpu.memory_space<vmem>>, %arg30: memref<1x128xf32, #tpu.memory_space<vmem>>, %arg31: memref<16x128xf32, #tpu.memory_space<vmem>>, %arg32: memref<16x8x128xf32, #tpu.memory_space<vmem>>, %arg33: memref<16x16x128xf32, #tpu.memory_space<vmem>>, %arg34: memref<16x128xf32, #tpu.memory_space<vmem>>, %arg35: memref<16x8x16xf32, #tpu.memory_space<vmem>>, %arg36: memref<16x8x16xf32, #tpu.memory_space<vmem>>, %arg37: memref<16x8x16xf32, #tpu.memory_space<vmem>>, %arg38: memref<16x128xf32, #tpu.memory_space<vmem>>) attributes {dimension_semantics = [#tpu.dimension_semantics<parallel>], iteration_bounds = array<i64: 1>, scalar_prefetch = 0 : i64, scratch_operands = 7 : i64, tpu.core_type = #tpu.core_type<tc>, window_params = [{transform_indices = @transform_0, window_bounds = array<i64: 16, 128>}, {transform_indices = @transform_1, window_bounds = array<i64: 16, 128>}, {pipeline_mode = #tpu.pipeline_mode<synchronous>, transform_indices = @transform_2, window_bounds = array<i64: 128, 256>}, {pipeline_mode = #tpu.pipeline_mode<synchronous>, transform_indices = @transform_3, window_bounds = array<i64: 1, 256>}, {pipeline_mode = #tpu.pipeline_mode<synchronous>, transform_indices = @transform_4, window_bounds = array<i64: 256, 1024>}, {pipeline_mode = #tpu.pipeline_mode<synchronous>, transform_indices = @transform_5, window_bounds = array<i64: 1, 1024>}, {pipeline_mode = #tpu.pipeline_mode<synchronous>, transform_indices = @transform_6, window_bounds = array<i64: 128, 256>}, {pipeline_mode = #tpu.pipeline_mode<synchronous>, transform_indices = @transform_7, window_bounds = array<i64: 1, 256>}, {pipeline_mode = #tpu.pipeline_mode<synchronous>, transform_indices = @transform_8, window_bounds = array<i64: 256, 2048>}, {pipeline_mode = #tpu.pipeline_mode<synchronous>, transform_indices = @transform_9, window_bounds = array<i64: 1, 2048>}, {pipeline_mode = #tpu.pipeline_mode<synchronous>, transform_indices = @transform_10, window_bounds = array<i64: 128, 128>}, {pipeline_mode = #tpu.pipeline_mode<synchronous>, transform_indices = @transform_11, window_bounds = array<i64: 1, 128>}, {pipeline_mode = #tpu.pipeline_mode<synchronous>, transform_indices = @transform_12, window_bounds = array<i64: 1, 128>}, {pipeline_mode = #tpu.pipeline_mode<synchronous>, transform_indices = @transform_13, window_bounds = array<i64: 1, 128>}, {pipeline_mode = #tpu.pipeline_mode<synchronous>, transform_indices = @transform_14, window_bounds = array<i64: 128, 128>}, {pipeline_mode = #tpu.pipeline_mode<synchronous>, transform_indices = @transform_15, window_bounds = array<i64: 1, 128>}, {pipeline_mode = #tpu.pipeline_mode<synchronous>, transform_indices = @transform_16, window_bounds = array<i64: 128, 128>}, {pipeline_mode = #tpu.pipeline_mode<synchronous>, transform_indices = @transform_17, window_bounds = array<i64: 1, 128>}, {pipeline_mode = #tpu.pipeline_mode<synchronous>, transform_indices = @transform_18, window_bounds = array<i64: 128, 128>}, {pipeline_mode = #tpu.pipeline_mode<synchronous>, transform_indices = @transform_19, window_bounds = array<i64: 1, 128>}, {pipeline_mode = #tpu.pipeline_mode<synchronous>, transform_indices = @transform_20, window_bounds = array<i64: 128, 128>}, {pipeline_mode = #tpu.pipeline_mode<synchronous>, transform_indices = @transform_21, window_bounds = array<i64: 1, 128>}, {pipeline_mode = #tpu.pipeline_mode<synchronous>, transform_indices = @transform_22, window_bounds = array<i64: 1, 128>}, {pipeline_mode = #tpu.pipeline_mode<synchronous>, transform_indices = @transform_23, window_bounds = array<i64: 1, 128>}, {pipeline_mode = #tpu.pipeline_mode<synchronous>, transform_indices = @transform_24, window_bounds = array<i64: 128, 256>}, {pipeline_mode = #tpu.pipeline_mode<synchronous>, transform_indices = @transform_25, window_bounds = array<i64: 1, 256>}, {pipeline_mode = #tpu.pipeline_mode<synchronous>, transform_indices = @transform_26, window_bounds = array<i64: 256, 128>}, {pipeline_mode = #tpu.pipeline_mode<synchronous>, transform_indices = @transform_27, window_bounds = array<i64: 1, 128>}, {pipeline_mode = #tpu.pipeline_mode<synchronous>, transform_indices = @transform_28, window_bounds = array<i64: 1, 128>}, {pipeline_mode = #tpu.pipeline_mode<synchronous>, transform_indices = @transform_29, window_bounds = array<i64: 1, 128>}, {transform_indices = @transform_30, window_bounds = array<i64: 16, 128>}]} {
    %c0 = arith.constant 0 : index
    %c0_0 = arith.constant 0 : index
    %0 = vector.load %arg1[%c0, %c0_0] : memref<16x128xf32, #tpu.memory_space<vmem>>, vector<16x128xf32>
    %c0_1 = arith.constant 0 : index
    %c0_2 = arith.constant 0 : index
    %1 = vector.load %arg2[%c0_1, %c0_2] : memref<16x128xf32, #tpu.memory_space<vmem>>, vector<16x128xf32>
    %2 = arith.truncf %0 : vector<16x128xf32> to vector<16x128xbf16>
    %c0_3 = arith.constant 0 : index
    %c0_4 = arith.constant 0 : index
    %3 = vector.load %arg3[%c0_3, %c0_4] : memref<128x256xbf16, #tpu.memory_space<vmem>>, vector<128x256xbf16>
    %cst = arith.constant dense<0.000000e+00> : vector<16x256xf32>
    %4 = tpu.matmul %2, %3, %cst {dimension_numbers = #tpu.dot_dimension_numbers<[1], [0], [0], [1], [0, 0, 1, 1], [], []>} : vector<16x128xbf16>, vector<128x256xbf16>, vector<16x256xf32> -> vector<16x256xf32>
    %c0_5 = arith.constant 0 : index
    %c0_6 = arith.constant 0 : index
    %5 = vector.load %arg4[%c0_5, %c0_6] : memref<1x256xf32, #tpu.memory_space<vmem>>, vector<1x256xf32>
    %6 = vector.broadcast %5 : vector<1x256xf32> to vector<16x256xf32>
    %7 = arith.addf %4, %6 : vector<16x256xf32>
    %cst_7 = arith.constant 0.000000e+00 : f32
    %8 = vector.broadcast %cst_7 : f32 to vector<16x256xf32>
    %9 = arith.maximumf %7, %8 : vector<16x256xf32>
    %10 = arith.truncf %9 : vector<16x256xf32> to vector<16x256xbf16>
    %c0_8 = arith.constant 0 : index
    %c0_9 = arith.constant 0 : index
    %11 = vector.load %arg5[%c0_8, %c0_9] : memref<256x1024xbf16, #tpu.memory_space<vmem>>, vector<256x1024xbf16>
    %cst_10 = arith.constant dense<0.000000e+00> : vector<16x1024xf32>
    %12 = tpu.matmul %10, %11, %cst_10 {dimension_numbers = #tpu.dot_dimension_numbers<[1], [0], [0], [1], [0, 0, 1, 1], [], []>} : vector<16x256xbf16>, vector<256x1024xbf16>, vector<16x1024xf32> -> vector<16x1024xf32>
    %c0_11 = arith.constant 0 : index
    %c0_12 = arith.constant 0 : index
    %13 = vector.load %arg6[%c0_11, %c0_12] : memref<1x1024xf32, #tpu.memory_space<vmem>>, vector<1x1024xf32>
    %14 = vector.broadcast %13 : vector<1x1024xf32> to vector<16x1024xf32>
    %15 = arith.addf %12, %14 : vector<16x1024xf32>
    %16 = arith.truncf %1 : vector<16x128xf32> to vector<16x128xbf16>
    %c0_13 = arith.constant 0 : index
    %c0_14 = arith.constant 0 : index
    %17 = vector.load %arg7[%c0_13, %c0_14] : memref<128x256xbf16, #tpu.memory_space<vmem>>, vector<128x256xbf16>
    %cst_15 = arith.constant dense<0.000000e+00> : vector<16x256xf32>
    %18 = tpu.matmul %16, %17, %cst_15 {dimension_numbers = #tpu.dot_dimension_numbers<[1], [0], [0], [1], [0, 0, 1, 1], [], []>} : vector<16x128xbf16>, vector<128x256xbf16>, vector<16x256xf32> -> vector<16x256xf32>
    %c0_16 = arith.constant 0 : index
    %c0_17 = arith.constant 0 : index
    %19 = vector.load %arg8[%c0_16, %c0_17] : memref<1x256xf32, #tpu.memory_space<vmem>>, vector<1x256xf32>
    %20 = vector.broadcast %19 : vector<1x256xf32> to vector<16x256xf32>
    %21 = arith.addf %18, %20 : vector<16x256xf32>
    %cst_18 = arith.constant 0.000000e+00 : f32
    %22 = vector.broadcast %cst_18 : f32 to vector<16x256xf32>
    %23 = arith.maximumf %21, %22 : vector<16x256xf32>
    %24 = arith.truncf %23 : vector<16x256xf32> to vector<16x256xbf16>
    %c0_19 = arith.constant 0 : index
    %c0_20 = arith.constant 0 : index
    %25 = vector.load %arg9[%c0_19, %c0_20] : memref<256x2048xbf16, #tpu.memory_space<vmem>>, vector<256x2048xbf16>
    %cst_21 = arith.constant dense<0.000000e+00> : vector<16x2048xf32>
    %26 = tpu.matmul %24, %25, %cst_21 {dimension_numbers = #tpu.dot_dimension_numbers<[1], [0], [0], [1], [0, 0, 1, 1], [], []>} : vector<16x256xbf16>, vector<256x2048xbf16>, vector<16x2048xf32> -> vector<16x2048xf32>
    %c0_22 = arith.constant 0 : index
    %c0_23 = arith.constant 0 : index
    %27 = vector.load %arg10[%c0_22, %c0_23] : memref<1x2048xf32, #tpu.memory_space<vmem>>, vector<1x2048xf32>
    %28 = vector.broadcast %27 : vector<1x2048xf32> to vector<16x2048xf32>
    %29 = arith.addf %26, %28 : vector<16x2048xf32>
    %30 = vector.extract_strided_slice %15 {offsets = [0, 0], sizes = [16, 128], strides = [1, 1]} : vector<16x1024xf32> to vector<16x128xf32>
    %c0_24 = arith.constant 0 : index
    %c0_25 = arith.constant 0 : index
    %c0_26 = arith.constant 0 : index
    %31 = vector.load %arg32[%c0_24, %c0_25, %c0_26] : memref<16x8x128xf32, #tpu.memory_space<vmem>>, vector<16x1x128xf32>
    %32 = vector.shape_cast %31 : vector<16x1x128xf32> to vector<16x128xf32>
    %33 = vector.shape_cast %30 : vector<16x128xf32> to vector<16x1x128xf32>
    tpu.vector_store %arg32[%c0_24, %c0_25, %c0_26], %33 {strides = array<i32>} : memref<16x8x128xf32, #tpu.memory_space<vmem>>, vector<16x1x128xf32>,
    %34 = vector.extract_strided_slice %15 {offsets = [0, 128], sizes = [16, 128], strides = [1, 1]} : vector<16x1024xf32> to vector<16x128xf32>
    %c0_27 = arith.constant 0 : index
    %c1 = arith.constant 1 : index
    %c0_28 = arith.constant 0 : index
    %35 = vector.load %arg32[%c0_27, %c1, %c0_28] : memref<16x8x128xf32, #tpu.memory_space<vmem>>, vector<16x1x128xf32>
    %36 = vector.shape_cast %35 : vector<16x1x128xf32> to vector<16x128xf32>
    %37 = vector.shape_cast %34 : vector<16x128xf32> to vector<16x1x128xf32>
    tpu.vector_store %arg32[%c0_27, %c1, %c0_28], %37 {strides = array<i32>} : memref<16x8x128xf32, #tpu.memory_space<vmem>>, vector<16x1x128xf32>,
    %38 = vector.extract_strided_slice %15 {offsets = [0, 256], sizes = [16, 128], strides = [1, 1]} : vector<16x1024xf32> to vector<16x128xf32>
    %c0_29 = arith.constant 0 : index
    %c2 = arith.constant 2 : index
    %c0_30 = arith.constant 0 : index
    %39 = vector.load %arg32[%c0_29, %c2, %c0_30] : memref<16x8x128xf32, #tpu.memory_space<vmem>>, vector<16x1x128xf32>
    %40 = vector.shape_cast %39 : vector<16x1x128xf32> to vector<16x128xf32>
    %41 = vector.shape_cast %38 : vector<16x128xf32> to vector<16x1x128xf32>
    tpu.vector_store %arg32[%c0_29, %c2, %c0_30], %41 {strides = array<i32>} : memref<16x8x128xf32, #tpu.memory_space<vmem>>, vector<16x1x128xf32>,
    %42 = vector.extract_strided_slice %15 {offsets = [0, 384], sizes = [16, 128], strides = [1, 1]} : vector<16x1024xf32> to vector<16x128xf32>
    %c0_31 = arith.constant 0 : index
    %c3 = arith.constant 3 : index
    %c0_32 = arith.constant 0 : index
    %43 = vector.load %arg32[%c0_31, %c3, %c0_32] : memref<16x8x128xf32, #tpu.memory_space<vmem>>, vector<16x1x128xf32>
    %44 = vector.shape_cast %43 : vector<16x1x128xf32> to vector<16x128xf32>
    %45 = vector.shape_cast %42 : vector<16x128xf32> to vector<16x1x128xf32>
    tpu.vector_store %arg32[%c0_31, %c3, %c0_32], %45 {strides = array<i32>} : memref<16x8x128xf32, #tpu.memory_space<vmem>>, vector<16x1x128xf32>,
    %46 = vector.extract_strided_slice %15 {offsets = [0, 512], sizes = [16, 128], strides = [1, 1]} : vector<16x1024xf32> to vector<16x128xf32>
    %c0_33 = arith.constant 0 : index
    %c4 = arith.constant 4 : index
    %c0_34 = arith.constant 0 : index
    %47 = vector.load %arg32[%c0_33, %c4, %c0_34] : memref<16x8x128xf32, #tpu.memory_space<vmem>>, vector<16x1x128xf32>
    %48 = vector.shape_cast %47 : vector<16x1x128xf32> to vector<16x128xf32>
    %49 = vector.shape_cast %46 : vector<16x128xf32> to vector<16x1x128xf32>
    tpu.vector_store %arg32[%c0_33, %c4, %c0_34], %49 {strides = array<i32>} : memref<16x8x128xf32, #tpu.memory_space<vmem>>, vector<16x1x128xf32>,
    %50 = vector.extract_strided_slice %15 {offsets = [0, 640], sizes = [16, 128], strides = [1, 1]} : vector<16x1024xf32> to vector<16x128xf32>
    %c0_35 = arith.constant 0 : index
    %c5 = arith.constant 5 : index
    %c0_36 = arith.constant 0 : index
    %51 = vector.load %arg32[%c0_35, %c5, %c0_36] : memref<16x8x128xf32, #tpu.memory_space<vmem>>, vector<16x1x128xf32>
    %52 = vector.shape_cast %51 : vector<16x1x128xf32> to vector<16x128xf32>
    %53 = vector.shape_cast %50 : vector<16x128xf32> to vector<16x1x128xf32>
    tpu.vector_store %arg32[%c0_35, %c5, %c0_36], %53 {strides = array<i32>} : memref<16x8x128xf32, #tpu.memory_space<vmem>>, vector<16x1x128xf32>,
    %54 = vector.extract_strided_slice %15 {offsets = [0, 768], sizes = [16, 128], strides = [1, 1]} : vector<16x1024xf32> to vector<16x128xf32>
    %c0_37 = arith.constant 0 : index
    %c6 = arith.constant 6 : index
    %c0_38 = arith.constant 0 : index
    %55 = vector.load %arg32[%c0_37, %c6, %c0_38] : memref<16x8x128xf32, #tpu.memory_space<vmem>>, vector<16x1x128xf32>
    %56 = vector.shape_cast %55 : vector<16x1x128xf32> to vector<16x128xf32>
    %57 = vector.shape_cast %54 : vector<16x128xf32> to vector<16x1x128xf32>
    tpu.vector_store %arg32[%c0_37, %c6, %c0_38], %57 {strides = array<i32>} : memref<16x8x128xf32, #tpu.memory_space<vmem>>, vector<16x1x128xf32>,
    %58 = vector.extract_strided_slice %15 {offsets = [0, 896], sizes = [16, 128], strides = [1, 1]} : vector<16x1024xf32> to vector<16x128xf32>
    %c0_39 = arith.constant 0 : index
    %c7 = arith.constant 7 : index
    %c0_40 = arith.constant 0 : index
    %59 = vector.load %arg32[%c0_39, %c7, %c0_40] : memref<16x8x128xf32, #tpu.memory_space<vmem>>, vector<16x1x128xf32>
    %60 = vector.shape_cast %59 : vector<16x1x128xf32> to vector<16x128xf32>
    %61 = vector.shape_cast %58 : vector<16x128xf32> to vector<16x1x128xf32>
    tpu.vector_store %arg32[%c0_39, %c7, %c0_40], %61 {strides = array<i32>} : memref<16x8x128xf32, #tpu.memory_space<vmem>>, vector<16x1x128xf32>,
    %62 = vector.extract_strided_slice %29 {offsets = [0, 0], sizes = [16, 128], strides = [1, 1]} : vector<16x2048xf32> to vector<16x128xf32>
    %c0_41 = arith.constant 0 : index
    %c0_42 = arith.constant 0 : index
    %c0_43 = arith.constant 0 : index
    %63 = vector.load %arg33[%c0_41, %c0_42, %c0_43] : memref<16x16x128xf32, #tpu.memory_space<vmem>>, vector<16x1x128xf32>
    %64 = vector.shape_cast %63 : vector<16x1x128xf32> to vector<16x128xf32>
    %65 = vector.shape_cast %62 : vector<16x128xf32> to vector<16x1x128xf32>
    tpu.vector_store %arg33[%c0_41, %c0_42, %c0_43], %65 {strides = array<i32>} : memref<16x16x128xf32, #tpu.memory_space<vmem>>, vector<16x1x128xf32>,
    %66 = vector.extract_strided_slice %29 {offsets = [0, 128], sizes = [16, 128], strides = [1, 1]} : vector<16x2048xf32> to vector<16x128xf32>
    %c0_44 = arith.constant 0 : index
    %c1_45 = arith.constant 1 : index
    %c0_46 = arith.constant 0 : index
    %67 = vector.load %arg33[%c0_44, %c1_45, %c0_46] : memref<16x16x128xf32, #tpu.memory_space<vmem>>, vector<16x1x128xf32>
    %68 = vector.shape_cast %67 : vector<16x1x128xf32> to vector<16x128xf32>
    %69 = vector.shape_cast %66 : vector<16x128xf32> to vector<16x1x128xf32>
    tpu.vector_store %arg33[%c0_44, %c1_45, %c0_46], %69 {strides = array<i32>} : memref<16x16x128xf32, #tpu.memory_space<vmem>>, vector<16x1x128xf32>,
    %70 = vector.extract_strided_slice %29 {offsets = [0, 256], sizes = [16, 128], strides = [1, 1]} : vector<16x2048xf32> to vector<16x128xf32>
    %c0_47 = arith.constant 0 : index
    %c2_48 = arith.constant 2 : index
    %c0_49 = arith.constant 0 : index
    %71 = vector.load %arg33[%c0_47, %c2_48, %c0_49] : memref<16x16x128xf32, #tpu.memory_space<vmem>>, vector<16x1x128xf32>
    %72 = vector.shape_cast %71 : vector<16x1x128xf32> to vector<16x128xf32>
    %73 = vector.shape_cast %70 : vector<16x128xf32> to vector<16x1x128xf32>
    tpu.vector_store %arg33[%c0_47, %c2_48, %c0_49], %73 {strides = array<i32>} : memref<16x16x128xf32, #tpu.memory_space<vmem>>, vector<16x1x128xf32>,
    %74 = vector.extract_strided_slice %29 {offsets = [0, 384], sizes = [16, 128], strides = [1, 1]} : vector<16x2048xf32> to vector<16x128xf32>
    %c0_50 = arith.constant 0 : index
    %c3_51 = arith.constant 3 : index
    %c0_52 = arith.constant 0 : index
    %75 = vector.load %arg33[%c0_50, %c3_51, %c0_52] : memref<16x16x128xf32, #tpu.memory_space<vmem>>, vector<16x1x128xf32>
    %76 = vector.shape_cast %75 : vector<16x1x128xf32> to vector<16x128xf32>
    %77 = vector.shape_cast %74 : vector<16x128xf32> to vector<16x1x128xf32>
    tpu.vector_store %arg33[%c0_50, %c3_51, %c0_52], %77 {strides = array<i32>} : memref<16x16x128xf32, #tpu.memory_space<vmem>>, vector<16x1x128xf32>,
    %78 = vector.extract_strided_slice %29 {offsets = [0, 512], sizes = [16, 128], strides = [1, 1]} : vector<16x2048xf32> to vector<16x128xf32>
    %c0_53 = arith.constant 0 : index
    %c4_54 = arith.constant 4 : index
    %c0_55 = arith.constant 0 : index
    %79 = vector.load %arg33[%c0_53, %c4_54, %c0_55] : memref<16x16x128xf32, #tpu.memory_space<vmem>>, vector<16x1x128xf32>
    %80 = vector.shape_cast %79 : vector<16x1x128xf32> to vector<16x128xf32>
    %81 = vector.shape_cast %78 : vector<16x128xf32> to vector<16x1x128xf32>
    tpu.vector_store %arg33[%c0_53, %c4_54, %c0_55], %81 {strides = array<i32>} : memref<16x16x128xf32, #tpu.memory_space<vmem>>, vector<16x1x128xf32>,
    %82 = vector.extract_strided_slice %29 {offsets = [0, 640], sizes = [16, 128], strides = [1, 1]} : vector<16x2048xf32> to vector<16x128xf32>
    %c0_56 = arith.constant 0 : index
    %c5_57 = arith.constant 5 : index
    %c0_58 = arith.constant 0 : index
    %83 = vector.load %arg33[%c0_56, %c5_57, %c0_58] : memref<16x16x128xf32, #tpu.memory_space<vmem>>, vector<16x1x128xf32>
    %84 = vector.shape_cast %83 : vector<16x1x128xf32> to vector<16x128xf32>
    %85 = vector.shape_cast %82 : vector<16x128xf32> to vector<16x1x128xf32>
    tpu.vector_store %arg33[%c0_56, %c5_57, %c0_58], %85 {strides = array<i32>} : memref<16x16x128xf32, #tpu.memory_space<vmem>>, vector<16x1x128xf32>,
    %86 = vector.extract_strided_slice %29 {offsets = [0, 768], sizes = [16, 128], strides = [1, 1]} : vector<16x2048xf32> to vector<16x128xf32>
    %c0_59 = arith.constant 0 : index
    %c6_60 = arith.constant 6 : index
    %c0_61 = arith.constant 0 : index
    %87 = vector.load %arg33[%c0_59, %c6_60, %c0_61] : memref<16x16x128xf32, #tpu.memory_space<vmem>>, vector<16x1x128xf32>
    %88 = vector.shape_cast %87 : vector<16x1x128xf32> to vector<16x128xf32>
    %89 = vector.shape_cast %86 : vector<16x128xf32> to vector<16x1x128xf32>
    tpu.vector_store %arg33[%c0_59, %c6_60, %c0_61], %89 {strides = array<i32>} : memref<16x16x128xf32, #tpu.memory_space<vmem>>, vector<16x1x128xf32>,
    %90 = vector.extract_strided_slice %29 {offsets = [0, 896], sizes = [16, 128], strides = [1, 1]} : vector<16x2048xf32> to vector<16x128xf32>
    %c0_62 = arith.constant 0 : index
    %c7_63 = arith.constant 7 : index
    %c0_64 = arith.constant 0 : index
    %91 = vector.load %arg33[%c0_62, %c7_63, %c0_64] : memref<16x16x128xf32, #tpu.memory_space<vmem>>, vector<16x1x128xf32>
    %92 = vector.shape_cast %91 : vector<16x1x128xf32> to vector<16x128xf32>
    %93 = vector.shape_cast %90 : vector<16x128xf32> to vector<16x1x128xf32>
    tpu.vector_store %arg33[%c0_62, %c7_63, %c0_64], %93 {strides = array<i32>} : memref<16x16x128xf32, #tpu.memory_space<vmem>>, vector<16x1x128xf32>,
    %94 = vector.extract_strided_slice %29 {offsets = [0, 1024], sizes = [16, 128], strides = [1, 1]} : vector<16x2048xf32> to vector<16x128xf32>
    %c0_65 = arith.constant 0 : index
    %c8 = arith.constant 8 : index
    %c0_66 = arith.constant 0 : index
    %95 = vector.load %arg33[%c0_65, %c8, %c0_66] : memref<16x16x128xf32, #tpu.memory_space<vmem>>, vector<16x1x128xf32>
    %96 = vector.shape_cast %95 : vector<16x1x128xf32> to vector<16x128xf32>
    %97 = vector.shape_cast %94 : vector<16x128xf32> to vector<16x1x128xf32>
    tpu.vector_store %arg33[%c0_65, %c8, %c0_66], %97 {strides = array<i32>} : memref<16x16x128xf32, #tpu.memory_space<vmem>>, vector<16x1x128xf32>,
    %98 = vector.extract_strided_slice %29 {offsets = [0, 1152], sizes = [16, 128], strides = [1, 1]} : vector<16x2048xf32> to vector<16x128xf32>
    %c0_67 = arith.constant 0 : index
    %c9 = arith.constant 9 : index
    %c0_68 = arith.constant 0 : index
    %99 = vector.load %arg33[%c0_67, %c9, %c0_68] : memref<16x16x128xf32, #tpu.memory_space<vmem>>, vector<16x1x128xf32>
    %100 = vector.shape_cast %99 : vector<16x1x128xf32> to vector<16x128xf32>
    %101 = vector.shape_cast %98 : vector<16x128xf32> to vector<16x1x128xf32>
    tpu.vector_store %arg33[%c0_67, %c9, %c0_68], %101 {strides = array<i32>} : memref<16x16x128xf32, #tpu.memory_space<vmem>>, vector<16x1x128xf32>,
    %102 = vector.extract_strided_slice %29 {offsets = [0, 1280], sizes = [16, 128], strides = [1, 1]} : vector<16x2048xf32> to vector<16x128xf32>
    %c0_69 = arith.constant 0 : index
    %c10 = arith.constant 10 : index
    %c0_70 = arith.constant 0 : index
    %103 = vector.load %arg33[%c0_69, %c10, %c0_70] : memref<16x16x128xf32, #tpu.memory_space<vmem>>, vector<16x1x128xf32>
    %104 = vector.shape_cast %103 : vector<16x1x128xf32> to vector<16x128xf32>
    %105 = vector.shape_cast %102 : vector<16x128xf32> to vector<16x1x128xf32>
    tpu.vector_store %arg33[%c0_69, %c10, %c0_70], %105 {strides = array<i32>} : memref<16x16x128xf32, #tpu.memory_space<vmem>>, vector<16x1x128xf32>,
    %106 = vector.extract_strided_slice %29 {offsets = [0, 1408], sizes = [16, 128], strides = [1, 1]} : vector<16x2048xf32> to vector<16x128xf32>
    %c0_71 = arith.constant 0 : index
    %c11 = arith.constant 11 : index
    %c0_72 = arith.constant 0 : index
    %107 = vector.load %arg33[%c0_71, %c11, %c0_72] : memref<16x16x128xf32, #tpu.memory_space<vmem>>, vector<16x1x128xf32>
    %108 = vector.shape_cast %107 : vector<16x1x128xf32> to vector<16x128xf32>
    %109 = vector.shape_cast %106 : vector<16x128xf32> to vector<16x1x128xf32>
    tpu.vector_store %arg33[%c0_71, %c11, %c0_72], %109 {strides = array<i32>} : memref<16x16x128xf32, #tpu.memory_space<vmem>>, vector<16x1x128xf32>,
    %110 = vector.extract_strided_slice %29 {offsets = [0, 1536], sizes = [16, 128], strides = [1, 1]} : vector<16x2048xf32> to vector<16x128xf32>
    %c0_73 = arith.constant 0 : index
    %c12 = arith.constant 12 : index
    %c0_74 = arith.constant 0 : index
    %111 = vector.load %arg33[%c0_73, %c12, %c0_74] : memref<16x16x128xf32, #tpu.memory_space<vmem>>, vector<16x1x128xf32>
    %112 = vector.shape_cast %111 : vector<16x1x128xf32> to vector<16x128xf32>
    %113 = vector.shape_cast %110 : vector<16x128xf32> to vector<16x1x128xf32>
    tpu.vector_store %arg33[%c0_73, %c12, %c0_74], %113 {strides = array<i32>} : memref<16x16x128xf32, #tpu.memory_space<vmem>>, vector<16x1x128xf32>,
    %114 = vector.extract_strided_slice %29 {offsets = [0, 1664], sizes = [16, 128], strides = [1, 1]} : vector<16x2048xf32> to vector<16x128xf32>
    %c0_75 = arith.constant 0 : index
    %c13 = arith.constant 13 : index
    %c0_76 = arith.constant 0 : index
    %115 = vector.load %arg33[%c0_75, %c13, %c0_76] : memref<16x16x128xf32, #tpu.memory_space<vmem>>, vector<16x1x128xf32>
    %116 = vector.shape_cast %115 : vector<16x1x128xf32> to vector<16x128xf32>
    %117 = vector.shape_cast %114 : vector<16x128xf32> to vector<16x1x128xf32>
    tpu.vector_store %arg33[%c0_75, %c13, %c0_76], %117 {strides = array<i32>} : memref<16x16x128xf32, #tpu.memory_space<vmem>>, vector<16x1x128xf32>,
    %118 = vector.extract_strided_slice %29 {offsets = [0, 1792], sizes = [16, 128], strides = [1, 1]} : vector<16x2048xf32> to vector<16x128xf32>
    %c0_77 = arith.constant 0 : index
    %c14 = arith.constant 14 : index
    %c0_78 = arith.constant 0 : index
    %119 = vector.load %arg33[%c0_77, %c14, %c0_78] : memref<16x16x128xf32, #tpu.memory_space<vmem>>, vector<16x1x128xf32>
    %120 = vector.shape_cast %119 : vector<16x1x128xf32> to vector<16x128xf32>
    %121 = vector.shape_cast %118 : vector<16x128xf32> to vector<16x1x128xf32>
    tpu.vector_store %arg33[%c0_77, %c14, %c0_78], %121 {strides = array<i32>} : memref<16x16x128xf32, #tpu.memory_space<vmem>>, vector<16x1x128xf32>,
    %122 = vector.extract_strided_slice %29 {offsets = [0, 1920], sizes = [16, 128], strides = [1, 1]} : vector<16x2048xf32> to vector<16x128xf32>
    %c0_79 = arith.constant 0 : index
    %c15 = arith.constant 15 : index
    %c0_80 = arith.constant 0 : index
    %123 = vector.load %arg33[%c0_79, %c15, %c0_80] : memref<16x16x128xf32, #tpu.memory_space<vmem>>, vector<16x1x128xf32>
    %124 = vector.shape_cast %123 : vector<16x1x128xf32> to vector<16x128xf32>
    %125 = vector.shape_cast %122 : vector<16x128xf32> to vector<16x1x128xf32>
    tpu.vector_store %arg33[%c0_79, %c15, %c0_80], %125 {strides = array<i32>} : memref<16x16x128xf32, #tpu.memory_space<vmem>>, vector<16x1x128xf32>,
    %c0_81 = arith.constant 0 : index
    %c0_82 = arith.constant 0 : index
    %c0_83 = arith.constant 0 : index
    %126 = vector.load %arg32[%c0_81, %c0_82, %c0_83] : memref<16x8x128xf32, #tpu.memory_space<vmem>>, vector<16x8x128xf32>
    %127 = arith.truncf %126 : vector<16x8x128xf32> to vector<16x8x128xbf16>
    %c0_84 = arith.constant 0 : index
    %c0_85 = arith.constant 0 : index
    %c0_86 = arith.constant 0 : index
    %128 = vector.load %arg33[%c0_84, %c0_85, %c0_86] : memref<16x16x128xf32, #tpu.memory_space<vmem>>, vector<16x16x128xf32>
    %129 = arith.truncf %128 : vector<16x16x128xf32> to vector<16x16x128xbf16>
    "tpu.trace_start"() <{level = 10 : i32, message = "nic,njc->nij"}> : () -> ()
    %cst_87 = arith.constant dense<0.000000e+00> : vector<16x8x16xf32>
    %130 = tpu.matmul %127, %129, %cst_87 {dimension_numbers = #tpu.dot_dimension_numbers<[2], [2], [1], [1], [0, 0, 0, 1, 1, 1], [0], [0]>} : vector<16x8x128xbf16>, vector<16x16x128xbf16>, vector<16x8x16xf32> -> vector<16x8x16xf32>
    "tpu.trace_stop"() : () -> ()
    %cst_88 = arith.constant 0.000000e+00 : f32
    %131 = vector.broadcast %cst_88 : f32 to vector<16x8x16xf32>
    %132 = arith.maximumf %130, %131 : vector<16x8x16xf32>
    %133 = vector.extract_strided_slice %132 {offsets = [0, 0, 0], sizes = [16, 1, 16], strides = [1, 1, 1]} : vector<16x8x16xf32> to vector<16x1x16xf32>
    %134 = vector.shape_cast %133 : vector<16x1x16xf32> to vector<16x16xf32>
    %c0_89 = arith.constant 0 : index
    %c0_90 = arith.constant 0 : index
    %135 = vector.load %arg34[%c0_89, %c0_90] : memref<16x128xf32, #tpu.memory_space<vmem>>, vector<16x16xf32>
    tpu.vector_store %arg34[%c0_89, %c0_90], %134 {strides = array<i32>} : memref<16x128xf32, #tpu.memory_space<vmem>>, vector<16x16xf32>,
    %136 = vector.extract_strided_slice %132 {offsets = [0, 1, 0], sizes = [16, 1, 16], strides = [1, 1, 1]} : vector<16x8x16xf32> to vector<16x1x16xf32>
    %137 = vector.shape_cast %136 : vector<16x1x16xf32> to vector<16x16xf32>
    %c0_91 = arith.constant 0 : index
    %c16 = arith.constant 16 : index
    %138 = vector.load %arg34[%c0_91, %c16] : memref<16x128xf32, #tpu.memory_space<vmem>>, vector<16x16xf32>
    tpu.vector_store %arg34[%c0_91, %c16], %137 {strides = array<i32>} : memref<16x128xf32, #tpu.memory_space<vmem>>, vector<16x16xf32>,
    %139 = vector.extract_strided_slice %132 {offsets = [0, 2, 0], sizes = [16, 1, 16], strides = [1, 1, 1]} : vector<16x8x16xf32> to vector<16x1x16xf32>
    %140 = vector.shape_cast %139 : vector<16x1x16xf32> to vector<16x16xf32>
    %c0_92 = arith.constant 0 : index
    %c32 = arith.constant 32 : index
    %141 = vector.load %arg34[%c0_92, %c32] : memref<16x128xf32, #tpu.memory_space<vmem>>, vector<16x16xf32>
    tpu.vector_store %arg34[%c0_92, %c32], %140 {strides = array<i32>} : memref<16x128xf32, #tpu.memory_space<vmem>>, vector<16x16xf32>,
    %142 = vector.extract_strided_slice %132 {offsets = [0, 3, 0], sizes = [16, 1, 16], strides = [1, 1, 1]} : vector<16x8x16xf32> to vector<16x1x16xf32>
    %143 = vector.shape_cast %142 : vector<16x1x16xf32> to vector<16x16xf32>
    %c0_93 = arith.constant 0 : index
    %c48 = arith.constant 48 : index
    %144 = vector.load %arg34[%c0_93, %c48] : memref<16x128xf32, #tpu.memory_space<vmem>>, vector<16x16xf32>
    tpu.vector_store %arg34[%c0_93, %c48], %143 {strides = array<i32>} : memref<16x128xf32, #tpu.memory_space<vmem>>, vector<16x16xf32>,
    %145 = vector.extract_strided_slice %132 {offsets = [0, 4, 0], sizes = [16, 1, 16], strides = [1, 1, 1]} : vector<16x8x16xf32> to vector<16x1x16xf32>
    %146 = vector.shape_cast %145 : vector<16x1x16xf32> to vector<16x16xf32>
    %c0_94 = arith.constant 0 : index
    %c64 = arith.constant 64 : index
    %147 = vector.load %arg34[%c0_94, %c64] : memref<16x128xf32, #tpu.memory_space<vmem>>, vector<16x16xf32>
    tpu.vector_store %arg34[%c0_94, %c64], %146 {strides = array<i32>} : memref<16x128xf32, #tpu.memory_space<vmem>>, vector<16x16xf32>,
    %148 = vector.extract_strided_slice %132 {offsets = [0, 5, 0], sizes = [16, 1, 16], strides = [1, 1, 1]} : vector<16x8x16xf32> to vector<16x1x16xf32>
    %149 = vector.shape_cast %148 : vector<16x1x16xf32> to vector<16x16xf32>
    %c0_95 = arith.constant 0 : index
    %c80 = arith.constant 80 : index
    %150 = vector.load %arg34[%c0_95, %c80] : memref<16x128xf32, #tpu.memory_space<vmem>>, vector<16x16xf32>
    tpu.vector_store %arg34[%c0_95, %c80], %149 {strides = array<i32>} : memref<16x128xf32, #tpu.memory_space<vmem>>, vector<16x16xf32>,
    %151 = vector.extract_strided_slice %132 {offsets = [0, 6, 0], sizes = [16, 1, 16], strides = [1, 1, 1]} : vector<16x8x16xf32> to vector<16x1x16xf32>
    %152 = vector.shape_cast %151 : vector<16x1x16xf32> to vector<16x16xf32>
    %c0_96 = arith.constant 0 : index
    %c96 = arith.constant 96 : index
    %153 = vector.load %arg34[%c0_96, %c96] : memref<16x128xf32, #tpu.memory_space<vmem>>, vector<16x16xf32>
    tpu.vector_store %arg34[%c0_96, %c96], %152 {strides = array<i32>} : memref<16x128xf32, #tpu.memory_space<vmem>>, vector<16x16xf32>,
    %154 = vector.extract_strided_slice %132 {offsets = [0, 7, 0], sizes = [16, 1, 16], strides = [1, 1, 1]} : vector<16x8x16xf32> to vector<16x1x16xf32>
    %155 = vector.shape_cast %154 : vector<16x1x16xf32> to vector<16x16xf32>
    %c0_97 = arith.constant 0 : index
    %c112 = arith.constant 112 : index
    %156 = vector.load %arg34[%c0_97, %c112] : memref<16x128xf32, #tpu.memory_space<vmem>>, vector<16x16xf32>
    tpu.vector_store %arg34[%c0_97, %c112], %155 {strides = array<i32>} : memref<16x128xf32, #tpu.memory_space<vmem>>, vector<16x16xf32>,
    %c0_98 = arith.constant 0 : index
    %c0_99 = arith.constant 0 : index
    %157 = vector.load %arg34[%c0_98, %c0_99] : memref<16x128xf32, #tpu.memory_space<vmem>>, vector<16x128xf32>
    %158 = arith.truncf %157 : vector<16x128xf32> to vector<16x128xbf16>
    %c0_100 = arith.constant 0 : index
    %c0_101 = arith.constant 0 : index
    %159 = vector.load %arg11[%c0_100, %c0_101] : memref<128x128xbf16, #tpu.memory_space<vmem>>, vector<128x128xbf16>
    %cst_102 = arith.constant dense<0.000000e+00> : vector<16x128xf32>
    %160 = tpu.matmul %158, %159, %cst_102 {dimension_numbers = #tpu.dot_dimension_numbers<[1], [0], [0], [1], [0, 0, 1, 1], [], []>} : vector<16x128xbf16>, vector<128x128xbf16>, vector<16x128xf32> -> vector<16x128xf32>
    %c0_103 = arith.constant 0 : index
    %c0_104 = arith.constant 0 : index
    %161 = vector.load %arg12[%c0_103, %c0_104] : memref<1x128xf32, #tpu.memory_space<vmem>>, vector<1x128xf32>
    %162 = vector.broadcast %161 : vector<1x128xf32> to vector<16x128xf32>
    %163 = arith.addf %160, %162 : vector<16x128xf32>
    %c0_105 = arith.constant 0 : index
    %c0_106 = arith.constant 0 : index
    %164 = vector.load %arg13[%c0_105, %c0_106] : memref<1x128xf32, #tpu.memory_space<vmem>>, vector<1x128xf32>
    %c0_107 = arith.constant 0 : index
    %c0_108 = arith.constant 0 : index
    %165 = vector.load %arg14[%c0_107, %c0_108] : memref<1x128xf32, #tpu.memory_space<vmem>>, vector<1x128xf32>
    %cst_109 = arith.constant dense<0.000000e+00> : vector<16xf32>
    %166 = vector.multi_reduction <add>, %163, %cst_109 [1] : vector<16x128xf32> to vector<16xf32>
    %167 = vector.shape_cast %166 : vector<16xf32> to vector<16x1xf32>
    %cst_110 = arith.constant 1.280000e+02 : f32
    %168 = vector.broadcast %cst_110 : f32 to vector<16x1xf32>
    %169 = arith.divf %167, %168 : vector<16x1xf32>
    %170 = vector.broadcast %169 : vector<16x1xf32> to vector<16x128xf32>
    %171 = arith.subf %163, %170 : vector<16x128xf32>
    %172 = arith.mulf %171, %171 : vector<16x128xf32>
    %cst_111 = arith.constant dense<0.000000e+00> : vector<16xf32>
    %173 = vector.multi_reduction <add>, %172, %cst_111 [1] : vector<16x128xf32> to vector<16xf32>
    %174 = vector.shape_cast %173 : vector<16xf32> to vector<16x1xf32>
    %cst_112 = arith.constant 1.280000e+02 : f32
    %175 = vector.broadcast %cst_112 : f32 to vector<16x1xf32>
    %176 = arith.divf %174, %175 : vector<16x1xf32>
    %177 = vector.broadcast %169 : vector<16x1xf32> to vector<16x128xf32>
    %178 = arith.subf %163, %177 : vector<16x128xf32>
    %cst_113 = arith.constant 9.99999974E-6 : f32
    %179 = vector.broadcast %cst_113 : f32 to vector<16x1xf32>
    %180 = arith.addf %176, %179 : vector<16x1xf32>
    %181 = math.rsqrt %180 : vector<16x1xf32>
    %182 = vector.broadcast %181 : vector<16x1xf32> to vector<16x128xf32>
    %183 = arith.mulf %178, %182 : vector<16x128xf32>
    %184 = vector.broadcast %164 : vector<1x128xf32> to vector<16x128xf32>
    %185 = arith.mulf %183, %184 : vector<16x128xf32>
    %186 = vector.broadcast %165 : vector<1x128xf32> to vector<16x128xf32>
    %187 = arith.addf %185, %186 : vector<16x128xf32>
    %188 = arith.truncf %187 : vector<16x128xf32> to vector<16x128xbf16>
    %c0_114 = arith.constant 0 : index
    %c0_115 = arith.constant 0 : index
    %189 = vector.load %arg15[%c0_114, %c0_115] : memref<128x128xbf16, #tpu.memory_space<vmem>>, vector<128x128xbf16>
    %cst_116 = arith.constant dense<0.000000e+00> : vector<16x128xf32>
    %190 = tpu.matmul %188, %189, %cst_116 {dimension_numbers = #tpu.dot_dimension_numbers<[1], [0], [0], [1], [0, 0, 1, 1], [], []>} : vector<16x128xbf16>, vector<128x128xbf16>, vector<16x128xf32> -> vector<16x128xf32>
    %c0_117 = arith.constant 0 : index
    %c0_118 = arith.constant 0 : index
    %191 = vector.load %arg16[%c0_117, %c0_118] : memref<1x128xf32, #tpu.memory_space<vmem>>, vector<1x128xf32>
    %192 = vector.broadcast %191 : vector<1x128xf32> to vector<16x128xf32>
    %193 = arith.addf %190, %192 : vector<16x128xf32>
    %194 = arith.truncf %187 : vector<16x128xf32> to vector<16x128xbf16>
    %c0_119 = arith.constant 0 : index
    %c0_120 = arith.constant 0 : index
    %195 = vector.load %arg17[%c0_119, %c0_120] : memref<128x128xbf16, #tpu.memory_space<vmem>>, vector<128x128xbf16>
    %cst_121 = arith.constant dense<0.000000e+00> : vector<16x128xf32>
    %196 = tpu.matmul %194, %195, %cst_121 {dimension_numbers = #tpu.dot_dimension_numbers<[1], [0], [0], [1], [0, 0, 1, 1], [], []>} : vector<16x128xbf16>, vector<128x128xbf16>, vector<16x128xf32> -> vector<16x128xf32>
    %c0_122 = arith.constant 0 : index
    %c0_123 = arith.constant 0 : index
    %197 = vector.load %arg18[%c0_122, %c0_123] : memref<1x128xf32, #tpu.memory_space<vmem>>, vector<1x128xf32>
    %198 = vector.broadcast %197 : vector<1x128xf32> to vector<16x128xf32>
    %199 = arith.addf %196, %198 : vector<16x128xf32>
    %200 = arith.truncf %187 : vector<16x128xf32> to vector<16x128xbf16>
    %c0_124 = arith.constant 0 : index
    %c0_125 = arith.constant 0 : index
    %201 = vector.load %arg19[%c0_124, %c0_125] : memref<128x128xbf16, #tpu.memory_space<vmem>>, vector<128x128xbf16>
    %cst_126 = arith.constant dense<0.000000e+00> : vector<16x128xf32>
    %202 = tpu.matmul %200, %201, %cst_126 {dimension_numbers = #tpu.dot_dimension_numbers<[1], [0], [0], [1], [0, 0, 1, 1], [], []>} : vector<16x128xbf16>, vector<128x128xbf16>, vector<16x128xf32> -> vector<16x128xf32>
    %c0_127 = arith.constant 0 : index
    %c0_128 = arith.constant 0 : index
    %203 = vector.load %arg20[%c0_127, %c0_128] : memref<1x128xf32, #tpu.memory_space<vmem>>, vector<1x128xf32>
    %204 = vector.broadcast %203 : vector<1x128xf32> to vector<16x128xf32>
    %205 = arith.addf %202, %204 : vector<16x128xf32>
    %206 = vector.extract_strided_slice %193 {offsets = [0, 0], sizes = [8, 16], strides = [1, 1]} : vector<16x128xf32> to vector<8x16xf32>
    %c0_129 = arith.constant 0 : index
    %c0_130 = arith.constant 0 : index
    %c0_131 = arith.constant 0 : index
    %207 = vector.load %arg35[%c0_129, %c0_130, %c0_131] : memref<16x8x16xf32, #tpu.memory_space<vmem>>, vector<1x8x16xf32>
    %208 = vector.shape_cast %207 : vector<1x8x16xf32> to vector<8x16xf32>
    %209 = vector.shape_cast %206 : vector<8x16xf32> to vector<1x8x16xf32>
    tpu.vector_store %arg35[%c0_129, %c0_130, %c0_131], %209 {strides = array<i32>} : memref<16x8x16xf32, #tpu.memory_space<vmem>>, vector<1x8x16xf32>,
    %210 = vector.extract_strided_slice %199 {offsets = [0, 0], sizes = [8, 16], strides = [1, 1]} : vector<16x128xf32> to vector<8x16xf32>
    %c0_132 = arith.constant 0 : index
    %c0_133 = arith.constant 0 : index
    %c0_134 = arith.constant 0 : index
    %211 = vector.load %arg36[%c0_132, %c0_133, %c0_134] : memref<16x8x16xf32, #tpu.memory_space<vmem>>, vector<1x8x16xf32>
    %212 = vector.shape_cast %211 : vector<1x8x16xf32> to vector<8x16xf32>
    %213 = vector.shape_cast %210 : vector<8x16xf32> to vector<1x8x16xf32>
    tpu.vector_store %arg36[%c0_132, %c0_133, %c0_134], %213 {strides = array<i32>} : memref<16x8x16xf32, #tpu.memory_space<vmem>>, vector<1x8x16xf32>,
    %214 = vector.extract_strided_slice %205 {offsets = [0, 0], sizes = [8, 16], strides = [1, 1]} : vector<16x128xf32> to vector<8x16xf32>
    %c0_135 = arith.constant 0 : index
    %c0_136 = arith.constant 0 : index
    %c0_137 = arith.constant 0 : index
    %215 = vector.load %arg37[%c0_135, %c0_136, %c0_137] : memref<16x8x16xf32, #tpu.memory_space<vmem>>, vector<1x8x16xf32>
    %216 = vector.shape_cast %215 : vector<1x8x16xf32> to vector<8x16xf32>
    %217 = vector.shape_cast %214 : vector<8x16xf32> to vector<1x8x16xf32>
    tpu.vector_store %arg37[%c0_135, %c0_136, %c0_137], %217 {strides = array<i32>} : memref<16x8x16xf32, #tpu.memory_space<vmem>>, vector<1x8x16xf32>,
    %218 = vector.extract_strided_slice %193 {offsets = [0, 16], sizes = [8, 16], strides = [1, 1]} : vector<16x128xf32> to vector<8x16xf32>
    %c1_138 = arith.constant 1 : index
    %c0_139 = arith.constant 0 : index
    %c0_140 = arith.constant 0 : index
    %219 = vector.load %arg35[%c1_138, %c0_139, %c0_140] : memref<16x8x16xf32, #tpu.memory_space<vmem>>, vector<1x8x16xf32>
    %220 = vector.shape_cast %219 : vector<1x8x16xf32> to vector<8x16xf32>
    %221 = vector.shape_cast %218 : vector<8x16xf32> to vector<1x8x16xf32>
    tpu.vector_store %arg35[%c1_138, %c0_139, %c0_140], %221 {strides = array<i32>} : memref<16x8x16xf32, #tpu.memory_space<vmem>>, vector<1x8x16xf32>,
    %222 = vector.extract_strided_slice %199 {offsets = [0, 16], sizes = [8, 16], strides = [1, 1]} : vector<16x128xf32> to vector<8x16xf32>
    %c1_141 = arith.constant 1 : index
    %c0_142 = arith.constant 0 : index
    %c0_143 = arith.constant 0 : index
    %223 = vector.load %arg36[%c1_141, %c0_142, %c0_143] : memref<16x8x16xf32, #tpu.memory_space<vmem>>, vector<1x8x16xf32>
    %224 = vector.shape_cast %223 : vector<1x8x16xf32> to vector<8x16xf32>
    %225 = vector.shape_cast %222 : vector<8x16xf32> to vector<1x8x16xf32>
    tpu.vector_store %arg36[%c1_141, %c0_142, %c0_143], %225 {strides = array<i32>} : memref<16x8x16xf32, #tpu.memory_space<vmem>>, vector<1x8x16xf32>,
    %226 = vector.extract_strided_slice %205 {offsets = [0, 16], sizes = [8, 16], strides = [1, 1]} : vector<16x128xf32> to vector<8x16xf32>
    %c1_144 = arith.constant 1 : index
    %c0_145 = arith.constant 0 : index
    %c0_146 = arith.constant 0 : index
    %227 = vector.load %arg37[%c1_144, %c0_145, %c0_146] : memref<16x8x16xf32, #tpu.memory_space<vmem>>, vector<1x8x16xf32>
    %228 = vector.shape_cast %227 : vector<1x8x16xf32> to vector<8x16xf32>
    %229 = vector.shape_cast %226 : vector<8x16xf32> to vector<1x8x16xf32>
    tpu.vector_store %arg37[%c1_144, %c0_145, %c0_146], %229 {strides = array<i32>} : memref<16x8x16xf32, #tpu.memory_space<vmem>>, vector<1x8x16xf32>,
    %230 = vector.extract_strided_slice %193 {offsets = [0, 32], sizes = [8, 16], strides = [1, 1]} : vector<16x128xf32> to vector<8x16xf32>
    %c2_147 = arith.constant 2 : index
    %c0_148 = arith.constant 0 : index
    %c0_149 = arith.constant 0 : index
    %231 = vector.load %arg35[%c2_147, %c0_148, %c0_149] : memref<16x8x16xf32, #tpu.memory_space<vmem>>, vector<1x8x16xf32>
    %232 = vector.shape_cast %231 : vector<1x8x16xf32> to vector<8x16xf32>
    %233 = vector.shape_cast %230 : vector<8x16xf32> to vector<1x8x16xf32>
    tpu.vector_store %arg35[%c2_147, %c0_148, %c0_149], %233 {strides = array<i32>} : memref<16x8x16xf32, #tpu.memory_space<vmem>>, vector<1x8x16xf32>,
    %234 = vector.extract_strided_slice %199 {offsets = [0, 32], sizes = [8, 16], strides = [1, 1]} : vector<16x128xf32> to vector<8x16xf32>
    %c2_150 = arith.constant 2 : index
    %c0_151 = arith.constant 0 : index
    %c0_152 = arith.constant 0 : index
    %235 = vector.load %arg36[%c2_150, %c0_151, %c0_152] : memref<16x8x16xf32, #tpu.memory_space<vmem>>, vector<1x8x16xf32>
    %236 = vector.shape_cast %235 : vector<1x8x16xf32> to vector<8x16xf32>
    %237 = vector.shape_cast %234 : vector<8x16xf32> to vector<1x8x16xf32>
    tpu.vector_store %arg36[%c2_150, %c0_151, %c0_152], %237 {strides = array<i32>} : memref<16x8x16xf32, #tpu.memory_space<vmem>>, vector<1x8x16xf32>,
    %238 = vector.extract_strided_slice %205 {offsets = [0, 32], sizes = [8, 16], strides = [1, 1]} : vector<16x128xf32> to vector<8x16xf32>
    %c2_153 = arith.constant 2 : index
    %c0_154 = arith.constant 0 : index
    %c0_155 = arith.constant 0 : index
    %239 = vector.load %arg37[%c2_153, %c0_154, %c0_155] : memref<16x8x16xf32, #tpu.memory_space<vmem>>, vector<1x8x16xf32>
    %240 = vector.shape_cast %239 : vector<1x8x16xf32> to vector<8x16xf32>
    %241 = vector.shape_cast %238 : vector<8x16xf32> to vector<1x8x16xf32>
    tpu.vector_store %arg37[%c2_153, %c0_154, %c0_155], %241 {strides = array<i32>} : memref<16x8x16xf32, #tpu.memory_space<vmem>>, vector<1x8x16xf32>,
    %242 = vector.extract_strided_slice %193 {offsets = [0, 48], sizes = [8, 16], strides = [1, 1]} : vector<16x128xf32> to vector<8x16xf32>
    %c3_156 = arith.constant 3 : index
    %c0_157 = arith.constant 0 : index
    %c0_158 = arith.constant 0 : index
    %243 = vector.load %arg35[%c3_156, %c0_157, %c0_158] : memref<16x8x16xf32, #tpu.memory_space<vmem>>, vector<1x8x16xf32>
    %244 = vector.shape_cast %243 : vector<1x8x16xf32> to vector<8x16xf32>
    %245 = vector.shape_cast %242 : vector<8x16xf32> to vector<1x8x16xf32>
    tpu.vector_store %arg35[%c3_156, %c0_157, %c0_158], %245 {strides = array<i32>} : memref<16x8x16xf32, #tpu.memory_space<vmem>>, vector<1x8x16xf32>,
    %246 = vector.extract_strided_slice %199 {offsets = [0, 48], sizes = [8, 16], strides = [1, 1]} : vector<16x128xf32> to vector<8x16xf32>
    %c3_159 = arith.constant 3 : index
    %c0_160 = arith.constant 0 : index
    %c0_161 = arith.constant 0 : index
    %247 = vector.load %arg36[%c3_159, %c0_160, %c0_161] : memref<16x8x16xf32, #tpu.memory_space<vmem>>, vector<1x8x16xf32>
    %248 = vector.shape_cast %247 : vector<1x8x16xf32> to vector<8x16xf32>
    %249 = vector.shape_cast %246 : vector<8x16xf32> to vector<1x8x16xf32>
    tpu.vector_store %arg36[%c3_159, %c0_160, %c0_161], %249 {strides = array<i32>} : memref<16x8x16xf32, #tpu.memory_space<vmem>>, vector<1x8x16xf32>,
    %250 = vector.extract_strided_slice %205 {offsets = [0, 48], sizes = [8, 16], strides = [1, 1]} : vector<16x128xf32> to vector<8x16xf32>
    %c3_162 = arith.constant 3 : index
    %c0_163 = arith.constant 0 : index
    %c0_164 = arith.constant 0 : index
    %251 = vector.load %arg37[%c3_162, %c0_163, %c0_164] : memref<16x8x16xf32, #tpu.memory_space<vmem>>, vector<1x8x16xf32>
    %252 = vector.shape_cast %251 : vector<1x8x16xf32> to vector<8x16xf32>
    %253 = vector.shape_cast %250 : vector<8x16xf32> to vector<1x8x16xf32>
    tpu.vector_store %arg37[%c3_162, %c0_163, %c0_164], %253 {strides = array<i32>} : memref<16x8x16xf32, #tpu.memory_space<vmem>>, vector<1x8x16xf32>,
    %254 = vector.extract_strided_slice %193 {offsets = [0, 64], sizes = [8, 16], strides = [1, 1]} : vector<16x128xf32> to vector<8x16xf32>
    %c4_165 = arith.constant 4 : index
    %c0_166 = arith.constant 0 : index
    %c0_167 = arith.constant 0 : index
    %255 = vector.load %arg35[%c4_165, %c0_166, %c0_167] : memref<16x8x16xf32, #tpu.memory_space<vmem>>, vector<1x8x16xf32>
    %256 = vector.shape_cast %255 : vector<1x8x16xf32> to vector<8x16xf32>
    %257 = vector.shape_cast %254 : vector<8x16xf32> to vector<1x8x16xf32>
    tpu.vector_store %arg35[%c4_165, %c0_166, %c0_167], %257 {strides = array<i32>} : memref<16x8x16xf32, #tpu.memory_space<vmem>>, vector<1x8x16xf32>,
    %258 = vector.extract_strided_slice %199 {offsets = [0, 64], sizes = [8, 16], strides = [1, 1]} : vector<16x128xf32> to vector<8x16xf32>
    %c4_168 = arith.constant 4 : index
    %c0_169 = arith.constant 0 : index
    %c0_170 = arith.constant 0 : index
    %259 = vector.load %arg36[%c4_168, %c0_169, %c0_170] : memref<16x8x16xf32, #tpu.memory_space<vmem>>, vector<1x8x16xf32>
    %260 = vector.shape_cast %259 : vector<1x8x16xf32> to vector<8x16xf32>
    %261 = vector.shape_cast %258 : vector<8x16xf32> to vector<1x8x16xf32>
    tpu.vector_store %arg36[%c4_168, %c0_169, %c0_170], %261 {strides = array<i32>} : memref<16x8x16xf32, #tpu.memory_space<vmem>>, vector<1x8x16xf32>,
    %262 = vector.extract_strided_slice %205 {offsets = [0, 64], sizes = [8, 16], strides = [1, 1]} : vector<16x128xf32> to vector<8x16xf32>
    %c4_171 = arith.constant 4 : index
    %c0_172 = arith.constant 0 : index
    %c0_173 = arith.constant 0 : index
    %263 = vector.load %arg37[%c4_171, %c0_172, %c0_173] : memref<16x8x16xf32, #tpu.memory_space<vmem>>, vector<1x8x16xf32>
    %264 = vector.shape_cast %263 : vector<1x8x16xf32> to vector<8x16xf32>
    %265 = vector.shape_cast %262 : vector<8x16xf32> to vector<1x8x16xf32>
    tpu.vector_store %arg37[%c4_171, %c0_172, %c0_173], %265 {strides = array<i32>} : memref<16x8x16xf32, #tpu.memory_space<vmem>>, vector<1x8x16xf32>,
    %266 = vector.extract_strided_slice %193 {offsets = [0, 80], sizes = [8, 16], strides = [1, 1]} : vector<16x128xf32> to vector<8x16xf32>
    %c5_174 = arith.constant 5 : index
    %c0_175 = arith.constant 0 : index
    %c0_176 = arith.constant 0 : index
    %267 = vector.load %arg35[%c5_174, %c0_175, %c0_176] : memref<16x8x16xf32, #tpu.memory_space<vmem>>, vector<1x8x16xf32>
    %268 = vector.shape_cast %267 : vector<1x8x16xf32> to vector<8x16xf32>
    %269 = vector.shape_cast %266 : vector<8x16xf32> to vector<1x8x16xf32>
    tpu.vector_store %arg35[%c5_174, %c0_175, %c0_176], %269 {strides = array<i32>} : memref<16x8x16xf32, #tpu.memory_space<vmem>>, vector<1x8x16xf32>,
    %270 = vector.extract_strided_slice %199 {offsets = [0, 80], sizes = [8, 16], strides = [1, 1]} : vector<16x128xf32> to vector<8x16xf32>
    %c5_177 = arith.constant 5 : index
    %c0_178 = arith.constant 0 : index
    %c0_179 = arith.constant 0 : index
    %271 = vector.load %arg36[%c5_177, %c0_178, %c0_179] : memref<16x8x16xf32, #tpu.memory_space<vmem>>, vector<1x8x16xf32>
    %272 = vector.shape_cast %271 : vector<1x8x16xf32> to vector<8x16xf32>
    %273 = vector.shape_cast %270 : vector<8x16xf32> to vector<1x8x16xf32>
    tpu.vector_store %arg36[%c5_177, %c0_178, %c0_179], %273 {strides = array<i32>} : memref<16x8x16xf32, #tpu.memory_space<vmem>>, vector<1x8x16xf32>,
    %274 = vector.extract_strided_slice %205 {offsets = [0, 80], sizes = [8, 16], strides = [1, 1]} : vector<16x128xf32> to vector<8x16xf32>
    %c5_180 = arith.constant 5 : index
    %c0_181 = arith.constant 0 : index
    %c0_182 = arith.constant 0 : index
    %275 = vector.load %arg37[%c5_180, %c0_181, %c0_182] : memref<16x8x16xf32, #tpu.memory_space<vmem>>, vector<1x8x16xf32>
    %276 = vector.shape_cast %275 : vector<1x8x16xf32> to vector<8x16xf32>
    %277 = vector.shape_cast %274 : vector<8x16xf32> to vector<1x8x16xf32>
    tpu.vector_store %arg37[%c5_180, %c0_181, %c0_182], %277 {strides = array<i32>} : memref<16x8x16xf32, #tpu.memory_space<vmem>>, vector<1x8x16xf32>,
    %278 = vector.extract_strided_slice %193 {offsets = [0, 96], sizes = [8, 16], strides = [1, 1]} : vector<16x128xf32> to vector<8x16xf32>
    %c6_183 = arith.constant 6 : index
    %c0_184 = arith.constant 0 : index
    %c0_185 = arith.constant 0 : index
    %279 = vector.load %arg35[%c6_183, %c0_184, %c0_185] : memref<16x8x16xf32, #tpu.memory_space<vmem>>, vector<1x8x16xf32>
    %280 = vector.shape_cast %279 : vector<1x8x16xf32> to vector<8x16xf32>
    %281 = vector.shape_cast %278 : vector<8x16xf32> to vector<1x8x16xf32>
    tpu.vector_store %arg35[%c6_183, %c0_184, %c0_185], %281 {strides = array<i32>} : memref<16x8x16xf32, #tpu.memory_space<vmem>>, vector<1x8x16xf32>,
    %282 = vector.extract_strided_slice %199 {offsets = [0, 96], sizes = [8, 16], strides = [1, 1]} : vector<16x128xf32> to vector<8x16xf32>
    %c6_186 = arith.constant 6 : index
    %c0_187 = arith.constant 0 : index
    %c0_188 = arith.constant 0 : index
    %283 = vector.load %arg36[%c6_186, %c0_187, %c0_188] : memref<16x8x16xf32, #tpu.memory_space<vmem>>, vector<1x8x16xf32>
    %284 = vector.shape_cast %283 : vector<1x8x16xf32> to vector<8x16xf32>
    %285 = vector.shape_cast %282 : vector<8x16xf32> to vector<1x8x16xf32>
    tpu.vector_store %arg36[%c6_186, %c0_187, %c0_188], %285 {strides = array<i32>} : memref<16x8x16xf32, #tpu.memory_space<vmem>>, vector<1x8x16xf32>,
    %286 = vector.extract_strided_slice %205 {offsets = [0, 96], sizes = [8, 16], strides = [1, 1]} : vector<16x128xf32> to vector<8x16xf32>
    %c6_189 = arith.constant 6 : index
    %c0_190 = arith.constant 0 : index
    %c0_191 = arith.constant 0 : index
    %287 = vector.load %arg37[%c6_189, %c0_190, %c0_191] : memref<16x8x16xf32, #tpu.memory_space<vmem>>, vector<1x8x16xf32>
    %288 = vector.shape_cast %287 : vector<1x8x16xf32> to vector<8x16xf32>
    %289 = vector.shape_cast %286 : vector<8x16xf32> to vector<1x8x16xf32>
    tpu.vector_store %arg37[%c6_189, %c0_190, %c0_191], %289 {strides = array<i32>} : memref<16x8x16xf32, #tpu.memory_space<vmem>>, vector<1x8x16xf32>,
    %290 = vector.extract_strided_slice %193 {offsets = [0, 112], sizes = [8, 16], strides = [1, 1]} : vector<16x128xf32> to vector<8x16xf32>
    %c7_192 = arith.constant 7 : index
    %c0_193 = arith.constant 0 : index
    %c0_194 = arith.constant 0 : index
    %291 = vector.load %arg35[%c7_192, %c0_193, %c0_194] : memref<16x8x16xf32, #tpu.memory_space<vmem>>, vector<1x8x16xf32>
    %292 = vector.shape_cast %291 : vector<1x8x16xf32> to vector<8x16xf32>
    %293 = vector.shape_cast %290 : vector<8x16xf32> to vector<1x8x16xf32>
    tpu.vector_store %arg35[%c7_192, %c0_193, %c0_194], %293 {strides = array<i32>} : memref<16x8x16xf32, #tpu.memory_space<vmem>>, vector<1x8x16xf32>,
    %294 = vector.extract_strided_slice %199 {offsets = [0, 112], sizes = [8, 16], strides = [1, 1]} : vector<16x128xf32> to vector<8x16xf32>
    %c7_195 = arith.constant 7 : index
    %c0_196 = arith.constant 0 : index
    %c0_197 = arith.constant 0 : index
    %295 = vector.load %arg36[%c7_195, %c0_196, %c0_197] : memref<16x8x16xf32, #tpu.memory_space<vmem>>, vector<1x8x16xf32>
    %296 = vector.shape_cast %295 : vector<1x8x16xf32> to vector<8x16xf32>
    %297 = vector.shape_cast %294 : vector<8x16xf32> to vector<1x8x16xf32>
    tpu.vector_store %arg36[%c7_195, %c0_196, %c0_197], %297 {strides = array<i32>} : memref<16x8x16xf32, #tpu.memory_space<vmem>>, vector<1x8x16xf32>,
    %298 = vector.extract_strided_slice %205 {offsets = [0, 112], sizes = [8, 16], strides = [1, 1]} : vector<16x128xf32> to vector<8x16xf32>
    %c7_198 = arith.constant 7 : index
    %c0_199 = arith.constant 0 : index
    %c0_200 = arith.constant 0 : index
    %299 = vector.load %arg37[%c7_198, %c0_199, %c0_200] : memref<16x8x16xf32, #tpu.memory_space<vmem>>, vector<1x8x16xf32>
    %300 = vector.shape_cast %299 : vector<1x8x16xf32> to vector<8x16xf32>
    %301 = vector.shape_cast %298 : vector<8x16xf32> to vector<1x8x16xf32>
    tpu.vector_store %arg37[%c7_198, %c0_199, %c0_200], %301 {strides = array<i32>} : memref<16x8x16xf32, #tpu.memory_space<vmem>>, vector<1x8x16xf32>,
    %302 = vector.extract_strided_slice %193 {offsets = [8, 0], sizes = [8, 16], strides = [1, 1]} : vector<16x128xf32> to vector<8x16xf32>
    %c8_201 = arith.constant 8 : index
    %c0_202 = arith.constant 0 : index
    %c0_203 = arith.constant 0 : index
    %303 = vector.load %arg35[%c8_201, %c0_202, %c0_203] : memref<16x8x16xf32, #tpu.memory_space<vmem>>, vector<1x8x16xf32>
    %304 = vector.shape_cast %303 : vector<1x8x16xf32> to vector<8x16xf32>
    %305 = vector.shape_cast %302 : vector<8x16xf32> to vector<1x8x16xf32>
    tpu.vector_store %arg35[%c8_201, %c0_202, %c0_203], %305 {strides = array<i32>} : memref<16x8x16xf32, #tpu.memory_space<vmem>>, vector<1x8x16xf32>,
    %306 = vector.extract_strided_slice %199 {offsets = [8, 0], sizes = [8, 16], strides = [1, 1]} : vector<16x128xf32> to vector<8x16xf32>
    %c8_204 = arith.constant 8 : index
    %c0_205 = arith.constant 0 : index
    %c0_206 = arith.constant 0 : index
    %307 = vector.load %arg36[%c8_204, %c0_205, %c0_206] : memref<16x8x16xf32, #tpu.memory_space<vmem>>, vector<1x8x16xf32>
    %308 = vector.shape_cast %307 : vector<1x8x16xf32> to vector<8x16xf32>
    %309 = vector.shape_cast %306 : vector<8x16xf32> to vector<1x8x16xf32>
    tpu.vector_store %arg36[%c8_204, %c0_205, %c0_206], %309 {strides = array<i32>} : memref<16x8x16xf32, #tpu.memory_space<vmem>>, vector<1x8x16xf32>,
    %310 = vector.extract_strided_slice %205 {offsets = [8, 0], sizes = [8, 16], strides = [1, 1]} : vector<16x128xf32> to vector<8x16xf32>
    %c8_207 = arith.constant 8 : index
    %c0_208 = arith.constant 0 : index
    %c0_209 = arith.constant 0 : index
    %311 = vector.load %arg37[%c8_207, %c0_208, %c0_209] : memref<16x8x16xf32, #tpu.memory_space<vmem>>, vector<1x8x16xf32>
    %312 = vector.shape_cast %311 : vector<1x8x16xf32> to vector<8x16xf32>
    %313 = vector.shape_cast %310 : vector<8x16xf32> to vector<1x8x16xf32>
    tpu.vector_store %arg37[%c8_207, %c0_208, %c0_209], %313 {strides = array<i32>} : memref<16x8x16xf32, #tpu.memory_space<vmem>>, vector<1x8x16xf32>,
    %314 = vector.extract_strided_slice %193 {offsets = [8, 16], sizes = [8, 16], strides = [1, 1]} : vector<16x128xf32> to vector<8x16xf32>
    %c9_210 = arith.constant 9 : index
    %c0_211 = arith.constant 0 : index
    %c0_212 = arith.constant 0 : index
    %315 = vector.load %arg35[%c9_210, %c0_211, %c0_212] : memref<16x8x16xf32, #tpu.memory_space<vmem>>, vector<1x8x16xf32>
    %316 = vector.shape_cast %315 : vector<1x8x16xf32> to vector<8x16xf32>
    %317 = vector.shape_cast %314 : vector<8x16xf32> to vector<1x8x16xf32>
    tpu.vector_store %arg35[%c9_210, %c0_211, %c0_212], %317 {strides = array<i32>} : memref<16x8x16xf32, #tpu.memory_space<vmem>>, vector<1x8x16xf32>,
    %318 = vector.extract_strided_slice %199 {offsets = [8, 16], sizes = [8, 16], strides = [1, 1]} : vector<16x128xf32> to vector<8x16xf32>
    %c9_213 = arith.constant 9 : index
    %c0_214 = arith.constant 0 : index
    %c0_215 = arith.constant 0 : index
    %319 = vector.load %arg36[%c9_213, %c0_214, %c0_215] : memref<16x8x16xf32, #tpu.memory_space<vmem>>, vector<1x8x16xf32>
    %320 = vector.shape_cast %319 : vector<1x8x16xf32> to vector<8x16xf32>
    %321 = vector.shape_cast %318 : vector<8x16xf32> to vector<1x8x16xf32>
    tpu.vector_store %arg36[%c9_213, %c0_214, %c0_215], %321 {strides = array<i32>} : memref<16x8x16xf32, #tpu.memory_space<vmem>>, vector<1x8x16xf32>,
    %322 = vector.extract_strided_slice %205 {offsets = [8, 16], sizes = [8, 16], strides = [1, 1]} : vector<16x128xf32> to vector<8x16xf32>
    %c9_216 = arith.constant 9 : index
    %c0_217 = arith.constant 0 : index
    %c0_218 = arith.constant 0 : index
    %323 = vector.load %arg37[%c9_216, %c0_217, %c0_218] : memref<16x8x16xf32, #tpu.memory_space<vmem>>, vector<1x8x16xf32>
    %324 = vector.shape_cast %323 : vector<1x8x16xf32> to vector<8x16xf32>
    %325 = vector.shape_cast %322 : vector<8x16xf32> to vector<1x8x16xf32>
    tpu.vector_store %arg37[%c9_216, %c0_217, %c0_218], %325 {strides = array<i32>} : memref<16x8x16xf32, #tpu.memory_space<vmem>>, vector<1x8x16xf32>,
    %326 = vector.extract_strided_slice %193 {offsets = [8, 32], sizes = [8, 16], strides = [1, 1]} : vector<16x128xf32> to vector<8x16xf32>
    %c10_219 = arith.constant 10 : index
    %c0_220 = arith.constant 0 : index
    %c0_221 = arith.constant 0 : index
    %327 = vector.load %arg35[%c10_219, %c0_220, %c0_221] : memref<16x8x16xf32, #tpu.memory_space<vmem>>, vector<1x8x16xf32>
    %328 = vector.shape_cast %327 : vector<1x8x16xf32> to vector<8x16xf32>
    %329 = vector.shape_cast %326 : vector<8x16xf32> to vector<1x8x16xf32>
    tpu.vector_store %arg35[%c10_219, %c0_220, %c0_221], %329 {strides = array<i32>} : memref<16x8x16xf32, #tpu.memory_space<vmem>>, vector<1x8x16xf32>,
    %330 = vector.extract_strided_slice %199 {offsets = [8, 32], sizes = [8, 16], strides = [1, 1]} : vector<16x128xf32> to vector<8x16xf32>
    %c10_222 = arith.constant 10 : index
    %c0_223 = arith.constant 0 : index
    %c0_224 = arith.constant 0 : index
    %331 = vector.load %arg36[%c10_222, %c0_223, %c0_224] : memref<16x8x16xf32, #tpu.memory_space<vmem>>, vector<1x8x16xf32>
    %332 = vector.shape_cast %331 : vector<1x8x16xf32> to vector<8x16xf32>
    %333 = vector.shape_cast %330 : vector<8x16xf32> to vector<1x8x16xf32>
    tpu.vector_store %arg36[%c10_222, %c0_223, %c0_224], %333 {strides = array<i32>} : memref<16x8x16xf32, #tpu.memory_space<vmem>>, vector<1x8x16xf32>,
    %334 = vector.extract_strided_slice %205 {offsets = [8, 32], sizes = [8, 16], strides = [1, 1]} : vector<16x128xf32> to vector<8x16xf32>
    %c10_225 = arith.constant 10 : index
    %c0_226 = arith.constant 0 : index
    %c0_227 = arith.constant 0 : index
    %335 = vector.load %arg37[%c10_225, %c0_226, %c0_227] : memref<16x8x16xf32, #tpu.memory_space<vmem>>, vector<1x8x16xf32>
    %336 = vector.shape_cast %335 : vector<1x8x16xf32> to vector<8x16xf32>
    %337 = vector.shape_cast %334 : vector<8x16xf32> to vector<1x8x16xf32>
    tpu.vector_store %arg37[%c10_225, %c0_226, %c0_227], %337 {strides = array<i32>} : memref<16x8x16xf32, #tpu.memory_space<vmem>>, vector<1x8x16xf32>,
    %338 = vector.extract_strided_slice %193 {offsets = [8, 48], sizes = [8, 16], strides = [1, 1]} : vector<16x128xf32> to vector<8x16xf32>
    %c11_228 = arith.constant 11 : index
    %c0_229 = arith.constant 0 : index
    %c0_230 = arith.constant 0 : index
    %339 = vector.load %arg35[%c11_228, %c0_229, %c0_230] : memref<16x8x16xf32, #tpu.memory_space<vmem>>, vector<1x8x16xf32>
    %340 = vector.shape_cast %339 : vector<1x8x16xf32> to vector<8x16xf32>
    %341 = vector.shape_cast %338 : vector<8x16xf32> to vector<1x8x16xf32>
    tpu.vector_store %arg35[%c11_228, %c0_229, %c0_230], %341 {strides = array<i32>} : memref<16x8x16xf32, #tpu.memory_space<vmem>>, vector<1x8x16xf32>,
    %342 = vector.extract_strided_slice %199 {offsets = [8, 48], sizes = [8, 16], strides = [1, 1]} : vector<16x128xf32> to vector<8x16xf32>
    %c11_231 = arith.constant 11 : index
    %c0_232 = arith.constant 0 : index
    %c0_233 = arith.constant 0 : index
    %343 = vector.load %arg36[%c11_231, %c0_232, %c0_233] : memref<16x8x16xf32, #tpu.memory_space<vmem>>, vector<1x8x16xf32>
    %344 = vector.shape_cast %343 : vector<1x8x16xf32> to vector<8x16xf32>
    %345 = vector.shape_cast %342 : vector<8x16xf32> to vector<1x8x16xf32>
    tpu.vector_store %arg36[%c11_231, %c0_232, %c0_233], %345 {strides = array<i32>} : memref<16x8x16xf32, #tpu.memory_space<vmem>>, vector<1x8x16xf32>,
    %346 = vector.extract_strided_slice %205 {offsets = [8, 48], sizes = [8, 16], strides = [1, 1]} : vector<16x128xf32> to vector<8x16xf32>
    %c11_234 = arith.constant 11 : index
    %c0_235 = arith.constant 0 : index
    %c0_236 = arith.constant 0 : index
    %347 = vector.load %arg37[%c11_234, %c0_235, %c0_236] : memref<16x8x16xf32, #tpu.memory_space<vmem>>, vector<1x8x16xf32>
    %348 = vector.shape_cast %347 : vector<1x8x16xf32> to vector<8x16xf32>
    %349 = vector.shape_cast %346 : vector<8x16xf32> to vector<1x8x16xf32>
    tpu.vector_store %arg37[%c11_234, %c0_235, %c0_236], %349 {strides = array<i32>} : memref<16x8x16xf32, #tpu.memory_space<vmem>>, vector<1x8x16xf32>,
    %350 = vector.extract_strided_slice %193 {offsets = [8, 64], sizes = [8, 16], strides = [1, 1]} : vector<16x128xf32> to vector<8x16xf32>
    %c12_237 = arith.constant 12 : index
    %c0_238 = arith.constant 0 : index
    %c0_239 = arith.constant 0 : index
    %351 = vector.load %arg35[%c12_237, %c0_238, %c0_239] : memref<16x8x16xf32, #tpu.memory_space<vmem>>, vector<1x8x16xf32>
    %352 = vector.shape_cast %351 : vector<1x8x16xf32> to vector<8x16xf32>
    %353 = vector.shape_cast %350 : vector<8x16xf32> to vector<1x8x16xf32>
    tpu.vector_store %arg35[%c12_237, %c0_238, %c0_239], %353 {strides = array<i32>} : memref<16x8x16xf32, #tpu.memory_space<vmem>>, vector<1x8x16xf32>,
    %354 = vector.extract_strided_slice %199 {offsets = [8, 64], sizes = [8, 16], strides = [1, 1]} : vector<16x128xf32> to vector<8x16xf32>
    %c12_240 = arith.constant 12 : index
    %c0_241 = arith.constant 0 : index
    %c0_242 = arith.constant 0 : index
    %355 = vector.load %arg36[%c12_240, %c0_241, %c0_242] : memref<16x8x16xf32, #tpu.memory_space<vmem>>, vector<1x8x16xf32>
    %356 = vector.shape_cast %355 : vector<1x8x16xf32> to vector<8x16xf32>
    %357 = vector.shape_cast %354 : vector<8x16xf32> to vector<1x8x16xf32>
    tpu.vector_store %arg36[%c12_240, %c0_241, %c0_242], %357 {strides = array<i32>} : memref<16x8x16xf32, #tpu.memory_space<vmem>>, vector<1x8x16xf32>,
    %358 = vector.extract_strided_slice %205 {offsets = [8, 64], sizes = [8, 16], strides = [1, 1]} : vector<16x128xf32> to vector<8x16xf32>
    %c12_243 = arith.constant 12 : index
    %c0_244 = arith.constant 0 : index
    %c0_245 = arith.constant 0 : index
    %359 = vector.load %arg37[%c12_243, %c0_244, %c0_245] : memref<16x8x16xf32, #tpu.memory_space<vmem>>, vector<1x8x16xf32>
    %360 = vector.shape_cast %359 : vector<1x8x16xf32> to vector<8x16xf32>
    %361 = vector.shape_cast %358 : vector<8x16xf32> to vector<1x8x16xf32>
    tpu.vector_store %arg37[%c12_243, %c0_244, %c0_245], %361 {strides = array<i32>} : memref<16x8x16xf32, #tpu.memory_space<vmem>>, vector<1x8x16xf32>,
    %362 = vector.extract_strided_slice %193 {offsets = [8, 80], sizes = [8, 16], strides = [1, 1]} : vector<16x128xf32> to vector<8x16xf32>
    %c13_246 = arith.constant 13 : index
    %c0_247 = arith.constant 0 : index
    %c0_248 = arith.constant 0 : index
    %363 = vector.load %arg35[%c13_246, %c0_247, %c0_248] : memref<16x8x16xf32, #tpu.memory_space<vmem>>, vector<1x8x16xf32>
    %364 = vector.shape_cast %363 : vector<1x8x16xf32> to vector<8x16xf32>
    %365 = vector.shape_cast %362 : vector<8x16xf32> to vector<1x8x16xf32>
    tpu.vector_store %arg35[%c13_246, %c0_247, %c0_248], %365 {strides = array<i32>} : memref<16x8x16xf32, #tpu.memory_space<vmem>>, vector<1x8x16xf32>,
    %366 = vector.extract_strided_slice %199 {offsets = [8, 80], sizes = [8, 16], strides = [1, 1]} : vector<16x128xf32> to vector<8x16xf32>
    %c13_249 = arith.constant 13 : index
    %c0_250 = arith.constant 0 : index
    %c0_251 = arith.constant 0 : index
    %367 = vector.load %arg36[%c13_249, %c0_250, %c0_251] : memref<16x8x16xf32, #tpu.memory_space<vmem>>, vector<1x8x16xf32>
    %368 = vector.shape_cast %367 : vector<1x8x16xf32> to vector<8x16xf32>
    %369 = vector.shape_cast %366 : vector<8x16xf32> to vector<1x8x16xf32>
    tpu.vector_store %arg36[%c13_249, %c0_250, %c0_251], %369 {strides = array<i32>} : memref<16x8x16xf32, #tpu.memory_space<vmem>>, vector<1x8x16xf32>,
    %370 = vector.extract_strided_slice %205 {offsets = [8, 80], sizes = [8, 16], strides = [1, 1]} : vector<16x128xf32> to vector<8x16xf32>
    %c13_252 = arith.constant 13 : index
    %c0_253 = arith.constant 0 : index
    %c0_254 = arith.constant 0 : index
    %371 = vector.load %arg37[%c13_252, %c0_253, %c0_254] : memref<16x8x16xf32, #tpu.memory_space<vmem>>, vector<1x8x16xf32>
    %372 = vector.shape_cast %371 : vector<1x8x16xf32> to vector<8x16xf32>
    %373 = vector.shape_cast %370 : vector<8x16xf32> to vector<1x8x16xf32>
    tpu.vector_store %arg37[%c13_252, %c0_253, %c0_254], %373 {strides = array<i32>} : memref<16x8x16xf32, #tpu.memory_space<vmem>>, vector<1x8x16xf32>,
    %374 = vector.extract_strided_slice %193 {offsets = [8, 96], sizes = [8, 16], strides = [1, 1]} : vector<16x128xf32> to vector<8x16xf32>
    %c14_255 = arith.constant 14 : index
    %c0_256 = arith.constant 0 : index
    %c0_257 = arith.constant 0 : index
    %375 = vector.load %arg35[%c14_255, %c0_256, %c0_257] : memref<16x8x16xf32, #tpu.memory_space<vmem>>, vector<1x8x16xf32>
    %376 = vector.shape_cast %375 : vector<1x8x16xf32> to vector<8x16xf32>
    %377 = vector.shape_cast %374 : vector<8x16xf32> to vector<1x8x16xf32>
    tpu.vector_store %arg35[%c14_255, %c0_256, %c0_257], %377 {strides = array<i32>} : memref<16x8x16xf32, #tpu.memory_space<vmem>>, vector<1x8x16xf32>,
    %378 = vector.extract_strided_slice %199 {offsets = [8, 96], sizes = [8, 16], strides = [1, 1]} : vector<16x128xf32> to vector<8x16xf32>
    %c14_258 = arith.constant 14 : index
    %c0_259 = arith.constant 0 : index
    %c0_260 = arith.constant 0 : index
    %379 = vector.load %arg36[%c14_258, %c0_259, %c0_260] : memref<16x8x16xf32, #tpu.memory_space<vmem>>, vector<1x8x16xf32>
    %380 = vector.shape_cast %379 : vector<1x8x16xf32> to vector<8x16xf32>
    %381 = vector.shape_cast %378 : vector<8x16xf32> to vector<1x8x16xf32>
    tpu.vector_store %arg36[%c14_258, %c0_259, %c0_260], %381 {strides = array<i32>} : memref<16x8x16xf32, #tpu.memory_space<vmem>>, vector<1x8x16xf32>,
    %382 = vector.extract_strided_slice %205 {offsets = [8, 96], sizes = [8, 16], strides = [1, 1]} : vector<16x128xf32> to vector<8x16xf32>
    %c14_261 = arith.constant 14 : index
    %c0_262 = arith.constant 0 : index
    %c0_263 = arith.constant 0 : index
    %383 = vector.load %arg37[%c14_261, %c0_262, %c0_263] : memref<16x8x16xf32, #tpu.memory_space<vmem>>, vector<1x8x16xf32>
    %384 = vector.shape_cast %383 : vector<1x8x16xf32> to vector<8x16xf32>
    %385 = vector.shape_cast %382 : vector<8x16xf32> to vector<1x8x16xf32>
    tpu.vector_store %arg37[%c14_261, %c0_262, %c0_263], %385 {strides = array<i32>} : memref<16x8x16xf32, #tpu.memory_space<vmem>>, vector<1x8x16xf32>,
    %386 = vector.extract_strided_slice %193 {offsets = [8, 112], sizes = [8, 16], strides = [1, 1]} : vector<16x128xf32> to vector<8x16xf32>
    %c15_264 = arith.constant 15 : index
    %c0_265 = arith.constant 0 : index
    %c0_266 = arith.constant 0 : index
    %387 = vector.load %arg35[%c15_264, %c0_265, %c0_266] : memref<16x8x16xf32, #tpu.memory_space<vmem>>, vector<1x8x16xf32>
    %388 = vector.shape_cast %387 : vector<1x8x16xf32> to vector<8x16xf32>
    %389 = vector.shape_cast %386 : vector<8x16xf32> to vector<1x8x16xf32>
    tpu.vector_store %arg35[%c15_264, %c0_265, %c0_266], %389 {strides = array<i32>} : memref<16x8x16xf32, #tpu.memory_space<vmem>>, vector<1x8x16xf32>,
    %390 = vector.extract_strided_slice %199 {offsets = [8, 112], sizes = [8, 16], strides = [1, 1]} : vector<16x128xf32> to vector<8x16xf32>
    %c15_267 = arith.constant 15 : index
    %c0_268 = arith.constant 0 : index
    %c0_269 = arith.constant 0 : index
    %391 = vector.load %arg36[%c15_267, %c0_268, %c0_269] : memref<16x8x16xf32, #tpu.memory_space<vmem>>, vector<1x8x16xf32>
    %392 = vector.shape_cast %391 : vector<1x8x16xf32> to vector<8x16xf32>
    %393 = vector.shape_cast %390 : vector<8x16xf32> to vector<1x8x16xf32>
    tpu.vector_store %arg36[%c15_267, %c0_268, %c0_269], %393 {strides = array<i32>} : memref<16x8x16xf32, #tpu.memory_space<vmem>>, vector<1x8x16xf32>,
    %394 = vector.extract_strided_slice %205 {offsets = [8, 112], sizes = [8, 16], strides = [1, 1]} : vector<16x128xf32> to vector<8x16xf32>
    %c15_270 = arith.constant 15 : index
    %c0_271 = arith.constant 0 : index
    %c0_272 = arith.constant 0 : index
    %395 = vector.load %arg37[%c15_270, %c0_271, %c0_272] : memref<16x8x16xf32, #tpu.memory_space<vmem>>, vector<1x8x16xf32>
    %396 = vector.shape_cast %395 : vector<1x8x16xf32> to vector<8x16xf32>
    %397 = vector.shape_cast %394 : vector<8x16xf32> to vector<1x8x16xf32>
    tpu.vector_store %arg37[%c15_270, %c0_271, %c0_272], %397 {strides = array<i32>} : memref<16x8x16xf32, #tpu.memory_space<vmem>>, vector<1x8x16xf32>,
    %c0_273 = arith.constant 0 : index
    %c0_274 = arith.constant 0 : index
    %c0_275 = arith.constant 0 : index
    %398 = vector.load %arg35[%c0_273, %c0_274, %c0_275] : memref<16x8x16xf32, #tpu.memory_space<vmem>>, vector<16x8x16xf32>
    %399 = arith.truncf %398 : vector<16x8x16xf32> to vector<16x8x16xbf16>
    %c0_276 = arith.constant 0 : index
    %c0_277 = arith.constant 0 : index
    %c0_278 = arith.constant 0 : index
    %400 = vector.load %arg36[%c0_276, %c0_277, %c0_278] : memref<16x8x16xf32, #tpu.memory_space<vmem>>, vector<16x8x16xf32>
    %401 = arith.truncf %400 : vector<16x8x16xf32> to vector<16x8x16xbf16>
    %c0_279 = arith.constant 0 : index
    %c0_280 = arith.constant 0 : index
    %c0_281 = arith.constant 0 : index
    %402 = vector.load %arg37[%c0_279, %c0_280, %c0_281] : memref<16x8x16xf32, #tpu.memory_space<vmem>>, vector<16x8x16xf32>
    %403 = arith.truncf %402 : vector<16x8x16xf32> to vector<16x8x16xbf16>
    "tpu.trace_start"() <{level = 10 : i32, message = "bqd,bkd->bqk"}> : () -> ()
    %cst_282 = arith.constant dense<0.000000e+00> : vector<16x8x8xf32>
    %404 = tpu.matmul %399, %401, %cst_282 {dimension_numbers = #tpu.dot_dimension_numbers<[2], [2], [1], [1], [0, 0, 0, 1, 1, 1], [0], [0]>} : vector<16x8x16xbf16>, vector<16x8x16xbf16>, vector<16x8x8xf32> -> vector<16x8x8xf32>
    "tpu.trace_stop"() : () -> ()
    %cst_283 = arith.constant 2.500000e-01 : f32
    %405 = vector.broadcast %cst_283 : f32 to vector<16x8x8xf32>
    %406 = arith.mulf %404, %405 : vector<16x8x8xf32>
    %cst_284 = arith.constant dense<0xFF800000> : vector<16x8xf32>
    %407 = vector.multi_reduction <maximumf>, %406, %cst_284 [2] : vector<16x8x8xf32> to vector<16x8xf32>
    %408 = vector.shape_cast %407 : vector<16x8xf32> to vector<16x8x1xf32>
    %409 = vector.broadcast %408 : vector<16x8x1xf32> to vector<16x8x8xf32>
    %410 = arith.subf %406, %409 : vector<16x8x8xf32>
    %411 = math.exp %410 : vector<16x8x8xf32>
    %cst_285 = arith.constant dense<0.000000e+00> : vector<16x8xf32>
    %412 = vector.multi_reduction <add>, %411, %cst_285 [2] : vector<16x8x8xf32> to vector<16x8xf32>
    %413 = vector.shape_cast %412 : vector<16x8xf32> to vector<16x8x1xf32>
    %414 = tpu.reciprocal %413 {approx = true} : vector<16x8x1xf32> -> vector<16x8x1xf32>
    %415 = vector.broadcast %414 : vector<16x8x1xf32> to vector<16x8x8xf32>
    %416 = arith.mulf %411, %415 : vector<16x8x8xf32>
    %417 = arith.truncf %416 : vector<16x8x8xf32> to vector<16x8x8xbf16>
    "tpu.trace_start"() <{level = 10 : i32, message = "bqk,bkd->bqd"}> : () -> ()
    %cst_286 = arith.constant dense<0.000000e+00> : vector<16x8x16xf32>
    %418 = tpu.matmul %417, %403, %cst_286 {dimension_numbers = #tpu.dot_dimension_numbers<[2], [1], [1], [2], [0, 0, 0, 1, 1, 2], [0], [0]>} : vector<16x8x8xbf16>, vector<16x8x16xbf16>, vector<16x8x16xf32> -> vector<16x8x16xf32>
    "tpu.trace_stop"() : () -> ()
    %419 = vector.extract_strided_slice %418 {offsets = [0, 0, 0], sizes = [1, 8, 16], strides = [1, 1, 1]} : vector<16x8x16xf32> to vector<1x8x16xf32>
    %420 = vector.shape_cast %419 : vector<1x8x16xf32> to vector<8x16xf32>
    %c0_287 = arith.constant 0 : index
    %c0_288 = arith.constant 0 : index
    %421 = vector.load %arg38[%c0_287, %c0_288] : memref<16x128xf32, #tpu.memory_space<vmem>>, vector<8x16xf32>
    tpu.vector_store %arg38[%c0_287, %c0_288], %420 {strides = array<i32>} : memref<16x128xf32, #tpu.memory_space<vmem>>, vector<8x16xf32>,
    %422 = vector.extract_strided_slice %418 {offsets = [1, 0, 0], sizes = [1, 8, 16], strides = [1, 1, 1]} : vector<16x8x16xf32> to vector<1x8x16xf32>
    %423 = vector.shape_cast %422 : vector<1x8x16xf32> to vector<8x16xf32>
    %c0_289 = arith.constant 0 : index
    %c16_290 = arith.constant 16 : index
    %424 = vector.load %arg38[%c0_289, %c16_290] : memref<16x128xf32, #tpu.memory_space<vmem>>, vector<8x16xf32>
    tpu.vector_store %arg38[%c0_289, %c16_290], %423 {strides = array<i32>} : memref<16x128xf32, #tpu.memory_space<vmem>>, vector<8x16xf32>,
    %425 = vector.extract_strided_slice %418 {offsets = [2, 0, 0], sizes = [1, 8, 16], strides = [1, 1, 1]} : vector<16x8x16xf32> to vector<1x8x16xf32>
    %426 = vector.shape_cast %425 : vector<1x8x16xf32> to vector<8x16xf32>
    %c0_291 = arith.constant 0 : index
    %c32_292 = arith.constant 32 : index
    %427 = vector.load %arg38[%c0_291, %c32_292] : memref<16x128xf32, #tpu.memory_space<vmem>>, vector<8x16xf32>
    tpu.vector_store %arg38[%c0_291, %c32_292], %426 {strides = array<i32>} : memref<16x128xf32, #tpu.memory_space<vmem>>, vector<8x16xf32>,
    %428 = vector.extract_strided_slice %418 {offsets = [3, 0, 0], sizes = [1, 8, 16], strides = [1, 1, 1]} : vector<16x8x16xf32> to vector<1x8x16xf32>
    %429 = vector.shape_cast %428 : vector<1x8x16xf32> to vector<8x16xf32>
    %c0_293 = arith.constant 0 : index
    %c48_294 = arith.constant 48 : index
    %430 = vector.load %arg38[%c0_293, %c48_294] : memref<16x128xf32, #tpu.memory_space<vmem>>, vector<8x16xf32>
    tpu.vector_store %arg38[%c0_293, %c48_294], %429 {strides = array<i32>} : memref<16x128xf32, #tpu.memory_space<vmem>>, vector<8x16xf32>,
    %431 = vector.extract_strided_slice %418 {offsets = [4, 0, 0], sizes = [1, 8, 16], strides = [1, 1, 1]} : vector<16x8x16xf32> to vector<1x8x16xf32>
    %432 = vector.shape_cast %431 : vector<1x8x16xf32> to vector<8x16xf32>
    %c0_295 = arith.constant 0 : index
    %c64_296 = arith.constant 64 : index
    %433 = vector.load %arg38[%c0_295, %c64_296] : memref<16x128xf32, #tpu.memory_space<vmem>>, vector<8x16xf32>
    tpu.vector_store %arg38[%c0_295, %c64_296], %432 {strides = array<i32>} : memref<16x128xf32, #tpu.memory_space<vmem>>, vector<8x16xf32>,
    %434 = vector.extract_strided_slice %418 {offsets = [5, 0, 0], sizes = [1, 8, 16], strides = [1, 1, 1]} : vector<16x8x16xf32> to vector<1x8x16xf32>
    %435 = vector.shape_cast %434 : vector<1x8x16xf32> to vector<8x16xf32>
    %c0_297 = arith.constant 0 : index
    %c80_298 = arith.constant 80 : index
    %436 = vector.load %arg38[%c0_297, %c80_298] : memref<16x128xf32, #tpu.memory_space<vmem>>, vector<8x16xf32>
    tpu.vector_store %arg38[%c0_297, %c80_298], %435 {strides = array<i32>} : memref<16x128xf32, #tpu.memory_space<vmem>>, vector<8x16xf32>,
    %437 = vector.extract_strided_slice %418 {offsets = [6, 0, 0], sizes = [1, 8, 16], strides = [1, 1, 1]} : vector<16x8x16xf32> to vector<1x8x16xf32>
    %438 = vector.shape_cast %437 : vector<1x8x16xf32> to vector<8x16xf32>
    %c0_299 = arith.constant 0 : index
    %c96_300 = arith.constant 96 : index
    %439 = vector.load %arg38[%c0_299, %c96_300] : memref<16x128xf32, #tpu.memory_space<vmem>>, vector<8x16xf32>
    tpu.vector_store %arg38[%c0_299, %c96_300], %438 {strides = array<i32>} : memref<16x128xf32, #tpu.memory_space<vmem>>, vector<8x16xf32>,
    %440 = vector.extract_strided_slice %418 {offsets = [7, 0, 0], sizes = [1, 8, 16], strides = [1, 1, 1]} : vector<16x8x16xf32> to vector<1x8x16xf32>
    %441 = vector.shape_cast %440 : vector<1x8x16xf32> to vector<8x16xf32>
    %c0_301 = arith.constant 0 : index
    %c112_302 = arith.constant 112 : index
    %442 = vector.load %arg38[%c0_301, %c112_302] : memref<16x128xf32, #tpu.memory_space<vmem>>, vector<8x16xf32>
    tpu.vector_store %arg38[%c0_301, %c112_302], %441 {strides = array<i32>} : memref<16x128xf32, #tpu.memory_space<vmem>>, vector<8x16xf32>,
    %443 = vector.extract_strided_slice %418 {offsets = [8, 0, 0], sizes = [1, 8, 16], strides = [1, 1, 1]} : vector<16x8x16xf32> to vector<1x8x16xf32>
    %444 = vector.shape_cast %443 : vector<1x8x16xf32> to vector<8x16xf32>
    %c8_303 = arith.constant 8 : index
    %c0_304 = arith.constant 0 : index
    %445 = vector.load %arg38[%c8_303, %c0_304] : memref<16x128xf32, #tpu.memory_space<vmem>>, vector<8x16xf32>
    tpu.vector_store %arg38[%c8_303, %c0_304], %444 {strides = array<i32>} : memref<16x128xf32, #tpu.memory_space<vmem>>, vector<8x16xf32>,
    %446 = vector.extract_strided_slice %418 {offsets = [9, 0, 0], sizes = [1, 8, 16], strides = [1, 1, 1]} : vector<16x8x16xf32> to vector<1x8x16xf32>
    %447 = vector.shape_cast %446 : vector<1x8x16xf32> to vector<8x16xf32>
    %c8_305 = arith.constant 8 : index
    %c16_306 = arith.constant 16 : index
    %448 = vector.load %arg38[%c8_305, %c16_306] : memref<16x128xf32, #tpu.memory_space<vmem>>, vector<8x16xf32>
    tpu.vector_store %arg38[%c8_305, %c16_306], %447 {strides = array<i32>} : memref<16x128xf32, #tpu.memory_space<vmem>>, vector<8x16xf32>,
    %449 = vector.extract_strided_slice %418 {offsets = [10, 0, 0], sizes = [1, 8, 16], strides = [1, 1, 1]} : vector<16x8x16xf32> to vector<1x8x16xf32>
    %450 = vector.shape_cast %449 : vector<1x8x16xf32> to vector<8x16xf32>
    %c8_307 = arith.constant 8 : index
    %c32_308 = arith.constant 32 : index
    %451 = vector.load %arg38[%c8_307, %c32_308] : memref<16x128xf32, #tpu.memory_space<vmem>>, vector<8x16xf32>
    tpu.vector_store %arg38[%c8_307, %c32_308], %450 {strides = array<i32>} : memref<16x128xf32, #tpu.memory_space<vmem>>, vector<8x16xf32>,
    %452 = vector.extract_strided_slice %418 {offsets = [11, 0, 0], sizes = [1, 8, 16], strides = [1, 1, 1]} : vector<16x8x16xf32> to vector<1x8x16xf32>
    %453 = vector.shape_cast %452 : vector<1x8x16xf32> to vector<8x16xf32>
    %c8_309 = arith.constant 8 : index
    %c48_310 = arith.constant 48 : index
    %454 = vector.load %arg38[%c8_309, %c48_310] : memref<16x128xf32, #tpu.memory_space<vmem>>, vector<8x16xf32>
    tpu.vector_store %arg38[%c8_309, %c48_310], %453 {strides = array<i32>} : memref<16x128xf32, #tpu.memory_space<vmem>>, vector<8x16xf32>,
    %455 = vector.extract_strided_slice %418 {offsets = [12, 0, 0], sizes = [1, 8, 16], strides = [1, 1, 1]} : vector<16x8x16xf32> to vector<1x8x16xf32>
    %456 = vector.shape_cast %455 : vector<1x8x16xf32> to vector<8x16xf32>
    %c8_311 = arith.constant 8 : index
    %c64_312 = arith.constant 64 : index
    %457 = vector.load %arg38[%c8_311, %c64_312] : memref<16x128xf32, #tpu.memory_space<vmem>>, vector<8x16xf32>
    tpu.vector_store %arg38[%c8_311, %c64_312], %456 {strides = array<i32>} : memref<16x128xf32, #tpu.memory_space<vmem>>, vector<8x16xf32>,
    %458 = vector.extract_strided_slice %418 {offsets = [13, 0, 0], sizes = [1, 8, 16], strides = [1, 1, 1]} : vector<16x8x16xf32> to vector<1x8x16xf32>
    %459 = vector.shape_cast %458 : vector<1x8x16xf32> to vector<8x16xf32>
    %c8_313 = arith.constant 8 : index
    %c80_314 = arith.constant 80 : index
    %460 = vector.load %arg38[%c8_313, %c80_314] : memref<16x128xf32, #tpu.memory_space<vmem>>, vector<8x16xf32>
    tpu.vector_store %arg38[%c8_313, %c80_314], %459 {strides = array<i32>} : memref<16x128xf32, #tpu.memory_space<vmem>>, vector<8x16xf32>,
    %461 = vector.extract_strided_slice %418 {offsets = [14, 0, 0], sizes = [1, 8, 16], strides = [1, 1, 1]} : vector<16x8x16xf32> to vector<1x8x16xf32>
    %462 = vector.shape_cast %461 : vector<1x8x16xf32> to vector<8x16xf32>
    %c8_315 = arith.constant 8 : index
    %c96_316 = arith.constant 96 : index
    %463 = vector.load %arg38[%c8_315, %c96_316] : memref<16x128xf32, #tpu.memory_space<vmem>>, vector<8x16xf32>
    tpu.vector_store %arg38[%c8_315, %c96_316], %462 {strides = array<i32>} : memref<16x128xf32, #tpu.memory_space<vmem>>, vector<8x16xf32>,
    %464 = vector.extract_strided_slice %418 {offsets = [15, 0, 0], sizes = [1, 8, 16], strides = [1, 1, 1]} : vector<16x8x16xf32> to vector<1x8x16xf32>
    %465 = vector.shape_cast %464 : vector<1x8x16xf32> to vector<8x16xf32>
    %c8_317 = arith.constant 8 : index
    %c112_318 = arith.constant 112 : index
    %466 = vector.load %arg38[%c8_317, %c112_318] : memref<16x128xf32, #tpu.memory_space<vmem>>, vector<8x16xf32>
    tpu.vector_store %arg38[%c8_317, %c112_318], %465 {strides = array<i32>} : memref<16x128xf32, #tpu.memory_space<vmem>>, vector<8x16xf32>,
    %c0_319 = arith.constant 0 : index
    %c0_320 = arith.constant 0 : index
    %467 = vector.load %arg38[%c0_319, %c0_320] : memref<16x128xf32, #tpu.memory_space<vmem>>, vector<16x128xf32>
    %468 = arith.truncf %467 : vector<16x128xf32> to vector<16x128xbf16>
    %c0_321 = arith.constant 0 : index
    %c0_322 = arith.constant 0 : index
    %469 = vector.load %arg21[%c0_321, %c0_322] : memref<128x128xbf16, #tpu.memory_space<vmem>>, vector<128x128xbf16>
    %cst_323 = arith.constant dense<0.000000e+00> : vector<16x128xf32>
    %470 = tpu.matmul %468, %469, %cst_323 {dimension_numbers = #tpu.dot_dimension_numbers<[1], [0], [0], [1], [0, 0, 1, 1], [], []>} : vector<16x128xbf16>, vector<128x128xbf16>, vector<16x128xf32> -> vector<16x128xf32>
    %c0_324 = arith.constant 0 : index
    %c0_325 = arith.constant 0 : index
    %471 = vector.load %arg22[%c0_324, %c0_325] : memref<1x128xf32, #tpu.memory_space<vmem>>, vector<1x128xf32>
    %472 = vector.broadcast %471 : vector<1x128xf32> to vector<16x128xf32>
    %473 = arith.addf %470, %472 : vector<16x128xf32>
    %474 = arith.addf %187, %473 : vector<16x128xf32>
    %c0_326 = arith.constant 0 : index
    %c0_327 = arith.constant 0 : index
    %475 = vector.load %arg23[%c0_326, %c0_327] : memref<1x128xf32, #tpu.memory_space<vmem>>, vector<1x128xf32>
    %c0_328 = arith.constant 0 : index
    %c0_329 = arith.constant 0 : index
    %476 = vector.load %arg24[%c0_328, %c0_329] : memref<1x128xf32, #tpu.memory_space<vmem>>, vector<1x128xf32>
    %cst_330 = arith.constant dense<0.000000e+00> : vector<16xf32>
    %477 = vector.multi_reduction <add>, %474, %cst_330 [1] : vector<16x128xf32> to vector<16xf32>
    %478 = vector.shape_cast %477 : vector<16xf32> to vector<16x1xf32>
    %cst_331 = arith.constant 1.280000e+02 : f32
    %479 = vector.broadcast %cst_331 : f32 to vector<16x1xf32>
    %480 = arith.divf %478, %479 : vector<16x1xf32>
    %481 = vector.broadcast %480 : vector<16x1xf32> to vector<16x128xf32>
    %482 = arith.subf %474, %481 : vector<16x128xf32>
    %483 = arith.mulf %482, %482 : vector<16x128xf32>
    %cst_332 = arith.constant dense<0.000000e+00> : vector<16xf32>
    %484 = vector.multi_reduction <add>, %483, %cst_332 [1] : vector<16x128xf32> to vector<16xf32>
    %485 = vector.shape_cast %484 : vector<16xf32> to vector<16x1xf32>
    %cst_333 = arith.constant 1.280000e+02 : f32
    %486 = vector.broadcast %cst_333 : f32 to vector<16x1xf32>
    %487 = arith.divf %485, %486 : vector<16x1xf32>
    %488 = vector.broadcast %480 : vector<16x1xf32> to vector<16x128xf32>
    %489 = arith.subf %474, %488 : vector<16x128xf32>
    %cst_334 = arith.constant 9.99999974E-6 : f32
    %490 = vector.broadcast %cst_334 : f32 to vector<16x1xf32>
    %491 = arith.addf %487, %490 : vector<16x1xf32>
    %492 = math.rsqrt %491 : vector<16x1xf32>
    %493 = vector.broadcast %492 : vector<16x1xf32> to vector<16x128xf32>
    %494 = arith.mulf %489, %493 : vector<16x128xf32>
    %495 = vector.broadcast %475 : vector<1x128xf32> to vector<16x128xf32>
    %496 = arith.mulf %494, %495 : vector<16x128xf32>
    %497 = vector.broadcast %476 : vector<1x128xf32> to vector<16x128xf32>
    %498 = arith.addf %496, %497 : vector<16x128xf32>
    %499 = arith.truncf %498 : vector<16x128xf32> to vector<16x128xbf16>
    %c0_335 = arith.constant 0 : index
    %c0_336 = arith.constant 0 : index
    %500 = vector.load %arg25[%c0_335, %c0_336] : memref<128x256xbf16, #tpu.memory_space<vmem>>, vector<128x256xbf16>
    %cst_337 = arith.constant dense<0.000000e+00> : vector<16x256xf32>
    %501 = tpu.matmul %499, %500, %cst_337 {dimension_numbers = #tpu.dot_dimension_numbers<[1], [0], [0], [1], [0, 0, 1, 1], [], []>} : vector<16x128xbf16>, vector<128x256xbf16>, vector<16x256xf32> -> vector<16x256xf32>
    %c0_338 = arith.constant 0 : index
    %c0_339 = arith.constant 0 : index
    %502 = vector.load %arg26[%c0_338, %c0_339] : memref<1x256xf32, #tpu.memory_space<vmem>>, vector<1x256xf32>
    %503 = vector.broadcast %502 : vector<1x256xf32> to vector<16x256xf32>
    %504 = arith.addf %501, %503 : vector<16x256xf32>
    %cst_340 = arith.constant 5.000000e-01 : f32
    %505 = vector.broadcast %cst_340 : f32 to vector<16x256xf32>
    %506 = arith.mulf %505, %504 : vector<16x256xf32>
    %cst_341 = arith.constant 0.707106769 : f32
    %507 = vector.broadcast %cst_341 : f32 to vector<16x256xf32>
    %508 = arith.mulf %504, %507 : vector<16x256xf32>
    %509 = math.erf %508 : vector<16x256xf32>
    %cst_342 = arith.constant 1.000000e+00 : f32
    %510 = vector.broadcast %cst_342 : f32 to vector<16x256xf32>
    %511 = arith.addf %510, %509 : vector<16x256xf32>
    %512 = arith.mulf %506, %511 : vector<16x256xf32>
    %513 = arith.truncf %512 : vector<16x256xf32> to vector<16x256xbf16>
    %c0_343 = arith.constant 0 : index
    %c0_344 = arith.constant 0 : index
    %514 = vector.load %arg27[%c0_343, %c0_344] : memref<256x128xbf16, #tpu.memory_space<vmem>>, vector<256x128xbf16>
    %cst_345 = arith.constant dense<0.000000e+00> : vector<16x128xf32>
    %515 = tpu.matmul %513, %514, %cst_345 {dimension_numbers = #tpu.dot_dimension_numbers<[1], [0], [0], [1], [0, 0, 1, 1], [], []>} : vector<16x256xbf16>, vector<256x128xbf16>, vector<16x128xf32> -> vector<16x128xf32>
    %c0_346 = arith.constant 0 : index
    %c0_347 = arith.constant 0 : index
    %516 = vector.load %arg28[%c0_346, %c0_347] : memref<1x128xf32, #tpu.memory_space<vmem>>, vector<1x128xf32>
    %517 = vector.broadcast %516 : vector<1x128xf32> to vector<16x128xf32>
    %518 = arith.addf %515, %517 : vector<16x128xf32>
    %519 = arith.addf %498, %518 : vector<16x128xf32>
    %c0_348 = arith.constant 0 : index
    %c0_349 = arith.constant 0 : index
    %520 = vector.load %arg29[%c0_348, %c0_349] : memref<1x128xf32, #tpu.memory_space<vmem>>, vector<1x128xf32>
    %c0_350 = arith.constant 0 : index
    %c0_351 = arith.constant 0 : index
    %521 = vector.load %arg30[%c0_350, %c0_351] : memref<1x128xf32, #tpu.memory_space<vmem>>, vector<1x128xf32>
    %cst_352 = arith.constant dense<0.000000e+00> : vector<16xf32>
    %522 = vector.multi_reduction <add>, %519, %cst_352 [1] : vector<16x128xf32> to vector<16xf32>
    %523 = vector.shape_cast %522 : vector<16xf32> to vector<16x1xf32>
    %cst_353 = arith.constant 1.280000e+02 : f32
    %524 = vector.broadcast %cst_353 : f32 to vector<16x1xf32>
    %525 = arith.divf %523, %524 : vector<16x1xf32>
    %526 = vector.broadcast %525 : vector<16x1xf32> to vector<16x128xf32>
    %527 = arith.subf %519, %526 : vector<16x128xf32>
    %528 = arith.mulf %527, %527 : vector<16x128xf32>
    %cst_354 = arith.constant dense<0.000000e+00> : vector<16xf32>
    %529 = vector.multi_reduction <add>, %528, %cst_354 [1] : vector<16x128xf32> to vector<16xf32>
    %530 = vector.shape_cast %529 : vector<16xf32> to vector<16x1xf32>
    %cst_355 = arith.constant 1.280000e+02 : f32
    %531 = vector.broadcast %cst_355 : f32 to vector<16x1xf32>
    %532 = arith.divf %530, %531 : vector<16x1xf32>
    %533 = vector.broadcast %525 : vector<16x1xf32> to vector<16x128xf32>
    %534 = arith.subf %519, %533 : vector<16x128xf32>
    %cst_356 = arith.constant 9.99999974E-6 : f32
    %535 = vector.broadcast %cst_356 : f32 to vector<16x1xf32>
    %536 = arith.addf %532, %535 : vector<16x1xf32>
    %537 = math.rsqrt %536 : vector<16x1xf32>
    %538 = vector.broadcast %537 : vector<16x1xf32> to vector<16x128xf32>
    %539 = arith.mulf %534, %538 : vector<16x128xf32>
    %540 = vector.broadcast %520 : vector<1x128xf32> to vector<16x128xf32>
    %541 = arith.mulf %539, %540 : vector<16x128xf32>
    %542 = vector.broadcast %521 : vector<1x128xf32> to vector<16x128xf32>
    %543 = arith.addf %541, %542 : vector<16x128xf32>
    %c0_357 = arith.constant 0 : index
    %c0_358 = arith.constant 0 : index
    %544 = vector.load %arg31[%c0_357, %c0_358] : memref<16x128xf32, #tpu.memory_space<vmem>>, vector<16x128xf32>
    tpu.vector_store %arg31[%c0_357, %c0_358], %543 {strides = array<i32>} : memref<16x128xf32, #tpu.memory_space<vmem>>, vector<16x128xf32>,
    return
  }
  func.func @transform_0(%arg0: i32) -> (i32, i32) {
    %c0_i32 = arith.constant 0 : i32
    %c0_i32_0 = arith.constant 0 : i32
    return %arg0, %c0_i32 : i32, i32
  }
  func.func @transform_1(%arg0: i32) -> (i32, i32) {
    %c0_i32 = arith.constant 0 : i32
    %c0_i32_0 = arith.constant 0 : i32
    return %arg0, %c0_i32 : i32, i32
  }
  func.func @transform_2(%arg0: i32) -> (i32, i32) {
    %c0_i32 = arith.constant 0 : i32
    %c0_i32_0 = arith.constant 0 : i32
    %c0_i32_1 = arith.constant 0 : i32
    return %c0_i32, %c0_i32_0 : i32, i32
  }
  func.func @transform_3(%arg0: i32) -> (i32, i32) {
    %c0_i32 = arith.constant 0 : i32
    %c0_i32_0 = arith.constant 0 : i32
    %c0_i32_1 = arith.constant 0 : i32
    return %c0_i32, %c0_i32_0 : i32, i32
  }
  func.func @transform_4(%arg0: i32) -> (i32, i32) {
    %c0_i32 = arith.constant 0 : i32
    %c0_i32_0 = arith.constant 0 : i32
    %c0_i32_1 = arith.constant 0 : i32
    return %c0_i32, %c0_i32_0 : i32, i32
  }
  func.func @transform_5(%arg0: i32) -> (i32, i32) {
    %c0_i32 = arith.constant 0 : i32
    %c0_i32_0 = arith.constant 0 : i32
    %c0_i32_1 = arith.constant 0 : i32
    return %c0_i32, %c0_i32_0 : i32, i32
  }
  func.func @transform_6(%arg0: i32) -> (i32, i32) {
    %c0_i32 = arith.constant 0 : i32
    %c0_i32_0 = arith.constant 0 : i32
    %c0_i32_1 = arith.constant 0 : i32
    return %c0_i32, %c0_i32_0 : i32, i32
  }
  func.func @transform_7(%arg0: i32) -> (i32, i32) {
    %c0_i32 = arith.constant 0 : i32
    %c0_i32_0 = arith.constant 0 : i32
    %c0_i32_1 = arith.constant 0 : i32
    return %c0_i32, %c0_i32_0 : i32, i32
  }
  func.func @transform_8(%arg0: i32) -> (i32, i32) {
    %c0_i32 = arith.constant 0 : i32
    %c0_i32_0 = arith.constant 0 : i32
    %c0_i32_1 = arith.constant 0 : i32
    return %c0_i32, %c0_i32_0 : i32, i32
  }
  func.func @transform_9(%arg0: i32) -> (i32, i32) {
    %c0_i32 = arith.constant 0 : i32
    %c0_i32_0 = arith.constant 0 : i32
    %c0_i32_1 = arith.constant 0 : i32
    return %c0_i32, %c0_i32_0 : i32, i32
  }
  func.func @transform_10(%arg0: i32) -> (i32, i32) {
    %c0_i32 = arith.constant 0 : i32
    %c0_i32_0 = arith.constant 0 : i32
    %c0_i32_1 = arith.constant 0 : i32
    return %c0_i32, %c0_i32_0 : i32, i32
  }
  func.func @transform_11(%arg0: i32) -> (i32, i32) {
    %c0_i32 = arith.constant 0 : i32
    %c0_i32_0 = arith.constant 0 : i32
    %c0_i32_1 = arith.constant 0 : i32
    return %c0_i32, %c0_i32_0 : i32, i32
  }
  func.func @transform_12(%arg0: i32) -> (i32, i32) {
    %c0_i32 = arith.constant 0 : i32
    %c0_i32_0 = arith.constant 0 : i32
    %c0_i32_1 = arith.constant 0 : i32
    return %c0_i32, %c0_i32_0 : i32, i32
  }
  func.func @transform_13(%arg0: i32) -> (i32, i32) {
    %c0_i32 = arith.constant 0 : i32
    %c0_i32_0 = arith.constant 0 : i32
    %c0_i32_1 = arith.constant 0 : i32
    return %c0_i32, %c0_i32_0 : i32, i32
  }
  func.func @transform_14(%arg0: i32) -> (i32, i32) {
    %c0_i32 = arith.constant 0 : i32
    %c0_i32_0 = arith.constant 0 : i32
    %c0_i32_1 = arith.constant 0 : i32
    return %c0_i32, %c0_i32_0 : i32, i32
  }
  func.func @transform_15(%arg0: i32) -> (i32, i32) {
    %c0_i32 = arith.constant 0 : i32
    %c0_i32_0 = arith.constant 0 : i32
    %c0_i32_1 = arith.constant 0 : i32
    return %c0_i32, %c0_i32_0 : i32, i32
  }
  func.func @transform_16(%arg0: i32) -> (i32, i32) {
    %c0_i32 = arith.constant 0 : i32
    %c0_i32_0 = arith.constant 0 : i32
    %c0_i32_1 = arith.constant 0 : i32
    return %c0_i32, %c0_i32_0 : i32, i32
  }
  func.func @transform_17(%arg0: i32) -> (i32, i32) {
    %c0_i32 = arith.constant 0 : i32
    %c0_i32_0 = arith.constant 0 : i32
    %c0_i32_1 = arith.constant 0 : i32
    return %c0_i32, %c0_i32_0 : i32, i32
  }
  func.func @transform_18(%arg0: i32) -> (i32, i32) {
    %c0_i32 = arith.constant 0 : i32
    %c0_i32_0 = arith.constant 0 : i32
    %c0_i32_1 = arith.constant 0 : i32
    return %c0_i32, %c0_i32_0 : i32, i32
  }
  func.func @transform_19(%arg0: i32) -> (i32, i32) {
    %c0_i32 = arith.constant 0 : i32
    %c0_i32_0 = arith.constant 0 : i32
    %c0_i32_1 = arith.constant 0 : i32
    return %c0_i32, %c0_i32_0 : i32, i32
  }
  func.func @transform_20(%arg0: i32) -> (i32, i32) {
    %c0_i32 = arith.constant 0 : i32
    %c0_i32_0 = arith.constant 0 : i32
    %c0_i32_1 = arith.constant 0 : i32
    return %c0_i32, %c0_i32_0 : i32, i32
  }
  func.func @transform_21(%arg0: i32) -> (i32, i32) {
    %c0_i32 = arith.constant 0 : i32
    %c0_i32_0 = arith.constant 0 : i32
    %c0_i32_1 = arith.constant 0 : i32
    return %c0_i32, %c0_i32_0 : i32, i32
  }
  func.func @transform_22(%arg0: i32) -> (i32, i32) {
    %c0_i32 = arith.constant 0 : i32
    %c0_i32_0 = arith.constant 0 : i32
    %c0_i32_1 = arith.constant 0 : i32
    return %c0_i32, %c0_i32_0 : i32, i32
  }
  func.func @transform_23(%arg0: i32) -> (i32, i32) {
    %c0_i32 = arith.constant 0 : i32
    %c0_i32_0 = arith.constant 0 : i32
    %c0_i32_1 = arith.constant 0 : i32
    return %c0_i32, %c0_i32_0 : i32, i32
  }
  func.func @transform_24(%arg0: i32) -> (i32, i32) {
    %c0_i32 = arith.constant 0 : i32
    %c0_i32_0 = arith.constant 0 : i32
    %c0_i32_1 = arith.constant 0 : i32
    return %c0_i32, %c0_i32_0 : i32, i32
  }
  func.func @transform_25(%arg0: i32) -> (i32, i32) {
    %c0_i32 = arith.constant 0 : i32
    %c0_i32_0 = arith.constant 0 : i32
    %c0_i32_1 = arith.constant 0 : i32
    return %c0_i32, %c0_i32_0 : i32, i32
  }
  func.func @transform_26(%arg0: i32) -> (i32, i32) {
    %c0_i32 = arith.constant 0 : i32
    %c0_i32_0 = arith.constant 0 : i32
    %c0_i32_1 = arith.constant 0 : i32
    return %c0_i32, %c0_i32_0 : i32, i32
  }
  func.func @transform_27(%arg0: i32) -> (i32, i32) {
    %c0_i32 = arith.constant 0 : i32
    %c0_i32_0 = arith.constant 0 : i32
    %c0_i32_1 = arith.constant 0 : i32
    return %c0_i32, %c0_i32_0 : i32, i32
  }
  func.func @transform_28(%arg0: i32) -> (i32, i32) {
    %c0_i32 = arith.constant 0 : i32
    %c0_i32_0 = arith.constant 0 : i32
    %c0_i32_1 = arith.constant 0 : i32
    return %c0_i32, %c0_i32_0 : i32, i32
  }
  func.func @transform_29(%arg0: i32) -> (i32, i32) {
    %c0_i32 = arith.constant 0 : i32
    %c0_i32_0 = arith.constant 0 : i32
    %c0_i32_1 = arith.constant 0 : i32
    return %c0_i32, %c0_i32_0 : i32, i32
  }
  func.func @transform_30(%arg0: i32) -> (i32, i32) {
    %c0_i32 = arith.constant 0 : i32
    %c0_i32_0 = arith.constant 0 : i32
    return %arg0, %c0_i32 : i32, i32
  }
}

</mosaic_0001>

<llo_original>
// kernel: foveal_step.1
$region0: #{foveal_step.1}
  #allocation0 [shape = 'u32[]', space=smem, size = 0x4, offset = 0x4, fixed_abs, tag = 'smem constant byte address 0x4 - core index']
  #allocation1 [shape = 'u32[144,128]{1,0:T(1,128)}', space=vmem, size = 0x12000, scoped, tag = 'internal scratch']
  #allocation2 [shape = 'f32[16,8,128]{2,1,0:T(8,128)}', space=vmem, size = 0x10000, scoped, tag = 'scratch operand']
  #allocation3 [shape = 'f32[16,16,128]{2,1,0:T(8,128)}', space=vmem, size = 0x20000, scoped, tag = 'scratch operand']
  #allocation4 [shape = 'f32[16,128]{1,0:T(8,128)}', space=vmem, size = 0x2000, scoped, tag = 'scratch operand']
  #allocation5 [shape = 'f32[16,8,16]{2,1,0:T(8,128)}', space=vmem, size = 0x10000, scoped, tag = 'scratch operand']
  #allocation6 [shape = 'f32[16,8,16]{2,1,0:T(8,128)}', space=vmem, size = 0x10000, scoped, tag = 'scratch operand']
  #allocation7 [shape = 'f32[16,8,16]{2,1,0:T(8,128)}', space=vmem, size = 0x10000, scoped, tag = 'scratch operand']
  #allocation8 [shape = 'f32[16,128]{1,0:T(8,128)}', space=vmem, size = 0x2000, scoped, tag = 'scratch operand']
  %s0 = inlined_call_operand.smem [shape: u32[31], index: -1, kind: input, shape index: {}]
  %s1 = sld [smem:[%s0]]
  %s2 = scalar_lea.smem %s0, 1
  %s3 = sld [smem:[%s2]]
  %s4 = scalar_lea.smem %s0, 2
  %s5 = sld [smem:[%s4]]
  %s6 = scalar_lea.smem %s0, 3
  %s7 = sld [smem:[%s6]]
  %s8 = scalar_lea.smem %s0, 4
  %s9 = sld [smem:[%s8]]
  %s10 = scalar_lea.smem %s0, 5
  %s11 = sld [smem:[%s10]]
  %s12 = scalar_lea.smem %s0, 6
  %s13 = sld [smem:[%s12]]
  %s14 = scalar_lea.smem %s0, 7
  %s15 = sld [smem:[%s14]]
  %s16 = scalar_lea.smem %s0, 8
  %s17 = sld [smem:[%s16]]
  %s18 = scalar_lea.smem %s0, 9
  %s19 = sld [smem:[%s18]]
  %s20 = scalar_lea.smem %s0, 10
  %s21 = sld [smem:[%s20]]
  %s22 = scalar_lea.smem %s0, 11
  %s23 = sld [smem:[%s22]]
  %s24 = scalar_lea.smem %s0, 12
  %s25 = sld [smem:[%s24]]
  %s26 = scalar_lea.smem %s0, 13
  %s27 = sld [smem:[%s26]]
  %s28 = scalar_lea.smem %s0, 14
  %s29 = sld [smem:[%s28]]
  %s30 = scalar_lea.smem %s0, 15
  %s31 = sld [smem:[%s30]]
  %s32 = scalar_lea.smem %s0, 16
  %s33 = sld [smem:[%s32]]
  %s34 = scalar_lea.smem %s0, 17
  %s35 = sld [smem:[%s34]]
  %s36 = scalar_lea.smem %s0, 18
  %s37 = sld [smem:[%s36]]
  %s38 = scalar_lea.smem %s0, 19
  %s39 = sld [smem:[%s38]]
  %s40 = scalar_lea.smem %s0, 20
  %s41 = sld [smem:[%s40]]
  %s42 = scalar_lea.smem %s0, 21
  %s43 = sld [smem:[%s42]]
  %s44 = scalar_lea.smem %s0, 22
  %s45 = sld [smem:[%s44]]
  %s46 = scalar_lea.smem %s0, 23
  %s47 = sld [smem:[%s46]]
  %s48 = scalar_lea.smem %s0, 24
  %s49 = sld [smem:[%s48]]
  %s50 = scalar_lea.smem %s0, 25
  %s51 = sld [smem:[%s50]]
  %s52 = scalar_lea.smem %s0, 26
  %s53 = sld [smem:[%s52]]
  %s54 = scalar_lea.smem %s0, 27
  %s55 = sld [smem:[%s54]]
  %s56 = scalar_lea.smem %s0, 28
  %s57 = sld [smem:[%s56]]
  %s58 = scalar_lea.smem %s0, 29
  %s59 = sld [smem:[%s58]]
  %s60 = scalar_lea.smem %s0, 30
  %s61 = sld [smem:[%s60]]
  %s62 = sld [smem:[#allocation0]]
  $region130: #{foveal_step.1} parent=0
    _
  %s64 = ssub.s32 1, %s62
  %s65 = scalar_select 0, %s64, %s62
  $region1: #{foveal_step.1} parent=0
    #allocation9 [shape = 'u8[8192]{0}', space=vmem, size = 0x2000, scoped, tag = 'output window, operand 0, single buffered']
    #allocation10 [shape = 's32[1]{0}', space=sflag, size = 0x4, scoped, tag = 'scoped memory for foveal_step.1']
    %66 = vsyncpa [#allocation10], 0
    // Predicated region
    $region2: #{foveal_step.1} parent=1 // pred_check
      _
    $region3: #{foveal_step.1} parent=1 // pred_check_branch
      %68 = sbr.rel (0) target = $region5
    $region4: #{foveal_step.1} parent=1 // pred_region
      _
    $region5: #{foveal_step.1} parent=1 // pred_fallthru
      _
    // Predicated region
    $region6: #{foveal_step.1} parent=1 // pred_check
      _
    $region7: #{foveal_step.1} parent=1 // pred_check_branch
      %70 = sbr.rel (0) target = $region9
    $region8: #{foveal_step.1} parent=1 // pred_region
      _
    $region9: #{foveal_step.1} parent=1 // pred_fallthru
      _
    // Predicated region
    $region10: #{foveal_step.1} parent=1 // pred_check
      _
    $region11: #{foveal_step.1} parent=1 // pred_check_branch
      %72 = sbr.rel (0) target = $region13
    $region12: #{foveal_step.1} parent=1 // pred_region
      _
    $region13: #{foveal_step.1} parent=1 // pred_fallthru
      _
    // Predicated region
    $region14: #{foveal_step.1} parent=1 // pred_check
      _
    $region15: #{foveal_step.1} parent=1 // pred_check_branch
      %74 = sbr.rel (0) target = $region17
    $region16: #{foveal_step.1} parent=1 // pred_region
      _
    $region17: #{foveal_step.1} parent=1 // pred_fallthru
      _
    // Predicated region
    $region18: #{foveal_step.1} parent=1 // pred_check
      _
    $region19: #{foveal_step.1} parent=1 // pred_check_branch
      %76 = sbr.rel (0) target = $region21
    $region20: #{foveal_step.1} parent=1 // pred_region
      _
    $region21: #{foveal_step.1} parent=1 // pred_fallthru
      _
    // Predicated region
    $region22: #{foveal_step.1} parent=1 // pred_check
      _
    $region23: #{foveal_step.1} parent=1 // pred_check_branch
      %78 = sbr.rel (0) target = $region25
    $region24: #{foveal_step.1} parent=1 // pred_region
      _
    $region25: #{foveal_step.1} parent=1 // pred_fallthru
      _
    // Predicated region
    $region26: #{foveal_step.1} parent=1 // pred_check
      _
    $region27: #{foveal_step.1} parent=1 // pred_check_branch
      %80 = sbr.rel (0) target = $region29
    $region28: #{foveal_step.1} parent=1 // pred_region
      _
    $region29: #{foveal_step.1} parent=1 // pred_fallthru
      _
    // Predicated region
    $region30: #{foveal_step.1} parent=1 // pred_check
      _
    $region31: #{foveal_step.1} parent=1 // pred_check_branch
      %82 = sbr.rel (0) target = $region33
    $region32: #{foveal_step.1} parent=1 // pred_region
      _
    $region33: #{foveal_step.1} parent=1 // pred_fallthru
      _
    // Predicated region
    $region34: #{foveal_step.1} parent=1 // pred_check
      _
    $region35: #{foveal_step.1} parent=1 // pred_check_branch
      %84 = sbr.rel (0) target = $region37
    $region36: #{foveal_step.1} parent=1 // pred_region
      _
    $region37: #{foveal_step.1} parent=1 // pred_fallthru
      _
    // Predicated region
    $region38: #{foveal_step.1} parent=1 // pred_check
      _
    $region39: #{foveal_step.1} parent=1 // pred_check_branch
      %86 = sbr.rel (0) target = $region41
    $region40: #{foveal_step.1} parent=1 // pred_region
      _
    $region41: #{foveal_step.1} parent=1 // pred_fallthru
      _
    // Predicated region
    $region42: #{foveal_step.1} parent=1 // pred_check
      _
    $region43: #{foveal_step.1} parent=1 // pred_check_branch
      %88 = sbr.rel (0) target = $region45
    $region44: #{foveal_step.1} parent=1 // pred_region
      _
    $region45: #{foveal_step.1} parent=1 // pred_fallthru
      _
    // Predicated region
    $region46: #{foveal_step.1} parent=1 // pred_check
      _
    $region47: #{foveal_step.1} parent=1 // pred_check_branch
      %90 = sbr.rel (0) target = $region49
    $region48: #{foveal_step.1} parent=1 // pred_region
      _
    $region49: #{foveal_step.1} parent=1 // pred_fallthru
      _
    // Predicated region
    $region50: #{foveal_step.1} parent=1 // pred_check
      _
    $region51: #{foveal_step.1} parent=1 // pred_check_branch
      %92 = sbr.rel (0) target = $region53
    $region52: #{foveal_step.1} parent=1 // pred_region
      _
    $region53: #{foveal_step.1} parent=1 // pred_fallthru
      _
    // Predicated region
    $region54: #{foveal_step.1} parent=1 // pred_check
      _
    $region55: #{foveal_step.1} parent=1 // pred_check_branch
      %94 = sbr.rel (0) target = $region57
    $region56: #{foveal_step.1} parent=1 // pred_region
      _
    $region57: #{foveal_step.1} parent=1 // pred_fallthru
      _
    // Predicated region
    $region58: #{foveal_step.1} parent=1 // pred_check
      _
    $region59: #{foveal_step.1} parent=1 // pred_check_branch
      %96 = sbr.rel (0) target = $region61
    $region60: #{foveal_step.1} parent=1 // pred_region
      _
    $region61: #{foveal_step.1} parent=1 // pred_fallthru
      _
    // Predicated region
    $region62: #{foveal_step.1} parent=1 // pred_check
      _
    $region63: #{foveal_step.1} parent=1 // pred_check_branch
      %98 = sbr.rel (0) target = $region65
    $region64: #{foveal_step.1} parent=1 // pred_region
      _
    $region65: #{foveal_step.1} parent=1 // pred_fallthru
      _
    // Predicated region
    $region66: #{foveal_step.1} parent=1 // pred_check
      _
    $region67: #{foveal_step.1} parent=1 // pred_check_branch
      %100 = sbr.rel (0) target = $region69
    $region68: #{foveal_step.1} parent=1 // pred_region
      _
    $region69: #{foveal_step.1} parent=1 // pred_fallthru
      _
    // Predicated region
    $region70: #{foveal_step.1} parent=1 // pred_check
      _
    $region71: #{foveal_step.1} parent=1 // pred_check_branch
      %102 = sbr.rel (0) target = $region73
    $region72: #{foveal_step.1} parent=1 // pred_region
      _
    $region73: #{foveal_step.1} parent=1 // pred_fallthru
      _
    // Predicated region
    $region74: #{foveal_step.1} parent=1 // pred_check
      _
    $region75: #{foveal_step.1} parent=1 // pred_check_branch
      %104 = sbr.rel (0) target = $region77
    $region76: #{foveal_step.1} parent=1 // pred_region
      _
    $region77: #{foveal_step.1} parent=1 // pred_fallthru
      _
    // Predicated region
    $region78: #{foveal_step.1} parent=1 // pred_check
      _
    $region79: #{foveal_step.1} parent=1 // pred_check_branch
      %106 = sbr.rel (0) target = $region81
    $region80: #{foveal_step.1} parent=1 // pred_region
      _
    $region81: #{foveal_step.1} parent=1 // pred_fallthru
      _
    // Predicated region
    $region82: #{foveal_step.1} parent=1 // pred_check
      _
    $region83: #{foveal_step.1} parent=1 // pred_check_branch
      %108 = sbr.rel (0) target = $region85
    $region84: #{foveal_step.1} parent=1 // pred_region
      _
    $region85: #{foveal_step.1} parent=1 // pred_fallthru
      _
    // Predicated region
    $region86: #{foveal_step.1} parent=1 // pred_check
      _
    $region87: #{foveal_step.1} parent=1 // pred_check_branch
      %110 = sbr.rel (0) target = $region89
    $region88: #{foveal_step.1} parent=1 // pred_region
      _
    $region89: #{foveal_step.1} parent=1 // pred_fallthru
      _
    // Predicated region
    $region90: #{foveal_step.1} parent=1 // pred_check
      _
    $region91: #{foveal_step.1} parent=1 // pred_check_branch
      %112 = sbr.rel (0) target = $region93
    $region92: #{foveal_step.1} parent=1 // pred_region
      _
    $region93: #{foveal_step.1} parent=1 // pred_fallthru
      _
    // Predicated region
    $region94: #{foveal_step.1} parent=1 // pred_check
      _
    $region95: #{foveal_step.1} parent=1 // pred_check_branch
      %114 = sbr.rel (0) target = $region97
    $region96: #{foveal_step.1} parent=1 // pred_region
      _
    $region97: #{foveal_step.1} parent=1 // pred_fallthru
      _
    // Predicated region
    $region98: #{foveal_step.1} parent=1 // pred_check
      _
    $region99: #{foveal_step.1} parent=1 // pred_check_branch
      %116 = sbr.rel (0) target = $region101
    $region100: #{foveal_step.1} parent=1 // pred_region
      _
    $region101: #{foveal_step.1} parent=1 // pred_fallthru
      _
    // Predicated region
    $region102: #{foveal_step.1} parent=1 // pred_check
      _
    $region103: #{foveal_step.1} parent=1 // pred_check_branch
      %118 = sbr.rel (0) target = $region105
    $region104: #{foveal_step.1} parent=1 // pred_region
      _
    $region105: #{foveal_step.1} parent=1 // pred_fallthru
      _
    // Predicated region
    $region106: #{foveal_step.1} parent=1 // pred_check
      _
    $region107: #{foveal_step.1} parent=1 // pred_check_branch
      %120 = sbr.rel (0) target = $region109
    $region108: #{foveal_step.1} parent=1 // pred_region
      _
    $region109: #{foveal_step.1} parent=1 // pred_fallthru
      _
    // Predicated region
    $region110: #{foveal_step.1} parent=1 // pred_check
      _
    $region111: #{foveal_step.1} parent=1 // pred_check_branch
      %122 = sbr.rel (0) target = $region113
    $region112: #{foveal_step.1} parent=1 // pred_region
      _
    $region113: #{foveal_step.1} parent=1 // pred_fallthru
      _
    // Predicated region
    $region114: #{foveal_step.1} parent=1 // pred_check
      _
    $region115: #{foveal_step.1} parent=1 // pred_check_branch
      %124 = sbr.rel (0) target = $region117
    $region116: #{foveal_step.1} parent=1 // pred_region
      _
    $region117: #{foveal_step.1} parent=1 // pred_fallthru
      _
    // Predicated region
    $region118: #{foveal_step.1} parent=1 // pred_check
      _
    $region119: #{foveal_step.1} parent=1 // pred_check_branch
      %126 = sbr.rel (0) target = $region121
    $region120: #{foveal_step.1} parent=1 // pred_region
      _
    $region121: #{foveal_step.1} parent=1 // pred_fallthru
      _
    %v128 = vld [vmem:[%s1] sm:$0xff]
    %v129 = vld [vmem:[%s1 + $0x8] sm:$0xff]
    %v130 = vld [vmem:[%s3] sm:$0xff]
    %v131 = vld [vmem:[%s3 + $0x8] sm:$0xff]
    %v132 = vpack.c.bf16 %v129, %v128
    %v133 = vld [vmem:[%s5] sm:$0xff]
    %v134 = vld [vmem:[%s5 + $0x8] sm:$0xff]
    %v135 = vld [vmem:[%s5 + $0x10] sm:$0xff]
    %v136 = vld [vmem:[%s5 + $0x18] sm:$0xff]
    %v137 = vld [vmem:[%s5 + $0x20] sm:$0xff]
    %v138 = vld [vmem:[%s5 + $0x28] sm:$0xff]
    %v139 = vld [vmem:[%s5 + $0x30] sm:$0xff]
    %v140 = vld [vmem:[%s5 + $0x38] sm:$0xff]
    %v141 = vld [vmem:[%s5 + $0x40] sm:$0xff]
    %v142 = vld [vmem:[%s5 + $0x48] sm:$0xff]
    %v143 = vld [vmem:[%s5 + $0x50] sm:$0xff]
    %v144 = vld [vmem:[%s5 + $0x58] sm:$0xff]
    %v145 = vld [vmem:[%s5 + $0x60] sm:$0xff]
    %v146 = vld [vmem:[%s5 + $0x68] sm:$0xff]
    %v147 = vld [vmem:[%s5 + $0x70] sm:$0xff]
    %v148 = vld [vmem:[%s5 + $0x78] sm:$0xff]
    %v149 = vld [vmem:[%s7] sm:$0x3]
    %v151 = vlaneseq
    %v152 = vshrl.u32 %v151, 7
    %v153 = vsub.s32 0, %v152
    %v154 = vrot.slane %v149, %v153
    %v155 = vlaneseq
    %v156 = vshrl.u32 %v155, 7
    %v157 = vsub.s32 1, %v156
    %v158 = vrot.slane %v149, %v157
    %v177 = vunpack.c.l.b16 %v133
    %v178 = vunpack.c.h.b16 %v133
    %v179 = vunpack.c.l.b16 %v134
    %v180 = vunpack.c.h.b16 %v134
    %v181 = vunpack.c.l.b16 %v135
    %v182 = vunpack.c.h.b16 %v135
    %v183 = vunpack.c.l.b16 %v136
    %v184 = vunpack.c.h.b16 %v136
    %v185 = vunpack.c.l.b16 %v137
    %v186 = vunpack.c.h.b16 %v137
    %v187 = vunpack.c.l.b16 %v138
    %v188 = vunpack.c.h.b16 %v138
    %v189 = vunpack.c.l.b16 %v139
    %v190 = vunpack.c.h.b16 %v139
    %v191 = vunpack.c.l.b16 %v140
    %v192 = vunpack.c.h.b16 %v140
    %v193 = vunpack.c.l.b16 %v141
    %v194 = vunpack.c.h.b16 %v141
    %v195 = vunpack.c.l.b16 %v142
    %v196 = vunpack.c.h.b16 %v142
    %v197 = vunpack.c.l.b16 %v143
    %v198 = vunpack.c.h.b16 %v143
    %v199 = vunpack.c.l.b16 %v144
    %v200 = vunpack.c.h.b16 %v144
    %v201 = vunpack.c.l.b16 %v145
    %v202 = vunpack.c.h.b16 %v145
    %v203 = vunpack.c.l.b16 %v146
    %v204 = vunpack.c.h.b16 %v146
    %v205 = vunpack.c.l.b16 %v147
    %v206 = vunpack.c.h.b16 %v147
    %v207 = vunpack.c.l.b16 %v148
    %v208 = vunpack.c.h.b16 %v148
    %v209 = vpack.c.b16 %v179, %v177
    %v210 = vpack.c.b16 %v180, %v178
    %v211 = vpack.c.b16 %v183, %v181
    %v212 = vpack.c.b16 %v184, %v182
    %v213 = vpack.c.b16 %v187, %v185
    %v214 = vpack.c.b16 %v188, %v186
    %v215 = vpack.c.b16 %v191, %v189
    %v216 = vpack.c.b16 %v192, %v190
    %v217 = vpack.c.b16 %v195, %v193
    %v218 = vpack.c.b16 %v196, %v194
    %v219 = vpack.c.b16 %v199, %v197
    %v220 = vpack.c.b16 %v200, %v198
    %v221 = vpack.c.b16 %v203, %v201
    %v222 = vpack.c.b16 %v204, %v202
    %v223 = vpack.c.b16 %v207, %v205
    %v224 = vpack.c.b16 %v208, %v206
    %241 = vmatprep.subr.bf16.mxu0 %v210
    %242 = vmatpush1.bf16.msra.mxu0 %v209
    %243 = vmatprep.subr.bf16.mxu0 %v212
    %244 = vmatpush1.bf16.msra.mxu0 %v211
    %245 = vmatprep.subr.bf16.mxu0 %v214
    %246 = vmatpush1.bf16.msra.mxu0 %v213
    %247 = vmatprep.subr.bf16.mxu0 %v216
    %248 = vmatpush1.bf16.msra.mxu0 %v215
    %249 = vmatprep.subr.bf16.mxu0 %v218
    %250 = vmatpush1.bf16.msra.mxu0 %v217
    %251 = vmatprep.subr.bf16.mxu0 %v220
    %252 = vmatpush1.bf16.msra.mxu0 %v219
    %253 = vmatprep.subr.bf16.mxu0 %v222
    %254 = vmatpush1.bf16.msra.mxu0 %v221
    %255 = vmatprep.subr.bf16.mxu0 %v224
    %256 = vmatpush1.bf16.msra.mxu0 %v223
    %257 = vmatprep.subr.bf16.mxu0 0
    %258 = vmatpush1.bf16.msra.mxu0 0
    %259 = vmatprep.subr.bf16.mxu0 0
    %260 = vmatpush1.bf16.msra.mxu0 0
    %261 = vmatprep.subr.bf16.mxu0 0
    %262 = vmatpush1.bf16.msra.mxu0 0
    %263 = vmatprep.subr.bf16.mxu0 0
    %264 = vmatpush1.bf16.msra.mxu0 0
    %265 = vmatprep.subr.bf16.mxu0 0
    %266 = vmatpush1.bf16.msra.mxu0 0
    %267 = vmatprep.subr.bf16.mxu0 0
    %268 = vmatpush1.bf16.msra.mxu0 0
    %269 = vmatprep.subr.bf16.mxu0 0
    %270 = vmatpush1.bf16.msra.mxu0 0
    %271 = vmatprep.subr.bf16.mxu0 0
    %272 = vmatpush1.bf16.msra.mxu0 0
    %273 = vmatprep.mubr.bf16.mxu0 0
    %274 = vmatmul.mubr.bf16.gmra.mrb[0].mxu0 %v132
    %v275 = vpop.f32.mrb[0].mxu0
    %v276 = vadd.f32 %v154, %v275
    %v277 = vpop.f32.mrb[0].mxu0
    %v278 = vadd.f32 %v158, %v277
    %v279 = vpop.f32.mrb[0].mxu0
    %v280 = vadd.f32 %v154, %v279
    %v281 = vpop.f32.mrb[0].mxu0
    %v282 = vadd.f32 %v158, %v281
    %283 = vdwg.mxu0
    %v284 = vmax.f32 %v276, 0.0
    %v285 = vmax.f32 %v278, 0.0
    %v286 = vmax.f32 %v280, 0.0
    %v287 = vmax.f32 %v282, 0.0
    %v288 = vpack.c.bf16 %v286, %v284
    %v289 = vpack.c.bf16 %v287, %v285
    %v290 = vld [vmem:[%s9] sm:$0xff]
    %v291 = vld [vmem:[%s9 + $0x8] sm:$0xff]
    %v292 = vld [vmem:[%s9 + $0x10] sm:$0xff]
    %v293 = vld [vmem:[%s9 + $0x18] sm:$0xff]
    %v294 = vld [vmem:[%s9 + $0x20] sm:$0xff]
    %v295 = vld [vmem:[%s9 + $0x28] sm:$0xff]
    %v296 = vld [vmem:[%s9 + $0x30] sm:$0xff]
    %v297 = vld [vmem:[%s9 + $0x38] sm:$0xff]
    %v298 = vld [vmem:[%s9 + $0x40] sm:$0xff]
    %v299 = vld [vmem:[%s9 + $0x48] sm:$0xff]
    %v300 = vld [vmem:[%s9 + $0x50] sm:$0xff]
    %v301 = vld [vmem:[%s9 + $0x58] sm:$0xff]
    %v302 = vld [vmem:[%s9 + $0x60] sm:$0xff]
    %v303 = vld [vmem:[%s9 + $0x68] sm:$0xff]
    %v304 = vld [vmem:[%s9 + $0x70] sm:$0xff]
    %v305 = vld [vmem:[%s9 + $0x78] sm:$0xff]
    %v306 = vld [vmem:[%s9 + $0x80] sm:$0xff]
    %v307 = vld [vmem:[%s9 + $0x88] sm:$0xff]
    %v308 = vld [vmem:[%s9 + $0x90] sm:$0xff]
    %v309 = vld [vmem:[%s9 + $0x98] sm:$0xff]
    %v310 = vld [vmem:[%s9 + $0xa0] sm:$0xff]
    %v311 = vld [vmem:[%s9 + $0xa8] sm:$0xff]
    %v312 = vld [vmem:[%s9 + $0xb0] sm:$0xff]
    %v313 = vld [vmem:[%s9 + $0xb8] sm:$0xff]
    %v314 = vld [vmem:[%s9 + $0xc0] sm:$0xff]
    %v315 = vld [vmem:[%s9 + $0xc8] sm:$0xff]
    %v316 = vld [vmem:[%s9 + $0xd0] sm:$0xff]
    %v317 = vld [vmem:[%s9 + $0xd8] sm:$0xff]
    %v318 = vld [vmem:[%s9 + $0xe0] sm:$0xff]
    %v319 = vld [vmem:[%s9 + $0xe8] sm:$0xff]
    %v320 = vld [vmem:[%s9 + $0xf0] sm:$0xff]
    %v321 = vld [vmem:[%s9 + $0xf8] sm:$0xff]
    %v322 = vld [vmem:[%s9 + $0x100] sm:$0xff]
    %v323 = vld [vmem:[%s9 + $0x108] sm:$0xff]
    %v324 = vld [vmem:[%s9 + $0x110] sm:$0xff]
    %v325 = vld [vmem:[%s9 + $0x118] sm:$0xff]
    %v326 = vld [vmem:[%s9 + $0x120] sm:$0xff]
    %v327 = vld [vmem:[%s9 + $0x128] sm:$0xff]
    %v328 = vld [vmem:[%s9 + $0x130] sm:$0xff]
    %v329 = vld [vmem:[%s9 + $0x138] sm:$0xff]
    %v330 = vld [vmem:[%s9 + $0x140] sm:$0xff]
    %v331 = vld [vmem:[%s9 + $0x148] sm:$0xff]
    %v332 = vld [vmem:[%s9 + $0x150] sm:$0xff]
    %v333 = vld [vmem:[%s9 + $0x158] sm:$0xff]
    %v334 = vld [vmem:[%s9 + $0x160] sm:$0xff]
    %v335 = vld [vmem:[%s9 + $0x168] sm:$0xff]
    %v336 = vld [vmem:[%s9 + $0x170] sm:$0xff]
    %v337 = vld [vmem:[%s9 + $0x178] sm:$0xff]
    %v338 = vld [vmem:[%s9 + $0x180] sm:$0xff]
    %v339 = vld [vmem:[%s9 + $0x188] sm:$0xff]
    %v340 = vld [vmem:[%s9 + $0x190] sm:$0xff]
    %v341 = vld [vmem:[%s9 + $0x198] sm:$0xff]
    %v342 = vld [vmem:[%s9 + $0x1a0] sm:$0xff]
    %v343 = vld [vmem:[%s9 + $0x1a8] sm:$0xff]
    %v344 = vld [vmem:[%s9 + $0x1b0] sm:$0xff]
    %v345 = vld [vmem:[%s9 + $0x1b8] sm:$0xff]
    %v346 = vld [vmem:[%s9 + $0x1c0] sm:$0xff]
    %v347 = vld [vmem:[%s9 + $0x1c8] sm:$0xff]
    %v348 = vld [vmem:[%s9 + $0x1d0] sm:$0xff]
    %v349 = vld [vmem:[%s9 + $0x1d8] sm:$0xff]
    %v350 = vld [vmem:[%s9 + $0x1e0] sm:$0xff]
    %v351 = vld [vmem:[%s9 + $0x1e8] sm:$0xff]
    %v352 = vld [vmem:[%s9 + $0x1f0] sm:$0xff]
    %v353 = vld [vmem:[%s9 + $0x1f8] sm:$0xff]
    %v354 = vld [vmem:[%s9 + $0x200] sm:$0xff]
    %v355 = vld [vmem:[%s9 + $0x208] sm:$0xff]
    %v356 = vld [vmem:[%s9 + $0x210] sm:$0xff]
    %v357 = vld [vmem:[%s9 + $0x218] sm:$0xff]
    %v358 = vld [vmem:[%s9 + $0x220] sm:$0xff]
    %v359 = vld [vmem:[%s9 + $0x228] sm:$0xff]
    %v360 = vld [vmem:[%s9 + $0x230] sm:$0xff]
    %v361 = vld [vmem:[%s9 + $0x238] sm:$0xff]
    %v362 = vld [vmem:[%s9 + $0x240] sm:$0xff]
    %v363 = vld [vmem:[%s9 + $0x248] sm:$0xff]
    %v364 = vld [vmem:[%s9 + $0x250] sm:$0xff]
    %v365 = vld [vmem:[%s9 + $0x258] sm:$0xff]
    %v366 = vld [vmem:[%s9 + $0x260] sm:$0xff]
    %v367 = vld [vmem:[%s9 + $0x268] sm:$0xff]
    %v368 = vld [vmem:[%s9 + $0x270] sm:$0xff]
    %v369 = vld [vmem:[%s9 + $0x278] sm:$0xff]
    %v370 = vld [vmem:[%s9 + $0x280] sm:$0xff]
    %v371 = vld [vmem:[%s9 + $0x288] sm:$0xff]
    %v372 = vld [vmem:[%s9 + $0x290] sm:$0xff]
    %v373 = vld [vmem:[%s9 + $0x298] sm:$0xff]
    %v374 = vld [vmem:[%s9 + $0x2a0] sm:$0xff]
    %v375 = vld [vmem:[%s9 + $0x2a8] sm:$0xff]
    %v376 = vld [vmem:[%s9 + $0x2b0] sm:$0xff]
    %v377 = vld [vmem:[%s9 + $0x2b8] sm:$0xff]
    %v378 = vld [vmem:[%s9 + $0x2c0] sm:$0xff]
    %v379 = vld [vmem:[%s9 + $0x2c8] sm:$0xff]
    %v380 = vld [vmem:[%s9 + $0x2d0] sm:$0xff]
    %v381 = vld [vmem:[%s9 + $0x2d8] sm:$0xff]
    %v382 = vld [vmem:[%s9 + $0x2e0] sm:$0xff]
    %v383 = vld [vmem:[%s9 + $0x2e8] sm:$0xff]
    %v384 = vld [vmem:[%s9 + $0x2f0] sm:$0xff]
    %v385 = vld [vmem:[%s9 + $0x2f8] sm:$0xff]
    %v386 = vld [vmem:[%s9 + $0x300] sm:$0xff]
    %v387 = vld [vmem:[%s9 + $0x308] sm:$0xff]
    %v388 = vld [vmem:[%s9 + $0x310] sm:$0xff]
    %v389 = vld [vmem:[%s9 + $0x318] sm:$0xff]
    %v390 = vld [vmem:[%s9 + $0x320] sm:$0xff]
    %v391 = vld [vmem:[%s9 + $0x328] sm:$0xff]
    %v392 = vld [vmem:[%s9 + $0x330] sm:$0xff]
    %v393 = vld [vmem:[%s9 + $0x338] sm:$0xff]
    %v394 = vld [vmem:[%s9 + $0x340] sm:$0xff]
    %v395 = vld [vmem:[%s9 + $0x348] sm:$0xff]
    %v396 = vld [vmem:[%s9 + $0x350] sm:$0xff]
    %v397 = vld [vmem:[%s9 + $0x358] sm:$0xff]
    %v398 = vld [vmem:[%s9 + $0x360] sm:$0xff]
    %v399 = vld [vmem:[%s9 + $0x368] sm:$0xff]
    %v400 = vld [vmem:[%s9 + $0x370] sm:$0xff]
    %v401 = vld [vmem:[%s9 + $0x378] sm:$0xff]
    %v402 = vld [vmem:[%s9 + $0x380] sm:$0xff]
    %v403 = vld [vmem:[%s9 + $0x388] sm:$0xff]
    %v404 = vld [vmem:[%s9 + $0x390] sm:$0xff]
    %v405 = vld [vmem:[%s9 + $0x398] sm:$0xff]
    %v406 = vld [vmem:[%s9 + $0x3a0] sm:$0xff]
    %v407 = vld [vmem:[%s9 + $0x3a8] sm:$0xff]
    %v408 = vld [vmem:[%s9 + $0x3b0] sm:$0xff]
    %v409 = vld [vmem:[%s9 + $0x3b8] sm:$0xff]
    %v410 = vld [vmem:[%s9 + $0x3c0] sm:$0xff]
    %v411 = vld [vmem:[%s9 + $0x3c8] sm:$0xff]
    %v412 = vld [vmem:[%s9 + $0x3d0] sm:$0xff]
    %v413 = vld [vmem:[%s9 + $0x3d8] sm:$0xff]
    %v414 = vld [vmem:[%s9 + $0x3e0] sm:$0xff]
    %v415 = vld [vmem:[%s9 + $0x3e8] sm:$0xff]
    %v416 = vld [vmem:[%s9 + $0x3f0] sm:$0xff]
    %v417 = vld [vmem:[%s9 + $0x3f8] sm:$0xff]
    %v418 = vld [vmem:[%s11] sm:$0xff]
    %v420 = vlaneseq
    %v421 = vshrl.u32 %v420, 7
    %v422 = vsub.s32 0, %v421
    %v423 = vrot.slane %v418, %v422
    %v424 = vlaneseq
    %v425 = vshrl.u32 %v424, 7
    %v426 = vsub.s32 1, %v425
    %v427 = vrot.slane %v418, %v426
    %v428 = vlaneseq
    %v429 = vshrl.u32 %v428, 7
    %v430 = vsub.s32 2, %v429
    %v431 = vrot.slane %v418, %v430
    %v432 = vlaneseq
    %v433 = vshrl.u32 %v432, 7
    %v434 = vsub.s32 3, %v433
    %v435 = vrot.slane %v418, %v434
    %v436 = vlaneseq
    %v437 = vshrl.u32 %v436, 7
    %v438 = vsub.s32 4, %v437
    %v439 = vrot.slane %v418, %v438
    %v440 = vlaneseq
    %v441 = vshrl.u32 %v440, 7
    %v442 = vsub.s32 5, %v441
    %v443 = vrot.slane %v418, %v442
    %v444 = vlaneseq
    %v445 = vshrl.u32 %v444, 7
    %v446 = vsub.s32 6, %v445
    %v447 = vrot.slane %v418, %v446
    %v448 = vlaneseq
    %v449 = vshrl.u32 %v448, 7
    %v450 = vsub.s32 7, %v449
    %v451 = vrot.slane %v418, %v450
    %v588 = vunpack.c.l.b16 %v290
    %v589 = vunpack.c.h.b16 %v290
    %v590 = vunpack.c.l.b16 %v291
    %v591 = vunpack.c.h.b16 %v291
    %v592 = vunpack.c.l.b16 %v292
    %v593 = vunpack.c.h.b16 %v292
    %v594 = vunpack.c.l.b16 %v293
    %v595 = vunpack.c.h.b16 %v293
    %v596 = vunpack.c.l.b16 %v294
    %v597 = vunpack.c.h.b16 %v294
    %v598 = vunpack.c.l.b16 %v295
    %v599 = vunpack.c.h.b16 %v295
    %v600 = vunpack.c.l.b16 %v296
    %v601 = vunpack.c.h.b16 %v296
    %v602 = vunpack.c.l.b16 %v297
    %v603 = vunpack.c.h.b16 %v297
    %v604 = vunpack.c.l.b16 %v298
    %v605 = vunpack.c.h.b16 %v298
    %v606 = vunpack.c.l.b16 %v299
    %v607 = vunpack.c.h.b16 %v299
    %v608 = vunpack.c.l.b16 %v300
    %v609 = vunpack.c.h.b16 %v300
    %v610 = vunpack.c.l.b16 %v301
    %v611 = vunpack.c.h.b16 %v301
    %v612 = vunpack.c.l.b16 %v302
    %v613 = vunpack.c.h.b16 %v302
    %v614 = vunpack.c.l.b16 %v303
    %v615 = vunpack.c.h.b16 %v303
    %v616 = vunpack.c.l.b16 %v304
    %v617 = vunpack.c.h.b16 %v304
    %v618 = vunpack.c.l.b16 %v305
    %v619 = vunpack.c.h.b16 %v305
    %v620 = vunpack.c.l.b16 %v306
    %v621 = vunpack.c.h.b16 %v306
    %v622 = vunpack.c.l.b16 %v307
    %v623 = vunpack.c.h.b16 %v307
    %v624 = vunpack.c.l.b16 %v308
    %v625 = vunpack.c.h.b16 %v308
    %v626 = vunpack.c.l.b16 %v309
    %v627 = vunpack.c.h.b16 %v309
    %v628 = vunpack.c.l.b16 %v310
    %v629 = vunpack.c.h.b16 %v310
    %v630 = vunpack.c.l.b16 %v311
    %v631 = vunpack.c.h.b16 %v311
    %v632 = vunpack.c.l.b16 %v312
    %v633 = vunpack.c.h.b16 %v312
    %v634 = vunpack.c.l.b16 %v313
    %v635 = vunpack.c.h.b16 %v313
    %v636 = vunpack.c.l.b16 %v314
    %v637 = vunpack.c.h.b16 %v314
    %v638 = vunpack.c.l.b16 %v315
    %v639 = vunpack.c.h.b16 %v315
    %v640 = vunpack.c.l.b16 %v316
    %v641 = vunpack.c.h.b16 %v316
    %v642 = vunpack.c.l.b16 %v317
    %v643 = vunpack.c.h.b16 %v317
    %v644 = vunpack.c.l.b16 %v318
    %v645 = vunpack.c.h.b16 %v318
    %v646 = vunpack.c.l.b16 %v319
    %v647 = vunpack.c.h.b16 %v319
    %v648 = vunpack.c.l.b16 %v320
    %v649 = vunpack.c.h.b16 %v320
    %v650 = vunpack.c.l.b16 %v321
    %v651 = vunpack.c.h.b16 %v321
    %v652 = vunpack.c.l.b16 %v322
    %v653 = vunpack.c.h.b16 %v322
    %v654 = vunpack.c.l.b16 %v323
    %v655 = vunpack.c.h.b16 %v323
    %v656 = vunpack.c.l.b16 %v324
    %v657 = vunpack.c.h.b16 %v324
    %v658 = vunpack.c.l.b16 %v325
    %v659 = vunpack.c.h.b16 %v325
    %v660 = vunpack.c.l.b16 %v326
    %v661 = vunpack.c.h.b16 %v326
    %v662 = vunpack.c.l.b16 %v327
    %v663 = vunpack.c.h.b16 %v327
    %v664 = vunpack.c.l.b16 %v328
    %v665 = vunpack.c.h.b16 %v328
    %v666 = vunpack.c.l.b16 %v329
    %v667 = vunpack.c.h.b16 %v329
    %v668 = vunpack.c.l.b16 %v330
    %v669 = vunpack.c.h.b16 %v330
    %v670 = vunpack.c.l.b16 %v331
    %v671 = vunpack.c.h.b16 %v331
    %v672 = vunpack.c.l.b16 %v332
    %v673 = vunpack.c.h.b16 %v332
    %v674 = vunpack.c.l.b16 %v333
    %v675 = vunpack.c.h.b16 %v333
    %v676 = vunpack.c.l.b16 %v334
    %v677 = vunpack.c.h.b16 %v334
    %v678 = vunpack.c.l.b16 %v335
    %v679 = vunpack.c.h.b16 %v335
    %v680 = vunpack.c.l.b16 %v336
    %v681 = vunpack.c.h.b16 %v336
    %v682 = vunpack.c.l.b16 %v337
    %v683 = vunpack.c.h.b16 %v337
    %v684 = vunpack.c.l.b16 %v338
    %v685 = vunpack.c.h.b16 %v338
    %v686 = vunpack.c.l.b16 %v339
    %v687 = vunpack.c.h.b16 %v339
    %v688 = vunpack.c.l.b16 %v340
    %v689 = vunpack.c.h.b16 %v340
    %v690 = vunpack.c.l.b16 %v341
    %v691 = vunpack.c.h.b16 %v341
    %v692 = vunpack.c.l.b16 %v342
    %v693 = vunpack.c.h.b16 %v342
    %v694 = vunpack.c.l.b16 %v343
    %v695 = vunpack.c.h.b16 %v343
    %v696 = vunpack.c.l.b16 %v344
    %v697 = vunpack.c.h.b16 %v344
    %v698 = vunpack.c.l.b16 %v345
    %v699 = vunpack.c.h.b16 %v345
    %v700 = vunpack.c.l.b16 %v346
    %v701 = vunpack.c.h.b16 %v346
    %v702 = vunpack.c.l.b16 %v347
    %v703 = vunpack.c.h.b16 %v347
    %v704 = vunpack.c.l.b16 %v348
    %v705 = vunpack.c.h.b16 %v348
    %v706 = vunpack.c.l.b16 %v349
    %v707 = vunpack.c.h.b16 %v349
    %v708 = vunpack.c.l.b16 %v350
    %v709 = vunpack.c.h.b16 %v350
    %v710 = vunpack.c.l.b16 %v351
    %v711 = vunpack.c.h.b16 %v351
    %v712 = vunpack.c.l.b16 %v352
    %v713 = vunpack.c.h.b16 %v352
    %v714 = vunpack.c.l.b16 %v353
    %v715 = vunpack.c.h.b16 %v353
    %v716 = vunpack.c.l.b16 %v354
    %v717 = vunpack.c.h.b16 %v354
    %v718 = vunpack.c.l.b16 %v355
    %v719 = vunpack.c.h.b16 %v355
    %v720 = vunpack.c.l.b16 %v356
    %v721 = vunpack.c.h.b16 %v356
    %v722 = vunpack.c.l.b16 %v357
    %v723 = vunpack.c.h.b16 %v357
    %v724 = vunpack.c.l.b16 %v358
    %v725 = vunpack.c.h.b16 %v358
    %v726 = vunpack.c.l.b16 %v359
    %v727 = vunpack.c.h.b16 %v359
    %v728 = vunpack.c.l.b16 %v360
    %v729 = vunpack.c.h.b16 %v360
    %v730 = vunpack.c.l.b16 %v361
    %v731 = vunpack.c.h.b16 %v361
    %v732 = vunpack.c.l.b16 %v362
    %v733 = vunpack.c.h.b16 %v362
    %v734 = vunpack.c.l.b16 %v363
    %v735 = vunpack.c.h.b16 %v363
    %v736 = vunpack.c.l.b16 %v364
    %v737 = vunpack.c.h.b16 %v364
    %v738 = vunpack.c.l.b16 %v365
    %v739 = vunpack.c.h.b16 %v365
    %v740 = vunpack.c.l.b16 %v366
    %v741 = vunpack.c.h.b16 %v366
    %v742 = vunpack.c.l.b16 %v367
    %v743 = vunpack.c.h.b16 %v367
    %v744 = vunpack.c.l.b16 %v368
    %v745 = vunpack.c.h.b16 %v368
    %v746 = vunpack.c.l.b16 %v369
    %v747 = vunpack.c.h.b16 %v369
    %v748 = vunpack.c.l.b16 %v370
    %v749 = vunpack.c.h.b16 %v370
    %v750 = vunpack.c.l.b16 %v371
    %v751 = vunpack.c.h.b16 %v371
    %v752 = vunpack.c.l.b16 %v372
    %v753 = vunpack.c.h.b16 %v372
    %v754 = vunpack.c.l.b16 %v373
    %v755 = vunpack.c.h.b16 %v373
    %v756 = vunpack.c.l.b16 %v374
    %v757 = vunpack.c.h.b16 %v374
    %v758 = vunpack.c.l.b16 %v375
    %v759 = vunpack.c.h.b16 %v375
    %v760 = vunpack.c.l.b16 %v376
    %v761 = vunpack.c.h.b16 %v376
    %v762 = vunpack.c.l.b16 %v377
    %v763 = vunpack.c.h.b16 %v377
    %v764 = vunpack.c.l.b16 %v378
    %v765 = vunpack.c.h.b16 %v378
    %v766 = vunpack.c.l.b16 %v379
    %v767 = vunpack.c.h.b16 %v379
    %v768 = vunpack.c.l.b16 %v380
    %v769 = vunpack.c.h.b16 %v380
    %v770 = vunpack.c.l.b16 %v381
    %v771 = vunpack.c.h.b16 %v381
    %v772 = vunpack.c.l.b16 %v382
    %v773 = vunpack.c.h.b16 %v382
    %v774 = vunpack.c.l.b16 %v383
    %v775 = vunpack.c.h.b16 %v383
    %v776 = vunpack.c.l.b16 %v384
    %v777 = vunpack.c.h.b16 %v384
    %v778 = vunpack.c.l.b16 %v385
    %v779 = vunpack.c.h.b16 %v385
    %v780 = vunpack.c.l.b16 %v386
    %v781 = vunpack.c.h.b16 %v386
    %v782 = vunpack.c.l.b16 %v387
    %v783 = vunpack.c.h.b16 %v387
    %v784 = vunpack.c.l.b16 %v388
    %v785 = vunpack.c.h.b16 %v388
    %v786 = vunpack.c.l.b16 %v389
    %v787 = vunpack.c.h.b16 %v389
    %v788 = vunpack.c.l.b16 %v390
    %v789 = vunpack.c.h.b16 %v390
    %v790 = vunpack.c.l.b16 %v391
    %v791 = vunpack.c.h.b16 %v391
    %v792 = vunpack.c.l.b16 %v392
    %v793 = vunpack.c.h.b16 %v392
    %v794 = vunpack.c.l.b16 %v393
    %v795 = vunpack.c.h.b16 %v393
    %v796 = vunpack.c.l.b16 %v394
    %v797 = vunpack.c.h.b16 %v394
    %v798 = vunpack.c.l.b16 %v395
    %v799 = vunpack.c.h.b16 %v395
    %v800 = vunpack.c.l.b16 %v396
    %v801 = vunpack.c.h.b16 %v396
    %v802 = vunpack.c.l.b16 %v397
    %v803 = vunpack.c.h.b16 %v397
    %v804 = vunpack.c.l.b16 %v398
    %v805 = vunpack.c.h.b16 %v398
    %v806 = vunpack.c.l.b16 %v399
    %v807 = vunpack.c.h.b16 %v399
    %v808 = vunpack.c.l.b16 %v400
    %v809 = vunpack.c.h.b16 %v400
    %v810 = vunpack.c.l.b16 %v401
    %v811 = vunpack.c.h.b16 %v401
    %v812 = vunpack.c.l.b16 %v402
    %v813 = vunpack.c.h.b16 %v402
    %v814 = vunpack.c.l.b16 %v403
    %v815 = vunpack.c.h.b16 %v403
    %v816 = vunpack.c.l.b16 %v404
    %v817 = vunpack.c.h.b16 %v404
    %v818 = vunpack.c.l.b16 %v405
    %v819 = vunpack.c.h.b16 %v405
    %v820 = vunpack.c.l.b16 %v406
    %v821 = vunpack.c.h.b16 %v406
    %v822 = vunpack.c.l.b16 %v407
    %v823 = vunpack.c.h.b16 %v407
    %v824 = vunpack.c.l.b16 %v408
    %v825 = vunpack.c.h.b16 %v408
    %v826 = vunpack.c.l.b16 %v409
    %v827 = vunpack.c.h.b16 %v409
    %v828 = vunpack.c.l.b16 %v410
    %v829 = vunpack.c.h.b16 %v410
    %v830 = vunpack.c.l.b16 %v411
    %v831 = vunpack.c.h.b16 %v411
    %v832 = vunpack.c.l.b16 %v412
    %v833 = vunpack.c.h.b16 %v412
    %v834 = vunpack.c.l.b16 %v413
    %v835 = vunpack.c.h.b16 %v413
    %v836 = vunpack.c.l.b16 %v414
    %v837 = vunpack.c.h.b16 %v414
    %v838 = vunpack.c.l.b16 %v415
    %v839 = vunpack.c.h.b16 %v415
    %v840 = vunpack.c.l.b16 %v416
    %v841 = vunpack.c.h.b16 %v416
    %v842 = vunpack.c.l.b16 %v417
    %v843 = vunpack.c.h.b16 %v417
    %v844 = vpack.c.b16 %v596, %v588
    %v845 = vpack.c.b16 %v597, %v589
    %v846 = vpack.c.b16 %v598, %v590
    %v847 = vpack.c.b16 %v599, %v591
    %v848 = vpack.c.b16 %v600, %v592
    %v849 = vpack.c.b16 %v601, %v593
    %v850 = vpack.c.b16 %v602, %v594
    %v851 = vpack.c.b16 %v603, %v595
    %v852 = vpack.c.b16 %v612, %v604
    %v853 = vpack.c.b16 %v613, %v605
    %v854 = vpack.c.b16 %v614, %v606
    %v855 = vpack.c.b16 %v615, %v607
    %v856 = vpack.c.b16 %v616, %v608
    %v857 = vpack.c.b16 %v617, %v609
    %v858 = vpack.c.b16 %v618, %v610
    %v859 = vpack.c.b16 %v619, %v611
    %v860 = vpack.c.b16 %v628, %v620
    %v861 = vpack.c.b16 %v629, %v621
    %v862 = vpack.c.b16 %v630, %v622
    %v863 = vpack.c.b16 %v631, %v623
    %v864 = vpack.c.b16 %v632, %v624
    %v865 = vpack.c.b16 %v633, %v625
    %v866 = vpack.c.b16 %v634, %v626
    %v867 = vpack.c.b16 %v635, %v627
    %v868 = vpack.c.b16 %v644, %v636
    %v869 = vpack.c.b16 %v645, %v637
    %v870 = vpack.c.b16 %v646, %v638
    %v871 = vpack.c.b16 %v647, %v639
    %v872 = vpack.c.b16 %v648, %v640
    %v873 = vpack.c.b16 %v649, %v641
    %v874 = vpack.c.b16 %v650, %v642
    %v875 = vpack.c.b16 %v651, %v643
    %v876 = vpack.c.b16 %v660, %v652
    %v877 = vpack.c.b16 %v661, %v653
    %v878 = vpack.c.b16 %v662, %v654
    %v879 = vpack.c.b16 %v663, %v655
    %v880 = vpack.c.b16 %v664, %v656
    %v881 = vpack.c.b16 %v665, %v657
    %v882 = vpack.c.b16 %v666, %v658
    %v883 = vpack.c.b16 %v667, %v659
    %v884 = vpack.c.b16 %v676, %v668
    %v885 = vpack.c.b16 %v677, %v669
    %v886 = vpack.c.b16 %v678, %v670
    %v887 = vpack.c.b16 %v679, %v671
    %v888 = vpack.c.b16 %v680, %v672
    %v889 = vpack.c.b16 %v681, %v673
    %v890 = vpack.c.b16 %v682, %v674
    %v891 = vpack.c.b16 %v683, %v675
    %v892 = vpack.c.b16 %v692, %v684
    %v893 = vpack.c.b16 %v693, %v685
    %v894 = vpack.c.b16 %v694, %v686
    %v895 = vpack.c.b16 %v695, %v687
    %v896 = vpack.c.b16 %v696, %v688
    %v897 = vpack.c.b16 %v697, %v689
    %v898 = vpack.c.b16 %v698, %v690
    %v899 = vpack.c.b16 %v699, %v691
    %v900 = vpack.c.b16 %v708, %v700
    %v901 = vpack.c.b16 %v709, %v701
    %v902 = vpack.c.b16 %v710, %v702
    %v903 = vpack.c.b16 %v711, %v703
    %v904 = vpack.c.b16 %v712, %v704
    %v905 = vpack.c.b16 %v713, %v705
    %v906 = vpack.c.b16 %v714, %v706
    %v907 = vpack.c.b16 %v715, %v707
    %v908 = vpack.c.b16 %v724, %v716
    %v909 = vpack.c.b16 %v725, %v717
    %v910 = vpack.c.b16 %v726, %v718
    %v911 = vpack.c.b16 %v727, %v719
    %v912 = vpack.c.b16 %v728, %v720
    %v913 = vpack.c.b16 %v729, %v721
    %v914 = vpack.c.b16 %v730, %v722
    %v915 = vpack.c.b16 %v731, %v723
    %v916 = vpack.c.b16 %v740, %v732
    %v917 = vpack.c.b16 %v741, %v733
    %v918 = vpack.c.b16 %v742, %v734
    %v919 = vpack.c.b16 %v743, %v735
    %v920 = vpack.c.b16 %v744, %v736
    %v921 = vpack.c.b16 %v745, %v737
    %v922 = vpack.c.b16 %v746, %v738
    %v923 = vpack.c.b16 %v747, %v739
    %v924 = vpack.c.b16 %v756, %v748
    %v925 = vpack.c.b16 %v757, %v749
    %v926 = vpack.c.b16 %v758, %v750
    %v927 = vpack.c.b16 %v759, %v751
    %v928 = vpack.c.b16 %v760, %v752
    %v929 = vpack.c.b16 %v761, %v753
    %v930 = vpack.c.b16 %v762, %v754
    %v931 = vpack.c.b16 %v763, %v755
    %v932 = vpack.c.b16 %v772, %v764
    %v933 = vpack.c.b16 %v773, %v765
    %v934 = vpack.c.b16 %v774, %v766
    %v935 = vpack.c.b16 %v775, %v767
    %v936 = vpack.c.b16 %v776, %v768
    %v937 = vpack.c.b16 %v777, %v769
    %v938 = vpack.c.b16 %v778, %v770
    %v939 = vpack.c.b16 %v779, %v771
    %v940 = vpack.c.b16 %v788, %v780
    %v941 = vpack.c.b16 %v789, %v781
    %v942 = vpack.c.b16 %v790, %v782
    %v943 = vpack.c.b16 %v791, %v783
    %v944 = vpack.c.b16 %v792, %v784
    %v945 = vpack.c.b16 %v793, %v785
    %v946 = vpack.c.b16 %v794, %v786
    %v947 = vpack.c.b16 %v795, %v787
    %v948 = vpack.c.b16 %v804, %v796
    %v949 = vpack.c.b16 %v805, %v797
    %v950 = vpack.c.b16 %v806, %v798
    %v951 = vpack.c.b16 %v807, %v799
    %v952 = vpack.c.b16 %v808, %v800
    %v953 = vpack.c.b16 %v809, %v801
    %v954 = vpack.c.b16 %v810, %v802
    %v955 = vpack.c.b16 %v811, %v803
    %v956 = vpack.c.b16 %v820, %v812
    %v957 = vpack.c.b16 %v821, %v813
    %v958 = vpack.c.b16 %v822, %v814
    %v959 = vpack.c.b16 %v823, %v815
    %v960 = vpack.c.b16 %v824, %v816
    %v961 = vpack.c.b16 %v825, %v817
    %v962 = vpack.c.b16 %v826, %v818
    %v963 = vpack.c.b16 %v827, %v819
    %v964 = vpack.c.b16 %v836, %v828
    %v965 = vpack.c.b16 %v837, %v829
    %v966 = vpack.c.b16 %v838, %v830
    %v967 = vpack.c.b16 %v839, %v831
    %v968 = vpack.c.b16 %v840, %v832
    %v969 = vpack.c.b16 %v841, %v833
    %v970 = vpack.c.b16 %v842, %v834
    %v971 = vpack.c.b16 %v843, %v835
    %1100 = vmatprep.subr.bf16.mxu0 %v845
    %1101 = vmatpush1.bf16.msra.mxu0 %v844
    %1102 = vmatprep.subr.bf16.mxu0 %v853
    %1103 = vmatpush1.bf16.msra.mxu0 %v852
    %1104 = vmatprep.subr.bf16.mxu0 %v861
    %1105 = vmatpush1.bf16.msra.mxu0 %v860
    %1106 = vmatprep.subr.bf16.mxu0 %v869
    %1107 = vmatpush1.bf16.msra.mxu0 %v868
    %1108 = vmatprep.subr.bf16.mxu0 %v877
    %1109 = vmatpush1.bf16.msra.mxu0 %v876
    %1110 = vmatprep.subr.bf16.mxu0 %v885
    %1111 = vmatpush1.bf16.msra.mxu0 %v884
    %1112 = vmatprep.subr.bf16.mxu0 %v893
    %1113 = vmatpush1.bf16.msra.mxu0 %v892
    %1114 = vmatprep.subr.bf16.mxu0 %v901
    %1115 = vmatpush1.bf16.msra.mxu0 %v900
    %1116 = vmatprep.subr.bf16.mxu0 %v909
    %1117 = vmatpush1.bf16.msra.mxu0 %v908
    %1118 = vmatprep.subr.bf16.mxu0 %v917
    %1119 = vmatpush1.bf16.msra.mxu0 %v916
    %1120 = vmatprep.subr.bf16.mxu0 %v925
    %1121 = vmatpush1.bf16.msra.mxu0 %v924
    %1122 = vmatprep.subr.bf16.mxu0 %v933
    %1123 = vmatpush1.bf16.msra.mxu0 %v932
    %1124 = vmatprep.subr.bf16.mxu0 %v941
    %1125 = vmatpush1.bf16.msra.mxu0 %v940
    %1126 = vmatprep.subr.bf16.mxu0 %v949
    %1127 = vmatpush1.bf16.msra.mxu0 %v948
    %1128 = vmatprep.subr.bf16.mxu0 %v957
    %1129 = vmatpush1.bf16.msra.mxu0 %v956
    %1130 = vmatprep.subr.bf16.mxu0 %v965
    %1131 = vmatpush1.bf16.msra.mxu0 %v964
    %1132 = vmatprep.mubr.bf16.mxu0 %v289
    %1133 = vmatmul.mubr.bf16.gmra.mrb[0].mxu0 %v288
    %v1134 = vpop.f32.mrb[0].mxu0
    %v1135 = vadd.f32 %v423, %v1134
    %v1136 = vpop.f32.mrb[0].mxu0
    %v1137 = vadd.f32 %v427, %v1136
    %v1138 = vpop.f32.mrb[0].mxu0
    %v1139 = vadd.f32 %v423, %v1138
    %v1140 = vpop.f32.mrb[0].mxu0
    %v1141 = vadd.f32 %v427, %v1140
    %1142 = vdwg.mxu0
    %1143 = vmatprep.subr.bf16.mxu0 %v847
    %1144 = vmatpush1.bf16.msra.mxu0 %v846
    %1145 = vmatprep.subr.bf16.mxu0 %v855
    %1146 = vmatpush1.bf16.msra.mxu0 %v854
    %1147 = vmatprep.subr.bf16.mxu0 %v863
    %1148 = vmatpush1.bf16.msra.mxu0 %v862
    %1149 = vmatprep.subr.bf16.mxu0 %v871
    %1150 = vmatpush1.bf16.msra.mxu0 %v870
    %1151 = vmatprep.subr.bf16.mxu0 %v879
    %1152 = vmatpush1.bf16.msra.mxu0 %v878
    %1153 = vmatprep.subr.bf16.mxu0 %v887
    %1154 = vmatpush1.bf16.msra.mxu0 %v886
    %1155 = vmatprep.subr.bf16.mxu0 %v895
    %1156 = vmatpush1.bf16.msra.mxu0 %v894
    %1157 = vmatprep.subr.bf16.mxu0 %v903
    %1158 = vmatpush1.bf16.msra.mxu0 %v902
    %1159 = vmatprep.subr.bf16.mxu0 %v911
    %1160 = vmatpush1.bf16.msra.mxu0 %v910
    %1161 = vmatprep.subr.bf16.mxu0 %v919
    %1162 = vmatpush1.bf16.msra.mxu0 %v918
    %1163 = vmatprep.subr.bf16.mxu0 %v927
    %1164 = vmatpush1.bf16.msra.mxu0 %v926
    %1165 = vmatprep.subr.bf16.mxu0 %v935
    %1166 = vmatpush1.bf16.msra.mxu0 %v934
    %1167 = vmatprep.subr.bf16.mxu0 %v943
    %1168 = vmatpush1.bf16.msra.mxu0 %v942
    %1169 = vmatprep.subr.bf16.mxu0 %v951
    %1170 = vmatpush1.bf16.msra.mxu0 %v950
    %1171 = vmatprep.subr.bf16.mxu0 %v959
    %1172 = vmatpush1.bf16.msra.mxu0 %v958
    %1173 = vmatprep.subr.bf16.mxu0 %v967
    %1174 = vmatpush1.bf16.msra.mxu0 %v966
    %1175 = vmatprep.mubr.bf16.mxu0 %v289
    %1176 = vmatmul.mubr.bf16.gmra.mrb[0].mxu0 %v288
    %v1177 = vpop.f32.mrb[0].mxu0
    %v1178 = vadd.f32 %v431, %v1177
    %v1179 = vpop.f32.mrb[0].mxu0
    %v1180 = vadd.f32 %v435, %v1179
    %v1181 = vpop.f32.mrb[0].mxu0
    %v1182 = vadd.f32 %v431, %v1181
    %v1183 = vpop.f32.mrb[0].mxu0
    %v1184 = vadd.f32 %v435, %v1183
    %1185 = vdwg.mxu0
    %1186 = vmatprep.subr.bf16.mxu0 %v849
    %1187 = vmatpush1.bf16.msra.mxu0 %v848
    %1188 = vmatprep.subr.bf16.mxu0 %v857
    %1189 = vmatpush1.bf16.msra.mxu0 %v856
    %1190 = vmatprep.subr.bf16.mxu0 %v865
    %1191 = vmatpush1.bf16.msra.mxu0 %v864
    %1192 = vmatprep.subr.bf16.mxu0 %v873
    %1193 = vmatpush1.bf16.msra.mxu0 %v872
    %1194 = vmatprep.subr.bf16.mxu0 %v881
    %1195 = vmatpush1.bf16.msra.mxu0 %v880
    %1196 = vmatprep.subr.bf16.mxu0 %v889
    %1197 = vmatpush1.bf16.msra.mxu0 %v888
    %1198 = vmatprep.subr.bf16.mxu0 %v897
    %1199 = vmatpush1.bf16.msra.mxu0 %v896
    %1200 = vmatprep.subr.bf16.mxu0 %v905
    %1201 = vmatpush1.bf16.msra.mxu0 %v904
    %1202 = vmatprep.subr.bf16.mxu0 %v913
    %1203 = vmatpush1.bf16.msra.mxu0 %v912
    %1204 = vmatprep.subr.bf16.mxu0 %v921
    %1205 = vmatpush1.bf16.msra.mxu0 %v920
    %1206 = vmatprep.subr.bf16.mxu0 %v929
    %1207 = vmatpush1.bf16.msra.mxu0 %v928
    %1208 = vmatprep.subr.bf16.mxu0 %v937
    %1209 = vmatpush1.bf16.msra.mxu0 %v936
    %1210 = vmatprep.subr.bf16.mxu0 %v945
    %1211 = vmatpush1.bf16.msra.mxu0 %v944
    %1212 = vmatprep.subr.bf16.mxu0 %v953
    %1213 = vmatpush1.bf16.msra.mxu0 %v952
    %1214 = vmatprep.subr.bf16.mxu0 %v961
    %1215 = vmatpush1.bf16.msra.mxu0 %v960
    %1216 = vmatprep.subr.bf16.mxu0 %v969
    %1217 = vmatpush1.bf16.msra.mxu0 %v968
    %1218 = vmatprep.mubr.bf16.mxu0 %v289
    %1219 = vmatmul.mubr.bf16.gmra.mrb[0].mxu0 %v288
    %v1220 = vpop.f32.mrb[0].mxu0
    %v1221 = vadd.f32 %v439, %v1220
    %v1222 = vpop.f32.mrb[0].mxu0
    %v1223 = vadd.f32 %v443, %v1222
    %v1224 = vpop.f32.mrb[0].mxu0
    %v1225 = vadd.f32 %v439, %v1224
    %v1226 = vpop.f32.mrb[0].mxu0
    %v1227 = vadd.f32 %v443, %v1226
    %1228 = vdwg.mxu0
    %1229 = vmatprep.subr.bf16.mxu0 %v851
    %1230 = vmatpush1.bf16.msra.mxu0 %v850
    %1231 = vmatprep.subr.bf16.mxu0 %v859
    %1232 = vmatpush1.bf16.msra.mxu0 %v858
    %1233 = vmatprep.subr.bf16.mxu0 %v867
    %1234 = vmatpush1.bf16.msra.mxu0 %v866
    %1235 = vmatprep.subr.bf16.mxu0 %v875
    %1236 = vmatpush1.bf16.msra.mxu0 %v874
    %1237 = vmatprep.subr.bf16.mxu0 %v883
    %1238 = vmatpush1.bf16.msra.mxu0 %v882
    %1239 = vmatprep.subr.bf16.mxu0 %v891
    %1240 = vmatpush1.bf16.msra.mxu0 %v890
    %1241 = vmatprep.subr.bf16.mxu0 %v899
    %1242 = vmatpush1.bf16.msra.mxu0 %v898
    %1243 = vmatprep.subr.bf16.mxu0 %v907
    %1244 = vmatpush1.bf16.msra.mxu0 %v906
    %1245 = vmatprep.subr.bf16.mxu0 %v915
    %1246 = vmatpush1.bf16.msra.mxu0 %v914
    %1247 = vmatprep.subr.bf16.mxu0 %v923
    %1248 = vmatpush1.bf16.msra.mxu0 %v922
    %1249 = vmatprep.subr.bf16.mxu0 %v931
    %1250 = vmatpush1.bf16.msra.mxu0 %v930
    %1251 = vmatprep.subr.bf16.mxu0 %v939
    %1252 = vmatpush1.bf16.msra.mxu0 %v938
    %1253 = vmatprep.subr.bf16.mxu0 %v947
    %1254 = vmatpush1.bf16.msra.mxu0 %v946
    %1255 = vmatprep.subr.bf16.mxu0 %v955
    %1256 = vmatpush1.bf16.msra.mxu0 %v954
    %1257 = vmatprep.subr.bf16.mxu0 %v963
    %1258 = vmatpush1.bf16.msra.mxu0 %v962
    %1259 = vmatprep.subr.bf16.mxu0 %v971
    %1260 = vmatpush1.bf16.msra.mxu0 %v970
    %1261 = vmatprep.mubr.bf16.mxu0 %v289
    %1262 = vmatmul.mubr.bf16.gmra.mrb[0].mxu0 %v288
    %v1263 = vpop.f32.mrb[0].mxu0
    %v1264 = vadd.f32 %v447, %v1263
    %v1265 = vpop.f32.mrb[0].mxu0
    %v1266 = vadd.f32 %v451, %v1265
    %v1267 = vpop.f32.mrb[0].mxu0
    %v1268 = vadd.f32 %v447, %v1267
    %v1269 = vpop.f32.mrb[0].mxu0
    %v1270 = vadd.f32 %v451, %v1269
    %1271 = vdwg.mxu0
    %v1272 = vpack.c.bf16 %v131, %v130
    %v1273 = vld [vmem:[%s13] sm:$0xff]
    %v1274 = vld [vmem:[%s13 + $0x8] sm:$0xff]
    %v1275 = vld [vmem:[%s13 + $0x10] sm:$0xff]
    %v1276 = vld [vmem:[%s13 + $0x18] sm:$0xff]
    %v1277 = vld [vmem:[%s13 + $0x20] sm:$0xff]
    %v1278 = vld [vmem:[%s13 + $0x28] sm:$0xff]
    %v1279 = vld [vmem:[%s13 + $0x30] sm:$0xff]
    %v1280 = vld [vmem:[%s13 + $0x38] sm:$0xff]
    %v1281 = vld [vmem:[%s13 + $0x40] sm:$0xff]
    %v1282 = vld [vmem:[%s13 + $0x48] sm:$0xff]
    %v1283 = vld [vmem:[%s13 + $0x50] sm:$0xff]
    %v1284 = vld [vmem:[%s13 + $0x58] sm:$0xff]
    %v1285 = vld [vmem:[%s13 + $0x60] sm:$0xff]
    %v1286 = vld [vmem:[%s13 + $0x68] sm:$0xff]
    %v1287 = vld [vmem:[%s13 + $0x70] sm:$0xff]
    %v1288 = vld [vmem:[%s13 + $0x78] sm:$0xff]
    %v1289 = vld [vmem:[%s15] sm:$0x3]
    %v1291 = vlaneseq
    %v1292 = vshrl.u32 %v1291, 7
    %v1293 = vsub.s32 0, %v1292
    %v1294 = vrot.slane %v1289, %v1293
    %v1295 = vlaneseq
    %v1296 = vshrl.u32 %v1295, 7
    %v1297 = vsub.s32 1, %v1296
    %v1298 = vrot.slane %v1289, %v1297
    %v1317 = vunpack.c.l.b16 %v1273
    %v1318 = vunpack.c.h.b16 %v1273
    %v1319 = vunpack.c.l.b16 %v1274
    %v1320 = vunpack.c.h.b16 %v1274
    %v1321 = vunpack.c.l.b16 %v1275
    %v1322 = vunpack.c.h.b16 %v1275
    %v1323 = vunpack.c.l.b16 %v1276
    %v1324 = vunpack.c.h.b16 %v1276
    %v1325 = vunpack.c.l.b16 %v1277
    %v1326 = vunpack.c.h.b16 %v1277
    %v1327 = vunpack.c.l.b16 %v1278
    %v1328 = vunpack.c.h.b16 %v1278
    %v1329 = vunpack.c.l.b16 %v1279
    %v1330 = vunpack.c.h.b16 %v1279
    %v1331 = vunpack.c.l.b16 %v1280
    %v1332 = vunpack.c.h.b16 %v1280
    %v1333 = vunpack.c.l.b16 %v1281
    %v1334 = vunpack.c.h.b16 %v1281
    %v1335 = vunpack.c.l.b16 %v1282
    %v1336 = vunpack.c.h.b16 %v1282
    %v1337 = vunpack.c.l.b16 %v1283
    %v1338 = vunpack.c.h.b16 %v1283
    %v1339 = vunpack.c.l.b16 %v1284
    %v1340 = vunpack.c.h.b16 %v1284
    %v1341 = vunpack.c.l.b16 %v1285
    %v1342 = vunpack.c.h.b16 %v1285
    %v1343 = vunpack.c.l.b16 %v1286
    %v1344 = vunpack.c.h.b16 %v1286
    %v1345 = vunpack.c.l.b16 %v1287
    %v1346 = vunpack.c.h.b16 %v1287
    %v1347 = vunpack.c.l.b16 %v1288
    %v1348 = vunpack.c.h.b16 %v1288
    %v1349 = vpack.c.b16 %v1319, %v1317
    %v1350 = vpack.c.b16 %v1320, %v1318
    %v1351 = vpack.c.b16 %v1323, %v1321
    %v1352 = vpack.c.b16 %v1324, %v1322
    %v1353 = vpack.c.b16 %v1327, %v1325
    %v1354 = vpack.c.b16 %v1328, %v1326
    %v1355 = vpack.c.b16 %v1331, %v1329
    %v1356 = vpack.c.b16 %v1332, %v1330
    %v1357 = vpack.c.b16 %v1335, %v1333
    %v1358 = vpack.c.b16 %v1336, %v1334
    %v1359 = vpack.c.b16 %v1339, %v1337
    %v1360 = vpack.c.b16 %v1340, %v1338
    %v1361 = vpack.c.b16 %v1343, %v1341
    %v1362 = vpack.c.b16 %v1344, %v1342
    %v1363 = vpack.c.b16 %v1347, %v1345
    %v1364 = vpack.c.b16 %v1348, %v1346
    %1381 = vmatprep.subr.bf16.mxu0 %v1350
    %1382 = vmatpush1.bf16.msra.mxu0 %v1349
    %1383 = vmatprep.subr.bf16.mxu0 %v1352
    %1384 = vmatpush1.bf16.msra.mxu0 %v1351
    %1385 = vmatprep.subr.bf16.mxu0 %v1354
    %1386 = vmatpush1.bf16.msra.mxu0 %v1353
    %1387 = vmatprep.subr.bf16.mxu0 %v1356
    %1388 = vmatpush1.bf16.msra.mxu0 %v1355
    %1389 = vmatprep.subr.bf16.mxu0 %v1358
    %1390 = vmatpush1.bf16.msra.mxu0 %v1357
    %1391 = vmatprep.subr.bf16.mxu0 %v1360
    %1392 = vmatpush1.bf16.msra.mxu0 %v1359
    %1393 = vmatprep.subr.bf16.mxu0 %v1362
    %1394 = vmatpush1.bf16.msra.mxu0 %v1361
    %1395 = vmatprep.subr.bf16.mxu0 %v1364
    %1396 = vmatpush1.bf16.msra.mxu0 %v1363
    %1397 = vmatprep.subr.bf16.mxu0 0
    %1398 = vmatpush1.bf16.msra.mxu0 0
    %1399 = vmatprep.subr.bf16.mxu0 0
    %1400 = vmatpush1.bf16.msra.mxu0 0
    %1401 = vmatprep.subr.bf16.mxu0 0
    %1402 = vmatpush1.bf16.msra.mxu0 0
    %1403 = vmatprep.subr.bf16.mxu0 0
    %1404 = vmatpush1.bf16.msra.mxu0 0
    %1405 = vmatprep.subr.bf16.mxu0 0
    %1406 = vmatpush1.bf16.msra.mxu0 0
    %1407 = vmatprep.subr.bf16.mxu0 0
    %1408 = vmatpush1.bf16.msra.mxu0 0
    %1409 = vmatprep.subr.bf16.mxu0 0
    %1410 = vmatpush1.bf16.msra.mxu0 0
    %1411 = vmatprep.subr.bf16.mxu0 0
    %1412 = vmatpush1.bf16.msra.mxu0 0
    %1413 = vmatprep.mubr.bf16.mxu0 0
    %1414 = vmatmul.mubr.bf16.gmra.mrb[0].mxu0 %v1272
    %v1415 = vpop.f32.mrb[0].mxu0
    %v1416 = vadd.f32 %v1294, %v1415
    %v1417 = vpop.f32.mrb[0].mxu0
    %v1418 = vadd.f32 %v1298, %v1417
    %v1419 = vpop.f32.mrb[0].mxu0
    %v1420 = vadd.f32 %v1294, %v1419
    %v1421 = vpop.f32.mrb[0].mxu0
    %v1422 = vadd.f32 %v1298, %v1421
    %1423 = vdwg.mxu0
    %v1424 = vmax.f32 %v1416, 0.0
    %v1425 = vmax.f32 %v1418, 0.0
    %v1426 = vmax.f32 %v1420, 0.0
    %v1427 = vmax.f32 %v1422, 0.0
    %v1428 = vpack.c.bf16 %v1426, %v1424
    %v1429 = vpack.c.bf16 %v1427, %v1425
    %v1430 = vld [vmem:[%s17] sm:$0xff]
    %v1431 = vld [vmem:[%s17 + $0x8] sm:$0xff]
    %v1432 = vld [vmem:[%s17 + $0x10] sm:$0xff]
    %v1433 = vld [vmem:[%s17 + $0x18] sm:$0xff]
    %v1434 = vld [vmem:[%s17 + $0x20] sm:$0xff]
    %v1435 = vld [vmem:[%s17 + $0x28] sm:$0xff]
    %v1436 = vld [vmem:[%s17 + $0x30] sm:$0xff]
    %v1437 = vld [vmem:[%s17 + $0x38] sm:$0xff]
    %v1438 = vld [vmem:[%s17 + $0x40] sm:$0xff]
    %v1439 = vld [vmem:[%s17 + $0x48] sm:$0xff]
    %v1440 = vld [vmem:[%s17 + $0x50] sm:$0xff]
    %v1441 = vld [vmem:[%s17 + $0x58] sm:$0xff]
    %v1442 = vld [vmem:[%s17 + $0x60] sm:$0xff]
    %v1443 = vld [vmem:[%s17 + $0x68] sm:$0xff]
    %v1444 = vld [vmem:[%s17 + $0x70] sm:$0xff]
    %v1445 = vld [vmem:[%s17 + $0x78] sm:$0xff]
    %v1446 = vld [vmem:[%s17 + $0x80] sm:$0xff]
    %v1447 = vld [vmem:[%s17 + $0x88] sm:$0xff]
    %v1448 = vld [vmem:[%s17 + $0x90] sm:$0xff]
    %v1449 = vld [vmem:[%s17 + $0x98] sm:$0xff]
    %v1450 = vld [vmem:[%s17 + $0xa0] sm:$0xff]
    %v1451 = vld [vmem:[%s17 + $0xa8] sm:$0xff]
    %v1452 = vld [vmem:[%s17 + $0xb0] sm:$0xff]
    %v1453 = vld [vmem:[%s17 + $0xb8] sm:$0xff]
    %v1454 = vld [vmem:[%s17 + $0xc0] sm:$0xff]
    %v1455 = vld [vmem:[%s17 + $0xc8] sm:$0xff]
    %v1456 = vld [vmem:[%s17 + $0xd0] sm:$0xff]
    %v1457 = vld [vmem:[%s17 + $0xd8] sm:$0xff]
    %v1458 = vld [vmem:[%s17 + $0xe0] sm:$0xff]
    %v1459 = vld [vmem:[%s17 + $0xe8] sm:$0xff]
    %v1460 = vld [vmem:[%s17 + $0xf0] sm:$0xff]
    %v1461 = vld [vmem:[%s17 + $0xf8] sm:$0xff]
    %v1462 = vld [vmem:[%s17 + $0x100] sm:$0xff]
    %v1463 = vld [vmem:[%s17 + $0x108] sm:$0xff]
    %v1464 = vld [vmem:[%s17 + $0x110] sm:$0xff]
    %v1465 = vld [vmem:[%s17 + $0x118] sm:$0xff]
    %v1466 = vld [vmem:[%s17 + $0x120] sm:$0xff]
    %v1467 = vld [vmem:[%s17 + $0x128] sm:$0xff]
    %v1468 = vld [vmem:[%s17 + $0x130] sm:$0xff]
    %v1469 = vld [vmem:[%s17 + $0x138] sm:$0xff]
    %v1470 = vld [vmem:[%s17 + $0x140] sm:$0xff]
    %v1471 = vld [vmem:[%s17 + $0x148] sm:$0xff]
    %v1472 = vld [vmem:[%s17 + $0x150] sm:$0xff]
    %v1473 = vld [vmem:[%s17 + $0x158] sm:$0xff]
    %v1474 = vld [vmem:[%s17 + $0x160] sm:$0xff]
    %v1475 = vld [vmem:[%s17 + $0x168] sm:$0xff]
    %v1476 = vld [vmem:[%s17 + $0x170] sm:$0xff]
    %v1477 = vld [vmem:[%s17 + $0x178] sm:$0xff]
    %v1478 = vld [vmem:[%s17 + $0x180] sm:$0xff]
    %v1479 = vld [vmem:[%s17 + $0x188] sm:$0xff]
    %v1480 = vld [vmem:[%s17 + $0x190] sm:$0xff]
    %v1481 = vld [vmem:[%s17 + $0x198] sm:$0xff]
    %v1482 = vld [vmem:[%s17 + $0x1a0] sm:$0xff]
    %v1483 = vld [vmem:[%s17 + $0x1a8] sm:$0xff]
    %v1484 = vld [vmem:[%s17 + $0x1b0] sm:$0xff]
    %v1485 = vld [vmem:[%s17 + $0x1b8] sm:$0xff]
    %v1486 = vld [vmem:[%s17 + $0x1c0] sm:$0xff]
    %v1487 = vld [vmem:[%s17 + $0x1c8] sm:$0xff]
    %v1488 = vld [vmem:[%s17 + $0x1d0] sm:$0xff]
    %v1489 = vld [vmem:[%s17 + $0x1d8] sm:$0xff]
    %v1490 = vld [vmem:[%s17 + $0x1e0] sm:$0xff]
    %v1491 = vld [vmem:[%s17 + $0x1e8] sm:$0xff]
    %v1492 = vld [vmem:[%s17 + $0x1f0] sm:$0xff]
    %v1493 = vld [vmem:[%s17 + $0x1f8] sm:$0xff]
    %v1494 = vld [vmem:[%s17 + $0x200] sm:$0xff]
    %v1495 = vld [vmem:[%s17 + $0x208] sm:$0xff]
    %v1496 = vld [vmem:[%s17 + $0x210] sm:$0xff]
    %v1497 = vld [vmem:[%s17 + $0x218] sm:$0xff]
    %v1498 = vld [vmem:[%s17 + $0x220] sm:$0xff]
    %v1499 = vld [vmem:[%s17 + $0x228] sm:$0xff]
    %v1500 = vld [vmem:[%s17 + $0x230] sm:$0xff]
    %v1501 = vld [vmem:[%s17 + $0x238] sm:$0xff]
    %v1502 = vld [vmem:[%s17 + $0x240] sm:$0xff]
    %v1503 = vld [vmem:[%s17 + $0x248] sm:$0xff]
    %v1504 = vld [vmem:[%s17 + $0x250] sm:$0xff]
    %v1505 = vld [vmem:[%s17 + $0x258] sm:$0xff]
    %v1506 = vld [vmem:[%s17 + $0x260] sm:$0xff]
    %v1507 = vld [vmem:[%s17 + $0x268] sm:$0xff]
    %v1508 = vld [vmem:[%s17 + $0x270] sm:$0xff]
    %v1509 = vld [vmem:[%s17 + $0x278] sm:$0xff]
    %v1510 = vld [vmem:[%s17 + $0x280] sm:$0xff]
    %v1511 = vld [vmem:[%s17 + $0x288] sm:$0xff]
    %v1512 = vld [vmem:[%s17 + $0x290] sm:$0xff]
    %v1513 = vld [vmem:[%s17 + $0x298] sm:$0xff]
    %v1514 = vld [vmem:[%s17 + $0x2a0] sm:$0xff]
    %v1515 = vld [vmem:[%s17 + $0x2a8] sm:$0xff]
    %v1516 = vld [vmem:[%s17 + $0x2b0] sm:$0xff]
    %v1517 = vld [vmem:[%s17 + $0x2b8] sm:$0xff]
    %v1518 = vld [vmem:[%s17 + $0x2c0] sm:$0xff]
    %v1519 = vld [vmem:[%s17 + $0x2c8] sm:$0xff]
    %v1520 = vld [vmem:[%s17 + $0x2d0] sm:$0xff]
    %v1521 = vld [vmem:[%s17 + $0x2d8] sm:$0xff]
    %v1522 = vld [vmem:[%s17 + $0x2e0] sm:$0xff]
    %v1523 = vld [vmem:[%s17 + $0x2e8] sm:$0xff]
    %v1524 = vld [vmem:[%s17 + $0x2f0] sm:$0xff]
    %v1525 = vld [vmem:[%s17 + $0x2f8] sm:$0xff]
    %v1526 = vld [vmem:[%s17 + $0x300] sm:$0xff]
    %v1527 = vld [vmem:[%s17 + $0x308] sm:$0xff]
    %v1528 = vld [vmem:[%s17 + $0x310] sm:$0xff]
    %v1529 = vld [vmem:[%s17 + $0x318] sm:$0xff]
    %v1530 = vld [vmem:[%s17 + $0x320] sm:$0xff]
    %v1531 = vld [vmem:[%s17 + $0x328] sm:$0xff]
    %v1532 = vld [vmem:[%s17 + $0x330] sm:$0xff]
    %v1533 = vld [vmem:[%s17 + $0x338] sm:$0xff]
    %v1534 = vld [vmem:[%s17 + $0x340] sm:$0xff]
    %v1535 = vld [vmem:[%s17 + $0x348] sm:$0xff]
    %v1536 = vld [vmem:[%s17 + $0x350] sm:$0xff]
    %v1537 = vld [vmem:[%s17 + $0x358] sm:$0xff]
    %v1538 = vld [vmem:[%s17 + $0x360] sm:$0xff]
    %v1539 = vld [vmem:[%s17 + $0x368] sm:$0xff]
    %v1540 = vld [vmem:[%s17 + $0x370] sm:$0xff]
    %v1541 = vld [vmem:[%s17 + $0x378] sm:$0xff]
    %v1542 = vld [vmem:[%s17 + $0x380] sm:$0xff]
    %v1543 = vld [vmem:[%s17 + $0x388] sm:$0xff]
    %v1544 = vld [vmem:[%s17 + $0x390] sm:$0xff]
    %v1545 = vld [vmem:[%s17 + $0x398] sm:$0xff]
    %v1546 = vld [vmem:[%s17 + $0x3a0] sm:$0xff]
    %v1547 = vld [vmem:[%s17 + $0x3a8] sm:$0xff]
    %v1548 = vld [vmem:[%s17 + $0x3b0] sm:$0xff]
    %v1549 = vld [vmem:[%s17 + $0x3b8] sm:$0xff]
    %v1550 = vld [vmem:[%s17 + $0x3c0] sm:$0xff]
    %v1551 = vld [vmem:[%s17 + $0x3c8] sm:$0xff]
    %v1552 = vld [vmem:[%s17 + $0x3d0] sm:$0xff]
    %v1553 = vld [vmem:[%s17 + $0x3d8] sm:$0xff]
    %v1554 = vld [vmem:[%s17 + $0x3e0] sm:$0xff]
    %v1555 = vld [vmem:[%s17 + $0x3e8] sm:$0xff]
    %v1556 = vld [vmem:[%s17 + $0x3f0] sm:$0xff]
    %v1557 = vld [vmem:[%s17 + $0x3f8] sm:$0xff]
    %v1558 = vld [vmem:[%s17 + $0x400] sm:$0xff]
    %v1559 = vld [vmem:[%s17 + $0x408] sm:$0xff]
    %v1560 = vld [vmem:[%s17 + $0x410] sm:$0xff]
    %v1561 = vld [vmem:[%s17 + $0x418] sm:$0xff]
    %v1562 = vld [vmem:[%s17 + $0x420] sm:$0xff]
    %v1563 = vld [vmem:[%s17 + $0x428] sm:$0xff]
    %v1564 = vld [vmem:[%s17 + $0x430] sm:$0xff]
    %v1565 = vld [vmem:[%s17 + $0x438] sm:$0xff]
    %v1566 = vld [vmem:[%s17 + $0x440] sm:$0xff]
    %v1567 = vld [vmem:[%s17 + $0x448] sm:$0xff]
    %v1568 = vld [vmem:[%s17 + $0x450] sm:$0xff]
    %v1569 = vld [vmem:[%s17 + $0x458] sm:$0xff]
    %v1570 = vld [vmem:[%s17 + $0x460] sm:$0xff]
    %v1571 = vld [vmem:[%s17 + $0x468] sm:$0xff]
    %v1572 = vld [vmem:[%s17 + $0x470] sm:$0xff]
    %v1573 = vld [vmem:[%s17 + $0x478] sm:$0xff]
    %v1574 = vld [vmem:[%s17 + $0x480] sm:$0xff]
    %v1575 = vld [vmem:[%s17 + $0x488] sm:$0xff]
    %v1576 = vld [vmem:[%s17 + $0x490] sm:$0xff]
    %v1577 = vld [vmem:[%s17 + $0x498] sm:$0xff]
    %v1578 = vld [vmem:[%s17 + $0x4a0] sm:$0xff]
    %v1579 = vld [vmem:[%s17 + $0x4a8] sm:$0xff]
    %v1580 = vld [vmem:[%s17 + $0x4b0] sm:$0xff]
    %v1581 = vld [vmem:[%s17 + $0x4b8] sm:$0xff]
    %v1582 = vld [vmem:[%s17 + $0x4c0] sm:$0xff]
    %v1583 = vld [vmem:[%s17 + $0x4c8] sm:$0xff]
    %v1584 = vld [vmem:[%s17 + $0x4d0] sm:$0xff]
    %v1585 = vld [vmem:[%s17 + $0x4d8] sm:$0xff]
    %v1586 = vld [vmem:[%s17 + $0x4e0] sm:$0xff]
    %v1587 = vld [vmem:[%s17 + $0x4e8] sm:$0xff]
    %v1588 = vld [vmem:[%s17 + $0x4f0] sm:$0xff]
    %v1589 = vld [vmem:[%s17 + $0x4f8] sm:$0xff]
    %v1590 = vld [vmem:[%s17 + $0x500] sm:$0xff]
    %v1591 = vld [vmem:[%s17 + $0x508] sm:$0xff]
    %v1592 = vld [vmem:[%s17 + $0x510] sm:$0xff]
    %v1593 = vld [vmem:[%s17 + $0x518] sm:$0xff]
    %v1594 = vld [vmem:[%s17 + $0x520] sm:$0xff]
    %v1595 = vld [vmem:[%s17 + $0x528] sm:$0xff]
    %v1596 = vld [vmem:[%s17 + $0x530] sm:$0xff]
    %v1597 = vld [vmem:[%s17 + $0x538] sm:$0xff]
    %v1598 = vld [vmem:[%s17 + $0x540] sm:$0xff]
    %v1599 = vld [vmem:[%s17 + $0x548] sm:$0xff]
    %v1600 = vld [vmem:[%s17 + $0x550] sm:$0xff]
    %v1601 = vld [vmem:[%s17 + $0x558] sm:$0xff]
    %v1602 = vld [vmem:[%s17 + $0x560] sm:$0xff]
    %v1603 = vld [vmem:[%s17 + $0x568] sm:$0xff]
    %v1604 = vld [vmem:[%s17 + $0x570] sm:$0xff]
    %v1605 = vld [vmem:[%s17 + $0x578] sm:$0xff]
    %v1606 = vld [vmem:[%s17 + $0x580] sm:$0xff]
    %v1607 = vld [vmem:[%s17 + $0x588] sm:$0xff]
    %v1608 = vld [vmem:[%s17 + $0x590] sm:$0xff]
    %v1609 = vld [vmem:[%s17 + $0x598] sm:$0xff]
    %v1610 = vld [vmem:[%s17 + $0x5a0] sm:$0xff]
    %v1611 = vld [vmem:[%s17 + $0x5a8] sm:$0xff]
    %v1612 = vld [vmem:[%s17 + $0x5b0] sm:$0xff]
    %v1613 = vld [vmem:[%s17 + $0x5b8] sm:$0xff]
    %v1614 = vld [vmem:[%s17 + $0x5c0] sm:$0xff]
    %v1615 = vld [vmem:[%s17 + $0x5c8] sm:$0xff]
    %v1616 = vld [vmem:[%s17 + $0x5d0] sm:$0xff]
    %v1617 = vld [vmem:[%s17 + $0x5d8] sm:$0xff]
    %v1618 = vld [vmem:[%s17 + $0x5e0] sm:$0xff]
    %v1619 = vld [vmem:[%s17 + $0x5e8] sm:$0xff]
    %v1620 = vld [vmem:[%s17 + $0x5f0] sm:$0xff]
    %v1621 = vld [vmem:[%s17 + $0x5f8] sm:$0xff]
    %v1622 = vld [vmem:[%s17 + $0x600] sm:$0xff]
    %v1623 = vld [vmem:[%s17 + $0x608] sm:$0xff]
    %v1624 = vld [vmem:[%s17 + $0x610] sm:$0xff]
    %v1625 = vld [vmem:[%s17 + $0x618] sm:$0xff]
    %v1626 = vld [vmem:[%s17 + $0x620] sm:$0xff]
    %v1627 = vld [vmem:[%s17 + $0x628] sm:$0xff]
    %v1628 = vld [vmem:[%s17 + $0x630] sm:$0xff]
    %v1629 = vld [vmem:[%s17 + $0x638] sm:$0xff]
    %v1630 = vld [vmem:[%s17 + $0x640] sm:$0xff]
    %v1631 = vld [vmem:[%s17 + $0x648] sm:$0xff]
    %v1632 = vld [vmem:[%s17 + $0x650] sm:$0xff]
    %v1633 = vld [vmem:[%s17 + $0x658] sm:$0xff]
    %v1634 = vld [vmem:[%s17 + $0x660] sm:$0xff]
    %v1635 = vld [vmem:[%s17 + $0x668] sm:$0xff]
    %v1636 = vld [vmem:[%s17 + $0x670] sm:$0xff]
    %v1637 = vld [vmem:[%s17 + $0x678] sm:$0xff]
    %v1638 = vld [vmem:[%s17 + $0x680] sm:$0xff]
    %v1639 = vld [vmem:[%s17 + $0x688] sm:$0xff]
    %v1640 = vld [vmem:[%s17 + $0x690] sm:$0xff]
    %v1641 = vld [vmem:[%s17 + $0x698] sm:$0xff]
    %v1642 = vld [vmem:[%s17 + $0x6a0] sm:$0xff]
    %v1643 = vld [vmem:[%s17 + $0x6a8] sm:$0xff]
    %v1644 = vld [vmem:[%s17 + $0x6b0] sm:$0xff]
    %v1645 = vld [vmem:[%s17 + $0x6b8] sm:$0xff]
    %v1646 = vld [vmem:[%s17 + $0x6c0] sm:$0xff]
    %v1647 = vld [vmem:[%s17 + $0x6c8] sm:$0xff]
    %v1648 = vld [vmem:[%s17 + $0x6d0] sm:$0xff]
    %v1649 = vld [vmem:[%s17 + $0x6d8] sm:$0xff]
    %v1650 = vld [vmem:[%s17 + $0x6e0] sm:$0xff]
    %v1651 = vld [vmem:[%s17 + $0x6e8] sm:$0xff]
    %v1652 = vld [vmem:[%s17 + $0x6f0] sm:$0xff]
    %v1653 = vld [vmem:[%s17 + $0x6f8] sm:$0xff]
    %v1654 = vld [vmem:[%s17 + $0x700] sm:$0xff]
    %v1655 = vld [vmem:[%s17 + $0x708] sm:$0xff]
    %v1656 = vld [vmem:[%s17 + $0x710] sm:$0xff]
    %v1657 = vld [vmem:[%s17 + $0x718] sm:$0xff]
    %v1658 = vld [vmem:[%s17 + $0x720] sm:$0xff]
    %v1659 = vld [vmem:[%s17 + $0x728] sm:$0xff]
    %v1660 = vld [vmem:[%s17 + $0x730] sm:$0xff]
    %v1661 = vld [vmem:[%s17 + $0x738] sm:$0xff]
    %v1662 = vld [vmem:[%s17 + $0x740] sm:$0xff]
    %v1663 = vld [vmem:[%s17 + $0x748] sm:$0xff]
    %v1664 = vld [vmem:[%s17 + $0x750] sm:$0xff]
    %v1665 = vld [vmem:[%s17 + $0x758] sm:$0xff]
    %v1666 = vld [vmem:[%s17 + $0x760] sm:$0xff]
    %v1667 = vld [vmem:[%s17 + $0x768] sm:$0xff]
    %v1668 = vld [vmem:[%s17 + $0x770] sm:$0xff]
    %v1669 = vld [vmem:[%s17 + $0x778] sm:$0xff]
    %v1670 = vld [vmem:[%s17 + $0x780] sm:$0xff]
    %v1671 = vld [vmem:[%s17 + $0x788] sm:$0xff]
    %v1672 = vld [vmem:[%s17 + $0x790] sm:$0xff]
    %v1673 = vld [vmem:[%s17 + $0x798] sm:$0xff]
    %v1674 = vld [vmem:[%s17 + $0x7a0] sm:$0xff]
    %v1675 = vld [vmem:[%s17 + $0x7a8] sm:$0xff]
    %v1676 = vld [vmem:[%s17 + $0x7b0] sm:$0xff]
    %v1677 = vld [vmem:[%s17 + $0x7b8] sm:$0xff]
    %v1678 = vld [vmem:[%s17 + $0x7c0] sm:$0xff]
    %v1679 = vld [vmem:[%s17 + $0x7c8] sm:$0xff]
    %v1680 = vld [vmem:[%s17 + $0x7d0] sm:$0xff]
    %v1681 = vld [vmem:[%s17 + $0x7d8] sm:$0xff]
    %v1682 = vld [vmem:[%s17 + $0x7e0] sm:$0xff]
    %v1683 = vld [vmem:[%s17 + $0x7e8] sm:$0xff]
    %v1684 = vld [vmem:[%s17 + $0x7f0] sm:$0xff]
    %v1685 = vld [vmem:[%s17 + $0x7f8] sm:$0xff]
    %v1686 = vld [vmem:[%s19] sm:$0xff]
    %v1687 = vld [vmem:[%s19 + $0x8] sm:$0xff]
    %v1690 = vlaneseq
    %v1691 = vshrl.u32 %v1690, 7
    %v1692 = vsub.s32 0, %v1691
    %v1693 = vrot.slane %v1686, %v1692
    %v1694 = vlaneseq
    %v1695 = vshrl.u32 %v1694, 7
    %v1696 = vsub.s32 1, %v1695
    %v1697 = vrot.slane %v1686, %v1696
    %v1698 = vlaneseq
    %v1699 = vshrl.u32 %v1698, 7
    %v1700 = vsub.s32 2, %v1699
    %v1701 = vrot.slane %v1686, %v1700
    %v1702 = vlaneseq
    %v1703 = vshrl.u32 %v1702, 7
    %v1704 = vsub.s32 3, %v1703
    %v1705 = vrot.slane %v1686, %v1704
    %v1706 = vlaneseq
    %v1707 = vshrl.u32 %v1706, 7
    %v1708 = vsub.s32 4, %v1707
    %v1709 = vrot.slane %v1686, %v1708
    %v1710 = vlaneseq
    %v1711 = vshrl.u32 %v1710, 7
    %v1712 = vsub.s32 5, %v1711
    %v1713 = vrot.slane %v1686, %v1712
    %v1714 = vlaneseq
    %v1715 = vshrl.u32 %v1714, 7
    %v1716 = vsub.s32 6, %v1715
    %v1717 = vrot.slane %v1686, %v1716
    %v1718 = vlaneseq
    %v1719 = vshrl.u32 %v1718, 7
    %v1720 = vsub.s32 7, %v1719
    %v1721 = vrot.slane %v1686, %v1720
    %v1722 = vlaneseq
    %v1723 = vshrl.u32 %v1722, 7
    %v1724 = vsub.s32 0, %v1723
    %v1725 = vrot.slane %v1687, %v1724
    %v1726 = vlaneseq
    %v1727 = vshrl.u32 %v1726, 7
    %v1728 = vsub.s32 1, %v1727
    %v1729 = vrot.slane %v1687, %v1728
    %v1730 = vlaneseq
    %v1731 = vshrl.u32 %v1730, 7
    %v1732 = vsub.s32 2, %v1731
    %v1733 = vrot.slane %v1687, %v1732
    %v1734 = vlaneseq
    %v1735 = vshrl.u32 %v1734, 7
    %v1736 = vsub.s32 3, %v1735
    %v1737 = vrot.slane %v1687, %v1736
    %v1738 = vlaneseq
    %v1739 = vshrl.u32 %v1738, 7
    %v1740 = vsub.s32 4, %v1739
    %v1741 = vrot.slane %v1687, %v1740
    %v1742 = vlaneseq
    %v1743 = vshrl.u32 %v1742, 7
    %v1744 = vsub.s32 5, %v1743
    %v1745 = vrot.slane %v1687, %v1744
    %v1746 = vlaneseq
    %v1747 = vshrl.u32 %v1746, 7
    %v1748 = vsub.s32 6, %v1747
    %v1749 = vrot.slane %v1687, %v1748
    %v1750 = vlaneseq
    %v1751 = vshrl.u32 %v1750, 7
    %v1752 = vsub.s32 7, %v1751
    %v1753 = vrot.slane %v1687, %v1752
    %v2026 = vunpack.c.l.b16 %v1430
    %v2027 = vunpack.c.h.b16 %v1430
    %v2028 = vunpack.c.l.b16 %v1431
    %v2029 = vunpack.c.h.b16 %v1431
    %v2030 = vunpack.c.l.b16 %v1432
    %v2031 = vunpack.c.h.b16 %v1432
    %v2032 = vunpack.c.l.b16 %v1433
    %v2033 = vunpack.c.h.b16 %v1433
    %v2034 = vunpack.c.l.b16 %v1434
    %v2035 = vunpack.c.h.b16 %v1434
    %v2036 = vunpack.c.l.b16 %v1435
    %v2037 = vunpack.c.h.b16 %v1435
    %v2038 = vunpack.c.l.b16 %v1436
    %v2039 = vunpack.c.h.b16 %v1436
    %v2040 = vunpack.c.l.b16 %v1437
    %v2041 = vunpack.c.h.b16 %v1437
    %v2042 = vunpack.c.l.b16 %v1438
    %v2043 = vunpack.c.h.b16 %v1438
    %v2044 = vunpack.c.l.b16 %v1439
    %v2045 = vunpack.c.h.b16 %v1439
    %v2046 = vunpack.c.l.b16 %v1440
    %v2047 = vunpack.c.h.b16 %v1440
    %v2048 = vunpack.c.l.b16 %v1441
    %v2049 = vunpack.c.h.b16 %v1441
    %v2050 = vunpack.c.l.b16 %v1442
    %v2051 = vunpack.c.h.b16 %v1442
    %v2052 = vunpack.c.l.b16 %v1443
    %v2053 = vunpack.c.h.b16 %v1443
    %v2054 = vunpack.c.l.b16 %v1444
    %v2055 = vunpack.c.h.b16 %v1444
    %v2056 = vunpack.c.l.b16 %v1445
    %v2057 = vunpack.c.h.b16 %v1445
    %v2058 = vunpack.c.l.b16 %v1446
    %v2059 = vunpack.c.h.b16 %v1446
    %v2060 = vunpack.c.l.b16 %v1447
    %v2061 = vunpack.c.h.b16 %v1447
    %v2062 = vunpack.c.l.b16 %v1448
    %v2063 = vunpack.c.h.b16 %v1448
    %v2064 = vunpack.c.l.b16 %v1449
    %v2065 = vunpack.c.h.b16 %v1449
    %v2066 = vunpack.c.l.b16 %v1450
    %v2067 = vunpack.c.h.b16 %v1450
    %v2068 = vunpack.c.l.b16 %v1451
    %v2069 = vunpack.c.h.b16 %v1451
    %v2070 = vunpack.c.l.b16 %v1452
    %v2071 = vunpack.c.h.b16 %v1452
    %v2072 = vunpack.c.l.b16 %v1453
    %v2073 = vunpack.c.h.b16 %v1453
    %v2074 = vunpack.c.l.b16 %v1454
    %v2075 = vunpack.c.h.b16 %v1454
    %v2076 = vunpack.c.l.b16 %v1455
    %v2077 = vunpack.c.h.b16 %v1455
    %v2078 = vunpack.c.l.b16 %v1456
    %v2079 = vunpack.c.h.b16 %v1456
    %v2080 = vunpack.c.l.b16 %v1457
    %v2081 = vunpack.c.h.b16 %v1457
    %v2082 = vunpack.c.l.b16 %v1458
    %v2083 = vunpack.c.h.b16 %v1458
    %v2084 = vunpack.c.l.b16 %v1459
    %v2085 = vunpack.c.h.b16 %v1459
    %v2086 = vunpack.c.l.b16 %v1460
    %v2087 = vunpack.c.h.b16 %v1460
    %v2088 = vunpack.c.l.b16 %v1461
    %v2089 = vunpack.c.h.b16 %v1461
    %v2090 = vunpack.c.l.b16 %v1462
    %v2091 = vunpack.c.h.b16 %v1462
    %v2092 = vunpack.c.l.b16 %v1463
    %v2093 = vunpack.c.h.b16 %v1463
    %v2094 = vunpack.c.l.b16 %v1464
    %v2095 = vunpack.c.h.b16 %v1464
    %v2096 = vunpack.c.l.b16 %v1465
    %v2097 = vunpack.c.h.b16 %v1465
    %v2098 = vunpack.c.l.b16 %v1466
    %v2099 = vunpack.c.h.b16 %v1466
    %v2100 = vunpack.c.l.b16 %v1467
    %v2101 = vunpack.c.h.b16 %v1467
    %v2102 = vunpack.c.l.b16 %v1468
    %v2103 = vunpack.c.h.b16 %v1468
    %v2104 = vunpack.c.l.b16 %v1469
    %v2105 = vunpack.c.h.b16 %v1469
    %v2106 = vunpack.c.l.b16 %v1470
    %v2107 = vunpack.c.h.b16 %v1470
    %v2108 = vunpack.c.l.b16 %v1471
    %v2109 = vunpack.c.h.b16 %v1471
    %v2110 = vunpack.c.l.b16 %v1472
    %v2111 = vunpack.c.h.b16 %v1472
    %v2112 = vunpack.c.l.b16 %v1473
    %v2113 = vunpack.c.h.b16 %v1473
    %v2114 = vunpack.c.l.b16 %v1474
    %v2115 = vunpack.c.h.b16 %v1474
    %v2116 = vunpack.c.l.b16 %v1475
    %v2117 = vunpack.c.h.b16 %v1475
    %v2118 = vunpack.c.l.b16 %v1476
    %v2119 = vunpack.c.h.b16 %v1476
    %v2120 = vunpack.c.l.b16 %v1477
    %v2121 = vunpack.c.h.b16 %v1477
    %v2122 = vunpack.c.l.b16 %v1478
    %v2123 = vunpack.c.h.b16 %v1478
    %v2124 = vunpack.c.l.b16 %v1479
    %v2125 = vunpack.c.h.b16 %v1479
    %v2126 = vunpack.c.l.b16 %v1480
    %v2127 = vunpack.c.h.b16 %v1480
    %v2128 = vunpack.c.l.b16 %v1481
    %v2129 = vunpack.c.h.b16 %v1481
    %v2130 = vunpack.c.l.b16 %v1482
    %v2131 = vunpack.c.h.b16 %v1482
    %v2132 = vunpack.c.l.b16 %v1483
    %v2133 = vunpack.c.h.b16 %v1483
    %v2134 = vunpack.c.l.b16 %v1484
    %v2135 = vunpack.c.h.b16 %v1484
    %v2136 = vunpack.c.l.b16 %v1485
    %v2137 = vunpack.c.h.b16 %v1485
    %v2138 = vunpack.c.l.b16 %v1486
    %v2139 = vunpack.c.h.b16 %v1486
    %v2140 = vunpack.c.l.b16 %v1487
    %v2141 = vunpack.c.h.b16 %v1487
    %v2142 = vunpack.c.l.b16 %v1488
    %v2143 = vunpack.c.h.b16 %v1488
    %v2144 = vunpack.c.l.b16 %v1489
    %v2145 = vunpack.c.h.b16 %v1489
    %v2146 = vunpack.c.l.b16 %v1490
    %v2147 = vunpack.c.h.b16 %v1490
    %v2148 = vunpack.c.l.b16 %v1491
    %v2149 = vunpack.c.h.b16 %v1491
    %v2150 = vunpack.c.l.b16 %v1492
    %v2151 = vunpack.c.h.b16 %v1492
    %v2152 = vunpack.c.l.b16 %v1493
    %v2153 = vunpack.c.h.b16 %v1493
    %v2154 = vunpack.c.l.b16 %v1494
    %v2155 = vunpack.c.h.b16 %v1494
    %v2156 = vunpack.c.l.b16 %v1495
    %v2157 = vunpack.c.h.b16 %v1495
    %v2158 = vunpack.c.l.b16 %v1496
    %v2159 = vunpack.c.h.b16 %v1496
    %v2160 = vunpack.c.l.b16 %v1497
    %v2161 = vunpack.c.h.b16 %v1497
    %v2162 = vunpack.c.l.b16 %v1498
    %v2163 = vunpack.c.h.b16 %v1498
    %v2164 = vunpack.c.l.b16 %v1499
    %v2165 = vunpack.c.h.b16 %v1499
    %v2166 = vunpack.c.l.b16 %v1500
    %v2167 = vunpack.c.h.b16 %v1500
    %v2168 = vunpack.c.l.b16 %v1501
    %v2169 = vunpack.c.h.b16 %v1501
    %v2170 = vunpack.c.l.b16 %v1502
    %v2171 = vunpack.c.h.b16 %v1502
    %v2172 = vunpack.c.l.b16 %v1503
    %v2173 = vunpack.c.h.b16 %v1503
    %v2174 = vunpack.c.l.b16 %v1504
    %v2175 = vunpack.c.h.b16 %v1504
    %v2176 = vunpack.c.l.b16 %v1505
    %v2177 = vunpack.c.h.b16 %v1505
    %v2178 = vunpack.c.l.b16 %v1506
    %v2179 = vunpack.c.h.b16 %v1506
    %v2180 = vunpack.c.l.b16 %v1507
    %v2181 = vunpack.c.h.b16 %v1507
    %v2182 = vunpack.c.l.b16 %v1508
    %v2183 = vunpack.c.h.b16 %v1508
    %v2184 = vunpack.c.l.b16 %v1509
    %v2185 = vunpack.c.h.b16 %v1509
    %v2186 = vunpack.c.l.b16 %v1510
    %v2187 = vunpack.c.h.b16 %v1510
    %v2188 = vunpack.c.l.b16 %v1511
    %v2189 = vunpack.c.h.b16 %v1511
    %v2190 = vunpack.c.l.b16 %v1512
    %v2191 = vunpack.c.h.b16 %v1512
    %v2192 = vunpack.c.l.b16 %v1513
    %v2193 = vunpack.c.h.b16 %v1513
    %v2194 = vunpack.c.l.b16 %v1514
    %v2195 = vunpack.c.h.b16 %v1514
    %v2196 = vunpack.c.l.b16 %v1515
    %v2197 = vunpack.c.h.b16 %v1515
    %v2198 = vunpack.c.l.b16 %v1516
    %v2199 = vunpack.c.h.b16 %v1516
    %v2200 = vunpack.c.l.b16 %v1517
    %v2201 = vunpack.c.h.b16 %v1517
    %v2202 = vunpack.c.l.b16 %v1518
    %v2203 = vunpack.c.h.b16 %v1518
    %v2204 = vunpack.c.l.b16 %v1519
    %v2205 = vunpack.c.h.b16 %v1519
    %v2206 = vunpack.c.l.b16 %v1520
    %v2207 = vunpack.c.h.b16 %v1520
    %v2208 = vunpack.c.l.b16 %v1521
    %v2209 = vunpack.c.h.b16 %v1521
    %v2210 = vunpack.c.l.b16 %v1522
    %v2211 = vunpack.c.h.b16 %v1522
    %v2212 = vunpack.c.l.b16 %v1523
    %v2213 = vunpack.c.h.b16 %v1523
    %v2214 = vunpack.c.l.b16 %v1524
    %v2215 = vunpack.c.h.b16 %v1524
    %v2216 = vunpack.c.l.b16 %v1525
    %v2217 = vunpack.c.h.b16 %v1525
    %v2218 = vunpack.c.l.b16 %v1526
    %v2219 = vunpack.c.h.b16 %v1526
    %v2220 = vunpack.c.l.b16 %v1527
    %v2221 = vunpack.c.h.b16 %v1527
    %v2222 = vunpack.c.l.b16 %v1528
    %v2223 = vunpack.c.h.b16 %v1528
    %v2224 = vunpack.c.l.b16 %v1529
    %v2225 = vunpack.c.h.b16 %v1529
    %v2226 = vunpack.c.l.b16 %v1530
    %v2227 = vunpack.c.h.b16 %v1530
    %v2228 = vunpack.c.l.b16 %v1531
    %v2229 = vunpack.c.h.b16 %v1531
    %v2230 = vunpack.c.l.b16 %v1532
    %v2231 = vunpack.c.h.b16 %v1532
    %v2232 = vunpack.c.l.b16 %v1533
    %v2233 = vunpack.c.h.b16 %v1533
    %v2234 = vunpack.c.l.b16 %v1534
    %v2235 = vunpack.c.h.b16 %v1534
    %v2236 = vunpack.c.l.b16 %v1535
    %v2237 = vunpack.c.h.b16 %v1535
    %v2238 = vunpack.c.l.b16 %v1536
    %v2239 = vunpack.c.h.b16 %v1536
    %v2240 = vunpack.c.l.b16 %v1537
    %v2241 = vunpack.c.h.b16 %v1537
    %v2242 = vunpack.c.l.b16 %v1538
    %v2243 = vunpack.c.h.b16 %v1538
    %v2244 = vunpack.c.l.b16 %v1539
    %v2245 = vunpack.c.h.b16 %v1539
    %v2246 = vunpack.c.l.b16 %v1540
    %v2247 = vunpack.c.h.b16 %v1540
    %v2248 = vunpack.c.l.b16 %v1541
    %v2249 = vunpack.c.h.b16 %v1541
    %v2250 = vunpack.c.l.b16 %v1542
    %v2251 = vunpack.c.h.b16 %v1542
    %v2252 = vunpack.c.l.b16 %v1543
    %v2253 = vunpack.c.h.b16 %v1543
    %v2254 = vunpack.c.l.b16 %v1544
    %v2255 = vunpack.c.h.b16 %v1544
    %v2256 = vunpack.c.l.b16 %v1545
    %v2257 = vunpack.c.h.b16 %v1545
    %v2258 = vunpack.c.l.b16 %v1546
    %v2259 = vunpack.c.h.b16 %v1546
    %v2260 = vunpack.c.l.b16 %v1547
    %v2261 = vunpack.c.h.b16 %v1547
    %v2262 = vunpack.c.l.b16 %v1548
    %v2263 = vunpack.c.h.b16 %v1548
    %v2264 = vunpack.c.l.b16 %v1549
    %v2265 = vunpack.c.h.b16 %v1549
    %v2266 = vunpack.c.l.b16 %v1550
    %v2267 = vunpack.c.h.b16 %v1550
    %v2268 = vunpack.c.l.b16 %v1551
    %v2269 = vunpack.c.h.b16 %v1551
    %v2270 = vunpack.c.l.b16 %v1552
    %v2271 = vunpack.c.h.b16 %v1552
    %v2272 = vunpack.c.l.b16 %v1553
    %v2273 = vunpack.c.h.b16 %v1553
    %v2274 = vunpack.c.l.b16 %v1554
    %v2275 = vunpack.c.h.b16 %v1554
    %v2276 = vunpack.c.l.b16 %v1555
    %v2277 = vunpack.c.h.b16 %v1555
    %v2278 = vunpack.c.l.b16 %v1556
    %v2279 = vunpack.c.h.b16 %v1556
    %v2280 = vunpack.c.l.b16 %v1557
    %v2281 = vunpack.c.h.b16 %v1557
    %v2282 = vunpack.c.l.b16 %v1558
    %v2283 = vunpack.c.h.b16 %v1558
    %v2284 = vunpack.c.l.b16 %v1559
    %v2285 = vunpack.c.h.b16 %v1559
    %v2286 = vunpack.c.l.b16 %v1560
    %v2287 = vunpack.c.h.b16 %v1560
    %v2288 = vunpack.c.l.b16 %v1561
    %v2289 = vunpack.c.h.b16 %v1561
    %v2290 = vunpack.c.l.b16 %v1562
    %v2291 = vunpack.c.h.b16 %v1562
    %v2292 = vunpack.c.l.b16 %v1563
    %v2293 = vunpack.c.h.b16 %v1563
    %v2294 = vunpack.c.l.b16 %v1564
    %v2295 = vunpack.c.h.b16 %v1564
    %v2296 = vunpack.c.l.b16 %v1565
    %v2297 = vunpack.c.h.b16 %v1565
    %v2298 = vunpack.c.l.b16 %v1566
    %v2299 = vunpack.c.h.b16 %v1566
    %v2300 = vunpack.c.l.b16 %v1567
    %v2301 = vunpack.c.h.b16 %v1567
    %v2302 = vunpack.c.l.b16 %v1568
    %v2303 = vunpack.c.h.b16 %v1568
    %v2304 = vunpack.c.l.b16 %v1569
    %v2305 = vunpack.c.h.b16 %v1569
    %v2306 = vunpack.c.l.b16 %v1570
    %v2307 = vunpack.c.h.b16 %v1570
    %v2308 = vunpack.c.l.b16 %v1571
    %v2309 = vunpack.c.h.b16 %v1571
    %v2310 = vunpack.c.l.b16 %v1572
    %v2311 = vunpack.c.h.b16 %v1572
    %v2312 = vunpack.c.l.b16 %v1573
    %v2313 = vunpack.c.h.b16 %v1573
    %v2314 = vunpack.c.l.b16 %v1574
    %v2315 = vunpack.c.h.b16 %v1574
    %v2316 = vunpack.c.l.b16 %v1575
    %v2317 = vunpack.c.h.b16 %v1575
    %v2318 = vunpack.c.l.b16 %v1576
    %v2319 = vunpack.c.h.b16 %v1576
    %v2320 = vunpack.c.l.b16 %v1577
    %v2321 = vunpack.c.h.b16 %v1577
    %v2322 = vunpack.c.l.b16 %v1578
    %v2323 = vunpack.c.h.b16 %v1578
    %v2324 = vunpack.c.l.b16 %v1579
    %v2325 = vunpack.c.h.b16 %v1579
    %v2326 = vunpack.c.l.b16 %v1580
    %v2327 = vunpack.c.h.b16 %v1580
    %v2328 = vunpack.c.l.b16 %v1581
    %v2329 = vunpack.c.h.b16 %v1581
    %v2330 = vunpack.c.l.b16 %v1582
    %v2331 = vunpack.c.h.b16 %v1582
    %v2332 = vunpack.c.l.b16 %v1583
    %v2333 = vunpack.c.h.b16 %v1583
    %v2334 = vunpack.c.l.b16 %v1584
    %v2335 = vunpack.c.h.b16 %v1584
    %v2336 = vunpack.c.l.b16 %v1585
    %v2337 = vunpack.c.h.b16 %v1585
    %v2338 = vunpack.c.l.b16 %v1586
    %v2339 = vunpack.c.h.b16 %v1586
    %v2340 = vunpack.c.l.b16 %v1587
    %v2341 = vunpack.c.h.b16 %v1587
    %v2342 = vunpack.c.l.b16 %v1588
    %v2343 = vunpack.c.h.b16 %v1588
    %v2344 = vunpack.c.l.b16 %v1589
    %v2345 = vunpack.c.h.b16 %v1589
    %v2346 = vunpack.c.l.b16 %v1590
    %v2347 = vunpack.c.h.b16 %v1590
    %v2348 = vunpack.c.l.b16 %v1591
    %v2349 = vunpack.c.h.b16 %v1591
    %v2350 = vunpack.c.l.b16 %v1592
    %v2351 = vunpack.c.h.b16 %v1592
    %v2352 = vunpack.c.l.b16 %v1593
    %v2353 = vunpack.c.h.b16 %v1593
    %v2354 = vunpack.c.l.b16 %v1594
    %v2355 = vunpack.c.h.b16 %v1594
    %v2356 = vunpack.c.l.b16 %v1595
    %v2357 = vunpack.c.h.b16 %v1595
    %v2358 = vunpack.c.l.b16 %v1596
    %v2359 = vunpack.c.h.b16 %v1596
    %v2360 = vunpack.c.l.b16 %v1597
    %v2361 = vunpack.c.h.b16 %v1597
    %v2362 = vunpack.c.l.b16 %v1598
    %v2363 = vunpack.c.h.b16 %v1598
    %v2364 = vunpack.c.l.b16 %v1599
    %v2365 = vunpack.c.h.b16 %v1599
    %v2366 = vunpack.c.l.b16 %v1600
    %v2367 = vunpack.c.h.b16 %v1600
    %v2368 = vunpack.c.l.b16 %v1601
    %v2369 = vunpack.c.h.b16 %v1601
    %v2370 = vunpack.c.l.b16 %v1602
    %v2371 = vunpack.c.h.b16 %v1602
    %v2372 = vunpack.c.l.b16 %v1603
    %v2373 = vunpack.c.h.b16 %v1603
    %v2374 = vunpack.c.l.b16 %v1604
    %v2375 = vunpack.c.h.b16 %v1604
    %v2376 = vunpack.c.l.b16 %v1605
    %v2377 = vunpack.c.h.b16 %v1605
    %v2378 = vunpack.c.l.b16 %v1606
    %v2379 = vunpack.c.h.b16 %v1606
    %v2380 = vunpack.c.l.b16 %v1607
    %v2381 = vunpack.c.h.b16 %v1607
    %v2382 = vunpack.c.l.b16 %v1608
    %v2383 = vunpack.c.h.b16 %v1608
    %v2384 = vunpack.c.l.b16 %v1609
    %v2385 = vunpack.c.h.b16 %v1609
    %v2386 = vunpack.c.l.b16 %v1610
    %v2387 = vunpack.c.h.b16 %v1610
    %v2388 = vunpack.c.l.b16 %v1611
    %v2389 = vunpack.c.h.b16 %v1611
    %v2390 = vunpack.c.l.b16 %v1612
    %v2391 = vunpack.c.h.b16 %v1612
    %v2392 = vunpack.c.l.b16 %v1613
    %v2393 = vunpack.c.h.b16 %v1613
    %v2394 = vunpack.c.l.b16 %v1614
    %v2395 = vunpack.c.h.b16 %v1614
    %v2396 = vunpack.c.l.b16 %v1615
    %v2397 = vunpack.c.h.b16 %v1615
    %v2398 = vunpack.c.l.b16 %v1616
    %v2399 = vunpack.c.h.b16 %v1616
    %v2400 = vunpack.c.l.b16 %v1617
    %v2401 = vunpack.c.h.b16 %v1617
    %v2402 = vunpack.c.l.b16 %v1618
    %v2403 = vunpack.c.h.b16 %v1618
    %v2404 = vunpack.c.l.b16 %v1619
    %v2405 = vunpack.c.h.b16 %v1619
    %v2406 = vunpack.c.l.b16 %v1620
    %v2407 = vunpack.c.h.b16 %v1620
    %v2408 = vunpack.c.l.b16 %v1621
    %v2409 = vunpack.c.h.b16 %v1621
    %v2410 = vunpack.c.l.b16 %v1622
    %v2411 = vunpack.c.h.b16 %v1622
    %v2412 = vunpack.c.l.b16 %v1623
    %v2413 = vunpack.c.h.b16 %v1623
    %v2414 = vunpack.c.l.b16 %v1624
    %v2415 = vunpack.c.h.b16 %v1624
    %v2416 = vunpack.c.l.b16 %v1625
    %v2417 = vunpack.c.h.b16 %v1625
    %v2418 = vunpack.c.l.b16 %v1626
    %v2419 = vunpack.c.h.b16 %v1626
    %v2420 = vunpack.c.l.b16 %v1627
    %v2421 = vunpack.c.h.b16 %v1627
    %v2422 = vunpack.c.l.b16 %v1628
    %v2423 = vunpack.c.h.b16 %v1628
    %v2424 = vunpack.c.l.b16 %v1629
    %v2425 = vunpack.c.h.b16 %v1629
    %v2426 = vunpack.c.l.b16 %v1630
    %v2427 = vunpack.c.h.b16 %v1630
    %v2428 = vunpack.c.l.b16 %v1631
    %v2429 = vunpack.c.h.b16 %v1631
    %v2430 = vunpack.c.l.b16 %v1632
    %v2431 = vunpack.c.h.b16 %v1632
    %v2432 = vunpack.c.l.b16 %v1633
    %v2433 = vunpack.c.h.b16 %v1633
    %v2434 = vunpack.c.l.b16 %v1634
    %v2435 = vunpack.c.h.b16 %v1634
    %v2436 = vunpack.c.l.b16 %v1635
    %v2437 = vunpack.c.h.b16 %v1635
    %v2438 = vunpack.c.l.b16 %v1636
    %v2439 = vunpack.c.h.b16 %v1636
    %v2440 = vunpack.c.l.b16 %v1637
    %v2441 = vunpack.c.h.b16 %v1637
    %v2442 = vunpack.c.l.b16 %v1638
    %v2443 = vunpack.c.h.b16 %v1638
    %v2444 = vunpack.c.l.b16 %v1639
    %v2445 = vunpack.c.h.b16 %v1639
    %v2446 = vunpack.c.l.b16 %v1640
    %v2447 = vunpack.c.h.b16 %v1640
    %v2448 = vunpack.c.l.b16 %v1641
    %v2449 = vunpack.c.h.b16 %v1641
    %v2450 = vunpack.c.l.b16 %v1642
    %v2451 = vunpack.c.h.b16 %v1642
    %v2452 = vunpack.c.l.b16 %v1643
    %v2453 = vunpack.c.h.b16 %v1643
    %v2454 = vunpack.c.l.b16 %v1644
    %v2455 = vunpack.c.h.b16 %v1644
    %v2456 = vunpack.c.l.b16 %v1645
    %v2457 = vunpack.c.h.b16 %v1645
    %v2458 = vunpack.c.l.b16 %v1646
    %v2459 = vunpack.c.h.b16 %v1646
    %v2460 = vunpack.c.l.b16 %v1647
    %v2461 = vunpack.c.h.b16 %v1647
    %v2462 = vunpack.c.l.b16 %v1648
    %v2463 = vunpack.c.h.b16 %v1648
    %v2464 = vunpack.c.l.b16 %v1649
    %v2465 = vunpack.c.h.b16 %v1649
    %v2466 = vunpack.c.l.b16 %v1650
    %v2467 = vunpack.c.h.b16 %v1650
    %v2468 = vunpack.c.l.b16 %v1651
    %v2469 = vunpack.c.h.b16 %v1651
    %v2470 = vunpack.c.l.b16 %v1652
    %v2471 = vunpack.c.h.b16 %v1652
    %v2472 = vunpack.c.l.b16 %v1653
    %v2473 = vunpack.c.h.b16 %v1653
    %v2474 = vunpack.c.l.b16 %v1654
    %v2475 = vunpack.c.h.b16 %v1654
    %v2476 = vunpack.c.l.b16 %v1655
    %v2477 = vunpack.c.h.b16 %v1655
    %v2478 = vunpack.c.l.b16 %v1656
    %v2479 = vunpack.c.h.b16 %v1656
    %v2480 = vunpack.c.l.b16 %v1657
    %v2481 = vunpack.c.h.b16 %v1657
    %v2482 = vunpack.c.l.b16 %v1658
    %v2483 = vunpack.c.h.b16 %v1658
    %v2484 = vunpack.c.l.b16 %v1659
    %v2485 = vunpack.c.h.b16 %v1659
    %v2486 = vunpack.c.l.b16 %v1660
    %v2487 = vunpack.c.h.b16 %v1660
    %v2488 = vunpack.c.l.b16 %v1661
    %v2489 = vunpack.c.h.b16 %v1661
    %v2490 = vunpack.c.l.b16 %v1662
    %v2491 = vunpack.c.h.b16 %v1662
    %v2492 = vunpack.c.l.b16 %v1663
    %v2493 = vunpack.c.h.b16 %v1663
    %v2494 = vunpack.c.l.b16 %v1664
    %v2495 = vunpack.c.h.b16 %v1664
    %v2496 = vunpack.c.l.b16 %v1665
    %v2497 = vunpack.c.h.b16 %v1665
    %v2498 = vunpack.c.l.b16 %v1666
    %v2499 = vunpack.c.h.b16 %v1666
    %v2500 = vunpack.c.l.b16 %v1667
    %v2501 = vunpack.c.h.b16 %v1667
    %v2502 = vunpack.c.l.b16 %v1668
    %v2503 = vunpack.c.h.b16 %v1668
    %v2504 = vunpack.c.l.b16 %v1669
    %v2505 = vunpack.c.h.b16 %v1669
    %v2506 = vunpack.c.l.b16 %v1670
    %v2507 = vunpack.c.h.b16 %v1670
    %v2508 = vunpack.c.l.b16 %v1671
    %v2509 = vunpack.c.h.b16 %v1671
    %v2510 = vunpack.c.l.b16 %v1672
    %v2511 = vunpack.c.h.b16 %v1672
    %v2512 = vunpack.c.l.b16 %v1673
    %v2513 = vunpack.c.h.b16 %v1673
    %v2514 = vunpack.c.l.b16 %v1674
    %v2515 = vunpack.c.h.b16 %v1674
    %v2516 = vunpack.c.l.b16 %v1675
    %v2517 = vunpack.c.h.b16 %v1675
    %v2518 = vunpack.c.l.b16 %v1676
    %v2519 = vunpack.c.h.b16 %v1676
    %v2520 = vunpack.c.l.b16 %v1677
    %v2521 = vunpack.c.h.b16 %v1677
    %v2522 = vunpack.c.l.b16 %v1678
    %v2523 = vunpack.c.h.b16 %v1678
    %v2524 = vunpack.c.l.b16 %v1679
    %v2525 = vunpack.c.h.b16 %v1679
    %v2526 = vunpack.c.l.b16 %v1680
    %v2527 = vunpack.c.h.b16 %v1680
    %v2528 = vunpack.c.l.b16 %v1681
    %v2529 = vunpack.c.h.b16 %v1681
    %v2530 = vunpack.c.l.b16 %v1682
    %v2531 = vunpack.c.h.b16 %v1682
    %v2532 = vunpack.c.l.b16 %v1683
    %v2533 = vunpack.c.h.b16 %v1683
    %v2534 = vunpack.c.l.b16 %v1684
    %v2535 = vunpack.c.h.b16 %v1684
    %v2536 = vunpack.c.l.b16 %v1685
    %v2537 = vunpack.c.h.b16 %v1685
    %v2538 = vpack.c.b16 %v2042, %v2026
    %v2539 = vpack.c.b16 %v2043, %v2027
    %v2540 = vpack.c.b16 %v2044, %v2028
    %v2541 = vpack.c.b16 %v2045, %v2029
    %v2542 = vpack.c.b16 %v2046, %v2030
    %v2543 = vpack.c.b16 %v2047, %v2031
    %v2544 = vpack.c.b16 %v2048, %v2032
    %v2545 = vpack.c.b16 %v2049, %v2033
    %v2546 = vpack.c.b16 %v2050, %v2034
    %v2547 = vpack.c.b16 %v2051, %v2035
    %v2548 = vpack.c.b16 %v2052, %v2036
    %v2549 = vpack.c.b16 %v2053, %v2037
    %v2550 = vpack.c.b16 %v2054, %v2038
    %v2551 = vpack.c.b16 %v2055, %v2039
    %v2552 = vpack.c.b16 %v2056, %v2040
    %v2553 = vpack.c.b16 %v2057, %v2041
    %v2554 = vpack.c.b16 %v2074, %v2058
    %v2555 = vpack.c.b16 %v2075, %v2059
    %v2556 = vpack.c.b16 %v2076, %v2060
    %v2557 = vpack.c.b16 %v2077, %v2061
    %v2558 = vpack.c.b16 %v2078, %v2062
    %v2559 = vpack.c.b16 %v2079, %v2063
    %v2560 = vpack.c.b16 %v2080, %v2064
    %v2561 = vpack.c.b16 %v2081, %v2065
    %v2562 = vpack.c.b16 %v2082, %v2066
    %v2563 = vpack.c.b16 %v2083, %v2067
    %v2564 = vpack.c.b16 %v2084, %v2068
    %v2565 = vpack.c.b16 %v2085, %v2069
    %v2566 = vpack.c.b16 %v2086, %v2070
    %v2567 = vpack.c.b16 %v2087, %v2071
    %v2568 = vpack.c.b16 %v2088, %v2072
    %v2569 = vpack.c.b16 %v2089, %v2073
    %v2570 = vpack.c.b16 %v2106, %v2090
    %v2571 = vpack.c.b16 %v2107, %v2091
    %v2572 = vpack.c.b16 %v2108, %v2092
    %v2573 = vpack.c.b16 %v2109, %v2093
    %v2574 = vpack.c.b16 %v2110, %v2094
    %v2575 = vpack.c.b16 %v2111, %v2095
    %v2576 = vpack.c.b16 %v2112, %v2096
    %v2577 = vpack.c.b16 %v2113, %v2097
    %v2578 = vpack.c.b16 %v2114, %v2098
    %v2579 = vpack.c.b16 %v2115, %v2099
    %v2580 = vpack.c.b16 %v2116, %v2100
    %v2581 = vpack.c.b16 %v2117, %v2101
    %v2582 = vpack.c.b16 %v2118, %v2102
    %v2583 = vpack.c.b16 %v2119, %v2103
    %v2584 = vpack.c.b16 %v2120, %v2104
    %v2585 = vpack.c.b16 %v2121, %v2105
    %v2586 = vpack.c.b16 %v2138, %v2122
    %v2587 = vpack.c.b16 %v2139, %v2123
    %v2588 = vpack.c.b16 %v2140, %v2124
    %v2589 = vpack.c.b16 %v2141, %v2125
    %v2590 = vpack.c.b16 %v2142, %v2126
    %v2591 = vpack.c.b16 %v2143, %v2127
    %v2592 = vpack.c.b16 %v2144, %v2128
    %v2593 = vpack.c.b16 %v2145, %v2129
    %v2594 = vpack.c.b16 %v2146, %v2130
    %v2595 = vpack.c.b16 %v2147, %v2131
    %v2596 = vpack.c.b16 %v2148, %v2132
    %v2597 = vpack.c.b16 %v2149, %v2133
    %v2598 = vpack.c.b16 %v2150, %v2134
    %v2599 = vpack.c.b16 %v2151, %v2135
    %v2600 = vpack.c.b16 %v2152, %v2136
    %v2601 = vpack.c.b16 %v2153, %v2137
    %v2602 = vpack.c.b16 %v2170, %v2154
    %v2603 = vpack.c.b16 %v2171, %v2155
    %v2604 = vpack.c.b16 %v2172, %v2156
    %v2605 = vpack.c.b16 %v2173, %v2157
    %v2606 = vpack.c.b16 %v2174, %v2158
    %v2607 = vpack.c.b16 %v2175, %v2159
    %v2608 = vpack.c.b16 %v2176, %v2160
    %v2609 = vpack.c.b16 %v2177, %v2161
    %v2610 = vpack.c.b16 %v2178, %v2162
    %v2611 = vpack.c.b16 %v2179, %v2163
    %v2612 = vpack.c.b16 %v2180, %v2164
    %v2613 = vpack.c.b16 %v2181, %v2165
    %v2614 = vpack.c.b16 %v2182, %v2166
    %v2615 = vpack.c.b16 %v2183, %v2167
    %v2616 = vpack.c.b16 %v2184, %v2168
    %v2617 = vpack.c.b16 %v2185, %v2169
    %v2618 = vpack.c.b16 %v2202, %v2186
    %v2619 = vpack.c.b16 %v2203, %v2187
    %v2620 = vpack.c.b16 %v2204, %v2188
    %v2621 = vpack.c.b16 %v2205, %v2189
    %v2622 = vpack.c.b16 %v2206, %v2190
    %v2623 = vpack.c.b16 %v2207, %v2191
    %v2624 = vpack.c.b16 %v2208, %v2192
    %v2625 = vpack.c.b16 %v2209, %v2193
    %v2626 = vpack.c.b16 %v2210, %v2194
    %v2627 = vpack.c.b16 %v2211, %v2195
    %v2628 = vpack.c.b16 %v2212, %v2196
    %v2629 = vpack.c.b16 %v2213, %v2197
    %v2630 = vpack.c.b16 %v2214, %v2198
    %v2631 = vpack.c.b16 %v2215, %v2199
    %v2632 = vpack.c.b16 %v2216, %v2200
    %v2633 = vpack.c.b16 %v2217, %v2201
    %v2634 = vpack.c.b16 %v2234, %v2218
    %v2635 = vpack.c.b16 %v2235, %v2219
    %v2636 = vpack.c.b16 %v2236, %v2220
    %v2637 = vpack.c.b16 %v2237, %v2221
    %v2638 = vpack.c.b16 %v2238, %v2222
    %v2639 = vpack.c.b16 %v2239, %v2223
    %v2640 = vpack.c.b16 %v2240, %v2224
    %v2641 = vpack.c.b16 %v2241, %v2225
    %v2642 = vpack.c.b16 %v2242, %v2226
    %v2643 = vpack.c.b16 %v2243, %v2227
    %v2644 = vpack.c.b16 %v2244, %v2228
    %v2645 = vpack.c.b16 %v2245, %v2229
    %v2646 = vpack.c.b16 %v2246, %v2230
    %v2647 = vpack.c.b16 %v2247, %v2231
    %v2648 = vpack.c.b16 %v2248, %v2232
    %v2649 = vpack.c.b16 %v2249, %v2233
    %v2650 = vpack.c.b16 %v2266, %v2250
    %v2651 = vpack.c.b16 %v2267, %v2251
    %v2652 = vpack.c.b16 %v2268, %v2252
    %v2653 = vpack.c.b16 %v2269, %v2253
    %v2654 = vpack.c.b16 %v2270, %v2254
    %v2655 = vpack.c.b16 %v2271, %v2255
    %v2656 = vpack.c.b16 %v2272, %v2256
    %v2657 = vpack.c.b16 %v2273, %v2257
    %v2658 = vpack.c.b16 %v2274, %v2258
    %v2659 = vpack.c.b16 %v2275, %v2259
    %v2660 = vpack.c.b16 %v2276, %v2260
    %v2661 = vpack.c.b16 %v2277, %v2261
    %v2662 = vpack.c.b16 %v2278, %v2262
    %v2663 = vpack.c.b16 %v2279, %v2263
    %v2664 = vpack.c.b16 %v2280, %v2264
    %v2665 = vpack.c.b16 %v2281, %v2265
    %v2666 = vpack.c.b16 %v2298, %v2282
    %v2667 = vpack.c.b16 %v2299, %v2283
    %v2668 = vpack.c.b16 %v2300, %v2284
    %v2669 = vpack.c.b16 %v2301, %v2285
    %v2670 = vpack.c.b16 %v2302, %v2286
    %v2671 = vpack.c.b16 %v2303, %v2287
    %v2672 = vpack.c.b16 %v2304, %v2288
    %v2673 = vpack.c.b16 %v2305, %v2289
    %v2674 = vpack.c.b16 %v2306, %v2290
    %v2675 = vpack.c.b16 %v2307, %v2291
    %v2676 = vpack.c.b16 %v2308, %v2292
    %v2677 = vpack.c.b16 %v2309, %v2293
    %v2678 = vpack.c.b16 %v2310, %v2294
    %v2679 = vpack.c.b16 %v2311, %v2295
    %v2680 = vpack.c.b16 %v2312, %v2296
    %v2681 = vpack.c.b16 %v2313, %v2297
    %v2682 = vpack.c.b16 %v2330, %v2314
    %v2683 = vpack.c.b16 %v2331, %v2315
    %v2684 = vpack.c.b16 %v2332, %v2316
    %v2685 = vpack.c.b16 %v2333, %v2317
    %v2686 = vpack.c.b16 %v2334, %v2318
    %v2687 = vpack.c.b16 %v2335, %v2319
    %v2688 = vpack.c.b16 %v2336, %v2320
    %v2689 = vpack.c.b16 %v2337, %v2321
    %v2690 = vpack.c.b16 %v2338, %v2322
    %v2691 = vpack.c.b16 %v2339, %v2323
    %v2692 = vpack.c.b16 %v2340, %v2324
    %v2693 = vpack.c.b16 %v2341, %v2325
    %v2694 = vpack.c.b16 %v2342, %v2326
    %v2695 = vpack.c.b16 %v2343, %v2327
    %v2696 = vpack.c.b16 %v2344, %v2328
    %v2697 = vpack.c.b16 %v2345, %v2329
    %v2698 = vpack.c.b16 %v2362, %v2346
    %v2699 = vpack.c.b16 %v2363, %v2347
    %v2700 = vpack.c.b16 %v2364, %v2348
    %v2701 = vpack.c.b16 %v2365, %v2349
    %v2702 = vpack.c.b16 %v2366, %v2350
    %v2703 = vpack.c.b16 %v2367, %v2351
    %v2704 = vpack.c.b16 %v2368, %v2352
    %v2705 = vpack.c.b16 %v2369, %v2353
    %v2706 = vpack.c.b16 %v2370, %v2354
    %v2707 = vpack.c.b16 %v2371, %v2355
    %v2708 = vpack.c.b16 %v2372, %v2356
    %v2709 = vpack.c.b16 %v2373, %v2357
    %v2710 = vpack.c.b16 %v2374, %v2358
    %v2711 = vpack.c.b16 %v2375, %v2359
    %v2712 = vpack.c.b16 %v2376, %v2360
    %v2713 = vpack.c.b16 %v2377, %v2361
    %v2714 = vpack.c.b16 %v2394, %v2378
    %v2715 = vpack.c.b16 %v2395, %v2379
    %v2716 = vpack.c.b16 %v2396, %v2380
    %v2717 = vpack.c.b16 %v2397, %v2381
    %v2718 = vpack.c.b16 %v2398, %v2382
    %v2719 = vpack.c.b16 %v2399, %v2383
    %v2720 = vpack.c.b16 %v2400, %v2384
    %v2721 = vpack.c.b16 %v2401, %v2385
    %v2722 = vpack.c.b16 %v2402, %v2386
    %v2723 = vpack.c.b16 %v2403, %v2387
    %v2724 = vpack.c.b16 %v2404, %v2388
    %v2725 = vpack.c.b16 %v2405, %v2389
    %v2726 = vpack.c.b16 %v2406, %v2390
    %v2727 = vpack.c.b16 %v2407, %v2391
    %v2728 = vpack.c.b16 %v2408, %v2392
    %v2729 = vpack.c.b16 %v2409, %v2393
    %v2730 = vpack.c.b16 %v2426, %v2410
    %v2731 = vpack.c.b16 %v2427, %v2411
    %v2732 = vpack.c.b16 %v2428, %v2412
    %v2733 = vpack.c.b16 %v2429, %v2413
    %v2734 = vpack.c.b16 %v2430, %v2414
    %v2735 = vpack.c.b16 %v2431, %v2415
    %v2736 = vpack.c.b16 %v2432, %v2416
    %v2737 = vpack.c.b16 %v2433, %v2417
    %v2738 = vpack.c.b16 %v2434, %v2418
    %v2739 = vpack.c.b16 %v2435, %v2419
    %v2740 = vpack.c.b16 %v2436, %v2420
    %v2741 = vpack.c.b16 %v2437, %v2421
    %v2742 = vpack.c.b16 %v2438, %v2422
    %v2743 = vpack.c.b16 %v2439, %v2423
    %v2744 = vpack.c.b16 %v2440, %v2424
    %v2745 = vpack.c.b16 %v2441, %v2425
    %v2746 = vpack.c.b16 %v2458, %v2442
    %v2747 = vpack.c.b16 %v2459, %v2443
    %v2748 = vpack.c.b16 %v2460, %v2444
    %v2749 = vpack.c.b16 %v2461, %v2445
    %v2750 = vpack.c.b16 %v2462, %v2446
    %v2751 = vpack.c.b16 %v2463, %v2447
    %v2752 = vpack.c.b16 %v2464, %v2448
    %v2753 = vpack.c.b16 %v2465, %v2449
    %v2754 = vpack.c.b16 %v2466, %v2450
    %v2755 = vpack.c.b16 %v2467, %v2451
    %v2756 = vpack.c.b16 %v2468, %v2452
    %v2757 = vpack.c.b16 %v2469, %v2453
    %v2758 = vpack.c.b16 %v2470, %v2454
    %v2759 = vpack.c.b16 %v2471, %v2455
    %v2760 = vpack.c.b16 %v2472, %v2456
    %v2761 = vpack.c.b16 %v2473, %v2457
    %v2762 = vpack.c.b16 %v2490, %v2474
    %v2763 = vpack.c.b16 %v2491, %v2475
    %v2764 = vpack.c.b16 %v2492, %v2476
    %v2765 = vpack.c.b16 %v2493, %v2477
    %v2766 = vpack.c.b16 %v2494, %v2478
    %v2767 = vpack.c.b16 %v2495, %v2479
    %v2768 = vpack.c.b16 %v2496, %v2480
    %v2769 = vpack.c.b16 %v2497, %v2481
    %v2770 = vpack.c.b16 %v2498, %v2482
    %v2771 = vpack.c.b16 %v2499, %v2483
    %v2772 = vpack.c.b16 %v2500, %v2484
    %v2773 = vpack.c.b16 %v2501, %v2485
    %v2774 = vpack.c.b16 %v2502, %v2486
    %v2775 = vpack.c.b16 %v2503, %v2487
    %v2776 = vpack.c.b16 %v2504, %v2488
    %v2777 = vpack.c.b16 %v2505, %v2489
    %v2778 = vpack.c.b16 %v2522, %v2506
    %v2779 = vpack.c.b16 %v2523, %v2507
    %v2780 = vpack.c.b16 %v2524, %v2508
    %v2781 = vpack.c.b16 %v2525, %v2509
    %v2782 = vpack.c.b16 %v2526, %v2510
    %v2783 = vpack.c.b16 %v2527, %v2511
    %v2784 = vpack.c.b16 %v2528, %v2512
    %v2785 = vpack.c.b16 %v2529, %v2513
    %v2786 = vpack.c.b16 %v2530, %v2514
    %v2787 = vpack.c.b16 %v2531, %v2515
    %v2788 = vpack.c.b16 %v2532, %v2516
    %v2789 = vpack.c.b16 %v2533, %v2517
    %v2790 = vpack.c.b16 %v2534, %v2518
    %v2791 = vpack.c.b16 %v2535, %v2519
    %v2792 = vpack.c.b16 %v2536, %v2520
    %v2793 = vpack.c.b16 %v2537, %v2521
    %3050 = vmatprep.subr.bf16.mxu0 %v2539
    %3051 = vmatpush1.bf16.msra.mxu0 %v2538
    %3052 = vmatprep.subr.bf16.mxu0 %v2555
    %3053 = vmatpush1.bf16.msra.mxu0 %v2554
    %3054 = vmatprep.subr.bf16.mxu0 %v2571
    %3055 = vmatpush1.bf16.msra.mxu0 %v2570
    %3056 = vmatprep.subr.bf16.mxu0 %v2587
    %3057 = vmatpush1.bf16.msra.mxu0 %v2586
    %3058 = vmatprep.subr.bf16.mxu0 %v2603
    %3059 = vmatpush1.bf16.msra.mxu0 %v2602
    %3060 = vmatprep.subr.bf16.mxu0 %v2619
    %3061 = vmatpush1.bf16.msra.mxu0 %v2618
    %3062 = vmatprep.subr.bf16.mxu0 %v2635
    %3063 = vmatpush1.bf16.msra.mxu0 %v2634
    %3064 = vmatprep.subr.bf16.mxu0 %v2651
    %3065 = vmatpush1.bf16.msra.mxu0 %v2650
    %3066 = vmatprep.subr.bf16.mxu0 %v2667
    %3067 = vmatpush1.bf16.msra.mxu0 %v2666
    %3068 = vmatprep.subr.bf16.mxu0 %v2683
    %3069 = vmatpush1.bf16.msra.mxu0 %v2682
    %3070 = vmatprep.subr.bf16.mxu0 %v2699
    %3071 = vmatpush1.bf16.msra.mxu0 %v2698
    %3072 = vmatprep.subr.bf16.mxu0 %v2715
    %3073 = vmatpush1.bf16.msra.mxu0 %v2714
    %3074 = vmatprep.subr.bf16.mxu0 %v2731
    %3075 = vmatpush1.bf16.msra.mxu0 %v2730
    %3076 = vmatprep.subr.bf16.mxu0 %v2747
    %3077 = vmatpush1.bf16.msra.mxu0 %v2746
    %3078 = vmatprep.subr.bf16.mxu0 %v2763
    %3079 = vmatpush1.bf16.msra.mxu0 %v2762
    %3080 = vmatprep.subr.bf16.mxu0 %v2779
    %3081 = vmatpush1.bf16.msra.mxu0 %v2778
    %3082 = vmatprep.mubr.bf16.mxu0 %v1429
    %3083 = vmatmul.mubr.bf16.gmra.mrb[0].mxu0 %v1428
    %v3084 = vpop.f32.mrb[0].mxu0
    %v3085 = vadd.f32 %v1693, %v3084
    %v3086 = vpop.f32.mrb[0].mxu0
    %v3087 = vadd.f32 %v1697, %v3086
    %v3088 = vpop.f32.mrb[0].mxu0
    %v3089 = vadd.f32 %v1693, %v3088
    %v3090 = vpop.f32.mrb[0].mxu0
    %v3091 = vadd.f32 %v1697, %v3090
    %3092 = vdwg.mxu0
    %3093 = vmatprep.subr.bf16.mxu0 %v2541
    %3094 = vmatpush1.bf16.msra.mxu0 %v2540
    %3095 = vmatprep.subr.bf16.mxu0 %v2557
    %3096 = vmatpush1.bf16.msra.mxu0 %v2556
    %3097 = vmatprep.subr.bf16.mxu0 %v2573
    %3098 = vmatpush1.bf16.msra.mxu0 %v2572
    %3099 = vmatprep.subr.bf16.mxu0 %v2589
    %3100 = vmatpush1.bf16.msra.mxu0 %v2588
    %3101 = vmatprep.subr.bf16.mxu0 %v2605
    %3102 = vmatpush1.bf16.msra.mxu0 %v2604
    %3103 = vmatprep.subr.bf16.mxu0 %v2621
    %3104 = vmatpush1.bf16.msra.mxu0 %v2620
    %3105 = vmatprep.subr.bf16.mxu0 %v2637
    %3106 = vmatpush1.bf16.msra.mxu0 %v2636
    %3107 = vmatprep.subr.bf16.mxu0 %v2653
    %3108 = vmatpush1.bf16.msra.mxu0 %v2652
    %3109 = vmatprep.subr.bf16.mxu0 %v2669
    %3110 = vmatpush1.bf16.msra.mxu0 %v2668
    %3111 = vmatprep.subr.bf16.mxu0 %v2685
    %3112 = vmatpush1.bf16.msra.mxu0 %v2684
    %3113 = vmatprep.subr.bf16.mxu0 %v2701
    %3114 = vmatpush1.bf16.msra.mxu0 %v2700
    %3115 = vmatprep.subr.bf16.mxu0 %v2717
    %3116 = vmatpush1.bf16.msra.mxu0 %v2716
    %3117 = vmatprep.subr.bf16.mxu0 %v2733
    %3118 = vmatpush1.bf16.msra.mxu0 %v2732
    %3119 = vmatprep.subr.bf16.mxu0 %v2749
    %3120 = vmatpush1.bf16.msra.mxu0 %v2748
    %3121 = vmatprep.subr.bf16.mxu0 %v2765
    %3122 = vmatpush1.bf16.msra.mxu0 %v2764
    %3123 = vmatprep.subr.bf16.mxu0 %v2781
    %3124 = vmatpush1.bf16.msra.mxu0 %v2780
    %3125 = vmatprep.mubr.bf16.mxu0 %v1429
    %3126 = vmatmul.mubr.bf16.gmra.mrb[0].mxu0 %v1428
    %v3127 = vpop.f32.mrb[0].mxu0
    %v3128 = vadd.f32 %v1701, %v3127
    %v3129 = vpop.f32.mrb[0].mxu0
    %v3130 = vadd.f32 %v1705, %v3129
    %v3131 = vpop.f32.mrb[0].mxu0
    %v3132 = vadd.f32 %v1701, %v3131
    %v3133 = vpop.f32.mrb[0].mxu0
    %v3134 = vadd.f32 %v1705, %v3133
    %3135 = vdwg.mxu0
    %3136 = vmatprep.subr.bf16.mxu0 %v2543
    %3137 = vmatpush1.bf16.msra.mxu0 %v2542
    %3138 = vmatprep.subr.bf16.mxu0 %v2559
    %3139 = vmatpush1.bf16.msra.mxu0 %v2558
    %3140 = vmatprep.subr.bf16.mxu0 %v2575
    %3141 = vmatpush1.bf16.msra.mxu0 %v2574
    %3142 = vmatprep.subr.bf16.mxu0 %v2591
    %3143 = vmatpush1.bf16.msra.mxu0 %v2590
    %3144 = vmatprep.subr.bf16.mxu0 %v2607
    %3145 = vmatpush1.bf16.msra.mxu0 %v2606
    %3146 = vmatprep.subr.bf16.mxu0 %v2623
    %3147 = vmatpush1.bf16.msra.mxu0 %v2622
    %3148 = vmatprep.subr.bf16.mxu0 %v2639
    %3149 = vmatpush1.bf16.msra.mxu0 %v2638
    %3150 = vmatprep.subr.bf16.mxu0 %v2655
    %3151 = vmatpush1.bf16.msra.mxu0 %v2654
    %3152 = vmatprep.subr.bf16.mxu0 %v2671
    %3153 = vmatpush1.bf16.msra.mxu0 %v2670
    %3154 = vmatprep.subr.bf16.mxu0 %v2687
    %3155 = vmatpush1.bf16.msra.mxu0 %v2686
    %3156 = vmatprep.subr.bf16.mxu0 %v2703
    %3157 = vmatpush1.bf16.msra.mxu0 %v2702
    %3158 = vmatprep.subr.bf16.mxu0 %v2719
    %3159 = vmatpush1.bf16.msra.mxu0 %v2718
    %3160 = vmatprep.subr.bf16.mxu0 %v2735
    %3161 = vmatpush1.bf16.msra.mxu0 %v2734
    %3162 = vmatprep.subr.bf16.mxu0 %v2751
    %3163 = vmatpush1.bf16.msra.mxu0 %v2750
    %3164 = vmatprep.subr.bf16.mxu0 %v2767
    %3165 = vmatpush1.bf16.msra.mxu0 %v2766
    %3166 = vmatprep.subr.bf16.mxu0 %v2783
    %3167 = vmatpush1.bf16.msra.mxu0 %v2782
    %3168 = vmatprep.mubr.bf16.mxu0 %v1429
    %3169 = vmatmul.mubr.bf16.gmra.mrb[0].mxu0 %v1428
    %v3170 = vpop.f32.mrb[0].mxu0
    %v3171 = vadd.f32 %v1709, %v3170
    %v3172 = vpop.f32.mrb[0].mxu0
    %v3173 = vadd.f32 %v1713, %v3172
    %v3174 = vpop.f32.mrb[0].mxu0
    %v3175 = vadd.f32 %v1709, %v3174
    %v3176 = vpop.f32.mrb[0].mxu0
    %v3177 = vadd.f32 %v1713, %v3176
    %3178 = vdwg.mxu0
    %3179 = vmatprep.subr.bf16.mxu0 %v2545
    %3180 = vmatpush1.bf16.msra.mxu0 %v2544
    %3181 = vmatprep.subr.bf16.mxu0 %v2561
    %3182 = vmatpush1.bf16.msra.mxu0 %v2560
    %3183 = vmatprep.subr.bf16.mxu0 %v2577
    %3184 = vmatpush1.bf16.msra.mxu0 %v2576
    %3185 = vmatprep.subr.bf16.mxu0 %v2593
    %3186 = vmatpush1.bf16.msra.mxu0 %v2592
    %3187 = vmatprep.subr.bf16.mxu0 %v2609
    %3188 = vmatpush1.bf16.msra.mxu0 %v2608
    %3189 = vmatprep.subr.bf16.mxu0 %v2625
    %3190 = vmatpush1.bf16.msra.mxu0 %v2624
    %3191 = vmatprep.subr.bf16.mxu0 %v2641
    %3192 = vmatpush1.bf16.msra.mxu0 %v2640
    %3193 = vmatprep.subr.bf16.mxu0 %v2657
    %3194 = vmatpush1.bf16.msra.mxu0 %v2656
    %3195 = vmatprep.subr.bf16.mxu0 %v2673
    %3196 = vmatpush1.bf16.msra.mxu0 %v2672
    %3197 = vmatprep.subr.bf16.mxu0 %v2689
    %3198 = vmatpush1.bf16.msra.mxu0 %v2688
    %3199 = vmatprep.subr.bf16.mxu0 %v2705
    %3200 = vmatpush1.bf16.msra.mxu0 %v2704
    %3201 = vmatprep.subr.bf16.mxu0 %v2721
    %3202 = vmatpush1.bf16.msra.mxu0 %v2720
    %3203 = vmatprep.subr.bf16.mxu0 %v2737
    %3204 = vmatpush1.bf16.msra.mxu0 %v2736
    %3205 = vmatprep.subr.bf16.mxu0 %v2753
    %3206 = vmatpush1.bf16.msra.mxu0 %v2752
    %3207 = vmatprep.subr.bf16.mxu0 %v2769
    %3208 = vmatpush1.bf16.msra.mxu0 %v2768
    %3209 = vmatprep.subr.bf16.mxu0 %v2785
    %3210 = vmatpush1.bf16.msra.mxu0 %v2784
    %3211 = vmatprep.mubr.bf16.mxu0 %v1429
    %3212 = vmatmul.mubr.bf16.gmra.mrb[0].mxu0 %v1428
    %v3213 = vpop.f32.mrb[0].mxu0
    %v3214 = vadd.f32 %v1717, %v3213
    %v3215 = vpop.f32.mrb[0].mxu0
    %v3216 = vadd.f32 %v1721, %v3215
    %v3217 = vpop.f32.mrb[0].mxu0
    %v3218 = vadd.f32 %v1717, %v3217
    %v3219 = vpop.f32.mrb[0].mxu0
    %v3220 = vadd.f32 %v1721, %v3219
    %3221 = vdwg.mxu0
    %3222 = vmatprep.subr.bf16.mxu0 %v2547
    %3223 = vmatpush1.bf16.msra.mxu0 %v2546
    %3224 = vmatprep.subr.bf16.mxu0 %v2563
    %3225 = vmatpush1.bf16.msra.mxu0 %v2562
    %3226 = vmatprep.subr.bf16.mxu0 %v2579
    %3227 = vmatpush1.bf16.msra.mxu0 %v2578
    %3228 = vmatprep.subr.bf16.mxu0 %v2595
    %3229 = vmatpush1.bf16.msra.mxu0 %v2594
    %3230 = vmatprep.subr.bf16.mxu0 %v2611
    %3231 = vmatpush1.bf16.msra.mxu0 %v2610
    %3232 = vmatprep.subr.bf16.mxu0 %v2627
    %3233 = vmatpush1.bf16.msra.mxu0 %v2626
    %3234 = vmatprep.subr.bf16.mxu0 %v2643
    %3235 = vmatpush1.bf16.msra.mxu0 %v2642
    %3236 = vmatprep.subr.bf16.mxu0 %v2659
    %3237 = vmatpush1.bf16.msra.mxu0 %v2658
    %3238 = vmatprep.subr.bf16.mxu0 %v2675
    %3239 = vmatpush1.bf16.msra.mxu0 %v2674
    %3240 = vmatprep.subr.bf16.mxu0 %v2691
    %3241 = vmatpush1.bf16.msra.mxu0 %v2690
    %3242 = vmatprep.subr.bf16.mxu0 %v2707
    %3243 = vmatpush1.bf16.msra.mxu0 %v2706
    %3244 = vmatprep.subr.bf16.mxu0 %v2723
    %3245 = vmatpush1.bf16.msra.mxu0 %v2722
    %3246 = vmatprep.subr.bf16.mxu0 %v2739
    %3247 = vmatpush1.bf16.msra.mxu0 %v2738
    %3248 = vmatprep.subr.bf16.mxu0 %v2755
    %3249 = vmatpush1.bf16.msra.mxu0 %v2754
    %3250 = vmatprep.subr.bf16.mxu0 %v2771
    %3251 = vmatpush1.bf16.msra.mxu0 %v2770
    %3252 = vmatprep.subr.bf16.mxu0 %v2787
    %3253 = vmatpush1.bf16.msra.mxu0 %v2786
    %3254 = vmatprep.mubr.bf16.mxu0 %v1429
    %3255 = vmatmul.mubr.bf16.gmra.mrb[0].mxu0 %v1428
    %v3256 = vpop.f32.mrb[0].mxu0
    %v3257 = vadd.f32 %v1725, %v3256
    %v3258 = vpop.f32.mrb[0].mxu0
    %v3259 = vadd.f32 %v1729, %v3258
    %v3260 = vpop.f32.mrb[0].mxu0
    %v3261 = vadd.f32 %v1725, %v3260
    %v3262 = vpop.f32.mrb[0].mxu0
    %v3263 = vadd.f32 %v1729, %v3262
    %3264 = vdwg.mxu0
    %3265 = vmatprep.subr.bf16.mxu0 %v2549
    %3266 = vmatpush1.bf16.msra.mxu0 %v2548
    %3267 = vmatprep.subr.bf16.mxu0 %v2565
    %3268 = vmatpush1.bf16.msra.mxu0 %v2564
    %3269 = vmatprep.subr.bf16.mxu0 %v2581
    %3270 = vmatpush1.bf16.msra.mxu0 %v2580
    %3271 = vmatprep.subr.bf16.mxu0 %v2597
    %3272 = vmatpush1.bf16.msra.mxu0 %v2596
    %3273 = vmatprep.subr.bf16.mxu0 %v2613
    %3274 = vmatpush1.bf16.msra.mxu0 %v2612
    %3275 = vmatprep.subr.bf16.mxu0 %v2629
    %3276 = vmatpush1.bf16.msra.mxu0 %v2628
    %3277 = vmatprep.subr.bf16.mxu0 %v2645
    %3278 = vmatpush1.bf16.msra.mxu0 %v2644
    %3279 = vmatprep.subr.bf16.mxu0 %v2661
    %3280 = vmatpush1.bf16.msra.mxu0 %v2660
    %3281 = vmatprep.subr.bf16.mxu0 %v2677
    %3282 = vmatpush1.bf16.msra.mxu0 %v2676
    %3283 = vmatprep.subr.bf16.mxu0 %v2693
    %3284 = vmatpush1.bf16.msra.mxu0 %v2692
    %3285 = vmatprep.subr.bf16.mxu0 %v2709
    %3286 = vmatpush1.bf16.msra.mxu0 %v2708
    %3287 = vmatprep.subr.bf16.mxu0 %v2725
    %3288 = vmatpush1.bf16.msra.mxu0 %v2724
    %3289 = vmatprep.subr.bf16.mxu0 %v2741
    %3290 = vmatpush1.bf16.msra.mxu0 %v2740
    %3291 = vmatprep.subr.bf16.mxu0 %v2757
    %3292 = vmatpush1.bf16.msra.mxu0 %v2756
    %3293 = vmatprep.subr.bf16.mxu0 %v2773
    %3294 = vmatpush1.bf16.msra.mxu0 %v2772
    %3295 = vmatprep.subr.bf16.mxu0 %v2789
    %3296 = vmatpush1.bf16.msra.mxu0 %v2788
    %3297 = vmatprep.mubr.bf16.mxu0 %v1429
    %3298 = vmatmul.mubr.bf16.gmra.mrb[0].mxu0 %v1428
    %v3299 = vpop.f32.mrb[0].mxu0
    %v3300 = vadd.f32 %v1733, %v3299
    %v3301 = vpop.f32.mrb[0].mxu0
    %v3302 = vadd.f32 %v1737, %v3301
    %v3303 = vpop.f32.mrb[0].mxu0
    %v3304 = vadd.f32 %v1733, %v3303
    %v3305 = vpop.f32.mrb[0].mxu0
    %v3306 = vadd.f32 %v1737, %v3305
    %3307 = vdwg.mxu0
    %3308 = vmatprep.subr.bf16.mxu0 %v2551
    %3309 = vmatpush1.bf16.msra.mxu0 %v2550
    %3310 = vmatprep.subr.bf16.mxu0 %v2567
    %3311 = vmatpush1.bf16.msra.mxu0 %v2566
    %3312 = vmatprep.subr.bf16.mxu0 %v2583
    %3313 = vmatpush1.bf16.msra.mxu0 %v2582
    %3314 = vmatprep.subr.bf16.mxu0 %v2599
    %3315 = vmatpush1.bf16.msra.mxu0 %v2598
    %3316 = vmatprep.subr.bf16.mxu0 %v2615
    %3317 = vmatpush1.bf16.msra.mxu0 %v2614
    %3318 = vmatprep.subr.bf16.mxu0 %v2631
    %3319 = vmatpush1.bf16.msra.mxu0 %v2630
    %3320 = vmatprep.subr.bf16.mxu0 %v2647
    %3321 = vmatpush1.bf16.msra.mxu0 %v2646
    %3322 = vmatprep.subr.bf16.mxu0 %v2663
    %3323 = vmatpush1.bf16.msra.mxu0 %v2662
    %3324 = vmatprep.subr.bf16.mxu0 %v2679
    %3325 = vmatpush1.bf16.msra.mxu0 %v2678
    %3326 = vmatprep.subr.bf16.mxu0 %v2695
    %3327 = vmatpush1.bf16.msra.mxu0 %v2694
    %3328 = vmatprep.subr.bf16.mxu0 %v2711
    %3329 = vmatpush1.bf16.msra.mxu0 %v2710
    %3330 = vmatprep.subr.bf16.mxu0 %v2727
    %3331 = vmatpush1.bf16.msra.mxu0 %v2726
    %3332 = vmatprep.subr.bf16.mxu0 %v2743
    %3333 = vmatpush1.bf16.msra.mxu0 %v2742
    %3334 = vmatprep.subr.bf16.mxu0 %v2759
    %3335 = vmatpush1.bf16.msra.mxu0 %v2758
    %3336 = vmatprep.subr.bf16.mxu0 %v2775
    %3337 = vmatpush1.bf16.msra.mxu0 %v2774
    %3338 = vmatprep.subr.bf16.mxu0 %v2791
    %3339 = vmatpush1.bf16.msra.mxu0 %v2790
    %3340 = vmatprep.mubr.bf16.mxu0 %v1429
    %3341 = vmatmul.mubr.bf16.gmra.mrb[0].mxu0 %v1428
    %v3342 = vpop.f32.mrb[0].mxu0
    %v3343 = vadd.f32 %v1741, %v3342
    %v3344 = vpop.f32.mrb[0].mxu0
    %v3345 = vadd.f32 %v1745, %v3344
    %v3346 = vpop.f32.mrb[0].mxu0
    %v3347 = vadd.f32 %v1741, %v3346
    %v3348 = vpop.f32.mrb[0].mxu0
    %v3349 = vadd.f32 %v1745, %v3348
    %3350 = vdwg.mxu0
    %3351 = vmatprep.subr.bf16.mxu0 %v2553
    %3352 = vmatpush1.bf16.msra.mxu0 %v2552
    %3353 = vmatprep.subr.bf16.mxu0 %v2569
    %3354 = vmatpush1.bf16.msra.mxu0 %v2568
    %3355 = vmatprep.subr.bf16.mxu0 %v2585
    %3356 = vmatpush1.bf16.msra.mxu0 %v2584
    %3357 = vmatprep.subr.bf16.mxu0 %v2601
    %3358 = vmatpush1.bf16.msra.mxu0 %v2600
    %3359 = vmatprep.subr.bf16.mxu0 %v2617
    %3360 = vmatpush1.bf16.msra.mxu0 %v2616
    %3361 = vmatprep.subr.bf16.mxu0 %v2633
    %3362 = vmatpush1.bf16.msra.mxu0 %v2632
    %3363 = vmatprep.subr.bf16.mxu0 %v2649
    %3364 = vmatpush1.bf16.msra.mxu0 %v2648
    %3365 = vmatprep.subr.bf16.mxu0 %v2665
    %3366 = vmatpush1.bf16.msra.mxu0 %v2664
    %3367 = vmatprep.subr.bf16.mxu0 %v2681
    %3368 = vmatpush1.bf16.msra.mxu0 %v2680
    %3369 = vmatprep.subr.bf16.mxu0 %v2697
    %3370 = vmatpush1.bf16.msra.mxu0 %v2696
    %3371 = vmatprep.subr.bf16.mxu0 %v2713
    %3372 = vmatpush1.bf16.msra.mxu0 %v2712
    %3373 = vmatprep.subr.bf16.mxu0 %v2729
    %3374 = vmatpush1.bf16.msra.mxu0 %v2728
    %3375 = vmatprep.subr.bf16.mxu0 %v2745
    %3376 = vmatpush1.bf16.msra.mxu0 %v2744
    %3377 = vmatprep.subr.bf16.mxu0 %v2761
    %3378 = vmatpush1.bf16.msra.mxu0 %v2760
    %3379 = vmatprep.subr.bf16.mxu0 %v2777
    %3380 = vmatpush1.bf16.msra.mxu0 %v2776
    %3381 = vmatprep.subr.bf16.mxu0 %v2793
    %3382 = vmatpush1.bf16.msra.mxu0 %v2792
    %3383 = vmatprep.mubr.bf16.mxu0 %v1429
    %3384 = vmatmul.mubr.bf16.gmra.mrb[0].mxu0 %v1428
    %v3385 = vpop.f32.mrb[0].mxu0
    %v3386 = vadd.f32 %v1749, %v3385
    %v3387 = vpop.f32.mrb[0].mxu0
    %v3388 = vadd.f32 %v1753, %v3387
    %v3389 = vpop.f32.mrb[0].mxu0
    %v3390 = vadd.f32 %v1749, %v3389
    %v3391 = vpop.f32.mrb[0].mxu0
    %v3392 = vadd.f32 %v1753, %v3391
    %3393 = vdwg.mxu0
    %v3396 = vcombine.high %v1135, %v1135
    %v3398 = vunpack.c.l.s4 1966171168
    %v3399 = vunpack.c.0.s8 %v3398
    %v3400 = vlaneseq
    %v3401 = vshrl.u32 %v3400, 7
    %v3402 = vsub.s32 %v3399, %v3401
    %v3403 = vrot.slane %v1135, %v3402
    %v3405 = vunpack.c.l.s4 1966171168
    %v3406 = vunpack.c.0.s8 %v3405
    %v3407 = vlaneseq
    %v3408 = vshrl.u32 %v3407, 7
    %v3409 = vsub.s32 %v3406, %v3408
    %v3410 = vrot.slane %v3396, %v3409
    %v3411 = vcombine.high %v3403, %v3403
    %v3412 = vcombine.high %v3410, %v3410
    %v3414 = vunpack.c.l.s4 1966171168
    %v3415 = vunpack.c.0.s8 %v3414
    %v3416 = vlaneseq
    %v3417 = vshrl.u32 %v3416, 7
    %v3418 = vsub.s32 %v3415, %v3417
    %v3419 = vrot.slane %v3403, %v3418
    %v3421 = vunpack.c.l.s4 1966171168
    %v3422 = vunpack.c.0.s8 %v3421
    %v3423 = vlaneseq
    %v3424 = vshrl.u32 %v3423, 7
    %v3425 = vsub.s32 %v3422, %v3424
    %v3426 = vrot.slane %v3410, %v3425
    %v3428 = vunpack.c.l.s4 1966171168
    %v3429 = vunpack.c.0.s8 %v3428
    %v3430 = vlaneseq
    %v3431 = vshrl.u32 %v3430, 7
    %v3432 = vsub.s32 %v3429, %v3431
    %v3433 = vrot.slane %v3411, %v3432
    %v3435 = vunpack.c.l.s4 1966171168
    %v3436 = vunpack.c.0.s8 %v3435
    %v3437 = vlaneseq
    %v3438 = vshrl.u32 %v3437, 7
    %v3439 = vsub.s32 %v3436, %v3438
    %v3440 = vrot.slane %v3412, %v3439
    %v3441 = vcombine.high %v3419, %v3419
    %v3442 = vcombine.high %v3426, %v3426
    %v3443 = vcombine.high %v3433, %v3433
    %v3444 = vcombine.high %v3440, %v3440
    %v3445 = vcombine.high %v1139, %v1139
    %v3447 = vunpack.c.l.s4 1966171168
    %v3448 = vunpack.c.0.s8 %v3447
    %v3449 = vlaneseq
    %v3450 = vshrl.u32 %v3449, 7
    %v3451 = vsub.s32 %v3448, %v3450
    %v3452 = vrot.slane %v1139, %v3451
    %v3454 = vunpack.c.l.s4 1966171168
    %v3455 = vunpack.c.0.s8 %v3454
    %v3456 = vlaneseq
    %v3457 = vshrl.u32 %v3456, 7
    %v3458 = vsub.s32 %v3455, %v3457
    %v3459 = vrot.slane %v3445, %v3458
    %v3460 = vcombine.high %v3452, %v3452
    %v3461 = vcombine.high %v3459, %v3459
    %v3463 = vunpack.c.l.s4 1966171168
    %v3464 = vunpack.c.0.s8 %v3463
    %v3465 = vlaneseq
    %v3466 = vshrl.u32 %v3465, 7
    %v3467 = vsub.s32 %v3464, %v3466
    %v3468 = vrot.slane %v3452, %v3467
    %v3470 = vunpack.c.l.s4 1966171168
    %v3471 = vunpack.c.0.s8 %v3470
    %v3472 = vlaneseq
    %v3473 = vshrl.u32 %v3472, 7
    %v3474 = vsub.s32 %v3471, %v3473
    %v3475 = vrot.slane %v3459, %v3474
    %v3477 = vunpack.c.l.s4 1966171168
    %v3478 = vunpack.c.0.s8 %v3477
    %v3479 = vlaneseq
    %v3480 = vshrl.u32 %v3479, 7
    %v3481 = vsub.s32 %v3478, %v3480
    %v3482 = vrot.slane %v3460, %v3481
    %v3484 = vunpack.c.l.s4 1966171168
    %v3485 = vunpack.c.0.s8 %v3484
    %v3486 = vlaneseq
    %v3487 = vshrl.u32 %v3486, 7
    %v3488 = vsub.s32 %v3485, %v3487
    %v3489 = vrot.slane %v3461, %v3488
    %v3490 = vcombine.high %v3468, %v3468
    %v3491 = vcombine.high %v3475, %v3475
    %v3492 = vcombine.high %v3482, %v3482
    %v3493 = vcombine.high %v3489, %v3489
    %3510 = vst [vmem:[#allocation2] sm:$0x1] %v3419
    %3511 = vst [vmem:[#allocation2 + $0x8] sm:$0x1] %v3433
    %3512 = vst [vmem:[#allocation2 + $0x10] sm:$0x1] %v3441
    %3513 = vst [vmem:[#allocation2 + $0x18] sm:$0x1] %v3443
    %3514 = vst [vmem:[#allocation2 + $0x20] sm:$0x1] %v3426
    %3515 = vst [vmem:[#allocation2 + $0x28] sm:$0x1] %v3440
    %3516 = vst [vmem:[#allocation2 + $0x30] sm:$0x1] %v3442
    %3517 = vst [vmem:[#allocation2 + $0x38] sm:$0x1] %v3444
    %3518 = vst [vmem:[#allocation2 + $0x40] sm:$0x1] %v3468
    %3519 = vst [vmem:[#allocation2 + $0x48] sm:$0x1] %v3482
    %3520 = vst [vmem:[#allocation2 + $0x50] sm:$0x1] %v3490
    %3521 = vst [vmem:[#allocation2 + $0x58] sm:$0x1] %v3492
    %3522 = vst [vmem:[#allocation2 + $0x60] sm:$0x1] %v3475
    %3523 = vst [vmem:[#allocation2 + $0x68] sm:$0x1] %v3489
    %3524 = vst [vmem:[#allocation2 + $0x70] sm:$0x1] %v3491
    %3525 = vst [vmem:[#allocation2 + $0x78] sm:$0x1] %v3493
    %v3528 = vcombine.high %v1137, %v1137
    %v3530 = vunpack.c.l.s4 1966171168
    %v3531 = vunpack.c.0.s8 %v3530
    %v3532 = vlaneseq
    %v3533 = vshrl.u32 %v3532, 7
    %v3534 = vsub.s32 %v3531, %v3533
    %v3535 = vrot.slane %v1137, %v3534
    %v3537 = vunpack.c.l.s4 1966171168
    %v3538 = vunpack.c.0.s8 %v3537
    %v3539 = vlaneseq
    %v3540 = vshrl.u32 %v3539, 7
    %v3541 = vsub.s32 %v3538, %v3540
    %v3542 = vrot.slane %v3528, %v3541
    %v3543 = vcombine.high %v3535, %v3535
    %v3544 = vcombine.high %v3542, %v3542
    %v3546 = vunpack.c.l.s4 1966171168
    %v3547 = vunpack.c.0.s8 %v3546
    %v3548 = vlaneseq
    %v3549 = vshrl.u32 %v3548, 7
    %v3550 = vsub.s32 %v3547, %v3549
    %v3551 = vrot.slane %v3535, %v3550
    %v3553 = vunpack.c.l.s4 1966171168
    %v3554 = vunpack.c.0.s8 %v3553
    %v3555 = vlaneseq
    %v3556 = vshrl.u32 %v3555, 7
    %v3557 = vsub.s32 %v3554, %v3556
    %v3558 = vrot.slane %v3542, %v3557
    %v3560 = vunpack.c.l.s4 1966171168
    %v3561 = vunpack.c.0.s8 %v3560
    %v3562 = vlaneseq
    %v3563 = vshrl.u32 %v3562, 7
    %v3564 = vsub.s32 %v3561, %v3563
    %v3565 = vrot.slane %v3543, %v3564
    %v3567 = vunpack.c.l.s4 1966171168
    %v3568 = vunpack.c.0.s8 %v3567
    %v3569 = vlaneseq
    %v3570 = vshrl.u32 %v3569, 7
    %v3571 = vsub.s32 %v3568, %v3570
    %v3572 = vrot.slane %v3544, %v3571
    %v3573 = vcombine.high %v3551, %v3551
    %v3574 = vcombine.high %v3558, %v3558
    %v3575 = vcombine.high %v3565, %v3565
    %v3576 = vcombine.high %v3572, %v3572
    %v3577 = vcombine.high %v1141, %v1141
    %v3579 = vunpack.c.l.s4 1966171168
    %v3580 = vunpack.c.0.s8 %v3579
    %v3581 = vlaneseq
    %v3582 = vshrl.u32 %v3581, 7
    %v3583 = vsub.s32 %v3580, %v3582
    %v3584 = vrot.slane %v1141, %v3583
    %v3586 = vunpack.c.l.s4 1966171168
    %v3587 = vunpack.c.0.s8 %v3586
    %v3588 = vlaneseq
    %v3589 = vshrl.u32 %v3588, 7
    %v3590 = vsub.s32 %v3587, %v3589
    %v3591 = vrot.slane %v3577, %v3590
    %v3592 = vcombine.high %v3584, %v3584
    %v3593 = vcombine.high %v3591, %v3591
    %v3595 = vunpack.c.l.s4 1966171168
    %v3596 = vunpack.c.0.s8 %v3595
    %v3597 = vlaneseq
    %v3598 = vshrl.u32 %v3597, 7
    %v3599 = vsub.s32 %v3596, %v3598
    %v3600 = vrot.slane %v3584, %v3599
    %v3602 = vunpack.c.l.s4 1966171168
    %v3603 = vunpack.c.0.s8 %v3602
    %v3604 = vlaneseq
    %v3605 = vshrl.u32 %v3604, 7
    %v3606 = vsub.s32 %v3603, %v3605
    %v3607 = vrot.slane %v3591, %v3606
    %v3609 = vunpack.c.l.s4 1966171168
    %v3610 = vunpack.c.0.s8 %v3609
    %v3611 = vlaneseq
    %v3612 = vshrl.u32 %v3611, 7
    %v3613 = vsub.s32 %v3610, %v3612
    %v3614 = vrot.slane %v3592, %v3613
    %v3616 = vunpack.c.l.s4 1966171168
    %v3617 = vunpack.c.0.s8 %v3616
    %v3618 = vlaneseq
    %v3619 = vshrl.u32 %v3618, 7
    %v3620 = vsub.s32 %v3617, %v3619
    %v3621 = vrot.slane %v3593, %v3620
    %v3622 = vcombine.high %v3600, %v3600
    %v3623 = vcombine.high %v3607, %v3607
    %v3624 = vcombine.high %v3614, %v3614
    %v3625 = vcombine.high %v3621, %v3621
    %3642 = vst [vmem:[#allocation2 + $0x1] sm:$0x1] %v3551
    %3643 = vst [vmem:[#allocation2 + $0x9] sm:$0x1] %v3565
    %3644 = vst [vmem:[#allocation2 + $0x11] sm:$0x1] %v3573
    %3645 = vst [vmem:[#allocation2 + $0x19] sm:$0x1] %v3575
    %3646 = vst [vmem:[#allocation2 + $0x21] sm:$0x1] %v3558
    %3647 = vst [vmem:[#allocation2 + $0x29] sm:$0x1] %v3572
    %3648 = vst [vmem:[#allocation2 + $0x31] sm:$0x1] %v3574
    %3649 = vst [vmem:[#allocation2 + $0x39] sm:$0x1] %v3576
    %3650 = vst [vmem:[#allocation2 + $0x41] sm:$0x1] %v3600
    %3651 = vst [vmem:[#allocation2 + $0x49] sm:$0x1] %v3614
    %3652 = vst [vmem:[#allocation2 + $0x51] sm:$0x1] %v3622
    %3653 = vst [vmem:[#allocation2 + $0x59] sm:$0x1] %v3624
    %3654 = vst [vmem:[#allocation2 + $0x61] sm:$0x1] %v3607
    %3655 = vst [vmem:[#allocation2 + $0x69] sm:$0x1] %v3621
    %3656 = vst [vmem:[#allocation2 + $0x71] sm:$0x1] %v3623
    %3657 = vst [vmem:[#allocation2 + $0x79] sm:$0x1] %v3625
    %v3660 = vcombine.high %v1178, %v1178
    %v3662 = vunpack.c.l.s4 1966171168
    %v3663 = vunpack.c.0.s8 %v3662
    %v3664 = vlaneseq
    %v3665 = vshrl.u32 %v3664, 7
    %v3666 = vsub.s32 %v3663, %v3665
    %v3667 = vrot.slane %v1178, %v3666
    %v3669 = vunpack.c.l.s4 1966171168
    %v3670 = vunpack.c.0.s8 %v3669
    %v3671 = vlaneseq
    %v3672 = vshrl.u32 %v3671, 7
    %v3673 = vsub.s32 %v3670, %v3672
    %v3674 = vrot.slane %v3660, %v3673
    %v3675 = vcombine.high %v3667, %v3667
    %v3676 = vcombine.high %v3674, %v3674
    %v3678 = vunpack.c.l.s4 1966171168
    %v3679 = vunpack.c.0.s8 %v3678
    %v3680 = vlaneseq
    %v3681 = vshrl.u32 %v3680, 7
    %v3682 = vsub.s32 %v3679, %v3681
    %v3683 = vrot.slane %v3667, %v3682
    %v3685 = vunpack.c.l.s4 1966171168
    %v3686 = vunpack.c.0.s8 %v3685
    %v3687 = vlaneseq
    %v3688 = vshrl.u32 %v3687, 7
    %v3689 = vsub.s32 %v3686, %v3688
    %v3690 = vrot.slane %v3674, %v3689
    %v3692 = vunpack.c.l.s4 1966171168
    %v3693 = vunpack.c.0.s8 %v3692
    %v3694 = vlaneseq
    %v3695 = vshrl.u32 %v3694, 7
    %v3696 = vsub.s32 %v3693, %v3695
    %v3697 = vrot.slane %v3675, %v3696
    %v3699 = vunpack.c.l.s4 1966171168
    %v3700 = vunpack.c.0.s8 %v3699
    %v3701 = vlaneseq
    %v3702 = vshrl.u32 %v3701, 7
    %v3703 = vsub.s32 %v3700, %v3702
    %v3704 = vrot.slane %v3676, %v3703
    %v3705 = vcombine.high %v3683, %v3683
    %v3706 = vcombine.high %v3690, %v3690
    %v3707 = vcombine.high %v3697, %v3697
    %v3708 = vcombine.high %v3704, %v3704
    %v3709 = vcombine.high %v1182, %v1182
    %v3711 = vunpack.c.l.s4 1966171168
    %v3712 = vunpack.c.0.s8 %v3711
    %v3713 = vlaneseq
    %v3714 = vshrl.u32 %v3713, 7
    %v3715 = vsub.s32 %v3712, %v3714
    %v3716 = vrot.slane %v1182, %v3715
    %v3718 = vunpack.c.l.s4 1966171168
    %v3719 = vunpack.c.0.s8 %v3718
    %v3720 = vlaneseq
    %v3721 = vshrl.u32 %v3720, 7
    %v3722 = vsub.s32 %v3719, %v3721
    %v3723 = vrot.slane %v3709, %v3722
    %v3724 = vcombine.high %v3716, %v3716
    %v3725 = vcombine.high %v3723, %v3723
    %v3727 = vunpack.c.l.s4 1966171168
    %v3728 = vunpack.c.0.s8 %v3727
    %v3729 = vlaneseq
    %v3730 = vshrl.u32 %v3729, 7
    %v3731 = vsub.s32 %v3728, %v3730
    %v3732 = vrot.slane %v3716, %v3731
    %v3734 = vunpack.c.l.s4 1966171168
    %v3735 = vunpack.c.0.s8 %v3734
    %v3736 = vlaneseq
    %v3737 = vshrl.u32 %v3736, 7
    %v3738 = vsub.s32 %v3735, %v3737
    %v3739 = vrot.slane %v3723, %v3738
    %v3741 = vunpack.c.l.s4 1966171168
    %v3742 = vunpack.c.0.s8 %v3741
    %v3743 = vlaneseq
    %v3744 = vshrl.u32 %v3743, 7
    %v3745 = vsub.s32 %v3742, %v3744
    %v3746 = vrot.slane %v3724, %v3745
    %v3748 = vunpack.c.l.s4 1966171168
    %v3749 = vunpack.c.0.s8 %v3748
    %v3750 = vlaneseq
    %v3751 = vshrl.u32 %v3750, 7
    %v3752 = vsub.s32 %v3749, %v3751
    %v3753 = vrot.slane %v3725, %v3752
    %v3754 = vcombine.high %v3732, %v3732
    %v3755 = vcombine.high %v3739, %v3739
    %v3756 = vcombine.high %v3746, %v3746
    %v3757 = vcombine.high %v3753, %v3753
    %3774 = vst [vmem:[#allocation2 + $0x2] sm:$0x1] %v3683
    %3775 = vst [vmem:[#allocation2 + $0xa] sm:$0x1] %v3697
    %3776 = vst [vmem:[#allocation2 + $0x12] sm:$0x1] %v3705
    %3777 = vst [vmem:[#allocation2 + $0x1a] sm:$0x1] %v3707
    %3778 = vst [vmem:[#allocation2 + $0x22] sm:$0x1] %v3690
    %3779 = vst [vmem:[#allocation2 + $0x2a] sm:$0x1] %v3704
    %3780 = vst [vmem:[#allocation2 + $0x32] sm:$0x1] %v3706
    %3781 = vst [vmem:[#allocation2 + $0x3a] sm:$0x1] %v3708
    %3782 = vst [vmem:[#allocation2 + $0x42] sm:$0x1] %v3732
    %3783 = vst [vmem:[#allocation2 + $0x4a] sm:$0x1] %v3746
    %3784 = vst [vmem:[#allocation2 + $0x52] sm:$0x1] %v3754
    %3785 = vst [vmem:[#allocation2 + $0x5a] sm:$0x1] %v3756
    %3786 = vst [vmem:[#allocation2 + $0x62] sm:$0x1] %v3739
    %3787 = vst [vmem:[#allocation2 + $0x6a] sm:$0x1] %v3753
    %3788 = vst [vmem:[#allocation2 + $0x72] sm:$0x1] %v3755
    %3789 = vst [vmem:[#allocation2 + $0x7a] sm:$0x1] %v3757
    %v3792 = vcombine.high %v1180, %v1180
    %v3794 = vunpack.c.l.s4 1966171168
    %v3795 = vunpack.c.0.s8 %v3794
    %v3796 = vlaneseq
    %v3797 = vshrl.u32 %v3796, 7
    %v3798 = vsub.s32 %v3795, %v3797
    %v3799 = vrot.slane %v1180, %v3798
    %v3801 = vunpack.c.l.s4 1966171168
    %v3802 = vunpack.c.0.s8 %v3801
    %v3803 = vlaneseq
    %v3804 = vshrl.u32 %v3803, 7
    %v3805 = vsub.s32 %v3802, %v3804
    %v3806 = vrot.slane %v3792, %v3805
    %v3807 = vcombine.high %v3799, %v3799
    %v3808 = vcombine.high %v3806, %v3806
    %v3810 = vunpack.c.l.s4 1966171168
    %v3811 = vunpack.c.0.s8 %v3810
    %v3812 = vlaneseq
    %v3813 = vshrl.u32 %v3812, 7
    %v3814 = vsub.s32 %v3811, %v3813
    %v3815 = vrot.slane %v3799, %v3814
    %v3817 = vunpack.c.l.s4 1966171168
    %v3818 = vunpack.c.0.s8 %v3817
    %v3819 = vlaneseq
    %v3820 = vshrl.u32 %v3819, 7
    %v3821 = vsub.s32 %v3818, %v3820
    %v3822 = vrot.slane %v3806, %v3821
    %v3824 = vunpack.c.l.s4 1966171168
    %v3825 = vunpack.c.0.s8 %v3824
    %v3826 = vlaneseq
    %v3827 = vshrl.u32 %v3826, 7
    %v3828 = vsub.s32 %v3825, %v3827
    %v3829 = vrot.slane %v3807, %v3828
    %v3831 = vunpack.c.l.s4 1966171168
    %v3832 = vunpack.c.0.s8 %v3831
    %v3833 = vlaneseq
    %v3834 = vshrl.u32 %v3833, 7
    %v3835 = vsub.s32 %v3832, %v3834
    %v3836 = vrot.slane %v3808, %v3835
    %v3837 = vcombine.high %v3815, %v3815
    %v3838 = vcombine.high %v3822, %v3822
    %v3839 = vcombine.high %v3829, %v3829
    %v3840 = vcombine.high %v3836, %v3836
    %v3841 = vcombine.high %v1184, %v1184
    %v3843 = vunpack.c.l.s4 1966171168
    %v3844 = vunpack.c.0.s8 %v3843
    %v3845 = vlaneseq
    %v3846 = vshrl.u32 %v3845, 7
    %v3847 = vsub.s32 %v3844, %v3846
    %v3848 = vrot.slane %v1184, %v3847
    %v3850 = vunpack.c.l.s4 1966171168
    %v3851 = vunpack.c.0.s8 %v3850
    %v3852 = vlaneseq
    %v3853 = vshrl.u32 %v3852, 7
    %v3854 = vsub.s32 %v3851, %v3853
    %v3855 = vrot.slane %v3841, %v3854
    %v3856 = vcombine.high %v3848, %v3848
    %v3857 = vcombine.high %v3855, %v3855
    %v3859 = vunpack.c.l.s4 1966171168
    %v3860 = vunpack.c.0.s8 %v3859
    %v3861 = vlaneseq
    %v3862 = vshrl.u32 %v3861, 7
    %v3863 = vsub.s32 %v3860, %v3862
    %v3864 = vrot.slane %v3848, %v3863
    %v3866 = vunpack.c.l.s4 1966171168
    %v3867 = vunpack.c.0.s8 %v3866
    %v3868 = vlaneseq
    %v3869 = vshrl.u32 %v3868, 7
    %v3870 = vsub.s32 %v3867, %v3869
    %v3871 = vrot.slane %v3855, %v3870
    %v3873 = vunpack.c.l.s4 1966171168
    %v3874 = vunpack.c.0.s8 %v3873
    %v3875 = vlaneseq
    %v3876 = vshrl.u32 %v3875, 7
    %v3877 = vsub.s32 %v3874, %v3876
    %v3878 = vrot.slane %v3856, %v3877
    %v3880 = vunpack.c.l.s4 1966171168
    %v3881 = vunpack.c.0.s8 %v3880
    %v3882 = vlaneseq
    %v3883 = vshrl.u32 %v3882, 7
    %v3884 = vsub.s32 %v3881, %v3883
    %v3885 = vrot.slane %v3857, %v3884
    %v3886 = vcombine.high %v3864, %v3864
    %v3887 = vcombine.high %v3871, %v3871
    %v3888 = vcombine.high %v3878, %v3878
    %v3889 = vcombine.high %v3885, %v3885
    %3906 = vst [vmem:[#allocation2 + $0x3] sm:$0x1] %v3815
    %3907 = vst [vmem:[#allocation2 + $0xb] sm:$0x1] %v3829
    %3908 = vst [vmem:[#allocation2 + $0x13] sm:$0x1] %v3837
    %3909 = vst [vmem:[#allocation2 + $0x1b] sm:$0x1] %v3839
    %3910 = vst [vmem:[#allocation2 + $0x23] sm:$0x1] %v3822
    %3911 = vst [vmem:[#allocation2 + $0x2b] sm:$0x1] %v3836
    %3912 = vst [vmem:[#allocation2 + $0x33] sm:$0x1] %v3838
    %3913 = vst [vmem:[#allocation2 + $0x3b] sm:$0x1] %v3840
    %3914 = vst [vmem:[#allocation2 + $0x43] sm:$0x1] %v3864
    %3915 = vst [vmem:[#allocation2 + $0x4b] sm:$0x1] %v3878
    %3916 = vst [vmem:[#allocation2 + $0x53] sm:$0x1] %v3886
    %3917 = vst [vmem:[#allocation2 + $0x5b] sm:$0x1] %v3888
    %3918 = vst [vmem:[#allocation2 + $0x63] sm:$0x1] %v3871
    %3919 = vst [vmem:[#allocation2 + $0x6b] sm:$0x1] %v3885
    %3920 = vst [vmem:[#allocation2 + $0x73] sm:$0x1] %v3887
    %3921 = vst [vmem:[#allocation2 + $0x7b] sm:$0x1] %v3889
    %v3924 = vcombine.high %v1221, %v1221
    %v3926 = vunpack.c.l.s4 1966171168
    %v3927 = vunpack.c.0.s8 %v3926
    %v3928 = vlaneseq
    %v3929 = vshrl.u32 %v3928, 7
    %v3930 = vsub.s32 %v3927, %v3929
    %v3931 = vrot.slane %v1221, %v3930
    %v3933 = vunpack.c.l.s4 1966171168
    %v3934 = vunpack.c.0.s8 %v3933
    %v3935 = vlaneseq
    %v3936 = vshrl.u32 %v3935, 7
    %v3937 = vsub.s32 %v3934, %v3936
    %v3938 = vrot.slane %v3924, %v3937
    %v3939 = vcombine.high %v3931, %v3931
    %v3940 = vcombine.high %v3938, %v3938
    %v3942 = vunpack.c.l.s4 1966171168
    %v3943 = vunpack.c.0.s8 %v3942
    %v3944 = vlaneseq
    %v3945 = vshrl.u32 %v3944, 7
    %v3946 = vsub.s32 %v3943, %v3945
    %v3947 = vrot.slane %v3931, %v3946
    %v3949 = vunpack.c.l.s4 1966171168
    %v3950 = vunpack.c.0.s8 %v3949
    %v3951 = vlaneseq
    %v3952 = vshrl.u32 %v3951, 7
    %v3953 = vsub.s32 %v3950, %v3952
    %v3954 = vrot.slane %v3938, %v3953
    %v3956 = vunpack.c.l.s4 1966171168
    %v3957 = vunpack.c.0.s8 %v3956
    %v3958 = vlaneseq
    %v3959 = vshrl.u32 %v3958, 7
    %v3960 = vsub.s32 %v3957, %v3959
    %v3961 = vrot.slane %v3939, %v3960
    %v3963 = vunpack.c.l.s4 1966171168
    %v3964 = vunpack.c.0.s8 %v3963
    %v3965 = vlaneseq
    %v3966 = vshrl.u32 %v3965, 7
    %v3967 = vsub.s32 %v3964, %v3966
    %v3968 = vrot.slane %v3940, %v3967
    %v3969 = vcombine.high %v3947, %v3947
    %v3970 = vcombine.high %v3954, %v3954
    %v3971 = vcombine.high %v3961, %v3961
    %v3972 = vcombine.high %v3968, %v3968
    %v3973 = vcombine.high %v1225, %v1225
    %v3975 = vunpack.c.l.s4 1966171168
    %v3976 = vunpack.c.0.s8 %v3975
    %v3977 = vlaneseq
    %v3978 = vshrl.u32 %v3977, 7
    %v3979 = vsub.s32 %v3976, %v3978
    %v3980 = vrot.slane %v1225, %v3979
    %v3982 = vunpack.c.l.s4 1966171168
    %v3983 = vunpack.c.0.s8 %v3982
    %v3984 = vlaneseq
    %v3985 = vshrl.u32 %v3984, 7
    %v3986 = vsub.s32 %v3983, %v3985
    %v3987 = vrot.slane %v3973, %v3986
    %v3988 = vcombine.high %v3980, %v3980
    %v3989 = vcombine.high %v3987, %v3987
    %v3991 = vunpack.c.l.s4 1966171168
    %v3992 = vunpack.c.0.s8 %v3991
    %v3993 = vlaneseq
    %v3994 = vshrl.u32 %v3993, 7
    %v3995 = vsub.s32 %v3992, %v3994
    %v3996 = vrot.slane %v3980, %v3995
    %v3998 = vunpack.c.l.s4 1966171168
    %v3999 = vunpack.c.0.s8 %v3998
    %v4000 = vlaneseq
    %v4001 = vshrl.u32 %v4000, 7
    %v4002 = vsub.s32 %v3999, %v4001
    %v4003 = vrot.slane %v3987, %v4002
    %v4005 = vunpack.c.l.s4 1966171168
    %v4006 = vunpack.c.0.s8 %v4005
    %v4007 = vlaneseq
    %v4008 = vshrl.u32 %v4007, 7
    %v4009 = vsub.s32 %v4006, %v4008
    %v4010 = vrot.slane %v3988, %v4009
    %v4012 = vunpack.c.l.s4 1966171168
    %v4013 = vunpack.c.0.s8 %v4012
    %v4014 = vlaneseq
    %v4015 = vshrl.u32 %v4014, 7
    %v4016 = vsub.s32 %v4013, %v4015
    %v4017 = vrot.slane %v3989, %v4016
    %v4018 = vcombine.high %v3996, %v3996
    %v4019 = vcombine.high %v4003, %v4003
    %v4020 = vcombine.high %v4010, %v4010
    %v4021 = vcombine.high %v4017, %v4017
    %4038 = vst [vmem:[#allocation2 + $0x4] sm:$0x1] %v3947
    %4039 = vst [vmem:[#allocation2 + $0xc] sm:$0x1] %v3961
    %4040 = vst [vmem:[#allocation2 + $0x14] sm:$0x1] %v3969
    %4041 = vst [vmem:[#allocation2 + $0x1c] sm:$0x1] %v3971
    %4042 = vst [vmem:[#allocation2 + $0x24] sm:$0x1] %v3954
    %4043 = vst [vmem:[#allocation2 + $0x2c] sm:$0x1] %v3968
    %4044 = vst [vmem:[#allocation2 + $0x34] sm:$0x1] %v3970
    %4045 = vst [vmem:[#allocation2 + $0x3c] sm:$0x1] %v3972
    %4046 = vst [vmem:[#allocation2 + $0x44] sm:$0x1] %v3996
    %4047 = vst [vmem:[#allocation2 + $0x4c] sm:$0x1] %v4010
    %4048 = vst [vmem:[#allocation2 + $0x54] sm:$0x1] %v4018
    %4049 = vst [vmem:[#allocation2 + $0x5c] sm:$0x1] %v4020
    %4050 = vst [vmem:[#allocation2 + $0x64] sm:$0x1] %v4003
    %4051 = vst [vmem:[#allocation2 + $0x6c] sm:$0x1] %v4017
    %4052 = vst [vmem:[#allocation2 + $0x74] sm:$0x1] %v4019
    %4053 = vst [vmem:[#allocation2 + $0x7c] sm:$0x1] %v4021
    %v4056 = vcombine.high %v1223, %v1223
    %v4058 = vunpack.c.l.s4 1966171168
    %v4059 = vunpack.c.0.s8 %v4058
    %v4060 = vlaneseq
    %v4061 = vshrl.u32 %v4060, 7
    %v4062 = vsub.s32 %v4059, %v4061
    %v4063 = vrot.slane %v1223, %v4062
    %v4065 = vunpack.c.l.s4 1966171168
    %v4066 = vunpack.c.0.s8 %v4065
    %v4067 = vlaneseq
    %v4068 = vshrl.u32 %v4067, 7
    %v4069 = vsub.s32 %v4066, %v4068
    %v4070 = vrot.slane %v4056, %v4069
    %v4071 = vcombine.high %v4063, %v4063
    %v4072 = vcombine.high %v4070, %v4070
    %v4074 = vunpack.c.l.s4 1966171168
    %v4075 = vunpack.c.0.s8 %v4074
    %v4076 = vlaneseq
    %v4077 = vshrl.u32 %v4076, 7
    %v4078 = vsub.s32 %v4075, %v4077
    %v4079 = vrot.slane %v4063, %v4078
    %v4081 = vunpack.c.l.s4 1966171168
    %v4082 = vunpack.c.0.s8 %v4081
    %v4083 = vlaneseq
    %v4084 = vshrl.u32 %v4083, 7
    %v4085 = vsub.s32 %v4082, %v4084
    %v4086 = vrot.slane %v4070, %v4085
    %v4088 = vunpack.c.l.s4 1966171168
    %v4089 = vunpack.c.0.s8 %v4088
    %v4090 = vlaneseq
    %v4091 = vshrl.u32 %v4090, 7
    %v4092 = vsub.s32 %v4089, %v4091
    %v4093 = vrot.slane %v4071, %v4092
    %v4095 = vunpack.c.l.s4 1966171168
    %v4096 = vunpack.c.0.s8 %v4095
    %v4097 = vlaneseq
    %v4098 = vshrl.u32 %v4097, 7
    %v4099 = vsub.s32 %v4096, %v4098
    %v4100 = vrot.slane %v4072, %v4099
    %v4101 = vcombine.high %v4079, %v4079
    %v4102 = vcombine.high %v4086, %v4086
    %v4103 = vcombine.high %v4093, %v4093
    %v4104 = vcombine.high %v4100, %v4100
    %v4105 = vcombine.high %v1227, %v1227
    %v4107 = vunpack.c.l.s4 1966171168
    %v4108 = vunpack.c.0.s8 %v4107
    %v4109 = vlaneseq
    %v4110 = vshrl.u32 %v4109, 7
    %v4111 = vsub.s32 %v4108, %v4110
    %v4112 = vrot.slane %v1227, %v4111
    %v4114 = vunpack.c.l.s4 1966171168
    %v4115 = vunpack.c.0.s8 %v4114
    %v4116 = vlaneseq
    %v4117 = vshrl.u32 %v4116, 7
    %v4118 = vsub.s32 %v4115, %v4117
    %v4119 = vrot.slane %v4105, %v4118
    %v4120 = vcombine.high %v4112, %v4112
    %v4121 = vcombine.high %v4119, %v4119
    %v4123 = vunpack.c.l.s4 1966171168
    %v4124 = vunpack.c.0.s8 %v4123
    %v4125 = vlaneseq
    %v4126 = vshrl.u32 %v4125, 7
    %v4127 = vsub.s32 %v4124, %v4126
    %v4128 = vrot.slane %v4112, %v4127
    %v4130 = vunpack.c.l.s4 1966171168
    %v4131 = vunpack.c.0.s8 %v4130
    %v4132 = vlaneseq
    %v4133 = vshrl.u32 %v4132, 7
    %v4134 = vsub.s32 %v4131, %v4133
    %v4135 = vrot.slane %v4119, %v4134
    %v4137 = vunpack.c.l.s4 1966171168
    %v4138 = vunpack.c.0.s8 %v4137
    %v4139 = vlaneseq
    %v4140 = vshrl.u32 %v4139, 7
    %v4141 = vsub.s32 %v4138, %v4140
    %v4142 = vrot.slane %v4120, %v4141
    %v4144 = vunpack.c.l.s4 1966171168
    %v4145 = vunpack.c.0.s8 %v4144
    %v4146 = vlaneseq
    %v4147 = vshrl.u32 %v4146, 7
    %v4148 = vsub.s32 %v4145, %v4147
    %v4149 = vrot.slane %v4121, %v4148
    %v4150 = vcombine.high %v4128, %v4128
    %v4151 = vcombine.high %v4135, %v4135
    %v4152 = vcombine.high %v4142, %v4142
    %v4153 = vcombine.high %v4149, %v4149
    %4170 = vst [vmem:[#allocation2 + $0x5] sm:$0x1] %v4079
    %4171 = vst [vmem:[#allocation2 + $0xd] sm:$0x1] %v4093
    %4172 = vst [vmem:[#allocation2 + $0x15] sm:$0x1] %v4101
    %4173 = vst [vmem:[#allocation2 + $0x1d] sm:$0x1] %v4103
    %4174 = vst [vmem:[#allocation2 + $0x25] sm:$0x1] %v4086
    %4175 = vst [vmem:[#allocation2 + $0x2d] sm:$0x1] %v4100
    %4176 = vst [vmem:[#allocation2 + $0x35] sm:$0x1] %v4102
    %4177 = vst [vmem:[#allocation2 + $0x3d] sm:$0x1] %v4104
    %4178 = vst [vmem:[#allocation2 + $0x45] sm:$0x1] %v4128
    %4179 = vst [vmem:[#allocation2 + $0x4d] sm:$0x1] %v4142
    %4180 = vst [vmem:[#allocation2 + $0x55] sm:$0x1] %v4150
    %4181 = vst [vmem:[#allocation2 + $0x5d] sm:$0x1] %v4152
    %4182 = vst [vmem:[#allocation2 + $0x65] sm:$0x1] %v4135
    %4183 = vst [vmem:[#allocation2 + $0x6d] sm:$0x1] %v4149
    %4184 = vst [vmem:[#allocation2 + $0x75] sm:$0x1] %v4151
    %4185 = vst [vmem:[#allocation2 + $0x7d] sm:$0x1] %v4153
    %v4188 = vcombine.high %v1264, %v1264
    %v4190 = vunpack.c.l.s4 1966171168
    %v4191 = vunpack.c.0.s8 %v4190
    %v4192 = vlaneseq
    %v4193 = vshrl.u32 %v4192, 7
    %v4194 = vsub.s32 %v4191, %v4193
    %v4195 = vrot.slane %v1264, %v4194
    %v4197 = vunpack.c.l.s4 1966171168
    %v4198 = vunpack.c.0.s8 %v4197
    %v4199 = vlaneseq
    %v4200 = vshrl.u32 %v4199, 7
    %v4201 = vsub.s32 %v4198, %v4200
    %v4202 = vrot.slane %v4188, %v4201
    %v4203 = vcombine.high %v4195, %v4195
    %v4204 = vcombine.high %v4202, %v4202
    %v4206 = vunpack.c.l.s4 1966171168
    %v4207 = vunpack.c.0.s8 %v4206
    %v4208 = vlaneseq
    %v4209 = vshrl.u32 %v4208, 7
    %v4210 = vsub.s32 %v4207, %v4209
    %v4211 = vrot.slane %v4195, %v4210
    %v4213 = vunpack.c.l.s4 1966171168
    %v4214 = vunpack.c.0.s8 %v4213
    %v4215 = vlaneseq
    %v4216 = vshrl.u32 %v4215, 7
    %v4217 = vsub.s32 %v4214, %v4216
    %v4218 = vrot.slane %v4202, %v4217
    %v4220 = vunpack.c.l.s4 1966171168
    %v4221 = vunpack.c.0.s8 %v4220
    %v4222 = vlaneseq
    %v4223 = vshrl.u32 %v4222, 7
    %v4224 = vsub.s32 %v4221, %v4223
    %v4225 = vrot.slane %v4203, %v4224
    %v4227 = vunpack.c.l.s4 1966171168
    %v4228 = vunpack.c.0.s8 %v4227
    %v4229 = vlaneseq
    %v4230 = vshrl.u32 %v4229, 7
    %v4231 = vsub.s32 %v4228, %v4230
    %v4232 = vrot.slane %v4204, %v4231
    %v4233 = vcombine.high %v4211, %v4211
    %v4234 = vcombine.high %v4218, %v4218
    %v4235 = vcombine.high %v4225, %v4225
    %v4236 = vcombine.high %v4232, %v4232
    %v4237 = vcombine.high %v1268, %v1268
    %v4239 = vunpack.c.l.s4 1966171168
    %v4240 = vunpack.c.0.s8 %v4239
    %v4241 = vlaneseq
    %v4242 = vshrl.u32 %v4241, 7
    %v4243 = vsub.s32 %v4240, %v4242
    %v4244 = vrot.slane %v1268, %v4243
    %v4246 = vunpack.c.l.s4 1966171168
    %v4247 = vunpack.c.0.s8 %v4246
    %v4248 = vlaneseq
    %v4249 = vshrl.u32 %v4248, 7
    %v4250 = vsub.s32 %v4247, %v4249
    %v4251 = vrot.slane %v4237, %v4250
    %v4252 = vcombine.high %v4244, %v4244
    %v4253 = vcombine.high %v4251, %v4251
    %v4255 = vunpack.c.l.s4 1966171168
    %v4256 = vunpack.c.0.s8 %v4255
    %v4257 = vlaneseq
    %v4258 = vshrl.u32 %v4257, 7
    %v4259 = vsub.s32 %v4256, %v4258
    %v4260 = vrot.slane %v4244, %v4259
    %v4262 = vunpack.c.l.s4 1966171168
    %v4263 = vunpack.c.0.s8 %v4262
    %v4264 = vlaneseq
    %v4265 = vshrl.u32 %v4264, 7
    %v4266 = vsub.s32 %v4263, %v4265
    %v4267 = vrot.slane %v4251, %v4266
    %v4269 = vunpack.c.l.s4 1966171168
    %v4270 = vunpack.c.0.s8 %v4269
    %v4271 = vlaneseq
    %v4272 = vshrl.u32 %v4271, 7
    %v4273 = vsub.s32 %v4270, %v4272
    %v4274 = vrot.slane %v4252, %v4273
    %v4276 = vunpack.c.l.s4 1966171168
    %v4277 = vunpack.c.0.s8 %v4276
    %v4278 = vlaneseq
    %v4279 = vshrl.u32 %v4278, 7
    %v4280 = vsub.s32 %v4277, %v4279
    %v4281 = vrot.slane %v4253, %v4280
    %v4282 = vcombine.high %v4260, %v4260
    %v4283 = vcombine.high %v4267, %v4267
    %v4284 = vcombine.high %v4274, %v4274
    %v4285 = vcombine.high %v4281, %v4281
    %4302 = vst [vmem:[#allocation2 + $0x6] sm:$0x1] %v4211
    %4303 = vst [vmem:[#allocation2 + $0xe] sm:$0x1] %v4225
    %4304 = vst [vmem:[#allocation2 + $0x16] sm:$0x1] %v4233
    %4305 = vst [vmem:[#allocation2 + $0x1e] sm:$0x1] %v4235
    %4306 = vst [vmem:[#allocation2 + $0x26] sm:$0x1] %v4218
    %4307 = vst [vmem:[#allocation2 + $0x2e] sm:$0x1] %v4232
    %4308 = vst [vmem:[#allocation2 + $0x36] sm:$0x1] %v4234
    %4309 = vst [vmem:[#allocation2 + $0x3e] sm:$0x1] %v4236
    %4310 = vst [vmem:[#allocation2 + $0x46] sm:$0x1] %v4260
    %4311 = vst [vmem:[#allocation2 + $0x4e] sm:$0x1] %v4274
    %4312 = vst [vmem:[#allocation2 + $0x56] sm:$0x1] %v4282
    %4313 = vst [vmem:[#allocation2 + $0x5e] sm:$0x1] %v4284
    %4314 = vst [vmem:[#allocation2 + $0x66] sm:$0x1] %v4267
    %4315 = vst [vmem:[#allocation2 + $0x6e] sm:$0x1] %v4281
    %4316 = vst [vmem:[#allocation2 + $0x76] sm:$0x1] %v4283
    %4317 = vst [vmem:[#allocation2 + $0x7e] sm:$0x1] %v4285
    %v4320 = vcombine.high %v1266, %v1266
    %v4322 = vunpack.c.l.s4 1966171168
    %v4323 = vunpack.c.0.s8 %v4322
    %v4324 = vlaneseq
    %v4325 = vshrl.u32 %v4324, 7
    %v4326 = vsub.s32 %v4323, %v4325
    %v4327 = vrot.slane %v1266, %v4326
    %v4329 = vunpack.c.l.s4 1966171168
    %v4330 = vunpack.c.0.s8 %v4329
    %v4331 = vlaneseq
    %v4332 = vshrl.u32 %v4331, 7
    %v4333 = vsub.s32 %v4330, %v4332
    %v4334 = vrot.slane %v4320, %v4333
    %v4335 = vcombine.high %v4327, %v4327
    %v4336 = vcombine.high %v4334, %v4334
    %v4338 = vunpack.c.l.s4 1966171168
    %v4339 = vunpack.c.0.s8 %v4338
    %v4340 = vlaneseq
    %v4341 = vshrl.u32 %v4340, 7
    %v4342 = vsub.s32 %v4339, %v4341
    %v4343 = vrot.slane %v4327, %v4342
    %v4345 = vunpack.c.l.s4 1966171168
    %v4346 = vunpack.c.0.s8 %v4345
    %v4347 = vlaneseq
    %v4348 = vshrl.u32 %v4347, 7
    %v4349 = vsub.s32 %v4346, %v4348
    %v4350 = vrot.slane %v4334, %v4349
    %v4352 = vunpack.c.l.s4 1966171168
    %v4353 = vunpack.c.0.s8 %v4352
    %v4354 = vlaneseq
    %v4355 = vshrl.u32 %v4354, 7
    %v4356 = vsub.s32 %v4353, %v4355
    %v4357 = vrot.slane %v4335, %v4356
    %v4359 = vunpack.c.l.s4 1966171168
    %v4360 = vunpack.c.0.s8 %v4359
    %v4361 = vlaneseq
    %v4362 = vshrl.u32 %v4361, 7
    %v4363 = vsub.s32 %v4360, %v4362
    %v4364 = vrot.slane %v4336, %v4363
    %v4365 = vcombine.high %v4343, %v4343
    %v4366 = vcombine.high %v4350, %v4350
    %v4367 = vcombine.high %v4357, %v4357
    %v4368 = vcombine.high %v4364, %v4364
    %v4369 = vcombine.high %v1270, %v1270
    %v4371 = vunpack.c.l.s4 1966171168
    %v4372 = vunpack.c.0.s8 %v4371
    %v4373 = vlaneseq
    %v4374 = vshrl.u32 %v4373, 7
    %v4375 = vsub.s32 %v4372, %v4374
    %v4376 = vrot.slane %v1270, %v4375
    %v4378 = vunpack.c.l.s4 1966171168
    %v4379 = vunpack.c.0.s8 %v4378
    %v4380 = vlaneseq
    %v4381 = vshrl.u32 %v4380, 7
    %v4382 = vsub.s32 %v4379, %v4381
    %v4383 = vrot.slane %v4369, %v4382
    %v4384 = vcombine.high %v4376, %v4376
    %v4385 = vcombine.high %v4383, %v4383
    %v4387 = vunpack.c.l.s4 1966171168
    %v4388 = vunpack.c.0.s8 %v4387
    %v4389 = vlaneseq
    %v4390 = vshrl.u32 %v4389, 7
    %v4391 = vsub.s32 %v4388, %v4390
    %v4392 = vrot.slane %v4376, %v4391
    %v4394 = vunpack.c.l.s4 1966171168
    %v4395 = vunpack.c.0.s8 %v4394
    %v4396 = vlaneseq
    %v4397 = vshrl.u32 %v4396, 7
    %v4398 = vsub.s32 %v4395, %v4397
    %v4399 = vrot.slane %v4383, %v4398
    %v4401 = vunpack.c.l.s4 1966171168
    %v4402 = vunpack.c.0.s8 %v4401
    %v4403 = vlaneseq
    %v4404 = vshrl.u32 %v4403, 7
    %v4405 = vsub.s32 %v4402, %v4404
    %v4406 = vrot.slane %v4384, %v4405
    %v4408 = vunpack.c.l.s4 1966171168
    %v4409 = vunpack.c.0.s8 %v4408
    %v4410 = vlaneseq
    %v4411 = vshrl.u32 %v4410, 7
    %v4412 = vsub.s32 %v4409, %v4411
    %v4413 = vrot.slane %v4385, %v4412
    %v4414 = vcombine.high %v4392, %v4392
    %v4415 = vcombine.high %v4399, %v4399
    %v4416 = vcombine.high %v4406, %v4406
    %v4417 = vcombine.high %v4413, %v4413
    %4434 = vst [vmem:[#allocation2 + $0x7] sm:$0x1] %v4343
    %4435 = vst [vmem:[#allocation2 + $0xf] sm:$0x1] %v4357
    %4436 = vst [vmem:[#allocation2 + $0x17] sm:$0x1] %v4365
    %4437 = vst [vmem:[#allocation2 + $0x1f] sm:$0x1] %v4367
    %4438 = vst [vmem:[#allocation2 + $0x27] sm:$0x1] %v4350
    %4439 = vst [vmem:[#allocation2 + $0x2f] sm:$0x1] %v4364
    %4440 = vst [vmem:[#allocation2 + $0x37] sm:$0x1] %v4366
    %4441 = vst [vmem:[#allocation2 + $0x3f] sm:$0x1] %v4368
    %4442 = vst [vmem:[#allocation2 + $0x47] sm:$0x1] %v4392
    %4443 = vst [vmem:[#allocation2 + $0x4f] sm:$0x1] %v4406
    %4444 = vst [vmem:[#allocation2 + $0x57] sm:$0x1] %v4414
    %4445 = vst [vmem:[#allocation2 + $0x5f] sm:$0x1] %v4416
    %4446 = vst [vmem:[#allocation2 + $0x67] sm:$0x1] %v4399
    %4447 = vst [vmem:[#allocation2 + $0x6f] sm:$0x1] %v4413
    %4448 = vst [vmem:[#allocation2 + $0x77] sm:$0x1] %v4415
    %4449 = vst [vmem:[#allocation2 + $0x7f] sm:$0x1] %v4417
    %v4452 = vcombine.high %v3085, %v3085
    %v4454 = vunpack.c.l.s4 1966171168
    %v4455 = vunpack.c.0.s8 %v4454
    %v4456 = vlaneseq
    %v4457 = vshrl.u32 %v4456, 7
    %v4458 = vsub.s32 %v4455, %v4457
    %v4459 = vrot.slane %v3085, %v4458
    %v4461 = vunpack.c.l.s4 1966171168
    %v4462 = vunpack.c.0.s8 %v4461
    %v4463 = vlaneseq
    %v4464 = vshrl.u32 %v4463, 7
    %v4465 = vsub.s32 %v4462, %v4464
    %v4466 = vrot.slane %v4452, %v4465
    %v4467 = vcombine.high %v4459, %v4459
    %v4468 = vcombine.high %v4466, %v4466
    %v4470 = vunpack.c.l.s4 1966171168
    %v4471 = vunpack.c.0.s8 %v4470
    %v4472 = vlaneseq
    %v4473 = vshrl.u32 %v4472, 7
    %v4474 = vsub.s32 %v4471, %v4473
    %v4475 = vrot.slane %v4459, %v4474
    %v4477 = vunpack.c.l.s4 1966171168
    %v4478 = vunpack.c.0.s8 %v4477
    %v4479 = vlaneseq
    %v4480 = vshrl.u32 %v4479, 7
    %v4481 = vsub.s32 %v4478, %v4480
    %v4482 = vrot.slane %v4466, %v4481
    %v4484 = vunpack.c.l.s4 1966171168
    %v4485 = vunpack.c.0.s8 %v4484
    %v4486 = vlaneseq
    %v4487 = vshrl.u32 %v4486, 7
    %v4488 = vsub.s32 %v4485, %v4487
    %v4489 = vrot.slane %v4467, %v4488
    %v4491 = vunpack.c.l.s4 1966171168
    %v4492 = vunpack.c.0.s8 %v4491
    %v4493 = vlaneseq
    %v4494 = vshrl.u32 %v4493, 7
    %v4495 = vsub.s32 %v4492, %v4494
    %v4496 = vrot.slane %v4468, %v4495
    %v4497 = vcombine.high %v4475, %v4475
    %v4498 = vcombine.high %v4482, %v4482
    %v4499 = vcombine.high %v4489, %v4489
    %v4500 = vcombine.high %v4496, %v4496
    %v4501 = vcombine.high %v3089, %v3089
    %v4503 = vunpack.c.l.s4 1966171168
    %v4504 = vunpack.c.0.s8 %v4503
    %v4505 = vlaneseq
    %v4506 = vshrl.u32 %v4505, 7
    %v4507 = vsub.s32 %v4504, %v4506
    %v4508 = vrot.slane %v3089, %v4507
    %v4510 = vunpack.c.l.s4 1966171168
    %v4511 = vunpack.c.0.s8 %v4510
    %v4512 = vlaneseq
    %v4513 = vshrl.u32 %v4512, 7
    %v4514 = vsub.s32 %v4511, %v4513
    %v4515 = vrot.slane %v4501, %v4514
    %v4516 = vcombine.high %v4508, %v4508
    %v4517 = vcombine.high %v4515, %v4515
    %v4519 = vunpack.c.l.s4 1966171168
    %v4520 = vunpack.c.0.s8 %v4519
    %v4521 = vlaneseq
    %v4522 = vshrl.u32 %v4521, 7
    %v4523 = vsub.s32 %v4520, %v4522
    %v4524 = vrot.slane %v4508, %v4523
    %v4526 = vunpack.c.l.s4 1966171168
    %v4527 = vunpack.c.0.s8 %v4526
    %v4528 = vlaneseq
    %v4529 = vshrl.u32 %v4528, 7
    %v4530 = vsub.s32 %v4527, %v4529
    %v4531 = vrot.slane %v4515, %v4530
    %v4533 = vunpack.c.l.s4 1966171168
    %v4534 = vunpack.c.0.s8 %v4533
    %v4535 = vlaneseq
    %v4536 = vshrl.u32 %v4535, 7
    %v4537 = vsub.s32 %v4534, %v4536
    %v4538 = vrot.slane %v4516, %v4537
    %v4540 = vunpack.c.l.s4 1966171168
    %v4541 = vunpack.c.0.s8 %v4540
    %v4542 = vlaneseq
    %v4543 = vshrl.u32 %v4542, 7
    %v4544 = vsub.s32 %v4541, %v4543
    %v4545 = vrot.slane %v4517, %v4544
    %v4546 = vcombine.high %v4524, %v4524
    %v4547 = vcombine.high %v4531, %v4531
    %v4548 = vcombine.high %v4538, %v4538
    %v4549 = vcombine.high %v4545, %v4545
    %4566 = vst [vmem:[#allocation3] sm:$0x1] %v4475
    %4567 = vst [vmem:[#allocation3 + $0x10] sm:$0x1] %v4489
    %4568 = vst [vmem:[#allocation3 + $0x20] sm:$0x1] %v4497
    %4569 = vst [vmem:[#allocation3 + $0x30] sm:$0x1] %v4499
    %4570 = vst [vmem:[#allocation3 + $0x40] sm:$0x1] %v4482
    %4571 = vst [vmem:[#allocation3 + $0x50] sm:$0x1] %v4496
    %4572 = vst [vmem:[#allocation3 + $0x60] sm:$0x1] %v4498
    %4573 = vst [vmem:[#allocation3 + $0x70] sm:$0x1] %v4500
    %4574 = vst [vmem:[#allocation3 + $0x80] sm:$0x1] %v4524
    %4575 = vst [vmem:[#allocation3 + $0x90] sm:$0x1] %v4538
    %4576 = vst [vmem:[#allocation3 + $0xa0] sm:$0x1] %v4546
    %4577 = vst [vmem:[#allocation3 + $0xb0] sm:$0x1] %v4548
    %4578 = vst [vmem:[#allocation3 + $0xc0] sm:$0x1] %v4531
    %4579 = vst [vmem:[#allocation3 + $0xd0] sm:$0x1] %v4545
    %4580 = vst [vmem:[#allocation3 + $0xe0] sm:$0x1] %v4547
    %4581 = vst [vmem:[#allocation3 + $0xf0] sm:$0x1] %v4549
    %v4584 = vcombine.high %v3087, %v3087
    %v4586 = vunpack.c.l.s4 1966171168
    %v4587 = vunpack.c.0.s8 %v4586
    %v4588 = vlaneseq
    %v4589 = vshrl.u32 %v4588, 7
    %v4590 = vsub.s32 %v4587, %v4589
    %v4591 = vrot.slane %v3087, %v4590
    %v4593 = vunpack.c.l.s4 1966171168
    %v4594 = vunpack.c.0.s8 %v4593
    %v4595 = vlaneseq
    %v4596 = vshrl.u32 %v4595, 7
    %v4597 = vsub.s32 %v4594, %v4596
    %v4598 = vrot.slane %v4584, %v4597
    %v4599 = vcombine.high %v4591, %v4591
    %v4600 = vcombine.high %v4598, %v4598
    %v4602 = vunpack.c.l.s4 1966171168
    %v4603 = vunpack.c.0.s8 %v4602
    %v4604 = vlaneseq
    %v4605 = vshrl.u32 %v4604, 7
    %v4606 = vsub.s32 %v4603, %v4605
    %v4607 = vrot.slane %v4591, %v4606
    %v4609 = vunpack.c.l.s4 1966171168
    %v4610 = vunpack.c.0.s8 %v4609
    %v4611 = vlaneseq
    %v4612 = vshrl.u32 %v4611, 7
    %v4613 = vsub.s32 %v4610, %v4612
    %v4614 = vrot.slane %v4598, %v4613
    %v4616 = vunpack.c.l.s4 1966171168
    %v4617 = vunpack.c.0.s8 %v4616
    %v4618 = vlaneseq
    %v4619 = vshrl.u32 %v4618, 7
    %v4620 = vsub.s32 %v4617, %v4619
    %v4621 = vrot.slane %v4599, %v4620
    %v4623 = vunpack.c.l.s4 1966171168
    %v4624 = vunpack.c.0.s8 %v4623
    %v4625 = vlaneseq
    %v4626 = vshrl.u32 %v4625, 7
    %v4627 = vsub.s32 %v4624, %v4626
    %v4628 = vrot.slane %v4600, %v4627
    %v4629 = vcombine.high %v4607, %v4607
    %v4630 = vcombine.high %v4614, %v4614
    %v4631 = vcombine.high %v4621, %v4621
    %v4632 = vcombine.high %v4628, %v4628
    %v4633 = vcombine.high %v3091, %v3091
    %v4635 = vunpack.c.l.s4 1966171168
    %v4636 = vunpack.c.0.s8 %v4635
    %v4637 = vlaneseq
    %v4638 = vshrl.u32 %v4637, 7
    %v4639 = vsub.s32 %v4636, %v4638
    %v4640 = vrot.slane %v3091, %v4639
    %v4642 = vunpack.c.l.s4 1966171168
    %v4643 = vunpack.c.0.s8 %v4642
    %v4644 = vlaneseq
    %v4645 = vshrl.u32 %v4644, 7
    %v4646 = vsub.s32 %v4643, %v4645
    %v4647 = vrot.slane %v4633, %v4646
    %v4648 = vcombine.high %v4640, %v4640
    %v4649 = vcombine.high %v4647, %v4647
    %v4651 = vunpack.c.l.s4 1966171168
    %v4652 = vunpack.c.0.s8 %v4651
    %v4653 = vlaneseq
    %v4654 = vshrl.u32 %v4653, 7
    %v4655 = vsub.s32 %v4652, %v4654
    %v4656 = vrot.slane %v4640, %v4655
    %v4658 = vunpack.c.l.s4 1966171168
    %v4659 = vunpack.c.0.s8 %v4658
    %v4660 = vlaneseq
    %v4661 = vshrl.u32 %v4660, 7
    %v4662 = vsub.s32 %v4659, %v4661
    %v4663 = vrot.slane %v4647, %v4662
    %v4665 = vunpack.c.l.s4 1966171168
    %v4666 = vunpack.c.0.s8 %v4665
    %v4667 = vlaneseq
    %v4668 = vshrl.u32 %v4667, 7
    %v4669 = vsub.s32 %v4666, %v4668
    %v4670 = vrot.slane %v4648, %v4669
    %v4672 = vunpack.c.l.s4 1966171168
    %v4673 = vunpack.c.0.s8 %v4672
    %v4674 = vlaneseq
    %v4675 = vshrl.u32 %v4674, 7
    %v4676 = vsub.s32 %v4673, %v4675
    %v4677 = vrot.slane %v4649, %v4676
    %v4678 = vcombine.high %v4656, %v4656
    %v4679 = vcombine.high %v4663, %v4663
    %v4680 = vcombine.high %v4670, %v4670
    %v4681 = vcombine.high %v4677, %v4677
    %4698 = vst [vmem:[#allocation3 + $0x1] sm:$0x1] %v4607
    %4699 = vst [vmem:[#allocation3 + $0x11] sm:$0x1] %v4621
    %4700 = vst [vmem:[#allocation3 + $0x21] sm:$0x1] %v4629
    %4701 = vst [vmem:[#allocation3 + $0x31] sm:$0x1] %v4631
    %4702 = vst [vmem:[#allocation3 + $0x41] sm:$0x1] %v4614
    %4703 = vst [vmem:[#allocation3 + $0x51] sm:$0x1] %v4628
    %4704 = vst [vmem:[#allocation3 + $0x61] sm:$0x1] %v4630
    %4705 = vst [vmem:[#allocation3 + $0x71] sm:$0x1] %v4632
    %4706 = vst [vmem:[#allocation3 + $0x81] sm:$0x1] %v4656
    %4707 = vst [vmem:[#allocation3 + $0x91] sm:$0x1] %v4670
    %4708 = vst [vmem:[#allocation3 + $0xa1] sm:$0x1] %v4678
    %4709 = vst [vmem:[#allocation3 + $0xb1] sm:$0x1] %v4680
    %4710 = vst [vmem:[#allocation3 + $0xc1] sm:$0x1] %v4663
    %4711 = vst [vmem:[#allocation3 + $0xd1] sm:$0x1] %v4677
    %4712 = vst [vmem:[#allocation3 + $0xe1] sm:$0x1] %v4679
    %4713 = vst [vmem:[#allocation3 + $0xf1] sm:$0x1] %v4681
    %v4716 = vcombine.high %v3128, %v3128
    %v4718 = vunpack.c.l.s4 1966171168
    %v4719 = vunpack.c.0.s8 %v4718
    %v4720 = vlaneseq
    %v4721 = vshrl.u32 %v4720, 7
    %v4722 = vsub.s32 %v4719, %v4721
    %v4723 = vrot.slane %v3128, %v4722
    %v4725 = vunpack.c.l.s4 1966171168
    %v4726 = vunpack.c.0.s8 %v4725
    %v4727 = vlaneseq
    %v4728 = vshrl.u32 %v4727, 7
    %v4729 = vsub.s32 %v4726, %v4728
    %v4730 = vrot.slane %v4716, %v4729
    %v4731 = vcombine.high %v4723, %v4723
    %v4732 = vcombine.high %v4730, %v4730
    %v4734 = vunpack.c.l.s4 1966171168
    %v4735 = vunpack.c.0.s8 %v4734
    %v4736 = vlaneseq
    %v4737 = vshrl.u32 %v4736, 7
    %v4738 = vsub.s32 %v4735, %v4737
    %v4739 = vrot.slane %v4723, %v4738
    %v4741 = vunpack.c.l.s4 1966171168
    %v4742 = vunpack.c.0.s8 %v4741
    %v4743 = vlaneseq
    %v4744 = vshrl.u32 %v4743, 7
    %v4745 = vsub.s32 %v4742, %v4744
    %v4746 = vrot.slane %v4730, %v4745
    %v4748 = vunpack.c.l.s4 1966171168
    %v4749 = vunpack.c.0.s8 %v4748
    %v4750 = vlaneseq
    %v4751 = vshrl.u32 %v4750, 7
    %v4752 = vsub.s32 %v4749, %v4751
    %v4753 = vrot.slane %v4731, %v4752
    %v4755 = vunpack.c.l.s4 1966171168
    %v4756 = vunpack.c.0.s8 %v4755
    %v4757 = vlaneseq
    %v4758 = vshrl.u32 %v4757, 7
    %v4759 = vsub.s32 %v4756, %v4758
    %v4760 = vrot.slane %v4732, %v4759
    %v4761 = vcombine.high %v4739, %v4739
    %v4762 = vcombine.high %v4746, %v4746
    %v4763 = vcombine.high %v4753, %v4753
    %v4764 = vcombine.high %v4760, %v4760
    %v4765 = vcombine.high %v3132, %v3132
    %v4767 = vunpack.c.l.s4 1966171168
    %v4768 = vunpack.c.0.s8 %v4767
    %v4769 = vlaneseq
    %v4770 = vshrl.u32 %v4769, 7
    %v4771 = vsub.s32 %v4768, %v4770
    %v4772 = vrot.slane %v3132, %v4771
    %v4774 = vunpack.c.l.s4 1966171168
    %v4775 = vunpack.c.0.s8 %v4774
    %v4776 = vlaneseq
    %v4777 = vshrl.u32 %v4776, 7
    %v4778 = vsub.s32 %v4775, %v4777
    %v4779 = vrot.slane %v4765, %v4778
    %v4780 = vcombine.high %v4772, %v4772
    %v4781 = vcombine.high %v4779, %v4779
    %v4783 = vunpack.c.l.s4 1966171168
    %v4784 = vunpack.c.0.s8 %v4783
    %v4785 = vlaneseq
    %v4786 = vshrl.u32 %v4785, 7
    %v4787 = vsub.s32 %v4784, %v4786
    %v4788 = vrot.slane %v4772, %v4787
    %v4790 = vunpack.c.l.s4 1966171168
    %v4791 = vunpack.c.0.s8 %v4790
    %v4792 = vlaneseq
    %v4793 = vshrl.u32 %v4792, 7
    %v4794 = vsub.s32 %v4791, %v4793
    %v4795 = vrot.slane %v4779, %v4794
    %v4797 = vunpack.c.l.s4 1966171168
    %v4798 = vunpack.c.0.s8 %v4797
    %v4799 = vlaneseq
    %v4800 = vshrl.u32 %v4799, 7
    %v4801 = vsub.s32 %v4798, %v4800
    %v4802 = vrot.slane %v4780, %v4801
    %v4804 = vunpack.c.l.s4 1966171168
    %v4805 = vunpack.c.0.s8 %v4804
    %v4806 = vlaneseq
    %v4807 = vshrl.u32 %v4806, 7
    %v4808 = vsub.s32 %v4805, %v4807
    %v4809 = vrot.slane %v4781, %v4808
    %v4810 = vcombine.high %v4788, %v4788
    %v4811 = vcombine.high %v4795, %v4795
    %v4812 = vcombine.high %v4802, %v4802
    %v4813 = vcombine.high %v4809, %v4809
    %4830 = vst [vmem:[#allocation3 + $0x2] sm:$0x1] %v4739
    %4831 = vst [vmem:[#allocation3 + $0x12] sm:$0x1] %v4753
    %4832 = vst [vmem:[#allocation3 + $0x22] sm:$0x1] %v4761
    %4833 = vst [vmem:[#allocation3 + $0x32] sm:$0x1] %v4763
    %4834 = vst [vmem:[#allocation3 + $0x42] sm:$0x1] %v4746
    %4835 = vst [vmem:[#allocation3 + $0x52] sm:$0x1] %v4760
    %4836 = vst [vmem:[#allocation3 + $0x62] sm:$0x1] %v4762
    %4837 = vst [vmem:[#allocation3 + $0x72] sm:$0x1] %v4764
    %4838 = vst [vmem:[#allocation3 + $0x82] sm:$0x1] %v4788
    %4839 = vst [vmem:[#allocation3 + $0x92] sm:$0x1] %v4802
    %4840 = vst [vmem:[#allocation3 + $0xa2] sm:$0x1] %v4810
    %4841 = vst [vmem:[#allocation3 + $0xb2] sm:$0x1] %v4812
    %4842 = vst [vmem:[#allocation3 + $0xc2] sm:$0x1] %v4795
    %4843 = vst [vmem:[#allocation3 + $0xd2] sm:$0x1] %v4809
    %4844 = vst [vmem:[#allocation3 + $0xe2] sm:$0x1] %v4811
    %4845 = vst [vmem:[#allocation3 + $0xf2] sm:$0x1] %v4813
    %v4848 = vcombine.high %v3130, %v3130
    %v4850 = vunpack.c.l.s4 1966171168
    %v4851 = vunpack.c.0.s8 %v4850
    %v4852 = vlaneseq
    %v4853 = vshrl.u32 %v4852, 7
    %v4854 = vsub.s32 %v4851, %v4853
    %v4855 = vrot.slane %v3130, %v4854
    %v4857 = vunpack.c.l.s4 1966171168
    %v4858 = vunpack.c.0.s8 %v4857
    %v4859 = vlaneseq
    %v4860 = vshrl.u32 %v4859, 7
    %v4861 = vsub.s32 %v4858, %v4860
    %v4862 = vrot.slane %v4848, %v4861
    %v4863 = vcombine.high %v4855, %v4855
    %v4864 = vcombine.high %v4862, %v4862
    %v4866 = vunpack.c.l.s4 1966171168
    %v4867 = vunpack.c.0.s8 %v4866
    %v4868 = vlaneseq
    %v4869 = vshrl.u32 %v4868, 7
    %v4870 = vsub.s32 %v4867, %v4869
    %v4871 = vrot.slane %v4855, %v4870
    %v4873 = vunpack.c.l.s4 1966171168
    %v4874 = vunpack.c.0.s8 %v4873
    %v4875 = vlaneseq
    %v4876 = vshrl.u32 %v4875, 7
    %v4877 = vsub.s32 %v4874, %v4876
    %v4878 = vrot.slane %v4862, %v4877
    %v4880 = vunpack.c.l.s4 1966171168
    %v4881 = vunpack.c.0.s8 %v4880
    %v4882 = vlaneseq
    %v4883 = vshrl.u32 %v4882, 7
    %v4884 = vsub.s32 %v4881, %v4883
    %v4885 = vrot.slane %v4863, %v4884
    %v4887 = vunpack.c.l.s4 1966171168
    %v4888 = vunpack.c.0.s8 %v4887
    %v4889 = vlaneseq
    %v4890 = vshrl.u32 %v4889, 7
    %v4891 = vsub.s32 %v4888, %v4890
    %v4892 = vrot.slane %v4864, %v4891
    %v4893 = vcombine.high %v4871, %v4871
    %v4894 = vcombine.high %v4878, %v4878
    %v4895 = vcombine.high %v4885, %v4885
    %v4896 = vcombine.high %v4892, %v4892
    %v4897 = vcombine.high %v3134, %v3134
    %v4899 = vunpack.c.l.s4 1966171168
    %v4900 = vunpack.c.0.s8 %v4899
    %v4901 = vlaneseq
    %v4902 = vshrl.u32 %v4901, 7
    %v4903 = vsub.s32 %v4900, %v4902
    %v4904 = vrot.slane %v3134, %v4903
    %v4906 = vunpack.c.l.s4 1966171168
    %v4907 = vunpack.c.0.s8 %v4906
    %v4908 = vlaneseq
    %v4909 = vshrl.u32 %v4908, 7
    %v4910 = vsub.s32 %v4907, %v4909
    %v4911 = vrot.slane %v4897, %v4910
    %v4912 = vcombine.high %v4904, %v4904
    %v4913 = vcombine.high %v4911, %v4911
    %v4915 = vunpack.c.l.s4 1966171168
    %v4916 = vunpack.c.0.s8 %v4915
    %v4917 = vlaneseq
    %v4918 = vshrl.u32 %v4917, 7
    %v4919 = vsub.s32 %v4916, %v4918
    %v4920 = vrot.slane %v4904, %v4919
    %v4922 = vunpack.c.l.s4 1966171168
    %v4923 = vunpack.c.0.s8 %v4922
    %v4924 = vlaneseq
    %v4925 = vshrl.u32 %v4924, 7
    %v4926 = vsub.s32 %v4923, %v4925
    %v4927 = vrot.slane %v4911, %v4926
    %v4929 = vunpack.c.l.s4 1966171168
    %v4930 = vunpack.c.0.s8 %v4929
    %v4931 = vlaneseq
    %v4932 = vshrl.u32 %v4931, 7
    %v4933 = vsub.s32 %v4930, %v4932
    %v4934 = vrot.slane %v4912, %v4933
    %v4936 = vunpack.c.l.s4 1966171168
    %v4937 = vunpack.c.0.s8 %v4936
    %v4938 = vlaneseq
    %v4939 = vshrl.u32 %v4938, 7
    %v4940 = vsub.s32 %v4937, %v4939
    %v4941 = vrot.slane %v4913, %v4940
    %v4942 = vcombine.high %v4920, %v4920
    %v4943 = vcombine.high %v4927, %v4927
    %v4944 = vcombine.high %v4934, %v4934
    %v4945 = vcombine.high %v4941, %v4941
    %4962 = vst [vmem:[#allocation3 + $0x3] sm:$0x1] %v4871
    %4963 = vst [vmem:[#allocation3 + $0x13] sm:$0x1] %v4885
    %4964 = vst [vmem:[#allocation3 + $0x23] sm:$0x1] %v4893
    %4965 = vst [vmem:[#allocation3 + $0x33] sm:$0x1] %v4895
    %4966 = vst [vmem:[#allocation3 + $0x43] sm:$0x1] %v4878
    %4967 = vst [vmem:[#allocation3 + $0x53] sm:$0x1] %v4892
    %4968 = vst [vmem:[#allocation3 + $0x63] sm:$0x1] %v4894
    %4969 = vst [vmem:[#allocation3 + $0x73] sm:$0x1] %v4896
    %4970 = vst [vmem:[#allocation3 + $0x83] sm:$0x1] %v4920
    %4971 = vst [vmem:[#allocation3 + $0x93] sm:$0x1] %v4934
    %4972 = vst [vmem:[#allocation3 + $0xa3] sm:$0x1] %v4942
    %4973 = vst [vmem:[#allocation3 + $0xb3] sm:$0x1] %v4944
    %4974 = vst [vmem:[#allocation3 + $0xc3] sm:$0x1] %v4927
    %4975 = vst [vmem:[#allocation3 + $0xd3] sm:$0x1] %v4941
    %4976 = vst [vmem:[#allocation3 + $0xe3] sm:$0x1] %v4943
    %4977 = vst [vmem:[#allocation3 + $0xf3] sm:$0x1] %v4945
    %v4980 = vcombine.high %v3171, %v3171
    %v4982 = vunpack.c.l.s4 1966171168
    %v4983 = vunpack.c.0.s8 %v4982
    %v4984 = vlaneseq
    %v4985 = vshrl.u32 %v4984, 7
    %v4986 = vsub.s32 %v4983, %v4985
    %v4987 = vrot.slane %v3171, %v4986
    %v4989 = vunpack.c.l.s4 1966171168
    %v4990 = vunpack.c.0.s8 %v4989
    %v4991 = vlaneseq
    %v4992 = vshrl.u32 %v4991, 7
    %v4993 = vsub.s32 %v4990, %v4992
    %v4994 = vrot.slane %v4980, %v4993
    %v4995 = vcombine.high %v4987, %v4987
    %v4996 = vcombine.high %v4994, %v4994
    %v4998 = vunpack.c.l.s4 1966171168
    %v4999 = vunpack.c.0.s8 %v4998
    %v5000 = vlaneseq
    %v5001 = vshrl.u32 %v5000, 7
    %v5002 = vsub.s32 %v4999, %v5001
    %v5003 = vrot.slane %v4987, %v5002
    %v5005 = vunpack.c.l.s4 1966171168
    %v5006 = vunpack.c.0.s8 %v5005
    %v5007 = vlaneseq
    %v5008 = vshrl.u32 %v5007, 7
    %v5009 = vsub.s32 %v5006, %v5008
    %v5010 = vrot.slane %v4994, %v5009
    %v5012 = vunpack.c.l.s4 1966171168
    %v5013 = vunpack.c.0.s8 %v5012
    %v5014 = vlaneseq
    %v5015 = vshrl.u32 %v5014, 7
    %v5016 = vsub.s32 %v5013, %v5015
    %v5017 = vrot.slane %v4995, %v5016
    %v5019 = vunpack.c.l.s4 1966171168
    %v5020 = vunpack.c.0.s8 %v5019
    %v5021 = vlaneseq
    %v5022 = vshrl.u32 %v5021, 7
    %v5023 = vsub.s32 %v5020, %v5022
    %v5024 = vrot.slane %v4996, %v5023
    %v5025 = vcombine.high %v5003, %v5003
    %v5026 = vcombine.high %v5010, %v5010
    %v5027 = vcombine.high %v5017, %v5017
    %v5028 = vcombine.high %v5024, %v5024
    %v5029 = vcombine.high %v3175, %v3175
    %v5031 = vunpack.c.l.s4 1966171168
    %v5032 = vunpack.c.0.s8 %v5031
    %v5033 = vlaneseq
    %v5034 = vshrl.u32 %v5033, 7
    %v5035 = vsub.s32 %v5032, %v5034
    %v5036 = vrot.slane %v3175, %v5035
    %v5038 = vunpack.c.l.s4 1966171168
    %v5039 = vunpack.c.0.s8 %v5038
    %v5040 = vlaneseq
    %v5041 = vshrl.u32 %v5040, 7
    %v5042 = vsub.s32 %v5039, %v5041
    %v5043 = vrot.slane %v5029, %v5042
    %v5044 = vcombine.high %v5036, %v5036
    %v5045 = vcombine.high %v5043, %v5043
    %v5047 = vunpack.c.l.s4 1966171168
    %v5048 = vunpack.c.0.s8 %v5047
    %v5049 = vlaneseq
    %v5050 = vshrl.u32 %v5049, 7
    %v5051 = vsub.s32 %v5048, %v5050
    %v5052 = vrot.slane %v5036, %v5051
    %v5054 = vunpack.c.l.s4 1966171168
    %v5055 = vunpack.c.0.s8 %v5054
    %v5056 = vlaneseq
    %v5057 = vshrl.u32 %v5056, 7
    %v5058 = vsub.s32 %v5055, %v5057
    %v5059 = vrot.slane %v5043, %v5058
    %v5061 = vunpack.c.l.s4 1966171168
    %v5062 = vunpack.c.0.s8 %v5061
    %v5063 = vlaneseq
    %v5064 = vshrl.u32 %v5063, 7
    %v5065 = vsub.s32 %v5062, %v5064
    %v5066 = vrot.slane %v5044, %v5065
    %v5068 = vunpack.c.l.s4 1966171168
    %v5069 = vunpack.c.0.s8 %v5068
    %v5070 = vlaneseq
    %v5071 = vshrl.u32 %v5070, 7
    %v5072 = vsub.s32 %v5069, %v5071
    %v5073 = vrot.slane %v5045, %v5072
    %v5074 = vcombine.high %v5052, %v5052
    %v5075 = vcombine.high %v5059, %v5059
    %v5076 = vcombine.high %v5066, %v5066
    %v5077 = vcombine.high %v5073, %v5073
    %5094 = vst [vmem:[#allocation3 + $0x4] sm:$0x1] %v5003
    %5095 = vst [vmem:[#allocation3 + $0x14] sm:$0x1] %v5017
    %5096 = vst [vmem:[#allocation3 + $0x24] sm:$0x1] %v5025
    %5097 = vst [vmem:[#allocation3 + $0x34] sm:$0x1] %v5027
    %5098 = vst [vmem:[#allocation3 + $0x44] sm:$0x1] %v5010
    %5099 = vst [vmem:[#allocation3 + $0x54] sm:$0x1] %v5024
    %5100 = vst [vmem:[#allocation3 + $0x64] sm:$0x1] %v5026
    %5101 = vst [vmem:[#allocation3 + $0x74] sm:$0x1] %v5028
    %5102 = vst [vmem:[#allocation3 + $0x84] sm:$0x1] %v5052
    %5103 = vst [vmem:[#allocation3 + $0x94] sm:$0x1] %v5066
    %5104 = vst [vmem:[#allocation3 + $0xa4] sm:$0x1] %v5074
    %5105 = vst [vmem:[#allocation3 + $0xb4] sm:$0x1] %v5076
    %5106 = vst [vmem:[#allocation3 + $0xc4] sm:$0x1] %v5059
    %5107 = vst [vmem:[#allocation3 + $0xd4] sm:$0x1] %v5073
    %5108 = vst [vmem:[#allocation3 + $0xe4] sm:$0x1] %v5075
    %5109 = vst [vmem:[#allocation3 + $0xf4] sm:$0x1] %v5077
    %v5112 = vcombine.high %v3173, %v3173
    %v5114 = vunpack.c.l.s4 1966171168
    %v5115 = vunpack.c.0.s8 %v5114
    %v5116 = vlaneseq
    %v5117 = vshrl.u32 %v5116, 7
    %v5118 = vsub.s32 %v5115, %v5117
    %v5119 = vrot.slane %v3173, %v5118
    %v5121 = vunpack.c.l.s4 1966171168
    %v5122 = vunpack.c.0.s8 %v5121
    %v5123 = vlaneseq
    %v5124 = vshrl.u32 %v5123, 7
    %v5125 = vsub.s32 %v5122, %v5124
    %v5126 = vrot.slane %v5112, %v5125
    %v5127 = vcombine.high %v5119, %v5119
    %v5128 = vcombine.high %v5126, %v5126
    %v5130 = vunpack.c.l.s4 1966171168
    %v5131 = vunpack.c.0.s8 %v5130
    %v5132 = vlaneseq
    %v5133 = vshrl.u32 %v5132, 7
    %v5134 = vsub.s32 %v5131, %v5133
    %v5135 = vrot.slane %v5119, %v5134
    %v5137 = vunpack.c.l.s4 1966171168
    %v5138 = vunpack.c.0.s8 %v5137
    %v5139 = vlaneseq
    %v5140 = vshrl.u32 %v5139, 7
    %v5141 = vsub.s32 %v5138, %v5140
    %v5142 = vrot.slane %v5126, %v5141
    %v5144 = vunpack.c.l.s4 1966171168
    %v5145 = vunpack.c.0.s8 %v5144
    %v5146 = vlaneseq
    %v5147 = vshrl.u32 %v5146, 7
    %v5148 = vsub.s32 %v5145, %v5147
    %v5149 = vrot.slane %v5127, %v5148
    %v5151 = vunpack.c.l.s4 1966171168
    %v5152 = vunpack.c.0.s8 %v5151
    %v5153 = vlaneseq
    %v5154 = vshrl.u32 %v5153, 7
    %v5155 = vsub.s32 %v5152, %v5154
    %v5156 = vrot.slane %v5128, %v5155
    %v5157 = vcombine.high %v5135, %v5135
    %v5158 = vcombine.high %v5142, %v5142
    %v5159 = vcombine.high %v5149, %v5149
    %v5160 = vcombine.high %v5156, %v5156
    %v5161 = vcombine.high %v3177, %v3177
    %v5163 = vunpack.c.l.s4 1966171168
    %v5164 = vunpack.c.0.s8 %v5163
    %v5165 = vlaneseq
    %v5166 = vshrl.u32 %v5165, 7
    %v5167 = vsub.s32 %v5164, %v5166
    %v5168 = vrot.slane %v3177, %v5167
    %v5170 = vunpack.c.l.s4 1966171168
    %v5171 = vunpack.c.0.s8 %v5170
    %v5172 = vlaneseq
    %v5173 = vshrl.u32 %v5172, 7
    %v5174 = vsub.s32 %v5171, %v5173
    %v5175 = vrot.slane %v5161, %v5174
    %v5176 = vcombine.high %v5168, %v5168
    %v5177 = vcombine.high %v5175, %v5175
    %v5179 = vunpack.c.l.s4 1966171168
    %v5180 = vunpack.c.0.s8 %v5179
    %v5181 = vlaneseq
    %v5182 = vshrl.u32 %v5181, 7
    %v5183 = vsub.s32 %v5180, %v5182
    %v5184 = vrot.slane %v5168, %v5183
    %v5186 = vunpack.c.l.s4 1966171168
    %v5187 = vunpack.c.0.s8 %v5186
    %v5188 = vlaneseq
    %v5189 = vshrl.u32 %v5188, 7
    %v5190 = vsub.s32 %v5187, %v5189
    %v5191 = vrot.slane %v5175, %v5190
    %v5193 = vunpack.c.l.s4 1966171168
    %v5194 = vunpack.c.0.s8 %v5193
    %v5195 = vlaneseq
    %v5196 = vshrl.u32 %v5195, 7
    %v5197 = vsub.s32 %v5194, %v5196
    %v5198 = vrot.slane %v5176, %v5197
    %v5200 = vunpack.c.l.s4 1966171168
    %v5201 = vunpack.c.0.s8 %v5200
    %v5202 = vlaneseq
    %v5203 = vshrl.u32 %v5202, 7
    %v5204 = vsub.s32 %v5201, %v5203
    %v5205 = vrot.slane %v5177, %v5204
    %v5206 = vcombine.high %v5184, %v5184
    %v5207 = vcombine.high %v5191, %v5191
    %v5208 = vcombine.high %v5198, %v5198
    %v5209 = vcombine.high %v5205, %v5205
    %5226 = vst [vmem:[#allocation3 + $0x5] sm:$0x1] %v5135
    %5227 = vst [vmem:[#allocation3 + $0x15] sm:$0x1] %v5149
    %5228 = vst [vmem:[#allocation3 + $0x25] sm:$0x1] %v5157
    %5229 = vst [vmem:[#allocation3 + $0x35] sm:$0x1] %v5159
    %5230 = vst [vmem:[#allocation3 + $0x45] sm:$0x1] %v5142
    %5231 = vst [vmem:[#allocation3 + $0x55] sm:$0x1] %v5156
    %5232 = vst [vmem:[#allocation3 + $0x65] sm:$0x1] %v5158
    %5233 = vst [vmem:[#allocation3 + $0x75] sm:$0x1] %v5160
    %5234 = vst [vmem:[#allocation3 + $0x85] sm:$0x1] %v5184
    %5235 = vst [vmem:[#allocation3 + $0x95] sm:$0x1] %v5198
    %5236 = vst [vmem:[#allocation3 + $0xa5] sm:$0x1] %v5206
    %5237 = vst [vmem:[#allocation3 + $0xb5] sm:$0x1] %v5208
    %5238 = vst [vmem:[#allocation3 + $0xc5] sm:$0x1] %v5191
    %5239 = vst [vmem:[#allocation3 + $0xd5] sm:$0x1] %v5205
    %5240 = vst [vmem:[#allocation3 + $0xe5] sm:$0x1] %v5207
    %5241 = vst [vmem:[#allocation3 + $0xf5] sm:$0x1] %v5209
    %v5244 = vcombine.high %v3214, %v3214
    %v5246 = vunpack.c.l.s4 1966171168
    %v5247 = vunpack.c.0.s8 %v5246
    %v5248 = vlaneseq
    %v5249 = vshrl.u32 %v5248, 7
    %v5250 = vsub.s32 %v5247, %v5249
    %v5251 = vrot.slane %v3214, %v5250
    %v5253 = vunpack.c.l.s4 1966171168
    %v5254 = vunpack.c.0.s8 %v5253
    %v5255 = vlaneseq
    %v5256 = vshrl.u32 %v5255, 7
    %v5257 = vsub.s32 %v5254, %v5256
    %v5258 = vrot.slane %v5244, %v5257
    %v5259 = vcombine.high %v5251, %v5251
    %v5260 = vcombine.high %v5258, %v5258
    %v5262 = vunpack.c.l.s4 1966171168
    %v5263 = vunpack.c.0.s8 %v5262
    %v5264 = vlaneseq
    %v5265 = vshrl.u32 %v5264, 7
    %v5266 = vsub.s32 %v5263, %v5265
    %v5267 = vrot.slane %v5251, %v5266
    %v5269 = vunpack.c.l.s4 1966171168
    %v5270 = vunpack.c.0.s8 %v5269
    %v5271 = vlaneseq
    %v5272 = vshrl.u32 %v5271, 7
    %v5273 = vsub.s32 %v5270, %v5272
    %v5274 = vrot.slane %v5258, %v5273
    %v5276 = vunpack.c.l.s4 1966171168
    %v5277 = vunpack.c.0.s8 %v5276
    %v5278 = vlaneseq
    %v5279 = vshrl.u32 %v5278, 7
    %v5280 = vsub.s32 %v5277, %v5279
    %v5281 = vrot.slane %v5259, %v5280
    %v5283 = vunpack.c.l.s4 1966171168
    %v5284 = vunpack.c.0.s8 %v5283
    %v5285 = vlaneseq
    %v5286 = vshrl.u32 %v5285, 7
    %v5287 = vsub.s32 %v5284, %v5286
    %v5288 = vrot.slane %v5260, %v5287
    %v5289 = vcombine.high %v5267, %v5267
    %v5290 = vcombine.high %v5274, %v5274
    %v5291 = vcombine.high %v5281, %v5281
    %v5292 = vcombine.high %v5288, %v5288
    %v5293 = vcombine.high %v3218, %v3218
    %v5295 = vunpack.c.l.s4 1966171168
    %v5296 = vunpack.c.0.s8 %v5295
    %v5297 = vlaneseq
    %v5298 = vshrl.u32 %v5297, 7
    %v5299 = vsub.s32 %v5296, %v5298
    %v5300 = vrot.slane %v3218, %v5299
    %v5302 = vunpack.c.l.s4 1966171168
    %v5303 = vunpack.c.0.s8 %v5302
    %v5304 = vlaneseq
    %v5305 = vshrl.u32 %v5304, 7
    %v5306 = vsub.s32 %v5303, %v5305
    %v5307 = vrot.slane %v5293, %v5306
    %v5308 = vcombine.high %v5300, %v5300
    %v5309 = vcombine.high %v5307, %v5307
    %v5311 = vunpack.c.l.s4 1966171168
    %v5312 = vunpack.c.0.s8 %v5311
    %v5313 = vlaneseq
    %v5314 = vshrl.u32 %v5313, 7
    %v5315 = vsub.s32 %v5312, %v5314
    %v5316 = vrot.slane %v5300, %v5315
    %v5318 = vunpack.c.l.s4 1966171168
    %v5319 = vunpack.c.0.s8 %v5318
    %v5320 = vlaneseq
    %v5321 = vshrl.u32 %v5320, 7
    %v5322 = vsub.s32 %v5319, %v5321
    %v5323 = vrot.slane %v5307, %v5322
    %v5325 = vunpack.c.l.s4 1966171168
    %v5326 = vunpack.c.0.s8 %v5325
    %v5327 = vlaneseq
    %v5328 = vshrl.u32 %v5327, 7
    %v5329 = vsub.s32 %v5326, %v5328
    %v5330 = vrot.slane %v5308, %v5329
    %v5332 = vunpack.c.l.s4 1966171168
    %v5333 = vunpack.c.0.s8 %v5332
    %v5334 = vlaneseq
    %v5335 = vshrl.u32 %v5334, 7
    %v5336 = vsub.s32 %v5333, %v5335
    %v5337 = vrot.slane %v5309, %v5336
    %v5338 = vcombine.high %v5316, %v5316
    %v5339 = vcombine.high %v5323, %v5323
    %v5340 = vcombine.high %v5330, %v5330
    %v5341 = vcombine.high %v5337, %v5337
    %5358 = vst [vmem:[#allocation3 + $0x6] sm:$0x1] %v5267
    %5359 = vst [vmem:[#allocation3 + $0x16] sm:$0x1] %v5281
    %5360 = vst [vmem:[#allocation3 + $0x26] sm:$0x1] %v5289
    %5361 = vst [vmem:[#allocation3 + $0x36] sm:$0x1] %v5291
    %5362 = vst [vmem:[#allocation3 + $0x46] sm:$0x1] %v5274
    %5363 = vst [vmem:[#allocation3 + $0x56] sm:$0x1] %v5288
    %5364 = vst [vmem:[#allocation3 + $0x66] sm:$0x1] %v5290
    %5365 = vst [vmem:[#allocation3 + $0x76] sm:$0x1] %v5292
    %5366 = vst [vmem:[#allocation3 + $0x86] sm:$0x1] %v5316
    %5367 = vst [vmem:[#allocation3 + $0x96] sm:$0x1] %v5330
    %5368 = vst [vmem:[#allocation3 + $0xa6] sm:$0x1] %v5338
    %5369 = vst [vmem:[#allocation3 + $0xb6] sm:$0x1] %v5340
    %5370 = vst [vmem:[#allocation3 + $0xc6] sm:$0x1] %v5323
    %5371 = vst [vmem:[#allocation3 + $0xd6] sm:$0x1] %v5337
    %5372 = vst [vmem:[#allocation3 + $0xe6] sm:$0x1] %v5339
    %5373 = vst [vmem:[#allocation3 + $0xf6] sm:$0x1] %v5341
    %v5376 = vcombine.high %v3216, %v3216
    %v5378 = vunpack.c.l.s4 1966171168
    %v5379 = vunpack.c.0.s8 %v5378
    %v5380 = vlaneseq
    %v5381 = vshrl.u32 %v5380, 7
    %v5382 = vsub.s32 %v5379, %v5381
    %v5383 = vrot.slane %v3216, %v5382
    %v5385 = vunpack.c.l.s4 1966171168
    %v5386 = vunpack.c.0.s8 %v5385
    %v5387 = vlaneseq
    %v5388 = vshrl.u32 %v5387, 7
    %v5389 = vsub.s32 %v5386, %v5388
    %v5390 = vrot.slane %v5376, %v5389
    %v5391 = vcombine.high %v5383, %v5383
    %v5392 = vcombine.high %v5390, %v5390
    %v5394 = vunpack.c.l.s4 1966171168
    %v5395 = vunpack.c.0.s8 %v5394
    %v5396 = vlaneseq
    %v5397 = vshrl.u32 %v5396, 7
    %v5398 = vsub.s32 %v5395, %v5397
    %v5399 = vrot.slane %v5383, %v5398
    %v5401 = vunpack.c.l.s4 1966171168
    %v5402 = vunpack.c.0.s8 %v5401
    %v5403 = vlaneseq
    %v5404 = vshrl.u32 %v5403, 7
    %v5405 = vsub.s32 %v5402, %v5404
    %v5406 = vrot.slane %v5390, %v5405
    %v5408 = vunpack.c.l.s4 1966171168
    %v5409 = vunpack.c.0.s8 %v5408
    %v5410 = vlaneseq
    %v5411 = vshrl.u32 %v5410, 7
    %v5412 = vsub.s32 %v5409, %v5411
    %v5413 = vrot.slane %v5391, %v5412
    %v5415 = vunpack.c.l.s4 1966171168
    %v5416 = vunpack.c.0.s8 %v5415
    %v5417 = vlaneseq
    %v5418 = vshrl.u32 %v5417, 7
    %v5419 = vsub.s32 %v5416, %v5418
    %v5420 = vrot.slane %v5392, %v5419
    %v5421 = vcombine.high %v5399, %v5399
    %v5422 = vcombine.high %v5406, %v5406
    %v5423 = vcombine.high %v5413, %v5413
    %v5424 = vcombine.high %v5420, %v5420
    %v5425 = vcombine.high %v3220, %v3220
    %v5427 = vunpack.c.l.s4 1966171168
    %v5428 = vunpack.c.0.s8 %v5427
    %v5429 = vlaneseq
    %v5430 = vshrl.u32 %v5429, 7
    %v5431 = vsub.s32 %v5428, %v5430
    %v5432 = vrot.slane %v3220, %v5431
    %v5434 = vunpack.c.l.s4 1966171168
    %v5435 = vunpack.c.0.s8 %v5434
    %v5436 = vlaneseq
    %v5437 = vshrl.u32 %v5436, 7
    %v5438 = vsub.s32 %v5435, %v5437
    %v5439 = vrot.slane %v5425, %v5438
    %v5440 = vcombine.high %v5432, %v5432
    %v5441 = vcombine.high %v5439, %v5439
    %v5443 = vunpack.c.l.s4 1966171168
    %v5444 = vunpack.c.0.s8 %v5443
    %v5445 = vlaneseq
    %v5446 = vshrl.u32 %v5445, 7
    %v5447 = vsub.s32 %v5444, %v5446
    %v5448 = vrot.slane %v5432, %v5447
    %v5450 = vunpack.c.l.s4 1966171168
    %v5451 = vunpack.c.0.s8 %v5450
    %v5452 = vlaneseq
    %v5453 = vshrl.u32 %v5452, 7
    %v5454 = vsub.s32 %v5451, %v5453
    %v5455 = vrot.slane %v5439, %v5454
    %v5457 = vunpack.c.l.s4 1966171168
    %v5458 = vunpack.c.0.s8 %v5457
    %v5459 = vlaneseq
    %v5460 = vshrl.u32 %v5459, 7
    %v5461 = vsub.s32 %v5458, %v5460
    %v5462 = vrot.slane %v5440, %v5461
    %v5464 = vunpack.c.l.s4 1966171168
    %v5465 = vunpack.c.0.s8 %v5464
    %v5466 = vlaneseq
    %v5467 = vshrl.u32 %v5466, 7
    %v5468 = vsub.s32 %v5465, %v5467
    %v5469 = vrot.slane %v5441, %v5468
    %v5470 = vcombine.high %v5448, %v5448
    %v5471 = vcombine.high %v5455, %v5455
    %v5472 = vcombine.high %v5462, %v5462
    %v5473 = vcombine.high %v5469, %v5469
    %5490 = vst [vmem:[#allocation3 + $0x7] sm:$0x1] %v5399
    %5491 = vst [vmem:[#allocation3 + $0x17] sm:$0x1] %v5413
    %5492 = vst [vmem:[#allocation3 + $0x27] sm:$0x1] %v5421
    %5493 = vst [vmem:[#allocation3 + $0x37] sm:$0x1] %v5423
    %5494 = vst [vmem:[#allocation3 + $0x47] sm:$0x1] %v5406
    %5495 = vst [vmem:[#allocation3 + $0x57] sm:$0x1] %v5420
    %5496 = vst [vmem:[#allocation3 + $0x67] sm:$0x1] %v5422
    %5497 = vst [vmem:[#allocation3 + $0x77] sm:$0x1] %v5424
    %5498 = vst [vmem:[#allocation3 + $0x87] sm:$0x1] %v5448
    %5499 = vst [vmem:[#allocation3 + $0x97] sm:$0x1] %v5462
    %5500 = vst [vmem:[#allocation3 + $0xa7] sm:$0x1] %v5470
    %5501 = vst [vmem:[#allocation3 + $0xb7] sm:$0x1] %v5472
    %5502 = vst [vmem:[#allocation3 + $0xc7] sm:$0x1] %v5455
    %5503 = vst [vmem:[#allocation3 + $0xd7] sm:$0x1] %v5469
    %5504 = vst [vmem:[#allocation3 + $0xe7] sm:$0x1] %v5471
    %5505 = vst [vmem:[#allocation3 + $0xf7] sm:$0x1] %v5473
    %v5508 = vcombine.high %v3257, %v3257
    %v5510 = vunpack.c.l.s4 1966171168
    %v5511 = vunpack.c.0.s8 %v5510
    %v5512 = vlaneseq
    %v5513 = vshrl.u32 %v5512, 7
    %v5514 = vsub.s32 %v5511, %v5513
    %v5515 = vrot.slane %v3257, %v5514
    %v5517 = vunpack.c.l.s4 1966171168
    %v5518 = vunpack.c.0.s8 %v5517
    %v5519 = vlaneseq
    %v5520 = vshrl.u32 %v5519, 7
    %v5521 = vsub.s32 %v5518, %v5520
    %v5522 = vrot.slane %v5508, %v5521
    %v5523 = vcombine.high %v5515, %v5515
    %v5524 = vcombine.high %v5522, %v5522
    %v5526 = vunpack.c.l.s4 1966171168
    %v5527 = vunpack.c.0.s8 %v5526
    %v5528 = vlaneseq
    %v5529 = vshrl.u32 %v5528, 7
    %v5530 = vsub.s32 %v5527, %v5529
    %v5531 = vrot.slane %v5515, %v5530
    %v5533 = vunpack.c.l.s4 1966171168
    %v5534 = vunpack.c.0.s8 %v5533
    %v5535 = vlaneseq
    %v5536 = vshrl.u32 %v5535, 7
    %v5537 = vsub.s32 %v5534, %v5536
    %v5538 = vrot.slane %v5522, %v5537
    %v5540 = vunpack.c.l.s4 1966171168
    %v5541 = vunpack.c.0.s8 %v5540
    %v5542 = vlaneseq
    %v5543 = vshrl.u32 %v5542, 7
    %v5544 = vsub.s32 %v5541, %v5543
    %v5545 = vrot.slane %v5523, %v5544
    %v5547 = vunpack.c.l.s4 1966171168
    %v5548 = vunpack.c.0.s8 %v5547
    %v5549 = vlaneseq
    %v5550 = vshrl.u32 %v5549, 7
    %v5551 = vsub.s32 %v5548, %v5550
    %v5552 = vrot.slane %v5524, %v5551
    %v5553 = vcombine.high %v5531, %v5531
    %v5554 = vcombine.high %v5538, %v5538
    %v5555 = vcombine.high %v5545, %v5545
    %v5556 = vcombine.high %v5552, %v5552
    %v5557 = vcombine.high %v3261, %v3261
    %v5559 = vunpack.c.l.s4 1966171168
    %v5560 = vunpack.c.0.s8 %v5559
    %v5561 = vlaneseq
    %v5562 = vshrl.u32 %v5561, 7
    %v5563 = vsub.s32 %v5560, %v5562
    %v5564 = vrot.slane %v3261, %v5563
    %v5566 = vunpack.c.l.s4 1966171168
    %v5567 = vunpack.c.0.s8 %v5566
    %v5568 = vlaneseq
    %v5569 = vshrl.u32 %v5568, 7
    %v5570 = vsub.s32 %v5567, %v5569
    %v5571 = vrot.slane %v5557, %v5570
    %v5572 = vcombine.high %v5564, %v5564
    %v5573 = vcombine.high %v5571, %v5571
    %v5575 = vunpack.c.l.s4 1966171168
    %v5576 = vunpack.c.0.s8 %v5575
    %v5577 = vlaneseq
    %v5578 = vshrl.u32 %v5577, 7
    %v5579 = vsub.s32 %v5576, %v5578
    %v5580 = vrot.slane %v5564, %v5579
    %v5582 = vunpack.c.l.s4 1966171168
    %v5583 = vunpack.c.0.s8 %v5582
    %v5584 = vlaneseq
    %v5585 = vshrl.u32 %v5584, 7
    %v5586 = vsub.s32 %v5583, %v5585
    %v5587 = vrot.slane %v5571, %v5586
    %v5589 = vunpack.c.l.s4 1966171168
    %v5590 = vunpack.c.0.s8 %v5589
    %v5591 = vlaneseq
    %v5592 = vshrl.u32 %v5591, 7
    %v5593 = vsub.s32 %v5590, %v5592
    %v5594 = vrot.slane %v5572, %v5593
    %v5596 = vunpack.c.l.s4 1966171168
    %v5597 = vunpack.c.0.s8 %v5596
    %v5598 = vlaneseq
    %v5599 = vshrl.u32 %v5598, 7
    %v5600 = vsub.s32 %v5597, %v5599
    %v5601 = vrot.slane %v5573, %v5600
    %v5602 = vcombine.high %v5580, %v5580
    %v5603 = vcombine.high %v5587, %v5587
    %v5604 = vcombine.high %v5594, %v5594
    %v5605 = vcombine.high %v5601, %v5601
    %5622 = vst [vmem:[#allocation3 + $0x8] sm:$0x1] %v5531
    %5623 = vst [vmem:[#allocation3 + $0x18] sm:$0x1] %v5545
    %5624 = vst [vmem:[#allocation3 + $0x28] sm:$0x1] %v5553
    %5625 = vst [vmem:[#allocation3 + $0x38] sm:$0x1] %v5555
    %5626 = vst [vmem:[#allocation3 + $0x48] sm:$0x1] %v5538
    %5627 = vst [vmem:[#allocation3 + $0x58] sm:$0x1] %v5552
    %5628 = vst [vmem:[#allocation3 + $0x68] sm:$0x1] %v5554
    %5629 = vst [vmem:[#allocation3 + $0x78] sm:$0x1] %v5556
    %5630 = vst [vmem:[#allocation3 + $0x88] sm:$0x1] %v5580
    %5631 = vst [vmem:[#allocation3 + $0x98] sm:$0x1] %v5594
    %5632 = vst [vmem:[#allocation3 + $0xa8] sm:$0x1] %v5602
    %5633 = vst [vmem:[#allocation3 + $0xb8] sm:$0x1] %v5604
    %5634 = vst [vmem:[#allocation3 + $0xc8] sm:$0x1] %v5587
    %5635 = vst [vmem:[#allocation3 + $0xd8] sm:$0x1] %v5601
    %5636 = vst [vmem:[#allocation3 + $0xe8] sm:$0x1] %v5603
    %5637 = vst [vmem:[#allocation3 + $0xf8] sm:$0x1] %v5605
    %v5640 = vcombine.high %v3259, %v3259
    %v5642 = vunpack.c.l.s4 1966171168
    %v5643 = vunpack.c.0.s8 %v5642
    %v5644 = vlaneseq
    %v5645 = vshrl.u32 %v5644, 7
    %v5646 = vsub.s32 %v5643, %v5645
    %v5647 = vrot.slane %v3259, %v5646
    %v5649 = vunpack.c.l.s4 1966171168
    %v5650 = vunpack.c.0.s8 %v5649
    %v5651 = vlaneseq
    %v5652 = vshrl.u32 %v5651, 7
    %v5653 = vsub.s32 %v5650, %v5652
    %v5654 = vrot.slane %v5640, %v5653
    %v5655 = vcombine.high %v5647, %v5647
    %v5656 = vcombine.high %v5654, %v5654
    %v5658 = vunpack.c.l.s4 1966171168
    %v5659 = vunpack.c.0.s8 %v5658
    %v5660 = vlaneseq
    %v5661 = vshrl.u32 %v5660, 7
    %v5662 = vsub.s32 %v5659, %v5661
    %v5663 = vrot.slane %v5647, %v5662
    %v5665 = vunpack.c.l.s4 1966171168
    %v5666 = vunpack.c.0.s8 %v5665
    %v5667 = vlaneseq
    %v5668 = vshrl.u32 %v5667, 7
    %v5669 = vsub.s32 %v5666, %v5668
    %v5670 = vrot.slane %v5654, %v5669
    %v5672 = vunpack.c.l.s4 1966171168
    %v5673 = vunpack.c.0.s8 %v5672
    %v5674 = vlaneseq
    %v5675 = vshrl.u32 %v5674, 7
    %v5676 = vsub.s32 %v5673, %v5675
    %v5677 = vrot.slane %v5655, %v5676
    %v5679 = vunpack.c.l.s4 1966171168
    %v5680 = vunpack.c.0.s8 %v5679
    %v5681 = vlaneseq
    %v5682 = vshrl.u32 %v5681, 7
    %v5683 = vsub.s32 %v5680, %v5682
    %v5684 = vrot.slane %v5656, %v5683
    %v5685 = vcombine.high %v5663, %v5663
    %v5686 = vcombine.high %v5670, %v5670
    %v5687 = vcombine.high %v5677, %v5677
    %v5688 = vcombine.high %v5684, %v5684
    %v5689 = vcombine.high %v3263, %v3263
    %v5691 = vunpack.c.l.s4 1966171168
    %v5692 = vunpack.c.0.s8 %v5691
    %v5693 = vlaneseq
    %v5694 = vshrl.u32 %v5693, 7
    %v5695 = vsub.s32 %v5692, %v5694
    %v5696 = vrot.slane %v3263, %v5695
    %v5698 = vunpack.c.l.s4 1966171168
    %v5699 = vunpack.c.0.s8 %v5698
    %v5700 = vlaneseq
    %v5701 = vshrl.u32 %v5700, 7
    %v5702 = vsub.s32 %v5699, %v5701
    %v5703 = vrot.slane %v5689, %v5702
    %v5704 = vcombine.high %v5696, %v5696
    %v5705 = vcombine.high %v5703, %v5703
    %v5707 = vunpack.c.l.s4 1966171168
    %v5708 = vunpack.c.0.s8 %v5707
    %v5709 = vlaneseq
    %v5710 = vshrl.u32 %v5709, 7
    %v5711 = vsub.s32 %v5708, %v5710
    %v5712 = vrot.slane %v5696, %v5711
    %v5714 = vunpack.c.l.s4 1966171168
    %v5715 = vunpack.c.0.s8 %v5714
    %v5716 = vlaneseq
    %v5717 = vshrl.u32 %v5716, 7
    %v5718 = vsub.s32 %v5715, %v5717
    %v5719 = vrot.slane %v5703, %v5718
    %v5721 = vunpack.c.l.s4 1966171168
    %v5722 = vunpack.c.0.s8 %v5721
    %v5723 = vlaneseq
    %v5724 = vshrl.u32 %v5723, 7
    %v5725 = vsub.s32 %v5722, %v5724
    %v5726 = vrot.slane %v5704, %v5725
    %v5728 = vunpack.c.l.s4 1966171168
    %v5729 = vunpack.c.0.s8 %v5728
    %v5730 = vlaneseq
    %v5731 = vshrl.u32 %v5730, 7
    %v5732 = vsub.s32 %v5729, %v5731
    %v5733 = vrot.slane %v5705, %v5732
    %v5734 = vcombine.high %v5712, %v5712
    %v5735 = vcombine.high %v5719, %v5719
    %v5736 = vcombine.high %v5726, %v5726
    %v5737 = vcombine.high %v5733, %v5733
    %5754 = vst [vmem:[#allocation3 + $0x9] sm:$0x1] %v5663
    %5755 = vst [vmem:[#allocation3 + $0x19] sm:$0x1] %v5677
    %5756 = vst [vmem:[#allocation3 + $0x29] sm:$0x1] %v5685
    %5757 = vst [vmem:[#allocation3 + $0x39] sm:$0x1] %v5687
    %5758 = vst [vmem:[#allocation3 + $0x49] sm:$0x1] %v5670
    %5759 = vst [vmem:[#allocation3 + $0x59] sm:$0x1] %v5684
    %5760 = vst [vmem:[#allocation3 + $0x69] sm:$0x1] %v5686
    %5761 = vst [vmem:[#allocation3 + $0x79] sm:$0x1] %v5688
    %5762 = vst [vmem:[#allocation3 + $0x89] sm:$0x1] %v5712
    %5763 = vst [vmem:[#allocation3 + $0x99] sm:$0x1] %v5726
    %5764 = vst [vmem:[#allocation3 + $0xa9] sm:$0x1] %v5734
    %5765 = vst [vmem:[#allocation3 + $0xb9] sm:$0x1] %v5736
    %5766 = vst [vmem:[#allocation3 + $0xc9] sm:$0x1] %v5719
    %5767 = vst [vmem:[#allocation3 + $0xd9] sm:$0x1] %v5733
    %5768 = vst [vmem:[#allocation3 + $0xe9] sm:$0x1] %v5735
    %5769 = vst [vmem:[#allocation3 + $0xf9] sm:$0x1] %v5737
    %v5772 = vcombine.high %v3300, %v3300
    %v5774 = vunpack.c.l.s4 1966171168
    %v5775 = vunpack.c.0.s8 %v5774
    %v5776 = vlaneseq
    %v5777 = vshrl.u32 %v5776, 7
    %v5778 = vsub.s32 %v5775, %v5777
    %v5779 = vrot.slane %v3300, %v5778
    %v5781 = vunpack.c.l.s4 1966171168
    %v5782 = vunpack.c.0.s8 %v5781
    %v5783 = vlaneseq
    %v5784 = vshrl.u32 %v5783, 7
    %v5785 = vsub.s32 %v5782, %v5784
    %v5786 = vrot.slane %v5772, %v5785
    %v5787 = vcombine.high %v5779, %v5779
    %v5788 = vcombine.high %v5786, %v5786
    %v5790 = vunpack.c.l.s4 1966171168
    %v5791 = vunpack.c.0.s8 %v5790
    %v5792 = vlaneseq
    %v5793 = vshrl.u32 %v5792, 7
    %v5794 = vsub.s32 %v5791, %v5793
    %v5795 = vrot.slane %v5779, %v5794
    %v5797 = vunpack.c.l.s4 1966171168
    %v5798 = vunpack.c.0.s8 %v5797
    %v5799 = vlaneseq
    %v5800 = vshrl.u32 %v5799, 7
    %v5801 = vsub.s32 %v5798, %v5800
    %v5802 = vrot.slane %v5786, %v5801
    %v5804 = vunpack.c.l.s4 1966171168
    %v5805 = vunpack.c.0.s8 %v5804
    %v5806 = vlaneseq
    %v5807 = vshrl.u32 %v5806, 7
    %v5808 = vsub.s32 %v5805, %v5807
    %v5809 = vrot.slane %v5787, %v5808
    %v5811 = vunpack.c.l.s4 1966171168
    %v5812 = vunpack.c.0.s8 %v5811
    %v5813 = vlaneseq
    %v5814 = vshrl.u32 %v5813, 7
    %v5815 = vsub.s32 %v5812, %v5814
    %v5816 = vrot.slane %v5788, %v5815
    %v5817 = vcombine.high %v5795, %v5795
    %v5818 = vcombine.high %v5802, %v5802
    %v5819 = vcombine.high %v5809, %v5809
    %v5820 = vcombine.high %v5816, %v5816
    %v5821 = vcombine.high %v3304, %v3304
    %v5823 = vunpack.c.l.s4 1966171168
    %v5824 = vunpack.c.0.s8 %v5823
    %v5825 = vlaneseq
    %v5826 = vshrl.u32 %v5825, 7
    %v5827 = vsub.s32 %v5824, %v5826
    %v5828 = vrot.slane %v3304, %v5827
    %v5830 = vunpack.c.l.s4 1966171168
    %v5831 = vunpack.c.0.s8 %v5830
    %v5832 = vlaneseq
    %v5833 = vshrl.u32 %v5832, 7
    %v5834 = vsub.s32 %v5831, %v5833
    %v5835 = vrot.slane %v5821, %v5834
    %v5836 = vcombine.high %v5828, %v5828
    %v5837 = vcombine.high %v5835, %v5835
    %v5839 = vunpack.c.l.s4 1966171168
    %v5840 = vunpack.c.0.s8 %v5839
    %v5841 = vlaneseq
    %v5842 = vshrl.u32 %v5841, 7
    %v5843 = vsub.s32 %v5840, %v5842
    %v5844 = vrot.slane %v5828, %v5843
    %v5846 = vunpack.c.l.s4 1966171168
    %v5847 = vunpack.c.0.s8 %v5846
    %v5848 = vlaneseq
    %v5849 = vshrl.u32 %v5848, 7
    %v5850 = vsub.s32 %v5847, %v5849
    %v5851 = vrot.slane %v5835, %v5850
    %v5853 = vunpack.c.l.s4 1966171168
    %v5854 = vunpack.c.0.s8 %v5853
    %v5855 = vlaneseq
    %v5856 = vshrl.u32 %v5855, 7
    %v5857 = vsub.s32 %v5854, %v5856
    %v5858 = vrot.slane %v5836, %v5857
    %v5860 = vunpack.c.l.s4 1966171168
    %v5861 = vunpack.c.0.s8 %v5860
    %v5862 = vlaneseq
    %v5863 = vshrl.u32 %v5862, 7
    %v5864 = vsub.s32 %v5861, %v5863
    %v5865 = vrot.slane %v5837, %v5864
    %v5866 = vcombine.high %v5844, %v5844
    %v5867 = vcombine.high %v5851, %v5851
    %v5868 = vcombine.high %v5858, %v5858
    %v5869 = vcombine.high %v5865, %v5865
    %5886 = vst [vmem:[#allocation3 + $0xa] sm:$0x1] %v5795
    %5887 = vst [vmem:[#allocation3 + $0x1a] sm:$0x1] %v5809
    %5888 = vst [vmem:[#allocation3 + $0x2a] sm:$0x1] %v5817
    %5889 = vst [vmem:[#allocation3 + $0x3a] sm:$0x1] %v5819
    %5890 = vst [vmem:[#allocation3 + $0x4a] sm:$0x1] %v5802
    %5891 = vst [vmem:[#allocation3 + $0x5a] sm:$0x1] %v5816
    %5892 = vst [vmem:[#allocation3 + $0x6a] sm:$0x1] %v5818
    %5893 = vst [vmem:[#allocation3 + $0x7a] sm:$0x1] %v5820
    %5894 = vst [vmem:[#allocation3 + $0x8a] sm:$0x1] %v5844
    %5895 = vst [vmem:[#allocation3 + $0x9a] sm:$0x1] %v5858
    %5896 = vst [vmem:[#allocation3 + $0xaa] sm:$0x1] %v5866
    %5897 = vst [vmem:[#allocation3 + $0xba] sm:$0x1] %v5868
    %5898 = vst [vmem:[#allocation3 + $0xca] sm:$0x1] %v5851
    %5899 = vst [vmem:[#allocation3 + $0xda] sm:$0x1] %v5865
    %5900 = vst [vmem:[#allocation3 + $0xea] sm:$0x1] %v5867
    %5901 = vst [vmem:[#allocation3 + $0xfa] sm:$0x1] %v5869
    %v5904 = vcombine.high %v3302, %v3302
    %v5906 = vunpack.c.l.s4 1966171168
    %v5907 = vunpack.c.0.s8 %v5906
    %v5908 = vlaneseq
    %v5909 = vshrl.u32 %v5908, 7
    %v5910 = vsub.s32 %v5907, %v5909
    %v5911 = vrot.slane %v3302, %v5910
    %v5913 = vunpack.c.l.s4 1966171168
    %v5914 = vunpack.c.0.s8 %v5913
    %v5915 = vlaneseq
    %v5916 = vshrl.u32 %v5915, 7
    %v5917 = vsub.s32 %v5914, %v5916
    %v5918 = vrot.slane %v5904, %v5917
    %v5919 = vcombine.high %v5911, %v5911
    %v5920 = vcombine.high %v5918, %v5918
    %v5922 = vunpack.c.l.s4 1966171168
    %v5923 = vunpack.c.0.s8 %v5922
    %v5924 = vlaneseq
    %v5925 = vshrl.u32 %v5924, 7
    %v5926 = vsub.s32 %v5923, %v5925
    %v5927 = vrot.slane %v5911, %v5926
    %v5929 = vunpack.c.l.s4 1966171168
    %v5930 = vunpack.c.0.s8 %v5929
    %v5931 = vlaneseq
    %v5932 = vshrl.u32 %v5931, 7
    %v5933 = vsub.s32 %v5930, %v5932
    %v5934 = vrot.slane %v5918, %v5933
    %v5936 = vunpack.c.l.s4 1966171168
    %v5937 = vunpack.c.0.s8 %v5936
    %v5938 = vlaneseq
    %v5939 = vshrl.u32 %v5938, 7
    %v5940 = vsub.s32 %v5937, %v5939
    %v5941 = vrot.slane %v5919, %v5940
    %v5943 = vunpack.c.l.s4 1966171168
    %v5944 = vunpack.c.0.s8 %v5943
    %v5945 = vlaneseq
    %v5946 = vshrl.u32 %v5945, 7
    %v5947 = vsub.s32 %v5944, %v5946
    %v5948 = vrot.slane %v5920, %v5947
    %v5949 = vcombine.high %v5927, %v5927
    %v5950 = vcombine.high %v5934, %v5934
    %v5951 = vcombine.high %v5941, %v5941
    %v5952 = vcombine.high %v5948, %v5948
    %v5953 = vcombine.high %v3306, %v3306
    %v5955 = vunpack.c.l.s4 1966171168
    %v5956 = vunpack.c.0.s8 %v5955
    %v5957 = vlaneseq
    %v5958 = vshrl.u32 %v5957, 7
    %v5959 = vsub.s32 %v5956, %v5958
    %v5960 = vrot.slane %v3306, %v5959
    %v5962 = vunpack.c.l.s4 1966171168
    %v5963 = vunpack.c.0.s8 %v5962
    %v5964 = vlaneseq
    %v5965 = vshrl.u32 %v5964, 7
    %v5966 = vsub.s32 %v5963, %v5965
    %v5967 = vrot.slane %v5953, %v5966
    %v5968 = vcombine.high %v5960, %v5960
    %v5969 = vcombine.high %v5967, %v5967
    %v5971 = vunpack.c.l.s4 1966171168
    %v5972 = vunpack.c.0.s8 %v5971
    %v5973 = vlaneseq
    %v5974 = vshrl.u32 %v5973, 7
    %v5975 = vsub.s32 %v5972, %v5974
    %v5976 = vrot.slane %v5960, %v5975
    %v5978 = vunpack.c.l.s4 1966171168
    %v5979 = vunpack.c.0.s8 %v5978
    %v5980 = vlaneseq
    %v5981 = vshrl.u32 %v5980, 7
    %v5982 = vsub.s32 %v5979, %v5981
    %v5983 = vrot.slane %v5967, %v5982
    %v5985 = vunpack.c.l.s4 1966171168
    %v5986 = vunpack.c.0.s8 %v5985
    %v5987 = vlaneseq
    %v5988 = vshrl.u32 %v5987, 7
    %v5989 = vsub.s32 %v5986, %v5988
    %v5990 = vrot.slane %v5968, %v5989
    %v5992 = vunpack.c.l.s4 1966171168
    %v5993 = vunpack.c.0.s8 %v5992
    %v5994 = vlaneseq
    %v5995 = vshrl.u32 %v5994, 7
    %v5996 = vsub.s32 %v5993, %v5995
    %v5997 = vrot.slane %v5969, %v5996
    %v5998 = vcombine.high %v5976, %v5976
    %v5999 = vcombine.high %v5983, %v5983
    %v6000 = vcombine.high %v5990, %v5990
    %v6001 = vcombine.high %v5997, %v5997
    %6018 = vst [vmem:[#allocation3 + $0xb] sm:$0x1] %v5927
    %6019 = vst [vmem:[#allocation3 + $0x1b] sm:$0x1] %v5941
    %6020 = vst [vmem:[#allocation3 + $0x2b] sm:$0x1] %v5949
    %6021 = vst [vmem:[#allocation3 + $0x3b] sm:$0x1] %v5951
    %6022 = vst [vmem:[#allocation3 + $0x4b] sm:$0x1] %v5934
    %6023 = vst [vmem:[#allocation3 + $0x5b] sm:$0x1] %v5948
    %6024 = vst [vmem:[#allocation3 + $0x6b] sm:$0x1] %v5950
    %6025 = vst [vmem:[#allocation3 + $0x7b] sm:$0x1] %v5952
    %6026 = vst [vmem:[#allocation3 + $0x8b] sm:$0x1] %v5976
    %6027 = vst [vmem:[#allocation3 + $0x9b] sm:$0x1] %v5990
    %6028 = vst [vmem:[#allocation3 + $0xab] sm:$0x1] %v5998
    %6029 = vst [vmem:[#allocation3 + $0xbb] sm:$0x1] %v6000
    %6030 = vst [vmem:[#allocation3 + $0xcb] sm:$0x1] %v5983
    %6031 = vst [vmem:[#allocation3 + $0xdb] sm:$0x1] %v5997
    %6032 = vst [vmem:[#allocation3 + $0xeb] sm:$0x1] %v5999
    %6033 = vst [vmem:[#allocation3 + $0xfb] sm:$0x1] %v6001
    %v6036 = vcombine.high %v3343, %v3343
    %v6038 = vunpack.c.l.s4 1966171168
    %v6039 = vunpack.c.0.s8 %v6038
    %v6040 = vlaneseq
    %v6041 = vshrl.u32 %v6040, 7
    %v6042 = vsub.s32 %v6039, %v6041
    %v6043 = vrot.slane %v3343, %v6042
    %v6045 = vunpack.c.l.s4 1966171168
    %v6046 = vunpack.c.0.s8 %v6045
    %v6047 = vlaneseq
    %v6048 = vshrl.u32 %v6047, 7
    %v6049 = vsub.s32 %v6046, %v6048
    %v6050 = vrot.slane %v6036, %v6049
    %v6051 = vcombine.high %v6043, %v6043
    %v6052 = vcombine.high %v6050, %v6050
    %v6054 = vunpack.c.l.s4 1966171168
    %v6055 = vunpack.c.0.s8 %v6054
    %v6056 = vlaneseq
    %v6057 = vshrl.u32 %v6056, 7
    %v6058 = vsub.s32 %v6055, %v6057
    %v6059 = vrot.slane %v6043, %v6058
    %v6061 = vunpack.c.l.s4 1966171168
    %v6062 = vunpack.c.0.s8 %v6061
    %v6063 = vlaneseq
    %v6064 = vshrl.u32 %v6063, 7
    %v6065 = vsub.s32 %v6062, %v6064
    %v6066 = vrot.slane %v6050, %v6065
    %v6068 = vunpack.c.l.s4 1966171168
    %v6069 = vunpack.c.0.s8 %v6068
    %v6070 = vlaneseq
    %v6071 = vshrl.u32 %v6070, 7
    %v6072 = vsub.s32 %v6069, %v6071
    %v6073 = vrot.slane %v6051, %v6072
    %v6075 = vunpack.c.l.s4 1966171168
    %v6076 = vunpack.c.0.s8 %v6075
    %v6077 = vlaneseq
    %v6078 = vshrl.u32 %v6077, 7
    %v6079 = vsub.s32 %v6076, %v6078
    %v6080 = vrot.slane %v6052, %v6079
    %v6081 = vcombine.high %v6059, %v6059
    %v6082 = vcombine.high %v6066, %v6066
    %v6083 = vcombine.high %v6073, %v6073
    %v6084 = vcombine.high %v6080, %v6080
    %v6085 = vcombine.high %v3347, %v3347
    %v6087 = vunpack.c.l.s4 1966171168
    %v6088 = vunpack.c.0.s8 %v6087
    %v6089 = vlaneseq
    %v6090 = vshrl.u32 %v6089, 7
    %v6091 = vsub.s32 %v6088, %v6090
    %v6092 = vrot.slane %v3347, %v6091
    %v6094 = vunpack.c.l.s4 1966171168
    %v6095 = vunpack.c.0.s8 %v6094
    %v6096 = vlaneseq
    %v6097 = vshrl.u32 %v6096, 7
    %v6098 = vsub.s32 %v6095, %v6097
    %v6099 = vrot.slane %v6085, %v6098
    %v6100 = vcombine.high %v6092, %v6092
    %v6101 = vcombine.high %v6099, %v6099
    %v6103 = vunpack.c.l.s4 1966171168
    %v6104 = vunpack.c.0.s8 %v6103
    %v6105 = vlaneseq
    %v6106 = vshrl.u32 %v6105, 7
    %v6107 = vsub.s32 %v6104, %v6106
    %v6108 = vrot.slane %v6092, %v6107
    %v6110 = vunpack.c.l.s4 1966171168
    %v6111 = vunpack.c.0.s8 %v6110
    %v6112 = vlaneseq
    %v6113 = vshrl.u32 %v6112, 7
    %v6114 = vsub.s32 %v6111, %v6113
    %v6115 = vrot.slane %v6099, %v6114
    %v6117 = vunpack.c.l.s4 1966171168
    %v6118 = vunpack.c.0.s8 %v6117
    %v6119 = vlaneseq
    %v6120 = vshrl.u32 %v6119, 7
    %v6121 = vsub.s32 %v6118, %v6120
    %v6122 = vrot.slane %v6100, %v6121
    %v6124 = vunpack.c.l.s4 1966171168
    %v6125 = vunpack.c.0.s8 %v6124
    %v6126 = vlaneseq
    %v6127 = vshrl.u32 %v6126, 7
    %v6128 = vsub.s32 %v6125, %v6127
    %v6129 = vrot.slane %v6101, %v6128
    %v6130 = vcombine.high %v6108, %v6108
    %v6131 = vcombine.high %v6115, %v6115
    %v6132 = vcombine.high %v6122, %v6122
    %v6133 = vcombine.high %v6129, %v6129
    %6150 = vst [vmem:[#allocation3 + $0xc] sm:$0x1] %v6059
    %6151 = vst [vmem:[#allocation3 + $0x1c] sm:$0x1] %v6073
    %6152 = vst [vmem:[#allocation3 + $0x2c] sm:$0x1] %v6081
    %6153 = vst [vmem:[#allocation3 + $0x3c] sm:$0x1] %v6083
    %6154 = vst [vmem:[#allocation3 + $0x4c] sm:$0x1] %v6066
    %6155 = vst [vmem:[#allocation3 + $0x5c] sm:$0x1] %v6080
    %6156 = vst [vmem:[#allocation3 + $0x6c] sm:$0x1] %v6082
    %6157 = vst [vmem:[#allocation3 + $0x7c] sm:$0x1] %v6084
    %6158 = vst [vmem:[#allocation3 + $0x8c] sm:$0x1] %v6108
    %6159 = vst [vmem:[#allocation3 + $0x9c] sm:$0x1] %v6122
    %6160 = vst [vmem:[#allocation3 + $0xac] sm:$0x1] %v6130
    %6161 = vst [vmem:[#allocation3 + $0xbc] sm:$0x1] %v6132
    %6162 = vst [vmem:[#allocation3 + $0xcc] sm:$0x1] %v6115
    %6163 = vst [vmem:[#allocation3 + $0xdc] sm:$0x1] %v6129
    %6164 = vst [vmem:[#allocation3 + $0xec] sm:$0x1] %v6131
    %6165 = vst [vmem:[#allocation3 + $0xfc] sm:$0x1] %v6133
    %v6168 = vcombine.high %v3345, %v3345
    %v6170 = vunpack.c.l.s4 1966171168
    %v6171 = vunpack.c.0.s8 %v6170
    %v6172 = vlaneseq
    %v6173 = vshrl.u32 %v6172, 7
    %v6174 = vsub.s32 %v6171, %v6173
    %v6175 = vrot.slane %v3345, %v6174
    %v6177 = vunpack.c.l.s4 1966171168
    %v6178 = vunpack.c.0.s8 %v6177
    %v6179 = vlaneseq
    %v6180 = vshrl.u32 %v6179, 7
    %v6181 = vsub.s32 %v6178, %v6180
    %v6182 = vrot.slane %v6168, %v6181
    %v6183 = vcombine.high %v6175, %v6175
    %v6184 = vcombine.high %v6182, %v6182
    %v6186 = vunpack.c.l.s4 1966171168
    %v6187 = vunpack.c.0.s8 %v6186
    %v6188 = vlaneseq
    %v6189 = vshrl.u32 %v6188, 7
    %v6190 = vsub.s32 %v6187, %v6189
    %v6191 = vrot.slane %v6175, %v6190
    %v6193 = vunpack.c.l.s4 1966171168
    %v6194 = vunpack.c.0.s8 %v6193
    %v6195 = vlaneseq
    %v6196 = vshrl.u32 %v6195, 7
    %v6197 = vsub.s32 %v6194, %v6196
    %v6198 = vrot.slane %v6182, %v6197
    %v6200 = vunpack.c.l.s4 1966171168
    %v6201 = vunpack.c.0.s8 %v6200
    %v6202 = vlaneseq
    %v6203 = vshrl.u32 %v6202, 7
    %v6204 = vsub.s32 %v6201, %v6203
    %v6205 = vrot.slane %v6183, %v6204
    %v6207 = vunpack.c.l.s4 1966171168
    %v6208 = vunpack.c.0.s8 %v6207
    %v6209 = vlaneseq
    %v6210 = vshrl.u32 %v6209, 7
    %v6211 = vsub.s32 %v6208, %v6210
    %v6212 = vrot.slane %v6184, %v6211
    %v6213 = vcombine.high %v6191, %v6191
    %v6214 = vcombine.high %v6198, %v6198
    %v6215 = vcombine.high %v6205, %v6205
    %v6216 = vcombine.high %v6212, %v6212
    %v6217 = vcombine.high %v3349, %v3349
    %v6219 = vunpack.c.l.s4 1966171168
    %v6220 = vunpack.c.0.s8 %v6219
    %v6221 = vlaneseq
    %v6222 = vshrl.u32 %v6221, 7
    %v6223 = vsub.s32 %v6220, %v6222
    %v6224 = vrot.slane %v3349, %v6223
    %v6226 = vunpack.c.l.s4 1966171168
    %v6227 = vunpack.c.0.s8 %v6226
    %v6228 = vlaneseq
    %v6229 = vshrl.u32 %v6228, 7
    %v6230 = vsub.s32 %v6227, %v6229
    %v6231 = vrot.slane %v6217, %v6230
    %v6232 = vcombine.high %v6224, %v6224
    %v6233 = vcombine.high %v6231, %v6231
    %v6235 = vunpack.c.l.s4 1966171168
    %v6236 = vunpack.c.0.s8 %v6235
    %v6237 = vlaneseq
    %v6238 = vshrl.u32 %v6237, 7
    %v6239 = vsub.s32 %v6236, %v6238
    %v6240 = vrot.slane %v6224, %v6239
    %v6242 = vunpack.c.l.s4 1966171168
    %v6243 = vunpack.c.0.s8 %v6242
    %v6244 = vlaneseq
    %v6245 = vshrl.u32 %v6244, 7
    %v6246 = vsub.s32 %v6243, %v6245
    %v6247 = vrot.slane %v6231, %v6246
    %v6249 = vunpack.c.l.s4 1966171168
    %v6250 = vunpack.c.0.s8 %v6249
    %v6251 = vlaneseq
    %v6252 = vshrl.u32 %v6251, 7
    %v6253 = vsub.s32 %v6250, %v6252
    %v6254 = vrot.slane %v6232, %v6253
    %v6256 = vunpack.c.l.s4 1966171168
    %v6257 = vunpack.c.0.s8 %v6256
    %v6258 = vlaneseq
    %v6259 = vshrl.u32 %v6258, 7
    %v6260 = vsub.s32 %v6257, %v6259
    %v6261 = vrot.slane %v6233, %v6260
    %v6262 = vcombine.high %v6240, %v6240
    %v6263 = vcombine.high %v6247, %v6247
    %v6264 = vcombine.high %v6254, %v6254
    %v6265 = vcombine.high %v6261, %v6261
    %6282 = vst [vmem:[#allocation3 + $0xd] sm:$0x1] %v6191
    %6283 = vst [vmem:[#allocation3 + $0x1d] sm:$0x1] %v6205
    %6284 = vst [vmem:[#allocation3 + $0x2d] sm:$0x1] %v6213
    %6285 = vst [vmem:[#allocation3 + $0x3d] sm:$0x1] %v6215
    %6286 = vst [vmem:[#allocation3 + $0x4d] sm:$0x1] %v6198
    %6287 = vst [vmem:[#allocation3 + $0x5d] sm:$0x1] %v6212
    %6288 = vst [vmem:[#allocation3 + $0x6d] sm:$0x1] %v6214
    %6289 = vst [vmem:[#allocation3 + $0x7d] sm:$0x1] %v6216
    %6290 = vst [vmem:[#allocation3 + $0x8d] sm:$0x1] %v6240
    %6291 = vst [vmem:[#allocation3 + $0x9d] sm:$0x1] %v6254
    %6292 = vst [vmem:[#allocation3 + $0xad] sm:$0x1] %v6262
    %6293 = vst [vmem:[#allocation3 + $0xbd] sm:$0x1] %v6264
    %6294 = vst [vmem:[#allocation3 + $0xcd] sm:$0x1] %v6247
    %6295 = vst [vmem:[#allocation3 + $0xdd] sm:$0x1] %v6261
    %6296 = vst [vmem:[#allocation3 + $0xed] sm:$0x1] %v6263
    %6297 = vst [vmem:[#allocation3 + $0xfd] sm:$0x1] %v6265
    %v6300 = vcombine.high %v3386, %v3386
    %v6302 = vunpack.c.l.s4 1966171168
    %v6303 = vunpack.c.0.s8 %v6302
    %v6304 = vlaneseq
    %v6305 = vshrl.u32 %v6304, 7
    %v6306 = vsub.s32 %v6303, %v6305
    %v6307 = vrot.slane %v3386, %v6306
    %v6309 = vunpack.c.l.s4 1966171168
    %v6310 = vunpack.c.0.s8 %v6309
    %v6311 = vlaneseq
    %v6312 = vshrl.u32 %v6311, 7
    %v6313 = vsub.s32 %v6310, %v6312
    %v6314 = vrot.slane %v6300, %v6313
    %v6315 = vcombine.high %v6307, %v6307
    %v6316 = vcombine.high %v6314, %v6314
    %v6318 = vunpack.c.l.s4 1966171168
    %v6319 = vunpack.c.0.s8 %v6318
    %v6320 = vlaneseq
    %v6321 = vshrl.u32 %v6320, 7
    %v6322 = vsub.s32 %v6319, %v6321
    %v6323 = vrot.slane %v6307, %v6322
    %v6325 = vunpack.c.l.s4 1966171168
    %v6326 = vunpack.c.0.s8 %v6325
    %v6327 = vlaneseq
    %v6328 = vshrl.u32 %v6327, 7
    %v6329 = vsub.s32 %v6326, %v6328
    %v6330 = vrot.slane %v6314, %v6329
    %v6332 = vunpack.c.l.s4 1966171168
    %v6333 = vunpack.c.0.s8 %v6332
    %v6334 = vlaneseq
    %v6335 = vshrl.u32 %v6334, 7
    %v6336 = vsub.s32 %v6333, %v6335
    %v6337 = vrot.slane %v6315, %v6336
    %v6339 = vunpack.c.l.s4 1966171168
    %v6340 = vunpack.c.0.s8 %v6339
    %v6341 = vlaneseq
    %v6342 = vshrl.u32 %v6341, 7
    %v6343 = vsub.s32 %v6340, %v6342
    %v6344 = vrot.slane %v6316, %v6343
    %v6345 = vcombine.high %v6323, %v6323
    %v6346 = vcombine.high %v6330, %v6330
    %v6347 = vcombine.high %v6337, %v6337
    %v6348 = vcombine.high %v6344, %v6344
    %v6349 = vcombine.high %v3390, %v3390
    %v6351 = vunpack.c.l.s4 1966171168
    %v6352 = vunpack.c.0.s8 %v6351
    %v6353 = vlaneseq
    %v6354 = vshrl.u32 %v6353, 7
    %v6355 = vsub.s32 %v6352, %v6354
    %v6356 = vrot.slane %v3390, %v6355
    %v6358 = vunpack.c.l.s4 1966171168
    %v6359 = vunpack.c.0.s8 %v6358
    %v6360 = vlaneseq
    %v6361 = vshrl.u32 %v6360, 7
    %v6362 = vsub.s32 %v6359, %v6361
    %v6363 = vrot.slane %v6349, %v6362
    %v6364 = vcombine.high %v6356, %v6356
    %v6365 = vcombine.high %v6363, %v6363
    %v6367 = vunpack.c.l.s4 1966171168
    %v6368 = vunpack.c.0.s8 %v6367
    %v6369 = vlaneseq
    %v6370 = vshrl.u32 %v6369, 7
    %v6371 = vsub.s32 %v6368, %v6370
    %v6372 = vrot.slane %v6356, %v6371
    %v6374 = vunpack.c.l.s4 1966171168
    %v6375 = vunpack.c.0.s8 %v6374
    %v6376 = vlaneseq
    %v6377 = vshrl.u32 %v6376, 7
    %v6378 = vsub.s32 %v6375, %v6377
    %v6379 = vrot.slane %v6363, %v6378
    %v6381 = vunpack.c.l.s4 1966171168
    %v6382 = vunpack.c.0.s8 %v6381
    %v6383 = vlaneseq
    %v6384 = vshrl.u32 %v6383, 7
    %v6385 = vsub.s32 %v6382, %v6384
    %v6386 = vrot.slane %v6364, %v6385
    %v6388 = vunpack.c.l.s4 1966171168
    %v6389 = vunpack.c.0.s8 %v6388
    %v6390 = vlaneseq
    %v6391 = vshrl.u32 %v6390, 7
    %v6392 = vsub.s32 %v6389, %v6391
    %v6393 = vrot.slane %v6365, %v6392
    %v6394 = vcombine.high %v6372, %v6372
    %v6395 = vcombine.high %v6379, %v6379
    %v6396 = vcombine.high %v6386, %v6386
    %v6397 = vcombine.high %v6393, %v6393
    %6414 = vst [vmem:[#allocation3 + $0xe] sm:$0x1] %v6323
    %6415 = vst [vmem:[#allocation3 + $0x1e] sm:$0x1] %v6337
    %6416 = vst [vmem:[#allocation3 + $0x2e] sm:$0x1] %v6345
    %6417 = vst [vmem:[#allocation3 + $0x3e] sm:$0x1] %v6347
    %6418 = vst [vmem:[#allocation3 + $0x4e] sm:$0x1] %v6330
    %6419 = vst [vmem:[#allocation3 + $0x5e] sm:$0x1] %v6344
    %6420 = vst [vmem:[#allocation3 + $0x6e] sm:$0x1] %v6346
    %6421 = vst [vmem:[#allocation3 + $0x7e] sm:$0x1] %v6348
    %6422 = vst [vmem:[#allocation3 + $0x8e] sm:$0x1] %v6372
    %6423 = vst [vmem:[#allocation3 + $0x9e] sm:$0x1] %v6386
    %6424 = vst [vmem:[#allocation3 + $0xae] sm:$0x1] %v6394
    %6425 = vst [vmem:[#allocation3 + $0xbe] sm:$0x1] %v6396
    %6426 = vst [vmem:[#allocation3 + $0xce] sm:$0x1] %v6379
    %6427 = vst [vmem:[#allocation3 + $0xde] sm:$0x1] %v6393
    %6428 = vst [vmem:[#allocation3 + $0xee] sm:$0x1] %v6395
    %6429 = vst [vmem:[#allocation3 + $0xfe] sm:$0x1] %v6397
    %v6432 = vcombine.high %v3388, %v3388
    %v6434 = vunpack.c.l.s4 1966171168
    %v6435 = vunpack.c.0.s8 %v6434
    %v6436 = vlaneseq
    %v6437 = vshrl.u32 %v6436, 7
    %v6438 = vsub.s32 %v6435, %v6437
    %v6439 = vrot.slane %v3388, %v6438
    %v6441 = vunpack.c.l.s4 1966171168
    %v6442 = vunpack.c.0.s8 %v6441
    %v6443 = vlaneseq
    %v6444 = vshrl.u32 %v6443, 7
    %v6445 = vsub.s32 %v6442, %v6444
    %v6446 = vrot.slane %v6432, %v6445
    %v6447 = vcombine.high %v6439, %v6439
    %v6448 = vcombine.high %v6446, %v6446
    %v6450 = vunpack.c.l.s4 1966171168
    %v6451 = vunpack.c.0.s8 %v6450
    %v6452 = vlaneseq
    %v6453 = vshrl.u32 %v6452, 7
    %v6454 = vsub.s32 %v6451, %v6453
    %v6455 = vrot.slane %v6439, %v6454
    %v6457 = vunpack.c.l.s4 1966171168
    %v6458 = vunpack.c.0.s8 %v6457
    %v6459 = vlaneseq
    %v6460 = vshrl.u32 %v6459, 7
    %v6461 = vsub.s32 %v6458, %v6460
    %v6462 = vrot.slane %v6446, %v6461
    %v6464 = vunpack.c.l.s4 1966171168
    %v6465 = vunpack.c.0.s8 %v6464
    %v6466 = vlaneseq
    %v6467 = vshrl.u32 %v6466, 7
    %v6468 = vsub.s32 %v6465, %v6467
    %v6469 = vrot.slane %v6447, %v6468
    %v6471 = vunpack.c.l.s4 1966171168
    %v6472 = vunpack.c.0.s8 %v6471
    %v6473 = vlaneseq
    %v6474 = vshrl.u32 %v6473, 7
    %v6475 = vsub.s32 %v6472, %v6474
    %v6476 = vrot.slane %v6448, %v6475
    %v6477 = vcombine.high %v6455, %v6455
    %v6478 = vcombine.high %v6462, %v6462
    %v6479 = vcombine.high %v6469, %v6469
    %v6480 = vcombine.high %v6476, %v6476
    %v6481 = vcombine.high %v3392, %v3392
    %v6483 = vunpack.c.l.s4 1966171168
    %v6484 = vunpack.c.0.s8 %v6483
    %v6485 = vlaneseq
    %v6486 = vshrl.u32 %v6485, 7
    %v6487 = vsub.s32 %v6484, %v6486
    %v6488 = vrot.slane %v3392, %v6487
    %v6490 = vunpack.c.l.s4 1966171168
    %v6491 = vunpack.c.0.s8 %v6490
    %v6492 = vlaneseq
    %v6493 = vshrl.u32 %v6492, 7
    %v6494 = vsub.s32 %v6491, %v6493
    %v6495 = vrot.slane %v6481, %v6494
    %v6496 = vcombine.high %v6488, %v6488
    %v6497 = vcombine.high %v6495, %v6495
    %v6499 = vunpack.c.l.s4 1966171168
    %v6500 = vunpack.c.0.s8 %v6499
    %v6501 = vlaneseq
    %v6502 = vshrl.u32 %v6501, 7
    %v6503 = vsub.s32 %v6500, %v6502
    %v6504 = vrot.slane %v6488, %v6503
    %v6506 = vunpack.c.l.s4 1966171168
    %v6507 = vunpack.c.0.s8 %v6506
    %v6508 = vlaneseq
    %v6509 = vshrl.u32 %v6508, 7
    %v6510 = vsub.s32 %v6507, %v6509
    %v6511 = vrot.slane %v6495, %v6510
    %v6513 = vunpack.c.l.s4 1966171168
    %v6514 = vunpack.c.0.s8 %v6513
    %v6515 = vlaneseq
    %v6516 = vshrl.u32 %v6515, 7
    %v6517 = vsub.s32 %v6514, %v6516
    %v6518 = vrot.slane %v6496, %v6517
    %v6520 = vunpack.c.l.s4 1966171168
    %v6521 = vunpack.c.0.s8 %v6520
    %v6522 = vlaneseq
    %v6523 = vshrl.u32 %v6522, 7
    %v6524 = vsub.s32 %v6521, %v6523
    %v6525 = vrot.slane %v6497, %v6524
    %v6526 = vcombine.high %v6504, %v6504
    %v6527 = vcombine.high %v6511, %v6511
    %v6528 = vcombine.high %v6518, %v6518
    %v6529 = vcombine.high %v6525, %v6525
    %6546 = vst [vmem:[#allocation3 + $0xf] sm:$0x1] %v6455
    %6547 = vst [vmem:[#allocation3 + $0x1f] sm:$0x1] %v6469
    %6548 = vst [vmem:[#allocation3 + $0x2f] sm:$0x1] %v6477
    %6549 = vst [vmem:[#allocation3 + $0x3f] sm:$0x1] %v6479
    %6550 = vst [vmem:[#allocation3 + $0x4f] sm:$0x1] %v6462
    %6551 = vst [vmem:[#allocation3 + $0x5f] sm:$0x1] %v6476
    %6552 = vst [vmem:[#allocation3 + $0x6f] sm:$0x1] %v6478
    %6553 = vst [vmem:[#allocation3 + $0x7f] sm:$0x1] %v6480
    %6554 = vst [vmem:[#allocation3 + $0x8f] sm:$0x1] %v6504
    %6555 = vst [vmem:[#allocation3 + $0x9f] sm:$0x1] %v6518
    %6556 = vst [vmem:[#allocation3 + $0xaf] sm:$0x1] %v6526
    %6557 = vst [vmem:[#allocation3 + $0xbf] sm:$0x1] %v6528
    %6558 = vst [vmem:[#allocation3 + $0xcf] sm:$0x1] %v6511
    %6559 = vst [vmem:[#allocation3 + $0xdf] sm:$0x1] %v6525
    %6560 = vst [vmem:[#allocation3 + $0xef] sm:$0x1] %v6527
    %6561 = vst [vmem:[#allocation3 + $0xff] sm:$0x1] %v6529
    %v6562 = vld [vmem:[#allocation2] sm:$0xff]
    %v6563 = vld [vmem:[#allocation2 + $0x8] sm:$0xff]
    %v6564 = vld [vmem:[#allocation2 + $0x10] sm:$0xff]
    %v6565 = vld [vmem:[#allocation2 + $0x18] sm:$0xff]
    %v6566 = vld [vmem:[#allocation2 + $0x20] sm:$0xff]
    %v6567 = vld [vmem:[#allocation2 + $0x28] sm:$0xff]
    %v6568 = vld [vmem:[#allocation2 + $0x30] sm:$0xff]
    %v6569 = vld [vmem:[#allocation2 + $0x38] sm:$0xff]
    %v6570 = vld [vmem:[#allocation2 + $0x40] sm:$0xff]
    %v6571 = vld [vmem:[#allocation2 + $0x48] sm:$0xff]
    %v6572 = vld [vmem:[#allocation2 + $0x50] sm:$0xff]
    %v6573 = vld [vmem:[#allocation2 + $0x58] sm:$0xff]
    %v6574 = vld [vmem:[#allocation2 + $0x60] sm:$0xff]
    %v6575 = vld [vmem:[#allocation2 + $0x68] sm:$0xff]
    %v6576 = vld [vmem:[#allocation2 + $0x70] sm:$0xff]
    %v6577 = vld [vmem:[#allocation2 + $0x78] sm:$0xff]
    %v6578 = vpack.c.bf16 %v6562, %v6562
    %v6579 = vpack.c.bf16 %v6563, %v6563
    %v6580 = vpack.c.bf16 %v6564, %v6564
    %v6581 = vpack.c.bf16 %v6565, %v6565
    %v6582 = vpack.c.bf16 %v6566, %v6566
    %v6583 = vpack.c.bf16 %v6567, %v6567
    %v6584 = vpack.c.bf16 %v6568, %v6568
    %v6585 = vpack.c.bf16 %v6569, %v6569
    %v6586 = vpack.c.bf16 %v6570, %v6570
    %v6587 = vpack.c.bf16 %v6571, %v6571
    %v6588 = vpack.c.bf16 %v6572, %v6572
    %v6589 = vpack.c.bf16 %v6573, %v6573
    %v6590 = vpack.c.bf16 %v6574, %v6574
    %v6591 = vpack.c.bf16 %v6575, %v6575
    %v6592 = vpack.c.bf16 %v6576, %v6576
    %v6593 = vpack.c.bf16 %v6577, %v6577
    %v6594 = vld [vmem:[#allocation3] sm:$0xff]
    %v6595 = vld [vmem:[#allocation3 + $0x8] sm:$0xff]
    %v6596 = vld [vmem:[#allocation3 + $0x10] sm:$0xff]
    %v6597 = vld [vmem:[#allocation3 + $0x18] sm:$0xff]
    %v6598 = vld [vmem:[#allocation3 + $0x20] sm:$0xff]
    %v6599 = vld [vmem:[#allocation3 + $0x28] sm:$0xff]
    %v6600 = vld [vmem:[#allocation3 + $0x30] sm:$0xff]
    %v6601 = vld [vmem:[#allocation3 + $0x38] sm:$0xff]
    %v6602 = vld [vmem:[#allocation3 + $0x40] sm:$0xff]
    %v6603 = vld [vmem:[#allocation3 + $0x48] sm:$0xff]
    %v6604 = vld [vmem:[#allocation3 + $0x50] sm:$0xff]
    %v6605 = vld [vmem:[#allocation3 + $0x58] sm:$0xff]
    %v6606 = vld [vmem:[#allocation3 + $0x60] sm:$0xff]
    %v6607 = vld [vmem:[#allocation3 + $0x68] sm:$0xff]
    %v6608 = vld [vmem:[#allocation3 + $0x70] sm:$0xff]
    %v6609 = vld [vmem:[#allocation3 + $0x78] sm:$0xff]
    %v6610 = vld [vmem:[#allocation3 + $0x80] sm:$0xff]
    %v6611 = vld [vmem:[#allocation3 + $0x88] sm:$0xff]
    %v6612 = vld [vmem:[#allocation3 + $0x90] sm:$0xff]
    %v6613 = vld [vmem:[#allocation3 + $0x98] sm:$0xff]
    %v6614 = vld [vmem:[#allocation3 + $0xa0] sm:$0xff]
    %v6615 = vld [vmem:[#allocation3 + $0xa8] sm:$0xff]
    %v6616 = vld [vmem:[#allocation3 + $0xb0] sm:$0xff]
    %v6617 = vld [vmem:[#allocation3 + $0xb8] sm:$0xff]
    %v6618 = vld [vmem:[#allocation3 + $0xc0] sm:$0xff]
    %v6619 = vld [vmem:[#allocation3 + $0xc8] sm:$0xff]
    %v6620 = vld [vmem:[#allocation3 + $0xd0] sm:$0xff]
    %v6621 = vld [vmem:[#allocation3 + $0xd8] sm:$0xff]
    %v6622 = vld [vmem:[#allocation3 + $0xe0] sm:$0xff]
    %v6623 = vld [vmem:[#allocation3 + $0xe8] sm:$0xff]
    %v6624 = vld [vmem:[#allocation3 + $0xf0] sm:$0xff]
    %v6625 = vld [vmem:[#allocation3 + $0xf8] sm:$0xff]
    %v6626 = vpack.c.bf16 %v6595, %v6594
    %v6627 = vpack.c.bf16 %v6597, %v6596
    %v6628 = vpack.c.bf16 %v6599, %v6598
    %v6629 = vpack.c.bf16 %v6601, %v6600
    %v6630 = vpack.c.bf16 %v6603, %v6602
    %v6631 = vpack.c.bf16 %v6605, %v6604
    %v6632 = vpack.c.bf16 %v6607, %v6606
    %v6633 = vpack.c.bf16 %v6609, %v6608
    %v6634 = vpack.c.bf16 %v6611, %v6610
    %v6635 = vpack.c.bf16 %v6613, %v6612
    %v6636 = vpack.c.bf16 %v6615, %v6614
    %v6637 = vpack.c.bf16 %v6617, %v6616
    %v6638 = vpack.c.bf16 %v6619, %v6618
    %v6639 = vpack.c.bf16 %v6621, %v6620
    %v6640 = vpack.c.bf16 %v6623, %v6622
    %v6641 = vpack.c.bf16 %v6625, %v6624
    %6642 = vmatprep.subr.bf16.mxu0 0
    %6643 = vmatpush1.bf16.xpose.msra.mxu0 %v6626
    %6644 = vmatprep.subr.bf16.mxu0 0
    %6645 = vmatpush1.bf16.xpose.msra.mxu0 0
    %6646 = vmatprep.subr.bf16.mxu0 0
    %6647 = vmatpush1.bf16.xpose.msra.mxu0 0
    %6648 = vmatprep.subr.bf16.mxu0 0
    %6649 = vmatpush1.bf16.xpose.msra.mxu0 0
    %6650 = vmatprep.subr.bf16.mxu0 0
    %6651 = vmatpush1.bf16.xpose.msra.mxu0 0
    %6652 = vmatprep.subr.bf16.mxu0 0
    %6653 = vmatpush1.bf16.xpose.msra.mxu0 0
    %6654 = vmatprep.subr.bf16.mxu0 0
    %6655 = vmatpush1.bf16.xpose.msra.mxu0 0
    %6656 = vmatprep.subr.bf16.mxu0 0
    %6657 = vmatpush1.bf16.xpose.msra.mxu0 0
    %6658 = vmatprep.subr.bf16.mxu0 0
    %6659 = vmatpush1.bf16.xpose.msra.mxu0 0
    %6660 = vmatprep.subr.bf16.mxu0 0
    %6661 = vmatpush1.bf16.xpose.msra.mxu0 0
    %6662 = vmatprep.subr.bf16.mxu0 0
    %6663 = vmatpush1.bf16.xpose.msra.mxu0 0
    %6664 = vmatprep.subr.bf16.mxu0 0
    %6665 = vmatpush1.bf16.xpose.msra.mxu0 0
    %6666 = vmatprep.subr.bf16.mxu0 0
    %6667 = vmatpush1.bf16.xpose.msra.mxu0 0
    %6668 = vmatprep.subr.bf16.mxu0 0
    %6669 = vmatpush1.bf16.xpose.msra.mxu0 0
    %6670 = vmatprep.subr.bf16.mxu0 0
    %6671 = vmatpush1.bf16.xpose.msra.mxu0 0
    %6672 = vmatprep.subr.bf16.mxu0 0
    %6673 = vmatpush1.bf16.xpose.msra.mxu0 0
    %6674 = vmatprep.mubr.bf16.mxu0 0
    %6675 = vmatmul.mubr.bf16.gmra.mrb[0].mxu0 %v6578
    %v6676 = vpop.f32.mrb[0].mxu0
    %v6677 = vadd.f32 0.0, %v6676
    %v6678 = vpop.f32.mrb[0].mxu0
    %v6679 = vpop.f32.mrb[0].mxu0
    %v6680 = vpop.f32.mrb[0].mxu0
    %6681 = vdwg.mxu0
    %6682 = vmatprep.subr.bf16.mxu0 0
    %6683 = vmatpush1.bf16.xpose.msra.mxu0 %v6627
    %6684 = vmatprep.subr.bf16.mxu0 0
    %6685 = vmatpush1.bf16.xpose.msra.mxu0 0
    %6686 = vmatprep.subr.bf16.mxu0 0
    %6687 = vmatpush1.bf16.xpose.msra.mxu0 0
    %6688 = vmatprep.subr.bf16.mxu0 0
    %6689 = vmatpush1.bf16.xpose.msra.mxu0 0
    %6690 = vmatprep.subr.bf16.mxu0 0
    %6691 = vmatpush1.bf16.xpose.msra.mxu0 0
    %6692 = vmatprep.subr.bf16.mxu0 0
    %6693 = vmatpush1.bf16.xpose.msra.mxu0 0
    %6694 = vmatprep.subr.bf16.mxu0 0
    %6695 = vmatpush1.bf16.xpose.msra.mxu0 0
    %6696 = vmatprep.subr.bf16.mxu0 0
    %6697 = vmatpush1.bf16.xpose.msra.mxu0 0
    %6698 = vmatprep.subr.bf16.mxu0 0
    %6699 = vmatpush1.bf16.xpose.msra.mxu0 0
    %6700 = vmatprep.subr.bf16.mxu0 0
    %6701 = vmatpush1.bf16.xpose.msra.mxu0 0
    %6702 = vmatprep.subr.bf16.mxu0 0
    %6703 = vmatpush1.bf16.xpose.msra.mxu0 0
    %6704 = vmatprep.subr.bf16.mxu0 0
    %6705 = vmatpush1.bf16.xpose.msra.mxu0 0
    %6706 = vmatprep.subr.bf16.mxu0 0
    %6707 = vmatpush1.bf16.xpose.msra.mxu0 0
    %6708 = vmatprep.subr.bf16.mxu0 0
    %6709 = vmatpush1.bf16.xpose.msra.mxu0 0
    %6710 = vmatprep.subr.bf16.mxu0 0
    %6711 = vmatpush1.bf16.xpose.msra.mxu0 0
    %6712 = vmatprep.subr.bf16.mxu0 0
    %6713 = vmatpush1.bf16.xpose.msra.mxu0 0
    %6714 = vmatprep.mubr.bf16.mxu0 0
    %6715 = vmatmul.mubr.bf16.gmra.mrb[0].mxu0 %v6579
    %v6716 = vpop.f32.mrb[0].mxu0
    %v6717 = vadd.f32 0.0, %v6716
    %v6718 = vpop.f32.mrb[0].mxu0
    %v6719 = vpop.f32.mrb[0].mxu0
    %v6720 = vpop.f32.mrb[0].mxu0
    %6721 = vdwg.mxu0
    %6722 = vmatprep.subr.bf16.mxu0 0
    %6723 = vmatpush1.bf16.xpose.msra.mxu0 %v6628
    %6724 = vmatprep.subr.bf16.mxu0 0
    %6725 = vmatpush1.bf16.xpose.msra.mxu0 0
    %6726 = vmatprep.subr.bf16.mxu0 0
    %6727 = vmatpush1.bf16.xpose.msra.mxu0 0
    %6728 = vmatprep.subr.bf16.mxu0 0
    %6729 = vmatpush1.bf16.xpose.msra.mxu0 0
    %6730 = vmatprep.subr.bf16.mxu0 0
    %6731 = vmatpush1.bf16.xpose.msra.mxu0 0
    %6732 = vmatprep.subr.bf16.mxu0 0
    %6733 = vmatpush1.bf16.xpose.msra.mxu0 0
    %6734 = vmatprep.subr.bf16.mxu0 0
    %6735 = vmatpush1.bf16.xpose.msra.mxu0 0
    %6736 = vmatprep.subr.bf16.mxu0 0
    %6737 = vmatpush1.bf16.xpose.msra.mxu0 0
    %6738 = vmatprep.subr.bf16.mxu0 0
    %6739 = vmatpush1.bf16.xpose.msra.mxu0 0
    %6740 = vmatprep.subr.bf16.mxu0 0
    %6741 = vmatpush1.bf16.xpose.msra.mxu0 0
    %6742 = vmatprep.subr.bf16.mxu0 0
    %6743 = vmatpush1.bf16.xpose.msra.mxu0 0
    %6744 = vmatprep.subr.bf16.mxu0 0
    %6745 = vmatpush1.bf16.xpose.msra.mxu0 0
    %6746 = vmatprep.subr.bf16.mxu0 0
    %6747 = vmatpush1.bf16.xpose.msra.mxu0 0
    %6748 = vmatprep.subr.bf16.mxu0 0
    %6749 = vmatpush1.bf16.xpose.msra.mxu0 0
    %6750 = vmatprep.subr.bf16.mxu0 0
    %6751 = vmatpush1.bf16.xpose.msra.mxu0 0
    %6752 = vmatprep.subr.bf16.mxu0 0
    %6753 = vmatpush1.bf16.xpose.msra.mxu0 0
    %6754 = vmatprep.mubr.bf16.mxu0 0
    %6755 = vmatmul.mubr.bf16.gmra.mrb[0].mxu0 %v6580
    %v6756 = vpop.f32.mrb[0].mxu0
    %v6757 = vadd.f32 0.0, %v6756
    %v6758 = vpop.f32.mrb[0].mxu0
    %v6759 = vpop.f32.mrb[0].mxu0
    %v6760 = vpop.f32.mrb[0].mxu0
    %6761 = vdwg.mxu0
    %6762 = vmatprep.subr.bf16.mxu0 0
    %6763 = vmatpush1.bf16.xpose.msra.mxu0 %v6629
    %6764 = vmatprep.subr.bf16.mxu0 0
    %6765 = vmatpush1.bf16.xpose.msra.mxu0 0
    %6766 = vmatprep.subr.bf16.mxu0 0
    %6767 = vmatpush1.bf16.xpose.msra.mxu0 0
    %6768 = vmatprep.subr.bf16.mxu0 0
    %6769 = vmatpush1.bf16.xpose.msra.mxu0 0
    %6770 = vmatprep.subr.bf16.mxu0 0
    %6771 = vmatpush1.bf16.xpose.msra.mxu0 0
    %6772 = vmatprep.subr.bf16.mxu0 0
    %6773 = vmatpush1.bf16.xpose.msra.mxu0 0
    %6774 = vmatprep.subr.bf16.mxu0 0
    %6775 = vmatpush1.bf16.xpose.msra.mxu0 0
    %6776 = vmatprep.subr.bf16.mxu0 0
    %6777 = vmatpush1.bf16.xpose.msra.mxu0 0
    %6778 = vmatprep.subr.bf16.mxu0 0
    %6779 = vmatpush1.bf16.xpose.msra.mxu0 0
    %6780 = vmatprep.subr.bf16.mxu0 0
    %6781 = vmatpush1.bf16.xpose.msra.mxu0 0
    %6782 = vmatprep.subr.bf16.mxu0 0
    %6783 = vmatpush1.bf16.xpose.msra.mxu0 0
    %6784 = vmatprep.subr.bf16.mxu0 0
    %6785 = vmatpush1.bf16.xpose.msra.mxu0 0
    %6786 = vmatprep.subr.bf16.mxu0 0
    %6787 = vmatpush1.bf16.xpose.msra.mxu0 0
    %6788 = vmatprep.subr.bf16.mxu0 0
    %6789 = vmatpush1.bf16.xpose.msra.mxu0 0
    %6790 = vmatprep.subr.bf16.mxu0 0
    %6791 = vmatpush1.bf16.xpose.msra.mxu0 0
    %6792 = vmatprep.subr.bf16.mxu0 0
    %6793 = vmatpush1.bf16.xpose.msra.mxu0 0
    %6794 = vmatprep.mubr.bf16.mxu0 0
    %6795 = vmatmul.mubr.bf16.gmra.mrb[0].mxu0 %v6581
    %v6796 = vpop.f32.mrb[0].mxu0
    %v6797 = vadd.f32 0.0, %v6796
    %v6798 = vpop.f32.mrb[0].mxu0
    %v6799 = vpop.f32.mrb[0].mxu0
    %v6800 = vpop.f32.mrb[0].mxu0
    %6801 = vdwg.mxu0
    %6802 = vmatprep.subr.bf16.mxu0 0
    %6803 = vmatpush1.bf16.xpose.msra.mxu0 %v6630
    %6804 = vmatprep.subr.bf16.mxu0 0
    %6805 = vmatpush1.bf16.xpose.msra.mxu0 0
    %6806 = vmatprep.subr.bf16.mxu0 0
    %6807 = vmatpush1.bf16.xpose.msra.mxu0 0
    %6808 = vmatprep.subr.bf16.mxu0 0
    %6809 = vmatpush1.bf16.xpose.msra.mxu0 0
    %6810 = vmatprep.subr.bf16.mxu0 0
    %6811 = vmatpush1.bf16.xpose.msra.mxu0 0
    %6812 = vmatprep.subr.bf16.mxu0 0
    %6813 = vmatpush1.bf16.xpose.msra.mxu0 0
    %6814 = vmatprep.subr.bf16.mxu0 0
    %6815 = vmatpush1.bf16.xpose.msra.mxu0 0
    %6816 = vmatprep.subr.bf16.mxu0 0
    %6817 = vmatpush1.bf16.xpose.msra.mxu0 0
    %6818 = vmatprep.subr.bf16.mxu0 0
    %6819 = vmatpush1.bf16.xpose.msra.mxu0 0
    %6820 = vmatprep.subr.bf16.mxu0 0
    %6821 = vmatpush1.bf16.xpose.msra.mxu0 0
    %6822 = vmatprep.subr.bf16.mxu0 0
    %6823 = vmatpush1.bf16.xpose.msra.mxu0 0
    %6824 = vmatprep.subr.bf16.mxu0 0
    %6825 = vmatpush1.bf16.xpose.msra.mxu0 0
    %6826 = vmatprep.subr.bf16.mxu0 0
    %6827 = vmatpush1.bf16.xpose.msra.mxu0 0
    %6828 = vmatprep.subr.bf16.mxu0 0
    %6829 = vmatpush1.bf16.xpose.msra.mxu0 0
    %6830 = vmatprep.subr.bf16.mxu0 0
    %6831 = vmatpush1.bf16.xpose.msra.mxu0 0
    %6832 = vmatprep.subr.bf16.mxu0 0
    %6833 = vmatpush1.bf16.xpose.msra.mxu0 0
    %6834 = vmatprep.mubr.bf16.mxu0 0
    %6835 = vmatmul.mubr.bf16.gmra.mrb[0].mxu0 %v6582
    %v6836 = vpop.f32.mrb[0].mxu0
    %v6837 = vadd.f32 0.0, %v6836
    %v6838 = vpop.f32.mrb[0].mxu0
    %v6839 = vpop.f32.mrb[0].mxu0
    %v6840 = vpop.f32.mrb[0].mxu0
    %6841 = vdwg.mxu0
    %6842 = vmatprep.subr.bf16.mxu0 0
    %6843 = vmatpush1.bf16.xpose.msra.mxu0 %v6631
    %6844 = vmatprep.subr.bf16.mxu0 0
    %6845 = vmatpush1.bf16.xpose.msra.mxu0 0
    %6846 = vmatprep.subr.bf16.mxu0 0
    %6847 = vmatpush1.bf16.xpose.msra.mxu0 0
    %6848 = vmatprep.subr.bf16.mxu0 0
    %6849 = vmatpush1.bf16.xpose.msra.mxu0 0
    %6850 = vmatprep.subr.bf16.mxu0 0
    %6851 = vmatpush1.bf16.xpose.msra.mxu0 0
    %6852 = vmatprep.subr.bf16.mxu0 0
    %6853 = vmatpush1.bf16.xpose.msra.mxu0 0
    %6854 = vmatprep.subr.bf16.mxu0 0
    %6855 = vmatpush1.bf16.xpose.msra.mxu0 0
    %6856 = vmatprep.subr.bf16.mxu0 0
    %6857 = vmatpush1.bf16.xpose.msra.mxu0 0
    %6858 = vmatprep.subr.bf16.mxu0 0
    %6859 = vmatpush1.bf16.xpose.msra.mxu0 0
    %6860 = vmatprep.subr.bf16.mxu0 0
    %6861 = vmatpush1.bf16.xpose.msra.mxu0 0
    %6862 = vmatprep.subr.bf16.mxu0 0
    %6863 = vmatpush1.bf16.xpose.msra.mxu0 0
    %6864 = vmatprep.subr.bf16.mxu0 0
    %6865 = vmatpush1.bf16.xpose.msra.mxu0 0
    %6866 = vmatprep.subr.bf16.mxu0 0
    %6867 = vmatpush1.bf16.xpose.msra.mxu0 0
    %6868 = vmatprep.subr.bf16.mxu0 0
    %6869 = vmatpush1.bf16.xpose.msra.mxu0 0
    %6870 = vmatprep.subr.bf16.mxu0 0
    %6871 = vmatpush1.bf16.xpose.msra.mxu0 0
    %6872 = vmatprep.subr.bf16.mxu0 0
    %6873 = vmatpush1.bf16.xpose.msra.mxu0 0
    %6874 = vmatprep.mubr.bf16.mxu0 0
    %6875 = vmatmul.mubr.bf16.gmra.mrb[0].mxu0 %v6583
    %v6876 = vpop.f32.mrb[0].mxu0
    %v6877 = vadd.f32 0.0, %v6876
    %v6878 = vpop.f32.mrb[0].mxu0
    %v6879 = vpop.f32.mrb[0].mxu0
    %v6880 = vpop.f32.mrb[0].mxu0
    %6881 = vdwg.mxu0
    %6882 = vmatprep.subr.bf16.mxu0 0
    %6883 = vmatpush1.bf16.xpose.msra.mxu0 %v6632
    %6884 = vmatprep.subr.bf16.mxu0 0
    %6885 = vmatpush1.bf16.xpose.msra.mxu0 0
    %6886 = vmatprep.subr.bf16.mxu0 0
    %6887 = vmatpush1.bf16.xpose.msra.mxu0 0
    %6888 = vmatprep.subr.bf16.mxu0 0
    %6889 = vmatpush1.bf16.xpose.msra.mxu0 0
    %6890 = vmatprep.subr.bf16.mxu0 0
    %6891 = vmatpush1.bf16.xpose.msra.mxu0 0
    %6892 = vmatprep.subr.bf16.mxu0 0
    %6893 = vmatpush1.bf16.xpose.msra.mxu0 0
    %6894 = vmatprep.subr.bf16.mxu0 0
    %6895 = vmatpush1.bf16.xpose.msra.mxu0 0
    %6896 = vmatprep.subr.bf16.mxu0 0
    %6897 = vmatpush1.bf16.xpose.msra.mxu0 0
    %6898 = vmatprep.subr.bf16.mxu0 0
    %6899 = vmatpush1.bf16.xpose.msra.mxu0 0
    %6900 = vmatprep.subr.bf16.mxu0 0
    %6901 = vmatpush1.bf16.xpose.msra.mxu0 0
    %6902 = vmatprep.subr.bf16.mxu0 0
    %6903 = vmatpush1.bf16.xpose.msra.mxu0 0
    %6904 = vmatprep.subr.bf16.mxu0 0
    %6905 = vmatpush1.bf16.xpose.msra.mxu0 0
    %6906 = vmatprep.subr.bf16.mxu0 0
    %6907 = vmatpush1.bf16.xpose.msra.mxu0 0
    %6908 = vmatprep.subr.bf16.mxu0 0
    %6909 = vmatpush1.bf16.xpose.msra.mxu0 0
    %6910 = vmatprep.subr.bf16.mxu0 0
    %6911 = vmatpush1.bf16.xpose.msra.mxu0 0
    %6912 = vmatprep.subr.bf16.mxu0 0
    %6913 = vmatpush1.bf16.xpose.msra.mxu0 0
    %6914 = vmatprep.mubr.bf16.mxu0 0
    %6915 = vmatmul.mubr.bf16.gmra.mrb[0].mxu0 %v6584
    %v6916 = vpop.f32.mrb[0].mxu0
    %v6917 = vadd.f32 0.0, %v6916
    %v6918 = vpop.f32.mrb[0].mxu0
    %v6919 = vpop.f32.mrb[0].mxu0
    %v6920 = vpop.f32.mrb[0].mxu0
    %6921 = vdwg.mxu0
    %6922 = vmatprep.subr.bf16.mxu0 0
    %6923 = vmatpush1.bf16.xpose.msra.mxu0 %v6633
    %6924 = vmatprep.subr.bf16.mxu0 0
    %6925 = vmatpush1.bf16.xpose.msra.mxu0 0
    %6926 = vmatprep.subr.bf16.mxu0 0
    %6927 = vmatpush1.bf16.xpose.msra.mxu0 0
    %6928 = vmatprep.subr.bf16.mxu0 0
    %6929 = vmatpush1.bf16.xpose.msra.mxu0 0
    %6930 = vmatprep.subr.bf16.mxu0 0
    %6931 = vmatpush1.bf16.xpose.msra.mxu0 0
    %6932 = vmatprep.subr.bf16.mxu0 0
    %6933 = vmatpush1.bf16.xpose.msra.mxu0 0
    %6934 = vmatprep.subr.bf16.mxu0 0
    %6935 = vmatpush1.bf16.xpose.msra.mxu0 0
    %6936 = vmatprep.subr.bf16.mxu0 0
    %6937 = vmatpush1.bf16.xpose.msra.mxu0 0
    %6938 = vmatprep.subr.bf16.mxu0 0
    %6939 = vmatpush1.bf16.xpose.msra.mxu0 0
    %6940 = vmatprep.subr.bf16.mxu0 0
    %6941 = vmatpush1.bf16.xpose.msra.mxu0 0
    %6942 = vmatprep.subr.bf16.mxu0 0
    %6943 = vmatpush1.bf16.xpose.msra.mxu0 0
    %6944 = vmatprep.subr.bf16.mxu0 0
    %6945 = vmatpush1.bf16.xpose.msra.mxu0 0
    %6946 = vmatprep.subr.bf16.mxu0 0
    %6947 = vmatpush1.bf16.xpose.msra.mxu0 0
    %6948 = vmatprep.subr.bf16.mxu0 0
    %6949 = vmatpush1.bf16.xpose.msra.mxu0 0
    %6950 = vmatprep.subr.bf16.mxu0 0
    %6951 = vmatpush1.bf16.xpose.msra.mxu0 0
    %6952 = vmatprep.subr.bf16.mxu0 0
    %6953 = vmatpush1.bf16.xpose.msra.mxu0 0
    %6954 = vmatprep.mubr.bf16.mxu0 0
    %6955 = vmatmul.mubr.bf16.gmra.mrb[0].mxu0 %v6585
    %v6956 = vpop.f32.mrb[0].mxu0
    %v6957 = vadd.f32 0.0, %v6956
    %v6958 = vpop.f32.mrb[0].mxu0
    %v6959 = vpop.f32.mrb[0].mxu0
    %v6960 = vpop.f32.mrb[0].mxu0
    %6961 = vdwg.mxu0
    %6962 = vmatprep.subr.bf16.mxu0 0
    %6963 = vmatpush1.bf16.xpose.msra.mxu0 %v6634
    %6964 = vmatprep.subr.bf16.mxu0 0
    %6965 = vmatpush1.bf16.xpose.msra.mxu0 0
    %6966 = vmatprep.subr.bf16.mxu0 0
    %6967 = vmatpush1.bf16.xpose.msra.mxu0 0
    %6968 = vmatprep.subr.bf16.mxu0 0
    %6969 = vmatpush1.bf16.xpose.msra.mxu0 0
    %6970 = vmatprep.subr.bf16.mxu0 0
    %6971 = vmatpush1.bf16.xpose.msra.mxu0 0
    %6972 = vmatprep.subr.bf16.mxu0 0
    %6973 = vmatpush1.bf16.xpose.msra.mxu0 0
    %6974 = vmatprep.subr.bf16.mxu0 0
    %6975 = vmatpush1.bf16.xpose.msra.mxu0 0
    %6976 = vmatprep.subr.bf16.mxu0 0
    %6977 = vmatpush1.bf16.xpose.msra.mxu0 0
    %6978 = vmatprep.subr.bf16.mxu0 0
    %6979 = vmatpush1.bf16.xpose.msra.mxu0 0
    %6980 = vmatprep.subr.bf16.mxu0 0
    %6981 = vmatpush1.bf16.xpose.msra.mxu0 0
    %6982 = vmatprep.subr.bf16.mxu0 0
    %6983 = vmatpush1.bf16.xpose.msra.mxu0 0
    %6984 = vmatprep.subr.bf16.mxu0 0
    %6985 = vmatpush1.bf16.xpose.msra.mxu0 0
    %6986 = vmatprep.subr.bf16.mxu0 0
    %6987 = vmatpush1.bf16.xpose.msra.mxu0 0
    %6988 = vmatprep.subr.bf16.mxu0 0
    %6989 = vmatpush1.bf16.xpose.msra.mxu0 0
    %6990 = vmatprep.subr.bf16.mxu0 0
    %6991 = vmatpush1.bf16.xpose.msra.mxu0 0
    %6992 = vmatprep.subr.bf16.mxu0 0
    %6993 = vmatpush1.bf16.xpose.msra.mxu0 0
    %6994 = vmatprep.mubr.bf16.mxu0 0
    %6995 = vmatmul.mubr.bf16.gmra.mrb[0].mxu0 %v6586
    %v6996 = vpop.f32.mrb[0].mxu0
    %v6997 = vadd.f32 0.0, %v6996
    %v6998 = vpop.f32.mrb[0].mxu0
    %v6999 = vpop.f32.mrb[0].mxu0
    %v7000 = vpop.f32.mrb[0].mxu0
    %7001 = vdwg.mxu0
    %7002 = vmatprep.subr.bf16.mxu0 0
    %7003 = vmatpush1.bf16.xpose.msra.mxu0 %v6635
    %7004 = vmatprep.subr.bf16.mxu0 0
    %7005 = vmatpush1.bf16.xpose.msra.mxu0 0
    %7006 = vmatprep.subr.bf16.mxu0 0
    %7007 = vmatpush1.bf16.xpose.msra.mxu0 0
    %7008 = vmatprep.subr.bf16.mxu0 0
    %7009 = vmatpush1.bf16.xpose.msra.mxu0 0
    %7010 = vmatprep.subr.bf16.mxu0 0
    %7011 = vmatpush1.bf16.xpose.msra.mxu0 0
    %7012 = vmatprep.subr.bf16.mxu0 0
    %7013 = vmatpush1.bf16.xpose.msra.mxu0 0
    %7014 = vmatprep.subr.bf16.mxu0 0
    %7015 = vmatpush1.bf16.xpose.msra.mxu0 0
    %7016 = vmatprep.subr.bf16.mxu0 0
    %7017 = vmatpush1.bf16.xpose.msra.mxu0 0
    %7018 = vmatprep.subr.bf16.mxu0 0
    %7019 = vmatpush1.bf16.xpose.msra.mxu0 0
    %7020 = vmatprep.subr.bf16.mxu0 0
    %7021 = vmatpush1.bf16.xpose.msra.mxu0 0
    %7022 = vmatprep.subr.bf16.mxu0 0
    %7023 = vmatpush1.bf16.xpose.msra.mxu0 0
    %7024 = vmatprep.subr.bf16.mxu0 0
    %7025 = vmatpush1.bf16.xpose.msra.mxu0 0
    %7026 = vmatprep.subr.bf16.mxu0 0
    %7027 = vmatpush1.bf16.xpose.msra.mxu0 0
    %7028 = vmatprep.subr.bf16.mxu0 0
    %7029 = vmatpush1.bf16.xpose.msra.mxu0 0
    %7030 = vmatprep.subr.bf16.mxu0 0
    %7031 = vmatpush1.bf16.xpose.msra.mxu0 0
    %7032 = vmatprep.subr.bf16.mxu0 0
    %7033 = vmatpush1.bf16.xpose.msra.mxu0 0
    %7034 = vmatprep.mubr.bf16.mxu0 0
    %7035 = vmatmul.mubr.bf16.gmra.mrb[0].mxu0 %v6587
    %v7036 = vpop.f32.mrb[0].mxu0
    %v7037 = vadd.f32 0.0, %v7036
    %v7038 = vpop.f32.mrb[0].mxu0
    %v7039 = vpop.f32.mrb[0].mxu0
    %v7040 = vpop.f32.mrb[0].mxu0
    %7041 = vdwg.mxu0
    %7042 = vmatprep.subr.bf16.mxu0 0
    %7043 = vmatpush1.bf16.xpose.msra.mxu0 %v6636
    %7044 = vmatprep.subr.bf16.mxu0 0
    %7045 = vmatpush1.bf16.xpose.msra.mxu0 0
    %7046 = vmatprep.subr.bf16.mxu0 0
    %7047 = vmatpush1.bf16.xpose.msra.mxu0 0
    %7048 = vmatprep.subr.bf16.mxu0 0
    %7049 = vmatpush1.bf16.xpose.msra.mxu0 0
    %7050 = vmatprep.subr.bf16.mxu0 0
    %7051 = vmatpush1.bf16.xpose.msra.mxu0 0
    %7052 = vmatprep.subr.bf16.mxu0 0
    %7053 = vmatpush1.bf16.xpose.msra.mxu0 0
    %7054 = vmatprep.subr.bf16.mxu0 0
    %7055 = vmatpush1.bf16.xpose.msra.mxu0 0
    %7056 = vmatprep.subr.bf16.mxu0 0
    %7057 = vmatpush1.bf16.xpose.msra.mxu0 0
    %7058 = vmatprep.subr.bf16.mxu0 0
    %7059 = vmatpush1.bf16.xpose.msra.mxu0 0
    %7060 = vmatprep.subr.bf16.mxu0 0
    %7061 = vmatpush1.bf16.xpose.msra.mxu0 0
    %7062 = vmatprep.subr.bf16.mxu0 0
    %7063 = vmatpush1.bf16.xpose.msra.mxu0 0
    %7064 = vmatprep.subr.bf16.mxu0 0
    %7065 = vmatpush1.bf16.xpose.msra.mxu0 0
    %7066 = vmatprep.subr.bf16.mxu0 0
    %7067 = vmatpush1.bf16.xpose.msra.mxu0 0
    %7068 = vmatprep.subr.bf16.mxu0 0
    %7069 = vmatpush1.bf16.xpose.msra.mxu0 0
    %7070 = vmatprep.subr.bf16.mxu0 0
    %7071 = vmatpush1.bf16.xpose.msra.mxu0 0
    %7072 = vmatprep.subr.bf16.mxu0 0
    %7073 = vmatpush1.bf16.xpose.msra.mxu0 0
    %7074 = vmatprep.mubr.bf16.mxu0 0
    %7075 = vmatmul.mubr.bf16.gmra.mrb[0].mxu0 %v6588
    %v7076 = vpop.f32.mrb[0].mxu0
    %v7077 = vadd.f32 0.0, %v7076
    %v7078 = vpop.f32.mrb[0].mxu0
    %v7079 = vpop.f32.mrb[0].mxu0
    %v7080 = vpop.f32.mrb[0].mxu0
    %7081 = vdwg.mxu0
    %7082 = vmatprep.subr.bf16.mxu0 0
    %7083 = vmatpush1.bf16.xpose.msra.mxu0 %v6637
    %7084 = vmatprep.subr.bf16.mxu0 0
    %7085 = vmatpush1.bf16.xpose.msra.mxu0 0
    %7086 = vmatprep.subr.bf16.mxu0 0
    %7087 = vmatpush1.bf16.xpose.msra.mxu0 0
    %7088 = vmatprep.subr.bf16.mxu0 0
    %7089 = vmatpush1.bf16.xpose.msra.mxu0 0
    %7090 = vmatprep.subr.bf16.mxu0 0
    %7091 = vmatpush1.bf16.xpose.msra.mxu0 0
    %7092 = vmatprep.subr.bf16.mxu0 0
    %7093 = vmatpush1.bf16.xpose.msra.mxu0 0
    %7094 = vmatprep.subr.bf16.mxu0 0
    %7095 = vmatpush1.bf16.xpose.msra.mxu0 0
    %7096 = vmatprep.subr.bf16.mxu0 0
    %7097 = vmatpush1.bf16.xpose.msra.mxu0 0
    %7098 = vmatprep.subr.bf16.mxu0 0
    %7099 = vmatpush1.bf16.xpose.msra.mxu0 0
    %7100 = vmatprep.subr.bf16.mxu0 0
    %7101 = vmatpush1.bf16.xpose.msra.mxu0 0
    %7102 = vmatprep.subr.bf16.mxu0 0
    %7103 = vmatpush1.bf16.xpose.msra.mxu0 0
    %7104 = vmatprep.subr.bf16.mxu0 0
    %7105 = vmatpush1.bf16.xpose.msra.mxu0 0
    %7106 = vmatprep.subr.bf16.mxu0 0
    %7107 = vmatpush1.bf16.xpose.msra.mxu0 0
    %7108 = vmatprep.subr.bf16.mxu0 0
    %7109 = vmatpush1.bf16.xpose.msra.mxu0 0
    %7110 = vmatprep.subr.bf16.mxu0 0
    %7111 = vmatpush1.bf16.xpose.msra.mxu0 0
    %7112 = vmatprep.subr.bf16.mxu0 0
    %7113 = vmatpush1.bf16.xpose.msra.mxu0 0
    %7114 = vmatprep.mubr.bf16.mxu0 0
    %7115 = vmatmul.mubr.bf16.gmra.mrb[0].mxu0 %v6589
    %v7116 = vpop.f32.mrb[0].mxu0
    %v7117 = vadd.f32 0.0, %v7116
    %v7118 = vpop.f32.mrb[0].mxu0
    %v7119 = vpop.f32.mrb[0].mxu0
    %v7120 = vpop.f32.mrb[0].mxu0
    %7121 = vdwg.mxu0
    %7122 = vmatprep.subr.bf16.mxu0 0
    %7123 = vmatpush1.bf16.xpose.msra.mxu0 %v6638
    %7124 = vmatprep.subr.bf16.mxu0 0
    %7125 = vmatpush1.bf16.xpose.msra.mxu0 0
    %7126 = vmatprep.subr.bf16.mxu0 0
    %7127 = vmatpush1.bf16.xpose.msra.mxu0 0
    %7128 = vmatprep.subr.bf16.mxu0 0
    %7129 = vmatpush1.bf16.xpose.msra.mxu0 0
    %7130 = vmatprep.subr.bf16.mxu0 0
    %7131 = vmatpush1.bf16.xpose.msra.mxu0 0
    %7132 = vmatprep.subr.bf16.mxu0 0
    %7133 = vmatpush1.bf16.xpose.msra.mxu0 0
    %7134 = vmatprep.subr.bf16.mxu0 0
    %7135 = vmatpush1.bf16.xpose.msra.mxu0 0
    %7136 = vmatprep.subr.bf16.mxu0 0
    %7137 = vmatpush1.bf16.xpose.msra.mxu0 0
    %7138 = vmatprep.subr.bf16.mxu0 0
    %7139 = vmatpush1.bf16.xpose.msra.mxu0 0
    %7140 = vmatprep.subr.bf16.mxu0 0
    %7141 = vmatpush1.bf16.xpose.msra.mxu0 0
    %7142 = vmatprep.subr.bf16.mxu0 0
    %7143 = vmatpush1.bf16.xpose.msra.mxu0 0
    %7144 = vmatprep.subr.bf16.mxu0 0
    %7145 = vmatpush1.bf16.xpose.msra.mxu0 0
    %7146 = vmatprep.subr.bf16.mxu0 0
    %7147 = vmatpush1.bf16.xpose.msra.mxu0 0
    %7148 = vmatprep.subr.bf16.mxu0 0
    %7149 = vmatpush1.bf16.xpose.msra.mxu0 0
    %7150 = vmatprep.subr.bf16.mxu0 0
    %7151 = vmatpush1.bf16.xpose.msra.mxu0 0
    %7152 = vmatprep.subr.bf16.mxu0 0
    %7153 = vmatpush1.bf16.xpose.msra.mxu0 0
    %7154 = vmatprep.mubr.bf16.mxu0 0
    %7155 = vmatmul.mubr.bf16.gmra.mrb[0].mxu0 %v6590
    %v7156 = vpop.f32.mrb[0].mxu0
    %v7157 = vadd.f32 0.0, %v7156
    %v7158 = vpop.f32.mrb[0].mxu0
    %v7159 = vpop.f32.mrb[0].mxu0
    %v7160 = vpop.f32.mrb[0].mxu0
    %7161 = vdwg.mxu0
    %7162 = vmatprep.subr.bf16.mxu0 0
    %7163 = vmatpush1.bf16.xpose.msra.mxu0 %v6639
    %7164 = vmatprep.subr.bf16.mxu0 0
    %7165 = vmatpush1.bf16.xpose.msra.mxu0 0
    %7166 = vmatprep.subr.bf16.mxu0 0
    %7167 = vmatpush1.bf16.xpose.msra.mxu0 0
    %7168 = vmatprep.subr.bf16.mxu0 0
    %7169 = vmatpush1.bf16.xpose.msra.mxu0 0
    %7170 = vmatprep.subr.bf16.mxu0 0
    %7171 = vmatpush1.bf16.xpose.msra.mxu0 0
    %7172 = vmatprep.subr.bf16.mxu0 0
    %7173 = vmatpush1.bf16.xpose.msra.mxu0 0
    %7174 = vmatprep.subr.bf16.mxu0 0
    %7175 = vmatpush1.bf16.xpose.msra.mxu0 0
    %7176 = vmatprep.subr.bf16.mxu0 0
    %7177 = vmatpush1.bf16.xpose.msra.mxu0 0
    %7178 = vmatprep.subr.bf16.mxu0 0
    %7179 = vmatpush1.bf16.xpose.msra.mxu0 0
    %7180 = vmatprep.subr.bf16.mxu0 0
    %7181 = vmatpush1.bf16.xpose.msra.mxu0 0
    %7182 = vmatprep.subr.bf16.mxu0 0
    %7183 = vmatpush1.bf16.xpose.msra.mxu0 0
    %7184 = vmatprep.subr.bf16.mxu0 0
    %7185 = vmatpush1.bf16.xpose.msra.mxu0 0
    %7186 = vmatprep.subr.bf16.mxu0 0
    %7187 = vmatpush1.bf16.xpose.msra.mxu0 0
    %7188 = vmatprep.subr.bf16.mxu0 0
    %7189 = vmatpush1.bf16.xpose.msra.mxu0 0
    %7190 = vmatprep.subr.bf16.mxu0 0
    %7191 = vmatpush1.bf16.xpose.msra.mxu0 0
    %7192 = vmatprep.subr.bf16.mxu0 0
    %7193 = vmatpush1.bf16.xpose.msra.mxu0 0
    %7194 = vmatprep.mubr.bf16.mxu0 0
    %7195 = vmatmul.mubr.bf16.gmra.mrb[0].mxu0 %v6591
    %v7196 = vpop.f32.mrb[0].mxu0
    %v7197 = vadd.f32 0.0, %v7196
    %v7198 = vpop.f32.mrb[0].mxu0
    %v7199 = vpop.f32.mrb[0].mxu0
    %v7200 = vpop.f32.mrb[0].mxu0
    %7201 = vdwg.mxu0
    %7202 = vmatprep.subr.bf16.mxu0 0
    %7203 = vmatpush1.bf16.xpose.msra.mxu0 %v6640
    %7204 = vmatprep.subr.bf16.mxu0 0
    %7205 = vmatpush1.bf16.xpose.msra.mxu0 0
    %7206 = vmatprep.subr.bf16.mxu0 0
    %7207 = vmatpush1.bf16.xpose.msra.mxu0 0
    %7208 = vmatprep.subr.bf16.mxu0 0
    %7209 = vmatpush1.bf16.xpose.msra.mxu0 0
    %7210 = vmatprep.subr.bf16.mxu0 0
    %7211 = vmatpush1.bf16.xpose.msra.mxu0 0
    %7212 = vmatprep.subr.bf16.mxu0 0
    %7213 = vmatpush1.bf16.xpose.msra.mxu0 0
    %7214 = vmatprep.subr.bf16.mxu0 0
    %7215 = vmatpush1.bf16.xpose.msra.mxu0 0
    %7216 = vmatprep.subr.bf16.mxu0 0
    %7217 = vmatpush1.bf16.xpose.msra.mxu0 0
    %7218 = vmatprep.subr.bf16.mxu0 0
    %7219 = vmatpush1.bf16.xpose.msra.mxu0 0
    %7220 = vmatprep.subr.bf16.mxu0 0
    %7221 = vmatpush1.bf16.xpose.msra.mxu0 0
    %7222 = vmatprep.subr.bf16.mxu0 0
    %7223 = vmatpush1.bf16.xpose.msra.mxu0 0
    %7224 = vmatprep.subr.bf16.mxu0 0
    %7225 = vmatpush1.bf16.xpose.msra.mxu0 0
    %7226 = vmatprep.subr.bf16.mxu0 0
    %7227 = vmatpush1.bf16.xpose.msra.mxu0 0
    %7228 = vmatprep.subr.bf16.mxu0 0
    %7229 = vmatpush1.bf16.xpose.msra.mxu0 0
    %7230 = vmatprep.subr.bf16.mxu0 0
    %7231 = vmatpush1.bf16.xpose.msra.mxu0 0
    %7232 = vmatprep.subr.bf16.mxu0 0
    %7233 = vmatpush1.bf16.xpose.msra.mxu0 0
    %7234 = vmatprep.mubr.bf16.mxu0 0
    %7235 = vmatmul.mubr.bf16.gmra.mrb[0].mxu0 %v6592
    %v7236 = vpop.f32.mrb[0].mxu0
    %v7237 = vadd.f32 0.0, %v7236
    %v7238 = vpop.f32.mrb[0].mxu0
    %v7239 = vpop.f32.mrb[0].mxu0
    %v7240 = vpop.f32.mrb[0].mxu0
    %7241 = vdwg.mxu0
    %7242 = vmatprep.subr.bf16.mxu0 0
    %7243 = vmatpush1.bf16.xpose.msra.mxu0 %v6641
    %7244 = vmatprep.subr.bf16.mxu0 0
    %7245 = vmatpush1.bf16.xpose.msra.mxu0 0
    %7246 = vmatprep.subr.bf16.mxu0 0
    %7247 = vmatpush1.bf16.xpose.msra.mxu0 0
    %7248 = vmatprep.subr.bf16.mxu0 0
    %7249 = vmatpush1.bf16.xpose.msra.mxu0 0
    %7250 = vmatprep.subr.bf16.mxu0 0
    %7251 = vmatpush1.bf16.xpose.msra.mxu0 0
    %7252 = vmatprep.subr.bf16.mxu0 0
    %7253 = vmatpush1.bf16.xpose.msra.mxu0 0
    %7254 = vmatprep.subr.bf16.mxu0 0
    %7255 = vmatpush1.bf16.xpose.msra.mxu0 0
    %7256 = vmatprep.subr.bf16.mxu0 0
    %7257 = vmatpush1.bf16.xpose.msra.mxu0 0
    %7258 = vmatprep.subr.bf16.mxu0 0
    %7259 = vmatpush1.bf16.xpose.msra.mxu0 0
    %7260 = vmatprep.subr.bf16.mxu0 0
    %7261 = vmatpush1.bf16.xpose.msra.mxu0 0
    %7262 = vmatprep.subr.bf16.mxu0 0
    %7263 = vmatpush1.bf16.xpose.msra.mxu0 0
    %7264 = vmatprep.subr.bf16.mxu0 0
    %7265 = vmatpush1.bf16.xpose.msra.mxu0 0
    %7266 = vmatprep.subr.bf16.mxu0 0
    %7267 = vmatpush1.bf16.xpose.msra.mxu0 0
    %7268 = vmatprep.subr.bf16.mxu0 0
    %7269 = vmatpush1.bf16.xpose.msra.mxu0 0
    %7270 = vmatprep.subr.bf16.mxu0 0
    %7271 = vmatpush1.bf16.xpose.msra.mxu0 0
    %7272 = vmatprep.subr.bf16.mxu0 0
    %7273 = vmatpush1.bf16.xpose.msra.mxu0 0
    %7274 = vmatprep.mubr.bf16.mxu0 0
    %7275 = vmatmul.mubr.bf16.gmra.mrb[0].mxu0 %v6593
    %v7276 = vpop.f32.mrb[0].mxu0
    %v7277 = vadd.f32 0.0, %v7276
    %v7278 = vpop.f32.mrb[0].mxu0
    %v7279 = vpop.f32.mrb[0].mxu0
    %v7280 = vpop.f32.mrb[0].mxu0
    %7281 = vdwg.mxu0
    %v7282 = vmax.f32 %v6677, 0.0
    %v7283 = vmax.f32 %v6717, 0.0
    %v7284 = vmax.f32 %v6757, 0.0
    %v7285 = vmax.f32 %v6797, 0.0
    %v7286 = vmax.f32 %v6837, 0.0
    %v7287 = vmax.f32 %v6877, 0.0
    %v7288 = vmax.f32 %v6917, 0.0
    %v7289 = vmax.f32 %v6957, 0.0
    %v7290 = vmax.f32 %v6997, 0.0
    %v7291 = vmax.f32 %v7037, 0.0
    %v7292 = vmax.f32 %v7077, 0.0
    %v7293 = vmax.f32 %v7117, 0.0
    %v7294 = vmax.f32 %v7157, 0.0
    %v7295 = vmax.f32 %v7197, 0.0
    %v7296 = vmax.f32 %v7237, 0.0
    %v7297 = vmax.f32 %v7277, 0.0
    %v7314 = vrot.slane %v7283, 7
    %vm7315 = vcmask 1041409
    %v7316 = vsel %vm7315, %v7314, %v7282
    %v7317 = vrot.slane %v7284, 6
    %vm7318 = vcmask 1042434
    %v7319 = vsel %vm7318, %v7317, %v7316
    %v7320 = vrot.slane %v7285, 5
    %vm7321 = vcmask 1043459
    %v7322 = vsel %vm7321, %v7320, %v7319
    %v7323 = vrot.slane %v7286, 4
    %vm7324 = vcmask 1044484
    %v7325 = vsel %vm7324, %v7323, %v7322
    %v7326 = vrot.slane %v7287, 3
    %vm7327 = vcmask 1045509
    %v7328 = vsel %vm7327, %v7326, %v7325
    %v7329 = vrot.slane %v7288, 2
    %vm7330 = vcmask 1046534
    %v7331 = vsel %vm7330, %v7329, %v7328
    %v7332 = vrot.slane %v7289, 1
    %vm7333 = vcmask 1047559
    %v7334 = vsel %vm7333, %v7332, %v7331
    %v7335 = vrot.slane %v7291, 7
    %v7336 = vsel %vm7315, %v7335, %v7290
    %v7337 = vrot.slane %v7292, 6
    %v7338 = vsel %vm7318, %v7337, %v7336
    %v7339 = vrot.slane %v7293, 5
    %v7340 = vsel %vm7321, %v7339, %v7338
    %v7341 = vrot.slane %v7294, 4
    %v7342 = vsel %vm7324, %v7341, %v7340
    %v7343 = vrot.slane %v7295, 3
    %v7344 = vsel %vm7327, %v7343, %v7342
    %v7345 = vrot.slane %v7296, 2
    %v7346 = vsel %vm7330, %v7345, %v7344
    %v7347 = vrot.slane %v7297, 1
    %v7348 = vsel %vm7333, %v7347, %v7346
    %vm7351 = vcmask 130048
    %7352 = vst.msk [vmem:[#allocation4] sm:$0xff] %vm7351, %v7334
    %7353 = vst.msk [vmem:[#allocation4 + $0x8] sm:$0xff] %vm7351, %v7348
    %v7354 = vsel %vm7318, %v7314, %v7282
    %v7355 = vsel %vm7321, %v7317, %v7354
    %v7356 = vsel %vm7324, %v7320, %v7355
    %v7357 = vsel %vm7327, %v7323, %v7356
    %v7358 = vsel %vm7330, %v7326, %v7357
    %v7359 = vsel %vm7333, %v7329, %v7358
    %v7360 = vsel %vm7315, %v7290, %v7332
    %v7361 = vsel %vm7318, %v7335, %v7360
    %v7362 = vsel %vm7321, %v7337, %v7361
    %v7363 = vsel %vm7324, %v7339, %v7362
    %v7364 = vsel %vm7327, %v7341, %v7363
    %v7365 = vsel %vm7330, %v7343, %v7364
    %v7366 = vsel %vm7333, %v7345, %v7365
    %7367 = vrot.lane.b32.xlu0 %v7359, 16
    %v7368 = vpop.permute.xlu0 %7367
    %7369 = vrot.lane.b32.xlu0 %v7366, 16
    %v7370 = vpop.permute.xlu0 %7369
    %7371 = vrot.lane.b32.xlu0 %v7347, 16
    %v7372 = vpop.permute.xlu0 %7371
    %vm7376 = vcmask 261249
    %7377 = vst.msk [vmem:[#allocation4 - $0x1] sm:$0xfe] %vm7376, %v7368
    %vm7378 = vcmask 261248
    %7379 = vst.msk [vmem:[#allocation4 + $0x7] sm:$0xff] %vm7378, %v7370
    %vm7380 = vcmask 254080
    %7381 = vst.msk [vmem:[#allocation4 + $0xf] sm:$0x1] %vm7380, %v7372
    %v7382 = vsel %vm7321, %v7314, %v7282
    %v7383 = vsel %vm7324, %v7317, %v7382
    %v7384 = vsel %vm7327, %v7320, %v7383
    %v7385 = vsel %vm7330, %v7323, %v7384
    %v7386 = vsel %vm7333, %v7326, %v7385
    %v7387 = vsel %vm7315, %v7332, %v7329
    %v7388 = vsel %vm7318, %v7290, %v7387
    %v7389 = vsel %vm7321, %v7335, %v7388
    %v7390 = vsel %vm7324, %v7337, %v7389
    %v7391 = vsel %vm7327, %v7339, %v7390
    %v7392 = vsel %vm7330, %v7341, %v7391
    %v7393 = vsel %vm7333, %v7343, %v7392
    %v7394 = vsel %vm7315, %v7347, %v7345
    %7395 = vrot.lane.b32.xlu0 %v7386, 32
    %v7396 = vpop.permute.xlu0 %7395
    %7397 = vrot.lane.b32.xlu0 %v7393, 32
    %v7398 = vpop.permute.xlu0 %7397
    %7399 = vrot.lane.b32.xlu0 %v7394, 32
    %v7400 = vpop.permute.xlu0 %7399
    %vm7404 = vcmask 392450
    %7405 = vst.msk [vmem:[#allocation4 - $0x2] sm:$0xfc] %vm7404, %v7396
    %vm7406 = vcmask 392448
    %7407 = vst.msk [vmem:[#allocation4 + $0x6] sm:$0xff] %vm7406, %v7398
    %vm7408 = vcmask 386304
    %7409 = vst.msk [vmem:[#allocation4 + $0xe] sm:$0x3] %vm7408, %v7400
    %v7410 = vsel %vm7324, %v7314, %v7282
    %v7411 = vsel %vm7327, %v7317, %v7410
    %v7412 = vsel %vm7330, %v7320, %v7411
    %v7413 = vsel %vm7333, %v7323, %v7412
    %v7414 = vsel %vm7315, %v7329, %v7326
    %v7415 = vsel %vm7318, %v7332, %v7414
    %v7416 = vsel %vm7321, %v7290, %v7415
    %v7417 = vsel %vm7324, %v7335, %v7416
    %v7418 = vsel %vm7327, %v7337, %v7417
    %v7419 = vsel %vm7330, %v7339, %v7418
    %v7420 = vsel %vm7333, %v7341, %v7419
    %v7421 = vsel %vm7315, %v7345, %v7343
    %v7422 = vsel %vm7318, %v7347, %v7421
    %7423 = vrot.lane.b32.xlu0 %v7413, 48
    %v7424 = vpop.permute.xlu0 %7423
    %7425 = vrot.lane.b32.xlu0 %v7420, 48
    %v7426 = vpop.permute.xlu0 %7425
    %7427 = vrot.lane.b32.xlu0 %v7422, 48
    %v7428 = vpop.permute.xlu0 %7427
    %vm7432 = vcmask 523651
    %7433 = vst.msk [vmem:[#allocation4 - $0x3] sm:$0xf8] %vm7432, %v7424
    %vm7434 = vcmask 523648
    %7435 = vst.msk [vmem:[#allocation4 + $0x5] sm:$0xff] %vm7434, %v7426
    %vm7436 = vcmask 518528
    %7437 = vst.msk [vmem:[#allocation4 + $0xd] sm:$0x7] %vm7436, %v7428
    %v7438 = vsel %vm7327, %v7314, %v7282
    %v7439 = vsel %vm7330, %v7317, %v7438
    %v7440 = vsel %vm7333, %v7320, %v7439
    %v7441 = vsel %vm7315, %v7326, %v7323
    %v7442 = vsel %vm7318, %v7329, %v7441
    %v7443 = vsel %vm7321, %v7332, %v7442
    %v7444 = vsel %vm7324, %v7290, %v7443
    %v7445 = vsel %vm7327, %v7335, %v7444
    %v7446 = vsel %vm7330, %v7337, %v7445
    %v7447 = vsel %vm7333, %v7339, %v7446
    %v7448 = vsel %vm7315, %v7343, %v7341
    %v7449 = vsel %vm7318, %v7345, %v7448
    %v7450 = vsel %vm7321, %v7347, %v7449
    %7451 = vrot.lane.b32.xlu0 %v7440, 64
    %v7452 = vpop.permute.xlu0 %7451
    %7453 = vrot.lane.b32.xlu0 %v7447, 64
    %v7454 = vpop.permute.xlu0 %7453
    %7455 = vrot.lane.b32.xlu0 %v7450, 64
    %v7456 = vpop.permute.xlu0 %7455
    %vm7460 = vcmask 654852
    %7461 = vst.msk [vmem:[#allocation4 - $0x4] sm:$0xf0] %vm7460, %v7452
    %vm7462 = vcmask 654848
    %7463 = vst.msk [vmem:[#allocation4 + $0x4] sm:$0xff] %vm7462, %v7454
    %vm7464 = vcmask 650752
    %7465 = vst.msk [vmem:[#allocation4 + $0xc] sm:$0xf] %vm7464, %v7456
    %v7466 = vsel %vm7330, %v7314, %v7282
    %v7467 = vsel %vm7333, %v7317, %v7466
    %v7468 = vsel %vm7315, %v7323, %v7320
    %v7469 = vsel %vm7318, %v7326, %v7468
    %v7470 = vsel %vm7321, %v7329, %v7469
    %v7471 = vsel %vm7324, %v7332, %v7470
    %v7472 = vsel %vm7327, %v7290, %v7471
    %v7473 = vsel %vm7330, %v7335, %v7472
    %v7474 = vsel %vm7333, %v7337, %v7473
    %v7475 = vsel %vm7315, %v7341, %v7339
    %v7476 = vsel %vm7318, %v7343, %v7475
    %v7477 = vsel %vm7321, %v7345, %v7476
    %v7478 = vsel %vm7324, %v7347, %v7477
    %7479 = vrot.lane.b32.xlu0 %v7467, 80
    %v7480 = vpop.permute.xlu0 %7479
    %7481 = vrot.lane.b32.xlu0 %v7474, 80
    %v7482 = vpop.permute.xlu0 %7481
    %7483 = vrot.lane.b32.xlu0 %v7478, 80
    %v7484 = vpop.permute.xlu0 %7483
    %vm7488 = vcmask 786053
    %7489 = vst.msk [vmem:[#allocation4 - $0x5] sm:$0xe0] %vm7488, %v7480
    %vm7490 = vcmask 786048
    %7491 = vst.msk [vmem:[#allocation4 + $0x3] sm:$0xff] %vm7490, %v7482
    %vm7492 = vcmask 782976
    %7493 = vst.msk [vmem:[#allocation4 + $0xb] sm:$0x1f] %vm7492, %v7484
    %v7494 = vsel %vm7333, %v7314, %v7282
    %v7495 = vsel %vm7315, %v7320, %v7317
    %v7496 = vsel %vm7318, %v7323, %v7495
    %v7497 = vsel %vm7321, %v7326, %v7496
    %v7498 = vsel %vm7324, %v7329, %v7497
    %v7499 = vsel %vm7327, %v7332, %v7498
    %v7500 = vsel %vm7330, %v7290, %v7499
    %v7501 = vsel %vm7333, %v7335, %v7500
    %v7502 = vsel %vm7315, %v7339, %v7337
    %v7503 = vsel %vm7318, %v7341, %v7502
    %v7504 = vsel %vm7321, %v7343, %v7503
    %v7505 = vsel %vm7324, %v7345, %v7504
    %v7506 = vsel %vm7327, %v7347, %v7505
    %7507 = vrot.lane.b32.xlu0 %v7494, 96
    %v7508 = vpop.permute.xlu0 %7507
    %7509 = vrot.lane.b32.xlu0 %v7501, 96
    %v7510 = vpop.permute.xlu0 %7509
    %7511 = vrot.lane.b32.xlu0 %v7506, 96
    %v7512 = vpop.permute.xlu0 %7511
    %vm7516 = vcmask 917254
    %7517 = vst.msk [vmem:[#allocation4 - $0x6] sm:$0xc0] %vm7516, %v7508
    %vm7518 = vcmask 917248
    %7519 = vst.msk [vmem:[#allocation4 + $0x2] sm:$0xff] %vm7518, %v7510
    %vm7520 = vcmask 915200
    %7521 = vst.msk [vmem:[#allocation4 + $0xa] sm:$0x3f] %vm7520, %v7512
    %v7522 = vsel %vm7315, %v7317, %v7314
    %v7523 = vsel %vm7318, %v7320, %v7522
    %v7524 = vsel %vm7321, %v7323, %v7523
    %v7525 = vsel %vm7324, %v7326, %v7524
    %v7526 = vsel %vm7327, %v7329, %v7525
    %v7527 = vsel %vm7330, %v7332, %v7526
    %v7528 = vsel %vm7333, %v7290, %v7527
    %v7529 = vsel %vm7315, %v7337, %v7335
    %v7530 = vsel %vm7318, %v7339, %v7529
    %v7531 = vsel %vm7321, %v7341, %v7530
    %v7532 = vsel %vm7324, %v7343, %v7531
    %v7533 = vsel %vm7327, %v7345, %v7532
    %v7534 = vsel %vm7330, %v7347, %v7533
    %7535 = vrot.lane.b32.xlu0 %v7282, 112
    %v7536 = vpop.permute.xlu0 %7535
    %7537 = vrot.lane.b32.xlu0 %v7528, 112
    %v7538 = vpop.permute.xlu0 %7537
    %7539 = vrot.lane.b32.xlu0 %v7534, 112
    %v7540 = vpop.permute.xlu0 %7539
    %vm7544 = vcmask 1048455
    %7545 = vst.msk [vmem:[#allocation4 - $0x7] sm:$0x80] %vm7544, %v7536
    %vm7546 = vcmask 1048448
    %7547 = vst.msk [vmem:[#allocation4 + $0x1] sm:$0xff] %vm7546, %v7538
    %vm7548 = vcmask 1047424
    %7549 = vst.msk [vmem:[#allocation4 + $0x9] sm:$0x7f] %vm7548, %v7540
    %v7550 = vld [vmem:[#allocation4] sm:$0xff]
    %v7551 = vld [vmem:[#allocation4 + $0x8] sm:$0xff]
    %v7552 = vpack.c.bf16 %v7551, %v7550
    %v7553 = vld [vmem:[%s21] sm:$0xf]
    %v7554 = vld [vmem:[%s21 + $0x4] sm:$0xf]
    %v7555 = vld [vmem:[%s21 + $0x8] sm:$0xf]
    %v7556 = vld [vmem:[%s21 + $0xc] sm:$0xf]
    %v7557 = vld [vmem:[%s21 + $0x10] sm:$0xf]
    %v7558 = vld [vmem:[%s21 + $0x14] sm:$0xf]
    %v7559 = vld [vmem:[%s21 + $0x18] sm:$0xf]
    %v7560 = vld [vmem:[%s21 + $0x1c] sm:$0xf]
    %v7561 = vld [vmem:[%s21 + $0x20] sm:$0xf]
    %v7562 = vld [vmem:[%s21 + $0x24] sm:$0xf]
    %v7563 = vld [vmem:[%s21 + $0x28] sm:$0xf]
    %v7564 = vld [vmem:[%s21 + $0x2c] sm:$0xf]
    %v7565 = vld [vmem:[%s21 + $0x30] sm:$0xf]
    %v7566 = vld [vmem:[%s21 + $0x34] sm:$0xf]
    %v7567 = vld [vmem:[%s21 + $0x38] sm:$0xf]
    %v7568 = vld [vmem:[%s21 + $0x3c] sm:$0xf]
    %v7569 = vld [vmem:[%s23] sm:$0x1]
    %v7571 = vlaneseq
    %v7572 = vshrl.u32 %v7571, 7
    %v7573 = vsub.s32 0, %v7572
    %v7574 = vrot.slane %v7569, %v7573
    %v7592 = vunpack.c.l.b16 %v7553
    %v7593 = vunpack.c.l.b16 %v7554
    %v7594 = vunpack.c.l.b16 %v7555
    %v7595 = vunpack.c.l.b16 %v7556
    %v7596 = vunpack.c.l.b16 %v7557
    %v7597 = vunpack.c.l.b16 %v7558
    %v7598 = vunpack.c.l.b16 %v7559
    %v7599 = vunpack.c.l.b16 %v7560
    %v7600 = vunpack.c.l.b16 %v7561
    %v7601 = vunpack.c.l.b16 %v7562
    %v7602 = vunpack.c.l.b16 %v7563
    %v7603 = vunpack.c.l.b16 %v7564
    %v7604 = vunpack.c.l.b16 %v7565
    %v7605 = vunpack.c.l.b16 %v7566
    %v7606 = vunpack.c.l.b16 %v7567
    %v7607 = vunpack.c.l.b16 %v7568
    %v7608 = vpack.c.b16 %v7593, %v7592
    %v7609 = vpack.c.b16 %v7595, %v7594
    %v7610 = vpack.c.b16 %v7597, %v7596
    %v7611 = vpack.c.b16 %v7599, %v7598
    %v7612 = vpack.c.b16 %v7601, %v7600
    %v7613 = vpack.c.b16 %v7603, %v7602
    %v7614 = vpack.c.b16 %v7605, %v7604
    %v7615 = vpack.c.b16 %v7607, %v7606
    %7624 = vmatprep.subr.bf16.mxu0 0
    %7625 = vmatpush1.bf16.msra.mxu0 %v7608
    %7626 = vmatprep.subr.bf16.mxu0 0
    %7627 = vmatpush1.bf16.msra.mxu0 %v7609
    %7628 = vmatprep.subr.bf16.mxu0 0
    %7629 = vmatpush1.bf16.msra.mxu0 %v7610
    %7630 = vmatprep.subr.bf16.mxu0 0
    %7631 = vmatpush1.bf16.msra.mxu0 %v7611
    %7632 = vmatprep.subr.bf16.mxu0 0
    %7633 = vmatpush1.bf16.msra.mxu0 %v7612
    %7634 = vmatprep.subr.bf16.mxu0 0
    %7635 = vmatpush1.bf16.msra.mxu0 %v7613
    %7636 = vmatprep.subr.bf16.mxu0 0
    %7637 = vmatpush1.bf16.msra.mxu0 %v7614
    %7638 = vmatprep.subr.bf16.mxu0 0
    %7639 = vmatpush1.bf16.msra.mxu0 %v7615
    %7640 = vmatprep.subr.bf16.mxu0 0
    %7641 = vmatpush1.bf16.msra.mxu0 0
    %7642 = vmatprep.subr.bf16.mxu0 0
    %7643 = vmatpush1.bf16.msra.mxu0 0
    %7644 = vmatprep.subr.bf16.mxu0 0
    %7645 = vmatpush1.bf16.msra.mxu0 0
    %7646 = vmatprep.subr.bf16.mxu0 0
    %7647 = vmatpush1.bf16.msra.mxu0 0
    %7648 = vmatprep.subr.bf16.mxu0 0
    %7649 = vmatpush1.bf16.msra.mxu0 0
    %7650 = vmatprep.subr.bf16.mxu0 0
    %7651 = vmatpush1.bf16.msra.mxu0 0
    %7652 = vmatprep.subr.bf16.mxu0 0
    %7653 = vmatpush1.bf16.msra.mxu0 0
    %7654 = vmatprep.subr.bf16.mxu0 0
    %7655 = vmatpush1.bf16.msra.mxu0 0
    %7656 = vmatprep.mubr.bf16.mxu0 0
    %7657 = vmatmul.mubr.bf16.gmra.mrb[0].mxu0 %v7552
    %v7658 = vpop.f32.mrb[0].mxu0
    %v7659 = vadd.f32 %v7574, %v7658
    %v7660 = vpop.f32.mrb[0].mxu0
    %v7661 = vpop.f32.mrb[0].mxu0
    %v7662 = vadd.f32 %v7574, %v7661
    %v7663 = vpop.f32.mrb[0].mxu0
    %7664 = vdwg.mxu0
    %v7665 = vld [vmem:[%s25] sm:$0x1]
    %v7666 = vld [vmem:[%s27] sm:$0x1]
    %7667 = vadd.xlane.f32.xlu0 %v7659
    %v7668 = vpop.xlane.xlu0 %7667
    %7669 = vadd.xlane.f32.xlu0 %v7662
    %v7670 = vpop.xlane.xlu0 %7669
    %v7671 = vrcp.pop 128.0
    %v7672 = vmul.f32 %v7668, %v7671
    %v7673 = vmul.f32 %v7670, %v7671
    %v7674 = vsub.f32 %v7659, %v7672
    %v7675 = vsub.f32 %v7662, %v7673
    %v7676 = vmul.f32 %v7674, %v7674
    %v7677 = vmul.f32 %v7675, %v7675
    %7678 = vadd.xlane.f32.xlu0 %v7676
    %v7679 = vpop.xlane.xlu0 %7678
    %7680 = vadd.xlane.f32.xlu0 %v7677
    %v7681 = vpop.xlane.xlu0 %7680
    %v7682 = vmul.f32 %v7679, %v7671
    %v7683 = vmul.f32 %v7681, %v7671
    %v7684 = vadd.f32 %v7682, 1e-05
    %v7685 = vadd.f32 %v7683, 1e-05
    %v7686 = vrsqrt.pop %v7684
    %v7687 = vrsqrt.pop %v7685
    %v7688 = vmul.f32 %v7674, %v7686
    %v7689 = vmul.f32 %v7675, %v7687
    %v7691 = vlaneseq
    %v7692 = vshrl.u32 %v7691, 7
    %v7693 = vsub.s32 0, %v7692
    %v7694 = vrot.slane %v7665, %v7693
    %v7696 = vmul.f32 %v7688, %v7694
    %v7697 = vmul.f32 %v7689, %v7694
    %v7699 = vlaneseq
    %v7700 = vshrl.u32 %v7699, 7
    %v7701 = vsub.s32 0, %v7700
    %v7702 = vrot.slane %v7666, %v7701
    %v7704 = vadd.f32 %v7696, %v7702
    %v7705 = vadd.f32 %v7697, %v7702
    %v7706 = vpack.c.bf16 %v7705, %v7704
    %v7707 = vld [vmem:[%s29] sm:$0xf]
    %v7708 = vld [vmem:[%s29 + $0x4] sm:$0xf]
    %v7709 = vld [vmem:[%s29 + $0x8] sm:$0xf]
    %v7710 = vld [vmem:[%s29 + $0xc] sm:$0xf]
    %v7711 = vld [vmem:[%s29 + $0x10] sm:$0xf]
    %v7712 = vld [vmem:[%s29 + $0x14] sm:$0xf]
    %v7713 = vld [vmem:[%s29 + $0x18] sm:$0xf]
    %v7714 = vld [vmem:[%s29 + $0x1c] sm:$0xf]
    %v7715 = vld [vmem:[%s29 + $0x20] sm:$0xf]
    %v7716 = vld [vmem:[%s29 + $0x24] sm:$0xf]
    %v7717 = vld [vmem:[%s29 + $0x28] sm:$0xf]
    %v7718 = vld [vmem:[%s29 + $0x2c] sm:$0xf]
    %v7719 = vld [vmem:[%s29 + $0x30] sm:$0xf]
    %v7720 = vld [vmem:[%s29 + $0x34] sm:$0xf]
    %v7721 = vld [vmem:[%s29 + $0x38] sm:$0xf]
    %v7722 = vld [vmem:[%s29 + $0x3c] sm:$0xf]
    %v7723 = vld [vmem:[%s31] sm:$0x1]
    %v7725 = vlaneseq
    %v7726 = vshrl.u32 %v7725, 7
    %v7727 = vsub.s32 0, %v7726
    %v7728 = vrot.slane %v7723, %v7727
    %v7746 = vunpack.c.l.b16 %v7707
    %v7747 = vunpack.c.l.b16 %v7708
    %v7748 = vunpack.c.l.b16 %v7709
    %v7749 = vunpack.c.l.b16 %v7710
    %v7750 = vunpack.c.l.b16 %v7711
    %v7751 = vunpack.c.l.b16 %v7712
    %v7752 = vunpack.c.l.b16 %v7713
    %v7753 = vunpack.c.l.b16 %v7714
    %v7754 = vunpack.c.l.b16 %v7715
    %v7755 = vunpack.c.l.b16 %v7716
    %v7756 = vunpack.c.l.b16 %v7717
    %v7757 = vunpack.c.l.b16 %v7718
    %v7758 = vunpack.c.l.b16 %v7719
    %v7759 = vunpack.c.l.b16 %v7720
    %v7760 = vunpack.c.l.b16 %v7721
    %v7761 = vunpack.c.l.b16 %v7722
    %v7762 = vpack.c.b16 %v7747, %v7746
    %v7763 = vpack.c.b16 %v7749, %v7748
    %v7764 = vpack.c.b16 %v7751, %v7750
    %v7765 = vpack.c.b16 %v7753, %v7752
    %v7766 = vpack.c.b16 %v7755, %v7754
    %v7767 = vpack.c.b16 %v7757, %v7756
    %v7768 = vpack.c.b16 %v7759, %v7758
    %v7769 = vpack.c.b16 %v7761, %v7760
    %7778 = vmatprep.subr.bf16.mxu0 0
    %7779 = vmatpush1.bf16.msra.mxu0 %v7762
    %7780 = vmatprep.subr.bf16.mxu0 0
    %7781 = vmatpush1.bf16.msra.mxu0 %v7763
    %7782 = vmatprep.subr.bf16.mxu0 0
    %7783 = vmatpush1.bf16.msra.mxu0 %v7764
    %7784 = vmatprep.subr.bf16.mxu0 0
    %7785 = vmatpush1.bf16.msra.mxu0 %v7765
    %7786 = vmatprep.subr.bf16.mxu0 0
    %7787 = vmatpush1.bf16.msra.mxu0 %v7766
    %7788 = vmatprep.subr.bf16.mxu0 0
    %7789 = vmatpush1.bf16.msra.mxu0 %v7767
    %7790 = vmatprep.subr.bf16.mxu0 0
    %7791 = vmatpush1.bf16.msra.mxu0 %v7768
    %7792 = vmatprep.subr.bf16.mxu0 0
    %7793 = vmatpush1.bf16.msra.mxu0 %v7769
    %7794 = vmatprep.subr.bf16.mxu0 0
    %7795 = vmatpush1.bf16.msra.mxu0 0
    %7796 = vmatprep.subr.bf16.mxu0 0
    %7797 = vmatpush1.bf16.msra.mxu0 0
    %7798 = vmatprep.subr.bf16.mxu0 0
    %7799 = vmatpush1.bf16.msra.mxu0 0
    %7800 = vmatprep.subr.bf16.mxu0 0
    %7801 = vmatpush1.bf16.msra.mxu0 0
    %7802 = vmatprep.subr.bf16.mxu0 0
    %7803 = vmatpush1.bf16.msra.mxu0 0
    %7804 = vmatprep.subr.bf16.mxu0 0
    %7805 = vmatpush1.bf16.msra.mxu0 0
    %7806 = vmatprep.subr.bf16.mxu0 0
    %7807 = vmatpush1.bf16.msra.mxu0 0
    %7808 = vmatprep.subr.bf16.mxu0 0
    %7809 = vmatpush1.bf16.msra.mxu0 0
    %7810 = vmatprep.mubr.bf16.mxu0 0
    %7811 = vmatmul.mubr.bf16.gmra.mrb[0].mxu0 %v7706
    %v7812 = vpop.f32.mrb[0].mxu0
    %v7813 = vadd.f32 %v7728, %v7812
    %v7814 = vpop.f32.mrb[0].mxu0
    %v7815 = vpop.f32.mrb[0].mxu0
    %v7816 = vadd.f32 %v7728, %v7815
    %v7817 = vpop.f32.mrb[0].mxu0
    %7818 = vdwg.mxu0
    %v7819 = vld [vmem:[%s33] sm:$0xf]
    %v7820 = vld [vmem:[%s33 + $0x4] sm:$0xf]
    %v7821 = vld [vmem:[%s33 + $0x8] sm:$0xf]
    %v7822 = vld [vmem:[%s33 + $0xc] sm:$0xf]
    %v7823 = vld [vmem:[%s33 + $0x10] sm:$0xf]
    %v7824 = vld [vmem:[%s33 + $0x14] sm:$0xf]
    %v7825 = vld [vmem:[%s33 + $0x18] sm:$0xf]
    %v7826 = vld [vmem:[%s33 + $0x1c] sm:$0xf]
    %v7827 = vld [vmem:[%s33 + $0x20] sm:$0xf]
    %v7828 = vld [vmem:[%s33 + $0x24] sm:$0xf]
    %v7829 = vld [vmem:[%s33 + $0x28] sm:$0xf]
    %v7830 = vld [vmem:[%s33 + $0x2c] sm:$0xf]
    %v7831 = vld [vmem:[%s33 + $0x30] sm:$0xf]
    %v7832 = vld [vmem:[%s33 + $0x34] sm:$0xf]
    %v7833 = vld [vmem:[%s33 + $0x38] sm:$0xf]
    %v7834 = vld [vmem:[%s33 + $0x3c] sm:$0xf]
    %v7835 = vld [vmem:[%s35] sm:$0x1]
    %v7837 = vlaneseq
    %v7838 = vshrl.u32 %v7837, 7
    %v7839 = vsub.s32 0, %v7838
    %v7840 = vrot.slane %v7835, %v7839
    %v7858 = vunpack.c.l.b16 %v7819
    %v7859 = vunpack.c.l.b16 %v7820
    %v7860 = vunpack.c.l.b16 %v7821
    %v7861 = vunpack.c.l.b16 %v7822
    %v7862 = vunpack.c.l.b16 %v7823
    %v7863 = vunpack.c.l.b16 %v7824
    %v7864 = vunpack.c.l.b16 %v7825
    %v7865 = vunpack.c.l.b16 %v7826
    %v7866 = vunpack.c.l.b16 %v7827
    %v7867 = vunpack.c.l.b16 %v7828
    %v7868 = vunpack.c.l.b16 %v7829
    %v7869 = vunpack.c.l.b16 %v7830
    %v7870 = vunpack.c.l.b16 %v7831
    %v7871 = vunpack.c.l.b16 %v7832
    %v7872 = vunpack.c.l.b16 %v7833
    %v7873 = vunpack.c.l.b16 %v7834
    %v7874 = vpack.c.b16 %v7859, %v7858
    %v7875 = vpack.c.b16 %v7861, %v7860
    %v7876 = vpack.c.b16 %v7863, %v7862
    %v7877 = vpack.c.b16 %v7865, %v7864
    %v7878 = vpack.c.b16 %v7867, %v7866
    %v7879 = vpack.c.b16 %v7869, %v7868
    %v7880 = vpack.c.b16 %v7871, %v7870
    %v7881 = vpack.c.b16 %v7873, %v7872
    %7890 = vmatprep.subr.bf16.mxu0 0
    %7891 = vmatpush1.bf16.msra.mxu0 %v7874
    %7892 = vmatprep.subr.bf16.mxu0 0
    %7893 = vmatpush1.bf16.msra.mxu0 %v7875
    %7894 = vmatprep.subr.bf16.mxu0 0
    %7895 = vmatpush1.bf16.msra.mxu0 %v7876
    %7896 = vmatprep.subr.bf16.mxu0 0
    %7897 = vmatpush1.bf16.msra.mxu0 %v7877
    %7898 = vmatprep.subr.bf16.mxu0 0
    %7899 = vmatpush1.bf16.msra.mxu0 %v7878
    %7900 = vmatprep.subr.bf16.mxu0 0
    %7901 = vmatpush1.bf16.msra.mxu0 %v7879
    %7902 = vmatprep.subr.bf16.mxu0 0
    %7903 = vmatpush1.bf16.msra.mxu0 %v7880
    %7904 = vmatprep.subr.bf16.mxu0 0
    %7905 = vmatpush1.bf16.msra.mxu0 %v7881
    %7906 = vmatprep.subr.bf16.mxu0 0
    %7907 = vmatpush1.bf16.msra.mxu0 0
    %7908 = vmatprep.subr.bf16.mxu0 0
    %7909 = vmatpush1.bf16.msra.mxu0 0
    %7910 = vmatprep.subr.bf16.mxu0 0
    %7911 = vmatpush1.bf16.msra.mxu0 0
    %7912 = vmatprep.subr.bf16.mxu0 0
    %7913 = vmatpush1.bf16.msra.mxu0 0
    %7914 = vmatprep.subr.bf16.mxu0 0
    %7915 = vmatpush1.bf16.msra.mxu0 0
    %7916 = vmatprep.subr.bf16.mxu0 0
    %7917 = vmatpush1.bf16.msra.mxu0 0
    %7918 = vmatprep.subr.bf16.mxu0 0
    %7919 = vmatpush1.bf16.msra.mxu0 0
    %7920 = vmatprep.subr.bf16.mxu0 0
    %7921 = vmatpush1.bf16.msra.mxu0 0
    %7922 = vmatprep.mubr.bf16.mxu0 0
    %7923 = vmatmul.mubr.bf16.gmra.mrb[0].mxu0 %v7706
    %v7924 = vpop.f32.mrb[0].mxu0
    %v7925 = vadd.f32 %v7840, %v7924
    %v7926 = vpop.f32.mrb[0].mxu0
    %v7927 = vpop.f32.mrb[0].mxu0
    %v7928 = vadd.f32 %v7840, %v7927
    %v7929 = vpop.f32.mrb[0].mxu0
    %7930 = vdwg.mxu0
    %v7931 = vld [vmem:[%s37] sm:$0xf]
    %v7932 = vld [vmem:[%s37 + $0x4] sm:$0xf]
    %v7933 = vld [vmem:[%s37 + $0x8] sm:$0xf]
    %v7934 = vld [vmem:[%s37 + $0xc] sm:$0xf]
    %v7935 = vld [vmem:[%s37 + $0x10] sm:$0xf]
    %v7936 = vld [vmem:[%s37 + $0x14] sm:$0xf]
    %v7937 = vld [vmem:[%s37 + $0x18] sm:$0xf]
    %v7938 = vld [vmem:[%s37 + $0x1c] sm:$0xf]
    %v7939 = vld [vmem:[%s37 + $0x20] sm:$0xf]
    %v7940 = vld [vmem:[%s37 + $0x24] sm:$0xf]
    %v7941 = vld [vmem:[%s37 + $0x28] sm:$0xf]
    %v7942 = vld [vmem:[%s37 + $0x2c] sm:$0xf]
    %v7943 = vld [vmem:[%s37 + $0x30] sm:$0xf]
    %v7944 = vld [vmem:[%s37 + $0x34] sm:$0xf]
    %v7945 = vld [vmem:[%s37 + $0x38] sm:$0xf]
    %v7946 = vld [vmem:[%s37 + $0x3c] sm:$0xf]
    %v7947 = vld [vmem:[%s39] sm:$0x1]
    %v7949 = vlaneseq
    %v7950 = vshrl.u32 %v7949, 7
    %v7951 = vsub.s32 0, %v7950
    %v7952 = vrot.slane %v7947, %v7951
    %v7970 = vunpack.c.l.b16 %v7931
    %v7971 = vunpack.c.l.b16 %v7932
    %v7972 = vunpack.c.l.b16 %v7933
    %v7973 = vunpack.c.l.b16 %v7934
    %v7974 = vunpack.c.l.b16 %v7935
    %v7975 = vunpack.c.l.b16 %v7936
    %v7976 = vunpack.c.l.b16 %v7937
    %v7977 = vunpack.c.l.b16 %v7938
    %v7978 = vunpack.c.l.b16 %v7939
    %v7979 = vunpack.c.l.b16 %v7940
    %v7980 = vunpack.c.l.b16 %v7941
    %v7981 = vunpack.c.l.b16 %v7942
    %v7982 = vunpack.c.l.b16 %v7943
    %v7983 = vunpack.c.l.b16 %v7944
    %v7984 = vunpack.c.l.b16 %v7945
    %v7985 = vunpack.c.l.b16 %v7946
    %v7986 = vpack.c.b16 %v7971, %v7970
    %v7987 = vpack.c.b16 %v7973, %v7972
    %v7988 = vpack.c.b16 %v7975, %v7974
    %v7989 = vpack.c.b16 %v7977, %v7976
    %v7990 = vpack.c.b16 %v7979, %v7978
    %v7991 = vpack.c.b16 %v7981, %v7980
    %v7992 = vpack.c.b16 %v7983, %v7982
    %v7993 = vpack.c.b16 %v7985, %v7984
    %8002 = vmatprep.subr.bf16.mxu0 0
    %8003 = vmatpush1.bf16.msra.mxu0 %v7986
    %8004 = vmatprep.subr.bf16.mxu0 0
    %8005 = vmatpush1.bf16.msra.mxu0 %v7987
    %8006 = vmatprep.subr.bf16.mxu0 0
    %8007 = vmatpush1.bf16.msra.mxu0 %v7988
    %8008 = vmatprep.subr.bf16.mxu0 0
    %8009 = vmatpush1.bf16.msra.mxu0 %v7989
    %8010 = vmatprep.subr.bf16.mxu0 0
    %8011 = vmatpush1.bf16.msra.mxu0 %v7990
    %8012 = vmatprep.subr.bf16.mxu0 0
    %8013 = vmatpush1.bf16.msra.mxu0 %v7991
    %8014 = vmatprep.subr.bf16.mxu0 0
    %8015 = vmatpush1.bf16.msra.mxu0 %v7992
    %8016 = vmatprep.subr.bf16.mxu0 0
    %8017 = vmatpush1.bf16.msra.mxu0 %v7993
    %8018 = vmatprep.subr.bf16.mxu0 0
    %8019 = vmatpush1.bf16.msra.mxu0 0
    %8020 = vmatprep.subr.bf16.mxu0 0
    %8021 = vmatpush1.bf16.msra.mxu0 0
    %8022 = vmatprep.subr.bf16.mxu0 0
    %8023 = vmatpush1.bf16.msra.mxu0 0
    %8024 = vmatprep.subr.bf16.mxu0 0
    %8025 = vmatpush1.bf16.msra.mxu0 0
    %8026 = vmatprep.subr.bf16.mxu0 0
    %8027 = vmatpush1.bf16.msra.mxu0 0
    %8028 = vmatprep.subr.bf16.mxu0 0
    %8029 = vmatpush1.bf16.msra.mxu0 0
    %8030 = vmatprep.subr.bf16.mxu0 0
    %8031 = vmatpush1.bf16.msra.mxu0 0
    %8032 = vmatprep.subr.bf16.mxu0 0
    %8033 = vmatpush1.bf16.msra.mxu0 0
    %8034 = vmatprep.mubr.bf16.mxu0 0
    %8035 = vmatmul.mubr.bf16.gmra.mrb[0].mxu0 %v7706
    %v8036 = vpop.f32.mrb[0].mxu0
    %v8037 = vadd.f32 %v7952, %v8036
    %v8038 = vpop.f32.mrb[0].mxu0
    %v8039 = vpop.f32.mrb[0].mxu0
    %v8040 = vadd.f32 %v7952, %v8039
    %v8041 = vpop.f32.mrb[0].mxu0
    %8042 = vdwg.mxu0
    %8043 = vst.msk [vmem:[#allocation5] sm:$0xff] %vm7351, %v7813
    %8044 = vst.msk [vmem:[#allocation6] sm:$0xff] %vm7351, %v7925
    %8045 = vst.msk [vmem:[#allocation7] sm:$0xff] %vm7351, %v8037
    %8047 = vrot.lane.b32.xlu0 %v7813, 112
    %v8048 = vpop.permute.xlu0 %8047
    %s8050 = scalar_lea.vmem [#allocation5], 8
    %8051 = vst.msk [vmem:[%s8050] sm:$0xff] %vm7351, %v8048
    %8053 = vrot.lane.b32.xlu0 %v7925, 112
    %v8054 = vpop.permute.xlu0 %8053
    %s8056 = scalar_lea.vmem [#allocation6], 8
    %8057 = vst.msk [vmem:[%s8056] sm:$0xff] %vm7351, %v8054
    %8059 = vrot.lane.b32.xlu0 %v8037, 112
    %v8060 = vpop.permute.xlu0 %8059
    %s8062 = scalar_lea.vmem [#allocation7], 8
    %8063 = vst.msk [vmem:[%s8062] sm:$0xff] %vm7351, %v8060
    %8064 = vrot.lane.b32.xlu0 %v7813, 96
    %v8065 = vpop.permute.xlu0 %8064
    %s8067 = scalar_lea.vmem [#allocation5], 16
    %8068 = vst.msk [vmem:[%s8067] sm:$0xff] %vm7351, %v8065
    %8069 = vrot.lane.b32.xlu0 %v7925, 96
    %v8070 = vpop.permute.xlu0 %8069
    %s8072 = scalar_lea.vmem [#allocation6], 16
    %8073 = vst.msk [vmem:[%s8072] sm:$0xff] %vm7351, %v8070
    %8074 = vrot.lane.b32.xlu0 %v8037, 96
    %v8075 = vpop.permute.xlu0 %8074
    %s8077 = scalar_lea.vmem [#allocation7], 16
    %8078 = vst.msk [vmem:[%s8077] sm:$0xff] %vm7351, %v8075
    %8079 = vrot.lane.b32.xlu0 %v7813, 80
    %v8080 = vpop.permute.xlu0 %8079
    %s8082 = scalar_lea.vmem [#allocation5], 24
    %8083 = vst.msk [vmem:[%s8082] sm:$0xff] %vm7351, %v8080
    %8084 = vrot.lane.b32.xlu0 %v7925, 80
    %v8085 = vpop.permute.xlu0 %8084
    %s8087 = scalar_lea.vmem [#allocation6], 24
    %8088 = vst.msk [vmem:[%s8087] sm:$0xff] %vm7351, %v8085
    %8089 = vrot.lane.b32.xlu0 %v8037, 80
    %v8090 = vpop.permute.xlu0 %8089
    %s8092 = scalar_lea.vmem [#allocation7], 24
    %8093 = vst.msk [vmem:[%s8092] sm:$0xff] %vm7351, %v8090
    %8094 = vrot.lane.b32.xlu0 %v7813, 64
    %v8095 = vpop.permute.xlu0 %8094
    %s8097 = scalar_lea.vmem [#allocation5], 32
    %8098 = vst.msk [vmem:[%s8097] sm:$0xff] %vm7351, %v8095
    %8099 = vrot.lane.b32.xlu0 %v7925, 64
    %v8100 = vpop.permute.xlu0 %8099
    %s8102 = scalar_lea.vmem [#allocation6], 32
    %8103 = vst.msk [vmem:[%s8102] sm:$0xff] %vm7351, %v8100
    %8104 = vrot.lane.b32.xlu0 %v8037, 64
    %v8105 = vpop.permute.xlu0 %8104
    %s8107 = scalar_lea.vmem [#allocation7], 32
    %8108 = vst.msk [vmem:[%s8107] sm:$0xff] %vm7351, %v8105
    %8109 = vrot.lane.b32.xlu0 %v7813, 48
    %v8110 = vpop.permute.xlu0 %8109
    %s8112 = scalar_lea.vmem [#allocation5], 40
    %8113 = vst.msk [vmem:[%s8112] sm:$0xff] %vm7351, %v8110
    %8114 = vrot.lane.b32.xlu0 %v7925, 48
    %v8115 = vpop.permute.xlu0 %8114
    %s8117 = scalar_lea.vmem [#allocation6], 40
    %8118 = vst.msk [vmem:[%s8117] sm:$0xff] %vm7351, %v8115
    %8119 = vrot.lane.b32.xlu0 %v8037, 48
    %v8120 = vpop.permute.xlu0 %8119
    %s8122 = scalar_lea.vmem [#allocation7], 40
    %8123 = vst.msk [vmem:[%s8122] sm:$0xff] %vm7351, %v8120
    %8124 = vrot.lane.b32.xlu0 %v7813, 32
    %v8125 = vpop.permute.xlu0 %8124
    %s8127 = scalar_lea.vmem [#allocation5], 48
    %8128 = vst.msk [vmem:[%s8127] sm:$0xff] %vm7351, %v8125
    %8129 = vrot.lane.b32.xlu0 %v7925, 32
    %v8130 = vpop.permute.xlu0 %8129
    %s8132 = scalar_lea.vmem [#allocation6], 48
    %8133 = vst.msk [vmem:[%s8132] sm:$0xff] %vm7351, %v8130
    %8134 = vrot.lane.b32.xlu0 %v8037, 32
    %v8135 = vpop.permute.xlu0 %8134
    %s8137 = scalar_lea.vmem [#allocation7], 48
    %8138 = vst.msk [vmem:[%s8137] sm:$0xff] %vm7351, %v8135
    %8139 = vrot.lane.b32.xlu0 %v7813, 16
    %v8140 = vpop.permute.xlu0 %8139
    %s8142 = scalar_lea.vmem [#allocation5], 56
    %8143 = vst.msk [vmem:[%s8142] sm:$0xff] %vm7351, %v8140
    %8144 = vrot.lane.b32.xlu0 %v7925, 16
    %v8145 = vpop.permute.xlu0 %8144
    %s8147 = scalar_lea.vmem [#allocation6], 56
    %8148 = vst.msk [vmem:[%s8147] sm:$0xff] %vm7351, %v8145
    %8149 = vrot.lane.b32.xlu0 %v8037, 16
    %v8150 = vpop.permute.xlu0 %8149
    %s8152 = scalar_lea.vmem [#allocation7], 56
    %8153 = vst.msk [vmem:[%s8152] sm:$0xff] %vm7351, %v8150
    %s8154 = scalar_lea.vmem [#allocation5], 64
    %8155 = vst.msk [vmem:[%s8154] sm:$0xff] %vm7351, %v7816
    %s8156 = scalar_lea.vmem [#allocation6], 64
    %8157 = vst.msk [vmem:[%s8156] sm:$0xff] %vm7351, %v7928
    %s8158 = scalar_lea.vmem [#allocation7], 64
    %8159 = vst.msk [vmem:[%s8158] sm:$0xff] %vm7351, %v8040
    %8161 = vrot.lane.b32.xlu0 %v7816, 112
    %v8162 = vpop.permute.xlu0 %8161
    %s8164 = scalar_lea.vmem [#allocation5], 72
    %8165 = vst.msk [vmem:[%s8164] sm:$0xff] %vm7351, %v8162
    %8167 = vrot.lane.b32.xlu0 %v7928, 112
    %v8168 = vpop.permute.xlu0 %8167
    %s8170 = scalar_lea.vmem [#allocation6], 72
    %8171 = vst.msk [vmem:[%s8170] sm:$0xff] %vm7351, %v8168
    %8173 = vrot.lane.b32.xlu0 %v8040, 112
    %v8174 = vpop.permute.xlu0 %8173
    %s8176 = scalar_lea.vmem [#allocation7], 72
    %8177 = vst.msk [vmem:[%s8176] sm:$0xff] %vm7351, %v8174
    %8178 = vrot.lane.b32.xlu0 %v7816, 96
    %v8179 = vpop.permute.xlu0 %8178
    %s8181 = scalar_lea.vmem [#allocation5], 80
    %8182 = vst.msk [vmem:[%s8181] sm:$0xff] %vm7351, %v8179
    %8183 = vrot.lane.b32.xlu0 %v7928, 96
    %v8184 = vpop.permute.xlu0 %8183
    %s8186 = scalar_lea.vmem [#allocation6], 80
    %8187 = vst.msk [vmem:[%s8186] sm:$0xff] %vm7351, %v8184
    %8188 = vrot.lane.b32.xlu0 %v8040, 96
    %v8189 = vpop.permute.xlu0 %8188
    %s8191 = scalar_lea.vmem [#allocation7], 80
    %8192 = vst.msk [vmem:[%s8191] sm:$0xff] %vm7351, %v8189
    %8193 = vrot.lane.b32.xlu0 %v7816, 80
    %v8194 = vpop.permute.xlu0 %8193
    %s8196 = scalar_lea.vmem [#allocation5], 88
    %8197 = vst.msk [vmem:[%s8196] sm:$0xff] %vm7351, %v8194
    %8198 = vrot.lane.b32.xlu0 %v7928, 80
    %v8199 = vpop.permute.xlu0 %8198
    %s8201 = scalar_lea.vmem [#allocation6], 88
    %8202 = vst.msk [vmem:[%s8201] sm:$0xff] %vm7351, %v8199
    %8203 = vrot.lane.b32.xlu0 %v8040, 80
    %v8204 = vpop.permute.xlu0 %8203
    %s8206 = scalar_lea.vmem [#allocation7], 88
    %8207 = vst.msk [vmem:[%s8206] sm:$0xff] %vm7351, %v8204
    %8208 = vrot.lane.b32.xlu0 %v7816, 64
    %v8209 = vpop.permute.xlu0 %8208
    %s8211 = scalar_lea.vmem [#allocation5], 96
    %8212 = vst.msk [vmem:[%s8211] sm:$0xff] %vm7351, %v8209
    %8213 = vrot.lane.b32.xlu0 %v7928, 64
    %v8214 = vpop.permute.xlu0 %8213
    %s8216 = scalar_lea.vmem [#allocation6], 96
    %8217 = vst.msk [vmem:[%s8216] sm:$0xff] %vm7351, %v8214
    %8218 = vrot.lane.b32.xlu0 %v8040, 64
    %v8219 = vpop.permute.xlu0 %8218
    %s8221 = scalar_lea.vmem [#allocation7], 96
    %8222 = vst.msk [vmem:[%s8221] sm:$0xff] %vm7351, %v8219
    %8223 = vrot.lane.b32.xlu0 %v7816, 48
    %v8224 = vpop.permute.xlu0 %8223
    %s8226 = scalar_lea.vmem [#allocation5], 104
    %8227 = vst.msk [vmem:[%s8226] sm:$0xff] %vm7351, %v8224
    %8228 = vrot.lane.b32.xlu0 %v7928, 48
    %v8229 = vpop.permute.xlu0 %8228
    %s8231 = scalar_lea.vmem [#allocation6], 104
    %8232 = vst.msk [vmem:[%s8231] sm:$0xff] %vm7351, %v8229
    %8233 = vrot.lane.b32.xlu0 %v8040, 48
    %v8234 = vpop.permute.xlu0 %8233
    %s8236 = scalar_lea.vmem [#allocation7], 104
    %8237 = vst.msk [vmem:[%s8236] sm:$0xff] %vm7351, %v8234
    %8238 = vrot.lane.b32.xlu0 %v7816, 32
    %v8239 = vpop.permute.xlu0 %8238
    %s8241 = scalar_lea.vmem [#allocation5], 112
    %8242 = vst.msk [vmem:[%s8241] sm:$0xff] %vm7351, %v8239
    %8243 = vrot.lane.b32.xlu0 %v7928, 32
    %v8244 = vpop.permute.xlu0 %8243
    %s8246 = scalar_lea.vmem [#allocation6], 112
    %8247 = vst.msk [vmem:[%s8246] sm:$0xff] %vm7351, %v8244
    %8248 = vrot.lane.b32.xlu0 %v8040, 32
    %v8249 = vpop.permute.xlu0 %8248
    %s8251 = scalar_lea.vmem [#allocation7], 112
    %8252 = vst.msk [vmem:[%s8251] sm:$0xff] %vm7351, %v8249
    %8253 = vrot.lane.b32.xlu0 %v7816, 16
    %v8254 = vpop.permute.xlu0 %8253
    %s8256 = scalar_lea.vmem [#allocation5], 120
    %8257 = vst.msk [vmem:[%s8256] sm:$0xff] %vm7351, %v8254
    %8258 = vrot.lane.b32.xlu0 %v7928, 16
    %v8259 = vpop.permute.xlu0 %8258
    %s8261 = scalar_lea.vmem [#allocation6], 120
    %8262 = vst.msk [vmem:[%s8261] sm:$0xff] %vm7351, %v8259
    %8263 = vrot.lane.b32.xlu0 %v8040, 16
    %v8264 = vpop.permute.xlu0 %8263
    %s8266 = scalar_lea.vmem [#allocation7], 120
    %8267 = vst.msk [vmem:[%s8266] sm:$0xff] %vm7351, %v8264
    %v8268 = vld [vmem:[#allocation5] sm:$0xff]
    %v8269 = vld [vmem:[#allocation5 + $0x8] sm:$0xff]
    %v8270 = vld [vmem:[#allocation5 + $0x10] sm:$0xff]
    %v8271 = vld [vmem:[#allocation5 + $0x18] sm:$0xff]
    %v8272 = vld [vmem:[#allocation5 + $0x20] sm:$0xff]
    %v8273 = vld [vmem:[#allocation5 + $0x28] sm:$0xff]
    %v8274 = vld [vmem:[#allocation5 + $0x30] sm:$0xff]
    %v8275 = vld [vmem:[#allocation5 + $0x38] sm:$0xff]
    %v8276 = vld [vmem:[#allocation5 + $0x40] sm:$0xff]
    %v8277 = vld [vmem:[#allocation5 + $0x48] sm:$0xff]
    %v8278 = vld [vmem:[#allocation5 + $0x50] sm:$0xff]
    %v8279 = vld [vmem:[#allocation5 + $0x58] sm:$0xff]
    %v8280 = vld [vmem:[#allocation5 + $0x60] sm:$0xff]
    %v8281 = vld [vmem:[#allocation5 + $0x68] sm:$0xff]
    %v8282 = vld [vmem:[#allocation5 + $0x70] sm:$0xff]
    %v8283 = vld [vmem:[#allocation5 + $0x78] sm:$0xff]
    %v8284 = vpack.c.bf16 %v8268, %v8268
    %v8285 = vpack.c.bf16 %v8269, %v8269
    %v8286 = vpack.c.bf16 %v8270, %v8270
    %v8287 = vpack.c.bf16 %v8271, %v8271
    %v8288 = vpack.c.bf16 %v8272, %v8272
    %v8289 = vpack.c.bf16 %v8273, %v8273
    %v8290 = vpack.c.bf16 %v8274, %v8274
    %v8291 = vpack.c.bf16 %v8275, %v8275
    %v8292 = vpack.c.bf16 %v8276, %v8276
    %v8293 = vpack.c.bf16 %v8277, %v8277
    %v8294 = vpack.c.bf16 %v8278, %v8278
    %v8295 = vpack.c.bf16 %v8279, %v8279
    %v8296 = vpack.c.bf16 %v8280, %v8280
    %v8297 = vpack.c.bf16 %v8281, %v8281
    %v8298 = vpack.c.bf16 %v8282, %v8282
    %v8299 = vpack.c.bf16 %v8283, %v8283
    %v8300 = vld [vmem:[#allocation6] sm:$0xff]
    %v8301 = vld [vmem:[#allocation6 + $0x8] sm:$0xff]
    %v8302 = vld [vmem:[#allocation6 + $0x10] sm:$0xff]
    %v8303 = vld [vmem:[#allocation6 + $0x18] sm:$0xff]
    %v8304 = vld [vmem:[#allocation6 + $0x20] sm:$0xff]
    %v8305 = vld [vmem:[#allocation6 + $0x28] sm:$0xff]
    %v8306 = vld [vmem:[#allocation6 + $0x30] sm:$0xff]
    %v8307 = vld [vmem:[#allocation6 + $0x38] sm:$0xff]
    %v8308 = vld [vmem:[#allocation6 + $0x40] sm:$0xff]
    %v8309 = vld [vmem:[#allocation6 + $0x48] sm:$0xff]
    %v8310 = vld [vmem:[#allocation6 + $0x50] sm:$0xff]
    %v8311 = vld [vmem:[#allocation6 + $0x58] sm:$0xff]
    %v8312 = vld [vmem:[#allocation6 + $0x60] sm:$0xff]
    %v8313 = vld [vmem:[#allocation6 + $0x68] sm:$0xff]
    %v8314 = vld [vmem:[#allocation6 + $0x70] sm:$0xff]
    %v8315 = vld [vmem:[#allocation6 + $0x78] sm:$0xff]
    %v8316 = vpack.c.bf16 %v8300, %v8300
    %v8317 = vpack.c.bf16 %v8301, %v8301
    %v8318 = vpack.c.bf16 %v8302, %v8302
    %v8319 = vpack.c.bf16 %v8303, %v8303
    %v8320 = vpack.c.bf16 %v8304, %v8304
    %v8321 = vpack.c.bf16 %v8305, %v8305
    %v8322 = vpack.c.bf16 %v8306, %v8306
    %v8323 = vpack.c.bf16 %v8307, %v8307
    %v8324 = vpack.c.bf16 %v8308, %v8308
    %v8325 = vpack.c.bf16 %v8309, %v8309
    %v8326 = vpack.c.bf16 %v8310, %v8310
    %v8327 = vpack.c.bf16 %v8311, %v8311
    %v8328 = vpack.c.bf16 %v8312, %v8312
    %v8329 = vpack.c.bf16 %v8313, %v8313
    %v8330 = vpack.c.bf16 %v8314, %v8314
    %v8331 = vpack.c.bf16 %v8315, %v8315
    %v8332 = vld [vmem:[#allocation7] sm:$0xff]
    %v8333 = vld [vmem:[#allocation7 + $0x8] sm:$0xff]
    %v8334 = vld [vmem:[#allocation7 + $0x10] sm:$0xff]
    %v8335 = vld [vmem:[#allocation7 + $0x18] sm:$0xff]
    %v8336 = vld [vmem:[#allocation7 + $0x20] sm:$0xff]
    %v8337 = vld [vmem:[#allocation7 + $0x28] sm:$0xff]
    %v8338 = vld [vmem:[#allocation7 + $0x30] sm:$0xff]
    %v8339 = vld [vmem:[#allocation7 + $0x38] sm:$0xff]
    %v8340 = vld [vmem:[#allocation7 + $0x40] sm:$0xff]
    %v8341 = vld [vmem:[#allocation7 + $0x48] sm:$0xff]
    %v8342 = vld [vmem:[#allocation7 + $0x50] sm:$0xff]
    %v8343 = vld [vmem:[#allocation7 + $0x58] sm:$0xff]
    %v8344 = vld [vmem:[#allocation7 + $0x60] sm:$0xff]
    %v8345 = vld [vmem:[#allocation7 + $0x68] sm:$0xff]
    %v8346 = vld [vmem:[#allocation7 + $0x70] sm:$0xff]
    %v8347 = vld [vmem:[#allocation7 + $0x78] sm:$0xff]
    %v8348 = vpack.c.bf16 %v8332, %v8332
    %v8349 = vpack.c.bf16 %v8333, %v8333
    %v8350 = vpack.c.bf16 %v8334, %v8334
    %v8351 = vpack.c.bf16 %v8335, %v8335
    %v8352 = vpack.c.bf16 %v8336, %v8336
    %v8353 = vpack.c.bf16 %v8337, %v8337
    %v8354 = vpack.c.bf16 %v8338, %v8338
    %v8355 = vpack.c.bf16 %v8339, %v8339
    %v8356 = vpack.c.bf16 %v8340, %v8340
    %v8357 = vpack.c.bf16 %v8341, %v8341
    %v8358 = vpack.c.bf16 %v8342, %v8342
    %v8359 = vpack.c.bf16 %v8343, %v8343
    %v8360 = vpack.c.bf16 %v8344, %v8344
    %v8361 = vpack.c.bf16 %v8345, %v8345
    %v8362 = vpack.c.bf16 %v8346, %v8346
    %v8363 = vpack.c.bf16 %v8347, %v8347
    %v8365 = vsel %vm7351, %v8284, 0
    %v8368 = vsel %vm7351, %v8316, 0
    %8370 = vmatprep.subr.bf16.mxu0 0
    %8371 = vmatpush1.bf16.xpose.msra.mxu0 %v8368
    %8372 = vmatprep.subr.bf16.mxu0 0
    %8373 = vmatpush1.bf16.xpose.msra.mxu0 0
    %8374 = vmatprep.subr.bf16.mxu0 0
    %8375 = vmatpush1.bf16.xpose.msra.mxu0 0
    %8376 = vmatprep.subr.bf16.mxu0 0
    %8377 = vmatpush1.bf16.xpose.msra.mxu0 0
    %8378 = vmatprep.subr.bf16.mxu0 0
    %8379 = vmatpush1.bf16.xpose.msra.mxu0 0
    %8380 = vmatprep.subr.bf16.mxu0 0
    %8381 = vmatpush1.bf16.xpose.msra.mxu0 0
    %8382 = vmatprep.subr.bf16.mxu0 0
    %8383 = vmatpush1.bf16.xpose.msra.mxu0 0
    %8384 = vmatprep.subr.bf16.mxu0 0
    %8385 = vmatpush1.bf16.xpose.msra.mxu0 0
    %8386 = vmatprep.subr.bf16.mxu0 0
    %8387 = vmatpush1.bf16.xpose.msra.mxu0 0
    %8388 = vmatprep.subr.bf16.mxu0 0
    %8389 = vmatpush1.bf16.xpose.msra.mxu0 0
    %8390 = vmatprep.subr.bf16.mxu0 0
    %8391 = vmatpush1.bf16.xpose.msra.mxu0 0
    %8392 = vmatprep.subr.bf16.mxu0 0
    %8393 = vmatpush1.bf16.xpose.msra.mxu0 0
    %8394 = vmatprep.subr.bf16.mxu0 0
    %8395 = vmatpush1.bf16.xpose.msra.mxu0 0
    %8396 = vmatprep.subr.bf16.mxu0 0
    %8397 = vmatpush1.bf16.xpose.msra.mxu0 0
    %8398 = vmatprep.subr.bf16.mxu0 0
    %8399 = vmatpush1.bf16.xpose.msra.mxu0 0
    %8400 = vmatprep.subr.bf16.mxu0 0
    %8401 = vmatpush1.bf16.xpose.msra.mxu0 0
    %8402 = vmatprep.mubr.bf16.mxu0 0
    %8403 = vmatmul.mubr.bf16.gmra.mrb[0].mxu0 %v8365
    %v8404 = vpop.f32.mrb[0].mxu0
    %v8405 = vadd.f32 0.0, %v8404
    %v8406 = vpop.f32.mrb[0].mxu0
    %v8407 = vpop.f32.mrb[0].mxu0
    %v8408 = vpop.f32.mrb[0].mxu0
    %8409 = vdwg.mxu0
    %v8411 = vsel %vm7351, %v8285, 0
    %v8414 = vsel %vm7351, %v8317, 0
    %8416 = vmatprep.subr.bf16.mxu0 0
    %8417 = vmatpush1.bf16.xpose.msra.mxu0 %v8414
    %8418 = vmatprep.subr.bf16.mxu0 0
    %8419 = vmatpush1.bf16.xpose.msra.mxu0 0
    %8420 = vmatprep.subr.bf16.mxu0 0
    %8421 = vmatpush1.bf16.xpose.msra.mxu0 0
    %8422 = vmatprep.subr.bf16.mxu0 0
    %8423 = vmatpush1.bf16.xpose.msra.mxu0 0
    %8424 = vmatprep.subr.bf16.mxu0 0
    %8425 = vmatpush1.bf16.xpose.msra.mxu0 0
    %8426 = vmatprep.subr.bf16.mxu0 0
    %8427 = vmatpush1.bf16.xpose.msra.mxu0 0
    %8428 = vmatprep.subr.bf16.mxu0 0
    %8429 = vmatpush1.bf16.xpose.msra.mxu0 0
    %8430 = vmatprep.subr.bf16.mxu0 0
    %8431 = vmatpush1.bf16.xpose.msra.mxu0 0
    %8432 = vmatprep.subr.bf16.mxu0 0
    %8433 = vmatpush1.bf16.xpose.msra.mxu0 0
    %8434 = vmatprep.subr.bf16.mxu0 0
    %8435 = vmatpush1.bf16.xpose.msra.mxu0 0
    %8436 = vmatprep.subr.bf16.mxu0 0
    %8437 = vmatpush1.bf16.xpose.msra.mxu0 0
    %8438 = vmatprep.subr.bf16.mxu0 0
    %8439 = vmatpush1.bf16.xpose.msra.mxu0 0
    %8440 = vmatprep.subr.bf16.mxu0 0
    %8441 = vmatpush1.bf16.xpose.msra.mxu0 0
    %8442 = vmatprep.subr.bf16.mxu0 0
    %8443 = vmatpush1.bf16.xpose.msra.mxu0 0
    %8444 = vmatprep.subr.bf16.mxu0 0
    %8445 = vmatpush1.bf16.xpose.msra.mxu0 0
    %8446 = vmatprep.subr.bf16.mxu0 0
    %8447 = vmatpush1.bf16.xpose.msra.mxu0 0
    %8448 = vmatprep.mubr.bf16.mxu0 0
    %8449 = vmatmul.mubr.bf16.gmra.mrb[0].mxu0 %v8411
    %v8450 = vpop.f32.mrb[0].mxu0
    %v8451 = vadd.f32 0.0, %v8450
    %v8452 = vpop.f32.mrb[0].mxu0
    %v8453 = vpop.f32.mrb[0].mxu0
    %v8454 = vpop.f32.mrb[0].mxu0
    %8455 = vdwg.mxu0
    %v8457 = vsel %vm7351, %v8286, 0
    %v8460 = vsel %vm7351, %v8318, 0
    %8462 = vmatprep.subr.bf16.mxu0 0
    %8463 = vmatpush1.bf16.xpose.msra.mxu0 %v8460
    %8464 = vmatprep.subr.bf16.mxu0 0
    %8465 = vmatpush1.bf16.xpose.msra.mxu0 0
    %8466 = vmatprep.subr.bf16.mxu0 0
    %8467 = vmatpush1.bf16.xpose.msra.mxu0 0
    %8468 = vmatprep.subr.bf16.mxu0 0
    %8469 = vmatpush1.bf16.xpose.msra.mxu0 0
    %8470 = vmatprep.subr.bf16.mxu0 0
    %8471 = vmatpush1.bf16.xpose.msra.mxu0 0
    %8472 = vmatprep.subr.bf16.mxu0 0
    %8473 = vmatpush1.bf16.xpose.msra.mxu0 0
    %8474 = vmatprep.subr.bf16.mxu0 0
    %8475 = vmatpush1.bf16.xpose.msra.mxu0 0
    %8476 = vmatprep.subr.bf16.mxu0 0
    %8477 = vmatpush1.bf16.xpose.msra.mxu0 0
    %8478 = vmatprep.subr.bf16.mxu0 0
    %8479 = vmatpush1.bf16.xpose.msra.mxu0 0
    %8480 = vmatprep.subr.bf16.mxu0 0
    %8481 = vmatpush1.bf16.xpose.msra.mxu0 0
    %8482 = vmatprep.subr.bf16.mxu0 0
    %8483 = vmatpush1.bf16.xpose.msra.mxu0 0
    %8484 = vmatprep.subr.bf16.mxu0 0
    %8485 = vmatpush1.bf16.xpose.msra.mxu0 0
    %8486 = vmatprep.subr.bf16.mxu0 0
    %8487 = vmatpush1.bf16.xpose.msra.mxu0 0
    %8488 = vmatprep.subr.bf16.mxu0 0
    %8489 = vmatpush1.bf16.xpose.msra.mxu0 0
    %8490 = vmatprep.subr.bf16.mxu0 0
    %8491 = vmatpush1.bf16.xpose.msra.mxu0 0
    %8492 = vmatprep.subr.bf16.mxu0 0
    %8493 = vmatpush1.bf16.xpose.msra.mxu0 0
    %8494 = vmatprep.mubr.bf16.mxu0 0
    %8495 = vmatmul.mubr.bf16.gmra.mrb[0].mxu0 %v8457
    %v8496 = vpop.f32.mrb[0].mxu0
    %v8497 = vadd.f32 0.0, %v8496
    %v8498 = vpop.f32.mrb[0].mxu0
    %v8499 = vpop.f32.mrb[0].mxu0
    %v8500 = vpop.f32.mrb[0].mxu0
    %8501 = vdwg.mxu0
    %v8503 = vsel %vm7351, %v8287, 0
    %v8506 = vsel %vm7351, %v8319, 0
    %8508 = vmatprep.subr.bf16.mxu0 0
    %8509 = vmatpush1.bf16.xpose.msra.mxu0 %v8506
    %8510 = vmatprep.subr.bf16.mxu0 0
    %8511 = vmatpush1.bf16.xpose.msra.mxu0 0
    %8512 = vmatprep.subr.bf16.mxu0 0
    %8513 = vmatpush1.bf16.xpose.msra.mxu0 0
    %8514 = vmatprep.subr.bf16.mxu0 0
    %8515 = vmatpush1.bf16.xpose.msra.mxu0 0
    %8516 = vmatprep.subr.bf16.mxu0 0
    %8517 = vmatpush1.bf16.xpose.msra.mxu0 0
    %8518 = vmatprep.subr.bf16.mxu0 0
    %8519 = vmatpush1.bf16.xpose.msra.mxu0 0
    %8520 = vmatprep.subr.bf16.mxu0 0
    %8521 = vmatpush1.bf16.xpose.msra.mxu0 0
    %8522 = vmatprep.subr.bf16.mxu0 0
    %8523 = vmatpush1.bf16.xpose.msra.mxu0 0
    %8524 = vmatprep.subr.bf16.mxu0 0
    %8525 = vmatpush1.bf16.xpose.msra.mxu0 0
    %8526 = vmatprep.subr.bf16.mxu0 0
    %8527 = vmatpush1.bf16.xpose.msra.mxu0 0
    %8528 = vmatprep.subr.bf16.mxu0 0
    %8529 = vmatpush1.bf16.xpose.msra.mxu0 0
    %8530 = vmatprep.subr.bf16.mxu0 0
    %8531 = vmatpush1.bf16.xpose.msra.mxu0 0
    %8532 = vmatprep.subr.bf16.mxu0 0
    %8533 = vmatpush1.bf16.xpose.msra.mxu0 0
    %8534 = vmatprep.subr.bf16.mxu0 0
    %8535 = vmatpush1.bf16.xpose.msra.mxu0 0
    %8536 = vmatprep.subr.bf16.mxu0 0
    %8537 = vmatpush1.bf16.xpose.msra.mxu0 0
    %8538 = vmatprep.subr.bf16.mxu0 0
    %8539 = vmatpush1.bf16.xpose.msra.mxu0 0
    %8540 = vmatprep.mubr.bf16.mxu0 0
    %8541 = vmatmul.mubr.bf16.gmra.mrb[0].mxu0 %v8503
    %v8542 = vpop.f32.mrb[0].mxu0
    %v8543 = vadd.f32 0.0, %v8542
    %v8544 = vpop.f32.mrb[0].mxu0
    %v8545 = vpop.f32.mrb[0].mxu0
    %v8546 = vpop.f32.mrb[0].mxu0
    %8547 = vdwg.mxu0
    %v8549 = vsel %vm7351, %v8288, 0
    %v8552 = vsel %vm7351, %v8320, 0
    %8554 = vmatprep.subr.bf16.mxu0 0
    %8555 = vmatpush1.bf16.xpose.msra.mxu0 %v8552
    %8556 = vmatprep.subr.bf16.mxu0 0
    %8557 = vmatpush1.bf16.xpose.msra.mxu0 0
    %8558 = vmatprep.subr.bf16.mxu0 0
    %8559 = vmatpush1.bf16.xpose.msra.mxu0 0
    %8560 = vmatprep.subr.bf16.mxu0 0
    %8561 = vmatpush1.bf16.xpose.msra.mxu0 0
    %8562 = vmatprep.subr.bf16.mxu0 0
    %8563 = vmatpush1.bf16.xpose.msra.mxu0 0
    %8564 = vmatprep.subr.bf16.mxu0 0
    %8565 = vmatpush1.bf16.xpose.msra.mxu0 0
    %8566 = vmatprep.subr.bf16.mxu0 0
    %8567 = vmatpush1.bf16.xpose.msra.mxu0 0
    %8568 = vmatprep.subr.bf16.mxu0 0
    %8569 = vmatpush1.bf16.xpose.msra.mxu0 0
    %8570 = vmatprep.subr.bf16.mxu0 0
    %8571 = vmatpush1.bf16.xpose.msra.mxu0 0
    %8572 = vmatprep.subr.bf16.mxu0 0
    %8573 = vmatpush1.bf16.xpose.msra.mxu0 0
    %8574 = vmatprep.subr.bf16.mxu0 0
    %8575 = vmatpush1.bf16.xpose.msra.mxu0 0
    %8576 = vmatprep.subr.bf16.mxu0 0
    %8577 = vmatpush1.bf16.xpose.msra.mxu0 0
    %8578 = vmatprep.subr.bf16.mxu0 0
    %8579 = vmatpush1.bf16.xpose.msra.mxu0 0
    %8580 = vmatprep.subr.bf16.mxu0 0
    %8581 = vmatpush1.bf16.xpose.msra.mxu0 0
    %8582 = vmatprep.subr.bf16.mxu0 0
    %8583 = vmatpush1.bf16.xpose.msra.mxu0 0
    %8584 = vmatprep.subr.bf16.mxu0 0
    %8585 = vmatpush1.bf16.xpose.msra.mxu0 0
    %8586 = vmatprep.mubr.bf16.mxu0 0
    %8587 = vmatmul.mubr.bf16.gmra.mrb[0].mxu0 %v8549
    %v8588 = vpop.f32.mrb[0].mxu0
    %v8589 = vadd.f32 0.0, %v8588
    %v8590 = vpop.f32.mrb[0].mxu0
    %v8591 = vpop.f32.mrb[0].mxu0
    %v8592 = vpop.f32.mrb[0].mxu0
    %8593 = vdwg.mxu0
    %v8595 = vsel %vm7351, %v8289, 0
    %v8598 = vsel %vm7351, %v8321, 0
    %8600 = vmatprep.subr.bf16.mxu0 0
    %8601 = vmatpush1.bf16.xpose.msra.mxu0 %v8598
    %8602 = vmatprep.subr.bf16.mxu0 0
    %8603 = vmatpush1.bf16.xpose.msra.mxu0 0
    %8604 = vmatprep.subr.bf16.mxu0 0
    %8605 = vmatpush1.bf16.xpose.msra.mxu0 0
    %8606 = vmatprep.subr.bf16.mxu0 0
    %8607 = vmatpush1.bf16.xpose.msra.mxu0 0
    %8608 = vmatprep.subr.bf16.mxu0 0
    %8609 = vmatpush1.bf16.xpose.msra.mxu0 0
    %8610 = vmatprep.subr.bf16.mxu0 0
    %8611 = vmatpush1.bf16.xpose.msra.mxu0 0
    %8612 = vmatprep.subr.bf16.mxu0 0
    %8613 = vmatpush1.bf16.xpose.msra.mxu0 0
    %8614 = vmatprep.subr.bf16.mxu0 0
    %8615 = vmatpush1.bf16.xpose.msra.mxu0 0
    %8616 = vmatprep.subr.bf16.mxu0 0
    %8617 = vmatpush1.bf16.xpose.msra.mxu0 0
    %8618 = vmatprep.subr.bf16.mxu0 0
    %8619 = vmatpush1.bf16.xpose.msra.mxu0 0
    %8620 = vmatprep.subr.bf16.mxu0 0
    %8621 = vmatpush1.bf16.xpose.msra.mxu0 0
    %8622 = vmatprep.subr.bf16.mxu0 0
    %8623 = vmatpush1.bf16.xpose.msra.mxu0 0
    %8624 = vmatprep.subr.bf16.mxu0 0
    %8625 = vmatpush1.bf16.xpose.msra.mxu0 0
    %8626 = vmatprep.subr.bf16.mxu0 0
    %8627 = vmatpush1.bf16.xpose.msra.mxu0 0
    %8628 = vmatprep.subr.bf16.mxu0 0
    %8629 = vmatpush1.bf16.xpose.msra.mxu0 0
    %8630 = vmatprep.subr.bf16.mxu0 0
    %8631 = vmatpush1.bf16.xpose.msra.mxu0 0
    %8632 = vmatprep.mubr.bf16.mxu0 0
    %8633 = vmatmul.mubr.bf16.gmra.mrb[0].mxu0 %v8595
    %v8634 = vpop.f32.mrb[0].mxu0
    %v8635 = vadd.f32 0.0, %v8634
    %v8636 = vpop.f32.mrb[0].mxu0
    %v8637 = vpop.f32.mrb[0].mxu0
    %v8638 = vpop.f32.mrb[0].mxu0
    %8639 = vdwg.mxu0
    %v8641 = vsel %vm7351, %v8290, 0
    %v8644 = vsel %vm7351, %v8322, 0
    %8646 = vmatprep.subr.bf16.mxu0 0
    %8647 = vmatpush1.bf16.xpose.msra.mxu0 %v8644
    %8648 = vmatprep.subr.bf16.mxu0 0
    %8649 = vmatpush1.bf16.xpose.msra.mxu0 0
    %8650 = vmatprep.subr.bf16.mxu0 0
    %8651 = vmatpush1.bf16.xpose.msra.mxu0 0
    %8652 = vmatprep.subr.bf16.mxu0 0
    %8653 = vmatpush1.bf16.xpose.msra.mxu0 0
    %8654 = vmatprep.subr.bf16.mxu0 0
    %8655 = vmatpush1.bf16.xpose.msra.mxu0 0
    %8656 = vmatprep.subr.bf16.mxu0 0
    %8657 = vmatpush1.bf16.xpose.msra.mxu0 0
    %8658 = vmatprep.subr.bf16.mxu0 0
    %8659 = vmatpush1.bf16.xpose.msra.mxu0 0
    %8660 = vmatprep.subr.bf16.mxu0 0
    %8661 = vmatpush1.bf16.xpose.msra.mxu0 0
    %8662 = vmatprep.subr.bf16.mxu0 0
    %8663 = vmatpush1.bf16.xpose.msra.mxu0 0
    %8664 = vmatprep.subr.bf16.mxu0 0
    %8665 = vmatpush1.bf16.xpose.msra.mxu0 0
    %8666 = vmatprep.subr.bf16.mxu0 0
    %8667 = vmatpush1.bf16.xpose.msra.mxu0 0
    %8668 = vmatprep.subr.bf16.mxu0 0
    %8669 = vmatpush1.bf16.xpose.msra.mxu0 0
    %8670 = vmatprep.subr.bf16.mxu0 0
    %8671 = vmatpush1.bf16.xpose.msra.mxu0 0
    %8672 = vmatprep.subr.bf16.mxu0 0
    %8673 = vmatpush1.bf16.xpose.msra.mxu0 0
    %8674 = vmatprep.subr.bf16.mxu0 0
    %8675 = vmatpush1.bf16.xpose.msra.mxu0 0
    %8676 = vmatprep.subr.bf16.mxu0 0
    %8677 = vmatpush1.bf16.xpose.msra.mxu0 0
    %8678 = vmatprep.mubr.bf16.mxu0 0
    %8679 = vmatmul.mubr.bf16.gmra.mrb[0].mxu0 %v8641
    %v8680 = vpop.f32.mrb[0].mxu0
    %v8681 = vadd.f32 0.0, %v8680
    %v8682 = vpop.f32.mrb[0].mxu0
    %v8683 = vpop.f32.mrb[0].mxu0
    %v8684 = vpop.f32.mrb[0].mxu0
    %8685 = vdwg.mxu0
    %v8687 = vsel %vm7351, %v8291, 0
    %v8690 = vsel %vm7351, %v8323, 0
    %8692 = vmatprep.subr.bf16.mxu0 0
    %8693 = vmatpush1.bf16.xpose.msra.mxu0 %v8690
    %8694 = vmatprep.subr.bf16.mxu0 0
    %8695 = vmatpush1.bf16.xpose.msra.mxu0 0
    %8696 = vmatprep.subr.bf16.mxu0 0
    %8697 = vmatpush1.bf16.xpose.msra.mxu0 0
    %8698 = vmatprep.subr.bf16.mxu0 0
    %8699 = vmatpush1.bf16.xpose.msra.mxu0 0
    %8700 = vmatprep.subr.bf16.mxu0 0
    %8701 = vmatpush1.bf16.xpose.msra.mxu0 0
    %8702 = vmatprep.subr.bf16.mxu0 0
    %8703 = vmatpush1.bf16.xpose.msra.mxu0 0
    %8704 = vmatprep.subr.bf16.mxu0 0
    %8705 = vmatpush1.bf16.xpose.msra.mxu0 0
    %8706 = vmatprep.subr.bf16.mxu0 0
    %8707 = vmatpush1.bf16.xpose.msra.mxu0 0
    %8708 = vmatprep.subr.bf16.mxu0 0
    %8709 = vmatpush1.bf16.xpose.msra.mxu0 0
    %8710 = vmatprep.subr.bf16.mxu0 0
    %8711 = vmatpush1.bf16.xpose.msra.mxu0 0
    %8712 = vmatprep.subr.bf16.mxu0 0
    %8713 = vmatpush1.bf16.xpose.msra.mxu0 0
    %8714 = vmatprep.subr.bf16.mxu0 0
    %8715 = vmatpush1.bf16.xpose.msra.mxu0 0
    %8716 = vmatprep.subr.bf16.mxu0 0
    %8717 = vmatpush1.bf16.xpose.msra.mxu0 0
    %8718 = vmatprep.subr.bf16.mxu0 0
    %8719 = vmatpush1.bf16.xpose.msra.mxu0 0
    %8720 = vmatprep.subr.bf16.mxu0 0
    %8721 = vmatpush1.bf16.xpose.msra.mxu0 0
    %8722 = vmatprep.subr.bf16.mxu0 0
    %8723 = vmatpush1.bf16.xpose.msra.mxu0 0
    %8724 = vmatprep.mubr.bf16.mxu0 0
    %8725 = vmatmul.mubr.bf16.gmra.mrb[0].mxu0 %v8687
    %v8726 = vpop.f32.mrb[0].mxu0
    %v8727 = vadd.f32 0.0, %v8726
    %v8728 = vpop.f32.mrb[0].mxu0
    %v8729 = vpop.f32.mrb[0].mxu0
    %v8730 = vpop.f32.mrb[0].mxu0
    %8731 = vdwg.mxu0
    %v8733 = vsel %vm7351, %v8292, 0
    %v8736 = vsel %vm7351, %v8324, 0
    %8738 = vmatprep.subr.bf16.mxu0 0
    %8739 = vmatpush1.bf16.xpose.msra.mxu0 %v8736
    %8740 = vmatprep.subr.bf16.mxu0 0
    %8741 = vmatpush1.bf16.xpose.msra.mxu0 0
    %8742 = vmatprep.subr.bf16.mxu0 0
    %8743 = vmatpush1.bf16.xpose.msra.mxu0 0
    %8744 = vmatprep.subr.bf16.mxu0 0
    %8745 = vmatpush1.bf16.xpose.msra.mxu0 0
    %8746 = vmatprep.subr.bf16.mxu0 0
    %8747 = vmatpush1.bf16.xpose.msra.mxu0 0
    %8748 = vmatprep.subr.bf16.mxu0 0
    %8749 = vmatpush1.bf16.xpose.msra.mxu0 0
    %8750 = vmatprep.subr.bf16.mxu0 0
    %8751 = vmatpush1.bf16.xpose.msra.mxu0 0
    %8752 = vmatprep.subr.bf16.mxu0 0
    %8753 = vmatpush1.bf16.xpose.msra.mxu0 0
    %8754 = vmatprep.subr.bf16.mxu0 0
    %8755 = vmatpush1.bf16.xpose.msra.mxu0 0
    %8756 = vmatprep.subr.bf16.mxu0 0
    %8757 = vmatpush1.bf16.xpose.msra.mxu0 0
    %8758 = vmatprep.subr.bf16.mxu0 0
    %8759 = vmatpush1.bf16.xpose.msra.mxu0 0
    %8760 = vmatprep.subr.bf16.mxu0 0
    %8761 = vmatpush1.bf16.xpose.msra.mxu0 0
    %8762 = vmatprep.subr.bf16.mxu0 0
    %8763 = vmatpush1.bf16.xpose.msra.mxu0 0
    %8764 = vmatprep.subr.bf16.mxu0 0
    %8765 = vmatpush1.bf16.xpose.msra.mxu0 0
    %8766 = vmatprep.subr.bf16.mxu0 0
    %8767 = vmatpush1.bf16.xpose.msra.mxu0 0
    %8768 = vmatprep.subr.bf16.mxu0 0
    %8769 = vmatpush1.bf16.xpose.msra.mxu0 0
    %8770 = vmatprep.mubr.bf16.mxu0 0
    %8771 = vmatmul.mubr.bf16.gmra.mrb[0].mxu0 %v8733
    %v8772 = vpop.f32.mrb[0].mxu0
    %v8773 = vadd.f32 0.0, %v8772
    %v8774 = vpop.f32.mrb[0].mxu0
    %v8775 = vpop.f32.mrb[0].mxu0
    %v8776 = vpop.f32.mrb[0].mxu0
    %8777 = vdwg.mxu0
    %v8779 = vsel %vm7351, %v8293, 0
    %v8782 = vsel %vm7351, %v8325, 0
    %8784 = vmatprep.subr.bf16.mxu0 0
    %8785 = vmatpush1.bf16.xpose.msra.mxu0 %v8782
    %8786 = vmatprep.subr.bf16.mxu0 0
    %8787 = vmatpush1.bf16.xpose.msra.mxu0 0
    %8788 = vmatprep.subr.bf16.mxu0 0
    %8789 = vmatpush1.bf16.xpose.msra.mxu0 0
    %8790 = vmatprep.subr.bf16.mxu0 0
    %8791 = vmatpush1.bf16.xpose.msra.mxu0 0
    %8792 = vmatprep.subr.bf16.mxu0 0
    %8793 = vmatpush1.bf16.xpose.msra.mxu0 0
    %8794 = vmatprep.subr.bf16.mxu0 0
    %8795 = vmatpush1.bf16.xpose.msra.mxu0 0
    %8796 = vmatprep.subr.bf16.mxu0 0
    %8797 = vmatpush1.bf16.xpose.msra.mxu0 0
    %8798 = vmatprep.subr.bf16.mxu0 0
    %8799 = vmatpush1.bf16.xpose.msra.mxu0 0
    %8800 = vmatprep.subr.bf16.mxu0 0
    %8801 = vmatpush1.bf16.xpose.msra.mxu0 0
    %8802 = vmatprep.subr.bf16.mxu0 0
    %8803 = vmatpush1.bf16.xpose.msra.mxu0 0
    %8804 = vmatprep.subr.bf16.mxu0 0
    %8805 = vmatpush1.bf16.xpose.msra.mxu0 0
    %8806 = vmatprep.subr.bf16.mxu0 0
    %8807 = vmatpush1.bf16.xpose.msra.mxu0 0
    %8808 = vmatprep.subr.bf16.mxu0 0
    %8809 = vmatpush1.bf16.xpose.msra.mxu0 0
    %8810 = vmatprep.subr.bf16.mxu0 0
    %8811 = vmatpush1.bf16.xpose.msra.mxu0 0
    %8812 = vmatprep.subr.bf16.mxu0 0
    %8813 = vmatpush1.bf16.xpose.msra.mxu0 0
    %8814 = vmatprep.subr.bf16.mxu0 0
    %8815 = vmatpush1.bf16.xpose.msra.mxu0 0
    %8816 = vmatprep.mubr.bf16.mxu0 0
    %8817 = vmatmul.mubr.bf16.gmra.mrb[0].mxu0 %v8779
    %v8818 = vpop.f32.mrb[0].mxu0
    %v8819 = vadd.f32 0.0, %v8818
    %v8820 = vpop.f32.mrb[0].mxu0
    %v8821 = vpop.f32.mrb[0].mxu0
    %v8822 = vpop.f32.mrb[0].mxu0
    %8823 = vdwg.mxu0
    %v8825 = vsel %vm7351, %v8294, 0
    %v8828 = vsel %vm7351, %v8326, 0
    %8830 = vmatprep.subr.bf16.mxu0 0
    %8831 = vmatpush1.bf16.xpose.msra.mxu0 %v8828
    %8832 = vmatprep.subr.bf16.mxu0 0
    %8833 = vmatpush1.bf16.xpose.msra.mxu0 0
    %8834 = vmatprep.subr.bf16.mxu0 0
    %8835 = vmatpush1.bf16.xpose.msra.mxu0 0
    %8836 = vmatprep.subr.bf16.mxu0 0
    %8837 = vmatpush1.bf16.xpose.msra.mxu0 0
    %8838 = vmatprep.subr.bf16.mxu0 0
    %8839 = vmatpush1.bf16.xpose.msra.mxu0 0
    %8840 = vmatprep.subr.bf16.mxu0 0
    %8841 = vmatpush1.bf16.xpose.msra.mxu0 0
    %8842 = vmatprep.subr.bf16.mxu0 0
    %8843 = vmatpush1.bf16.xpose.msra.mxu0 0
    %8844 = vmatprep.subr.bf16.mxu0 0
    %8845 = vmatpush1.bf16.xpose.msra.mxu0 0
    %8846 = vmatprep.subr.bf16.mxu0 0
    %8847 = vmatpush1.bf16.xpose.msra.mxu0 0
    %8848 = vmatprep.subr.bf16.mxu0 0
    %8849 = vmatpush1.bf16.xpose.msra.mxu0 0
    %8850 = vmatprep.subr.bf16.mxu0 0
    %8851 = vmatpush1.bf16.xpose.msra.mxu0 0
    %8852 = vmatprep.subr.bf16.mxu0 0
    %8853 = vmatpush1.bf16.xpose.msra.mxu0 0
    %8854 = vmatprep.subr.bf16.mxu0 0
    %8855 = vmatpush1.bf16.xpose.msra.mxu0 0
    %8856 = vmatprep.subr.bf16.mxu0 0
    %8857 = vmatpush1.bf16.xpose.msra.mxu0 0
    %8858 = vmatprep.subr.bf16.mxu0 0
    %8859 = vmatpush1.bf16.xpose.msra.mxu0 0
    %8860 = vmatprep.subr.bf16.mxu0 0
    %8861 = vmatpush1.bf16.xpose.msra.mxu0 0
    %8862 = vmatprep.mubr.bf16.mxu0 0
    %8863 = vmatmul.mubr.bf16.gmra.mrb[0].mxu0 %v8825
    %v8864 = vpop.f32.mrb[0].mxu0
    %v8865 = vadd.f32 0.0, %v8864
    %v8866 = vpop.f32.mrb[0].mxu0
    %v8867 = vpop.f32.mrb[0].mxu0
    %v8868 = vpop.f32.mrb[0].mxu0
    %8869 = vdwg.mxu0
    %v8871 = vsel %vm7351, %v8295, 0
    %v8874 = vsel %vm7351, %v8327, 0
    %8876 = vmatprep.subr.bf16.mxu0 0
    %8877 = vmatpush1.bf16.xpose.msra.mxu0 %v8874
    %8878 = vmatprep.subr.bf16.mxu0 0
    %8879 = vmatpush1.bf16.xpose.msra.mxu0 0
    %8880 = vmatprep.subr.bf16.mxu0 0
    %8881 = vmatpush1.bf16.xpose.msra.mxu0 0
    %8882 = vmatprep.subr.bf16.mxu0 0
    %8883 = vmatpush1.bf16.xpose.msra.mxu0 0
    %8884 = vmatprep.subr.bf16.mxu0 0
    %8885 = vmatpush1.bf16.xpose.msra.mxu0 0
    %8886 = vmatprep.subr.bf16.mxu0 0
    %8887 = vmatpush1.bf16.xpose.msra.mxu0 0
    %8888 = vmatprep.subr.bf16.mxu0 0
    %8889 = vmatpush1.bf16.xpose.msra.mxu0 0
    %8890 = vmatprep.subr.bf16.mxu0 0
    %8891 = vmatpush1.bf16.xpose.msra.mxu0 0
    %8892 = vmatprep.subr.bf16.mxu0 0
    %8893 = vmatpush1.bf16.xpose.msra.mxu0 0
    %8894 = vmatprep.subr.bf16.mxu0 0
    %8895 = vmatpush1.bf16.xpose.msra.mxu0 0
    %8896 = vmatprep.subr.bf16.mxu0 0
    %8897 = vmatpush1.bf16.xpose.msra.mxu0 0
    %8898 = vmatprep.subr.bf16.mxu0 0
    %8899 = vmatpush1.bf16.xpose.msra.mxu0 0
    %8900 = vmatprep.subr.bf16.mxu0 0
    %8901 = vmatpush1.bf16.xpose.msra.mxu0 0
    %8902 = vmatprep.subr.bf16.mxu0 0
    %8903 = vmatpush1.bf16.xpose.msra.mxu0 0
    %8904 = vmatprep.subr.bf16.mxu0 0
    %8905 = vmatpush1.bf16.xpose.msra.mxu0 0
    %8906 = vmatprep.subr.bf16.mxu0 0
    %8907 = vmatpush1.bf16.xpose.msra.mxu0 0
    %8908 = vmatprep.mubr.bf16.mxu0 0
    %8909 = vmatmul.mubr.bf16.gmra.mrb[0].mxu0 %v8871
    %v8910 = vpop.f32.mrb[0].mxu0
    %v8911 = vadd.f32 0.0, %v8910
    %v8912 = vpop.f32.mrb[0].mxu0
    %v8913 = vpop.f32.mrb[0].mxu0
    %v8914 = vpop.f32.mrb[0].mxu0
    %8915 = vdwg.mxu0
    %v8917 = vsel %vm7351, %v8296, 0
    %v8920 = vsel %vm7351, %v8328, 0
    %8922 = vmatprep.subr.bf16.mxu0 0
    %8923 = vmatpush1.bf16.xpose.msra.mxu0 %v8920
    %8924 = vmatprep.subr.bf16.mxu0 0
    %8925 = vmatpush1.bf16.xpose.msra.mxu0 0
    %8926 = vmatprep.subr.bf16.mxu0 0
    %8927 = vmatpush1.bf16.xpose.msra.mxu0 0
    %8928 = vmatprep.subr.bf16.mxu0 0
    %8929 = vmatpush1.bf16.xpose.msra.mxu0 0
    %8930 = vmatprep.subr.bf16.mxu0 0
    %8931 = vmatpush1.bf16.xpose.msra.mxu0 0
    %8932 = vmatprep.subr.bf16.mxu0 0
    %8933 = vmatpush1.bf16.xpose.msra.mxu0 0
    %8934 = vmatprep.subr.bf16.mxu0 0
    %8935 = vmatpush1.bf16.xpose.msra.mxu0 0
    %8936 = vmatprep.subr.bf16.mxu0 0
    %8937 = vmatpush1.bf16.xpose.msra.mxu0 0
    %8938 = vmatprep.subr.bf16.mxu0 0
    %8939 = vmatpush1.bf16.xpose.msra.mxu0 0
    %8940 = vmatprep.subr.bf16.mxu0 0
    %8941 = vmatpush1.bf16.xpose.msra.mxu0 0
    %8942 = vmatprep.subr.bf16.mxu0 0
    %8943 = vmatpush1.bf16.xpose.msra.mxu0 0
    %8944 = vmatprep.subr.bf16.mxu0 0
    %8945 = vmatpush1.bf16.xpose.msra.mxu0 0
    %8946 = vmatprep.subr.bf16.mxu0 0
    %8947 = vmatpush1.bf16.xpose.msra.mxu0 0
    %8948 = vmatprep.subr.bf16.mxu0 0
    %8949 = vmatpush1.bf16.xpose.msra.mxu0 0
    %8950 = vmatprep.subr.bf16.mxu0 0
    %8951 = vmatpush1.bf16.xpose.msra.mxu0 0
    %8952 = vmatprep.subr.bf16.mxu0 0
    %8953 = vmatpush1.bf16.xpose.msra.mxu0 0
    %8954 = vmatprep.mubr.bf16.mxu0 0
    %8955 = vmatmul.mubr.bf16.gmra.mrb[0].mxu0 %v8917
    %v8956 = vpop.f32.mrb[0].mxu0
    %v8957 = vadd.f32 0.0, %v8956
    %v8958 = vpop.f32.mrb[0].mxu0
    %v8959 = vpop.f32.mrb[0].mxu0
    %v8960 = vpop.f32.mrb[0].mxu0
    %8961 = vdwg.mxu0
    %v8963 = vsel %vm7351, %v8297, 0
    %v8966 = vsel %vm7351, %v8329, 0
    %8968 = vmatprep.subr.bf16.mxu0 0
    %8969 = vmatpush1.bf16.xpose.msra.mxu0 %v8966
    %8970 = vmatprep.subr.bf16.mxu0 0
    %8971 = vmatpush1.bf16.xpose.msra.mxu0 0
    %8972 = vmatprep.subr.bf16.mxu0 0
    %8973 = vmatpush1.bf16.xpose.msra.mxu0 0
    %8974 = vmatprep.subr.bf16.mxu0 0
    %8975 = vmatpush1.bf16.xpose.msra.mxu0 0
    %8976 = vmatprep.subr.bf16.mxu0 0
    %8977 = vmatpush1.bf16.xpose.msra.mxu0 0
    %8978 = vmatprep.subr.bf16.mxu0 0
    %8979 = vmatpush1.bf16.xpose.msra.mxu0 0
    %8980 = vmatprep.subr.bf16.mxu0 0
    %8981 = vmatpush1.bf16.xpose.msra.mxu0 0
    %8982 = vmatprep.subr.bf16.mxu0 0
    %8983 = vmatpush1.bf16.xpose.msra.mxu0 0
    %8984 = vmatprep.subr.bf16.mxu0 0
    %8985 = vmatpush1.bf16.xpose.msra.mxu0 0
    %8986 = vmatprep.subr.bf16.mxu0 0
    %8987 = vmatpush1.bf16.xpose.msra.mxu0 0
    %8988 = vmatprep.subr.bf16.mxu0 0
    %8989 = vmatpush1.bf16.xpose.msra.mxu0 0
    %8990 = vmatprep.subr.bf16.mxu0 0
    %8991 = vmatpush1.bf16.xpose.msra.mxu0 0
    %8992 = vmatprep.subr.bf16.mxu0 0
    %8993 = vmatpush1.bf16.xpose.msra.mxu0 0
    %8994 = vmatprep.subr.bf16.mxu0 0
    %8995 = vmatpush1.bf16.xpose.msra.mxu0 0
    %8996 = vmatprep.subr.bf16.mxu0 0
    %8997 = vmatpush1.bf16.xpose.msra.mxu0 0
    %8998 = vmatprep.subr.bf16.mxu0 0
    %8999 = vmatpush1.bf16.xpose.msra.mxu0 0
    %9000 = vmatprep.mubr.bf16.mxu0 0
    %9001 = vmatmul.mubr.bf16.gmra.mrb[0].mxu0 %v8963
    %v9002 = vpop.f32.mrb[0].mxu0
    %v9003 = vadd.f32 0.0, %v9002
    %v9004 = vpop.f32.mrb[0].mxu0
    %v9005 = vpop.f32.mrb[0].mxu0
    %v9006 = vpop.f32.mrb[0].mxu0
    %9007 = vdwg.mxu0
    %v9009 = vsel %vm7351, %v8298, 0
    %v9012 = vsel %vm7351, %v8330, 0
    %9014 = vmatprep.subr.bf16.mxu0 0
    %9015 = vmatpush1.bf16.xpose.msra.mxu0 %v9012
    %9016 = vmatprep.subr.bf16.mxu0 0
    %9017 = vmatpush1.bf16.xpose.msra.mxu0 0
    %9018 = vmatprep.subr.bf16.mxu0 0
    %9019 = vmatpush1.bf16.xpose.msra.mxu0 0
    %9020 = vmatprep.subr.bf16.mxu0 0
    %9021 = vmatpush1.bf16.xpose.msra.mxu0 0
    %9022 = vmatprep.subr.bf16.mxu0 0
    %9023 = vmatpush1.bf16.xpose.msra.mxu0 0
    %9024 = vmatprep.subr.bf16.mxu0 0
    %9025 = vmatpush1.bf16.xpose.msra.mxu0 0
    %9026 = vmatprep.subr.bf16.mxu0 0
    %9027 = vmatpush1.bf16.xpose.msra.mxu0 0
    %9028 = vmatprep.subr.bf16.mxu0 0
    %9029 = vmatpush1.bf16.xpose.msra.mxu0 0
    %9030 = vmatprep.subr.bf16.mxu0 0
    %9031 = vmatpush1.bf16.xpose.msra.mxu0 0
    %9032 = vmatprep.subr.bf16.mxu0 0
    %9033 = vmatpush1.bf16.xpose.msra.mxu0 0
    %9034 = vmatprep.subr.bf16.mxu0 0
    %9035 = vmatpush1.bf16.xpose.msra.mxu0 0
    %9036 = vmatprep.subr.bf16.mxu0 0
    %9037 = vmatpush1.bf16.xpose.msra.mxu0 0
    %9038 = vmatprep.subr.bf16.mxu0 0
    %9039 = vmatpush1.bf16.xpose.msra.mxu0 0
    %9040 = vmatprep.subr.bf16.mxu0 0
    %9041 = vmatpush1.bf16.xpose.msra.mxu0 0
    %9042 = vmatprep.subr.bf16.mxu0 0
    %9043 = vmatpush1.bf16.xpose.msra.mxu0 0
    %9044 = vmatprep.subr.bf16.mxu0 0
    %9045 = vmatpush1.bf16.xpose.msra.mxu0 0
    %9046 = vmatprep.mubr.bf16.mxu0 0
    %9047 = vmatmul.mubr.bf16.gmra.mrb[0].mxu0 %v9009
    %v9048 = vpop.f32.mrb[0].mxu0
    %v9049 = vadd.f32 0.0, %v9048
    %v9050 = vpop.f32.mrb[0].mxu0
    %v9051 = vpop.f32.mrb[0].mxu0
    %v9052 = vpop.f32.mrb[0].mxu0
    %9053 = vdwg.mxu0
    %v9055 = vsel %vm7351, %v8299, 0
    %v9058 = vsel %vm7351, %v8331, 0
    %9060 = vmatprep.subr.bf16.mxu0 0
    %9061 = vmatpush1.bf16.xpose.msra.mxu0 %v9058
    %9062 = vmatprep.subr.bf16.mxu0 0
    %9063 = vmatpush1.bf16.xpose.msra.mxu0 0
    %9064 = vmatprep.subr.bf16.mxu0 0
    %9065 = vmatpush1.bf16.xpose.msra.mxu0 0
    %9066 = vmatprep.subr.bf16.mxu0 0
    %9067 = vmatpush1.bf16.xpose.msra.mxu0 0
    %9068 = vmatprep.subr.bf16.mxu0 0
    %9069 = vmatpush1.bf16.xpose.msra.mxu0 0
    %9070 = vmatprep.subr.bf16.mxu0 0
    %9071 = vmatpush1.bf16.xpose.msra.mxu0 0
    %9072 = vmatprep.subr.bf16.mxu0 0
    %9073 = vmatpush1.bf16.xpose.msra.mxu0 0
    %9074 = vmatprep.subr.bf16.mxu0 0
    %9075 = vmatpush1.bf16.xpose.msra.mxu0 0
    %9076 = vmatprep.subr.bf16.mxu0 0
    %9077 = vmatpush1.bf16.xpose.msra.mxu0 0
    %9078 = vmatprep.subr.bf16.mxu0 0
    %9079 = vmatpush1.bf16.xpose.msra.mxu0 0
    %9080 = vmatprep.subr.bf16.mxu0 0
    %9081 = vmatpush1.bf16.xpose.msra.mxu0 0
    %9082 = vmatprep.subr.bf16.mxu0 0
    %9083 = vmatpush1.bf16.xpose.msra.mxu0 0
    %9084 = vmatprep.subr.bf16.mxu0 0
    %9085 = vmatpush1.bf16.xpose.msra.mxu0 0
    %9086 = vmatprep.subr.bf16.mxu0 0
    %9087 = vmatpush1.bf16.xpose.msra.mxu0 0
    %9088 = vmatprep.subr.bf16.mxu0 0
    %9089 = vmatpush1.bf16.xpose.msra.mxu0 0
    %9090 = vmatprep.subr.bf16.mxu0 0
    %9091 = vmatpush1.bf16.xpose.msra.mxu0 0
    %9092 = vmatprep.mubr.bf16.mxu0 0
    %9093 = vmatmul.mubr.bf16.gmra.mrb[0].mxu0 %v9055
    %v9094 = vpop.f32.mrb[0].mxu0
    %v9095 = vadd.f32 0.0, %v9094
    %v9096 = vpop.f32.mrb[0].mxu0
    %v9097 = vpop.f32.mrb[0].mxu0
    %v9098 = vpop.f32.mrb[0].mxu0
    %9099 = vdwg.mxu0
    %v9100 = vmul.f32 %v8405, 0.25
    %v9101 = vmul.f32 %v8451, 0.25
    %v9102 = vmul.f32 %v8497, 0.25
    %v9103 = vmul.f32 %v8543, 0.25
    %v9104 = vmul.f32 %v8589, 0.25
    %v9105 = vmul.f32 %v8635, 0.25
    %v9106 = vmul.f32 %v8681, 0.25
    %v9107 = vmul.f32 %v8727, 0.25
    %v9108 = vmul.f32 %v8773, 0.25
    %v9109 = vmul.f32 %v8819, 0.25
    %v9110 = vmul.f32 %v8865, 0.25
    %v9111 = vmul.f32 %v8911, 0.25
    %v9112 = vmul.f32 %v8957, 0.25
    %v9113 = vmul.f32 %v9003, 0.25
    %v9114 = vmul.f32 %v9049, 0.25
    %v9115 = vmul.f32 %v9095, 0.25
    %vm9116 = vcmask 64512
    %v9117 = vsel %vm9116, %v9100, -inf
    %9118 = vmax.xlane.f32.xlu0 %v9117
    %v9119 = vpop.xlane.xlu0 %9118
    %v9120 = vsel %vm9116, %v9101, -inf
    %9121 = vmax.xlane.f32.xlu0 %v9120
    %v9122 = vpop.xlane.xlu0 %9121
    %v9123 = vsel %vm9116, %v9102, -inf
    %9124 = vmax.xlane.f32.xlu0 %v9123
    %v9125 = vpop.xlane.xlu0 %9124
    %v9126 = vsel %vm9116, %v9103, -inf
    %9127 = vmax.xlane.f32.xlu0 %v9126
    %v9128 = vpop.xlane.xlu0 %9127
    %v9129 = vsel %vm9116, %v9104, -inf
    %9130 = vmax.xlane.f32.xlu0 %v9129
    %v9131 = vpop.xlane.xlu0 %9130
    %v9132 = vsel %vm9116, %v9105, -inf
    %9133 = vmax.xlane.f32.xlu0 %v9132
    %v9134 = vpop.xlane.xlu0 %9133
    %v9135 = vsel %vm9116, %v9106, -inf
    %9136 = vmax.xlane.f32.xlu0 %v9135
    %v9137 = vpop.xlane.xlu0 %9136
    %v9138 = vsel %vm9116, %v9107, -inf
    %9139 = vmax.xlane.f32.xlu0 %v9138
    %v9140 = vpop.xlane.xlu0 %9139
    %v9141 = vsel %vm9116, %v9108, -inf
    %9142 = vmax.xlane.f32.xlu0 %v9141
    %v9143 = vpop.xlane.xlu0 %9142
    %v9144 = vsel %vm9116, %v9109, -inf
    %9145 = vmax.xlane.f32.xlu0 %v9144
    %v9146 = vpop.xlane.xlu0 %9145
    %v9147 = vsel %vm9116, %v9110, -inf
    %9148 = vmax.xlane.f32.xlu0 %v9147
    %v9149 = vpop.xlane.xlu0 %9148
    %v9150 = vsel %vm9116, %v9111, -inf
    %9151 = vmax.xlane.f32.xlu0 %v9150
    %v9152 = vpop.xlane.xlu0 %9151
    %v9153 = vsel %vm9116, %v9112, -inf
    %9154 = vmax.xlane.f32.xlu0 %v9153
    %v9155 = vpop.xlane.xlu0 %9154
    %v9156 = vsel %vm9116, %v9113, -inf
    %9157 = vmax.xlane.f32.xlu0 %v9156
    %v9158 = vpop.xlane.xlu0 %9157
    %v9159 = vsel %vm9116, %v9114, -inf
    %9160 = vmax.xlane.f32.xlu0 %v9159
    %v9161 = vpop.xlane.xlu0 %9160
    %v9162 = vsel %vm9116, %v9115, -inf
    %9163 = vmax.xlane.f32.xlu0 %v9162
    %v9164 = vpop.xlane.xlu0 %9163
    %v9165 = vsub.f32 %v9100, %v9119
    %v9166 = vsub.f32 %v9101, %v9122
    %v9167 = vsub.f32 %v9102, %v9125
    %v9168 = vsub.f32 %v9103, %v9128
    %v9169 = vsub.f32 %v9104, %v9131
    %v9170 = vsub.f32 %v9105, %v9134
    %v9171 = vsub.f32 %v9106, %v9137
    %v9172 = vsub.f32 %v9107, %v9140
    %v9173 = vsub.f32 %v9108, %v9143
    %v9174 = vsub.f32 %v9109, %v9146
    %v9175 = vsub.f32 %v9110, %v9149
    %v9176 = vsub.f32 %v9111, %v9152
    %v9177 = vsub.f32 %v9112, %v9155
    %v9178 = vsub.f32 %v9113, %v9158
    %v9179 = vsub.f32 %v9114, %v9161
    %v9180 = vsub.f32 %v9115, %v9164
    %v9181 = vmul.f32 %v9165, 1.442695
    %v9182 = vpow.pop %v9181
    %v9183 = vmul.f32 %v9166, 1.442695
    %v9184 = vpow.pop %v9183
    %v9185 = vmul.f32 %v9167, 1.442695
    %v9186 = vpow.pop %v9185
    %v9187 = vmul.f32 %v9168, 1.442695
    %v9188 = vpow.pop %v9187
    %v9189 = vmul.f32 %v9169, 1.442695
    %v9190 = vpow.pop %v9189
    %v9191 = vmul.f32 %v9170, 1.442695
    %v9192 = vpow.pop %v9191
    %v9193 = vmul.f32 %v9171, 1.442695
    %v9194 = vpow.pop %v9193
    %v9195 = vmul.f32 %v9172, 1.442695
    %v9196 = vpow.pop %v9195
    %v9197 = vmul.f32 %v9173, 1.442695
    %v9198 = vpow.pop %v9197
    %v9199 = vmul.f32 %v9174, 1.442695
    %v9200 = vpow.pop %v9199
    %v9201 = vmul.f32 %v9175, 1.442695
    %v9202 = vpow.pop %v9201
    %v9203 = vmul.f32 %v9176, 1.442695
    %v9204 = vpow.pop %v9203
    %v9205 = vmul.f32 %v9177, 1.442695
    %v9206 = vpow.pop %v9205
    %v9207 = vmul.f32 %v9178, 1.442695
    %v9208 = vpow.pop %v9207
    %v9209 = vmul.f32 %v9179, 1.442695
    %v9210 = vpow.pop %v9209
    %v9211 = vmul.f32 %v9180, 1.442695
    %v9212 = vpow.pop %v9211
    %v9213 = vsel %vm9116, %v9182, 0.0
    %9214 = vadd.xlane.f32.xlu0 %v9213
    %v9215 = vpop.xlane.xlu0 %9214
    %v9216 = vsel %vm9116, %v9184, 0.0
    %9217 = vadd.xlane.f32.xlu0 %v9216
    %v9218 = vpop.xlane.xlu0 %9217
    %v9219 = vsel %vm9116, %v9186, 0.0
    %9220 = vadd.xlane.f32.xlu0 %v9219
    %v9221 = vpop.xlane.xlu0 %9220
    %v9222 = vsel %vm9116, %v9188, 0.0
    %9223 = vadd.xlane.f32.xlu0 %v9222
    %v9224 = vpop.xlane.xlu0 %9223
    %v9225 = vsel %vm9116, %v9190, 0.0
    %9226 = vadd.xlane.f32.xlu0 %v9225
    %v9227 = vpop.xlane.xlu0 %9226
    %v9228 = vsel %vm9116, %v9192, 0.0
    %9229 = vadd.xlane.f32.xlu0 %v9228
    %v9230 = vpop.xlane.xlu0 %9229
    %v9231 = vsel %vm9116, %v9194, 0.0
    %9232 = vadd.xlane.f32.xlu0 %v9231
    %v9233 = vpop.xlane.xlu0 %9232
    %v9234 = vsel %vm9116, %v9196, 0.0
    %9235 = vadd.xlane.f32.xlu0 %v9234
    %v9236 = vpop.xlane.xlu0 %9235
    %v9237 = vsel %vm9116, %v9198, 0.0
    %9238 = vadd.xlane.f32.xlu0 %v9237
    %v9239 = vpop.xlane.xlu0 %9238
    %v9240 = vsel %vm9116, %v9200, 0.0
    %9241 = vadd.xlane.f32.xlu0 %v9240
    %v9242 = vpop.xlane.xlu0 %9241
    %v9243 = vsel %vm9116, %v9202, 0.0
    %9244 = vadd.xlane.f32.xlu0 %v9243
    %v9245 = vpop.xlane.xlu0 %9244
    %v9246 = vsel %vm9116, %v9204, 0.0
    %9247 = vadd.xlane.f32.xlu0 %v9246
    %v9248 = vpop.xlane.xlu0 %9247
    %v9249 = vsel %vm9116, %v9206, 0.0
    %9250 = vadd.xlane.f32.xlu0 %v9249
    %v9251 = vpop.xlane.xlu0 %9250
    %v9252 = vsel %vm9116, %v9208, 0.0
    %9253 = vadd.xlane.f32.xlu0 %v9252
    %v9254 = vpop.xlane.xlu0 %9253
    %v9255 = vsel %vm9116, %v9210, 0.0
    %9256 = vadd.xlane.f32.xlu0 %v9255
    %v9257 = vpop.xlane.xlu0 %9256
    %v9258 = vsel %vm9116, %v9212, 0.0
    %9259 = vadd.xlane.f32.xlu0 %v9258
    %v9260 = vpop.xlane.xlu0 %9259
    %v9261 = vrcp.pop %v9215
    %v9262 = vrcp.pop %v9218
    %v9263 = vrcp.pop %v9221
    %v9264 = vrcp.pop %v9224
    %v9265 = vrcp.pop %v9227
    %v9266 = vrcp.pop %v9230
    %v9267 = vrcp.pop %v9233
    %v9268 = vrcp.pop %v9236
    %v9269 = vrcp.pop %v9239
    %v9270 = vrcp.pop %v9242
    %v9271 = vrcp.pop %v9245
    %v9272 = vrcp.pop %v9248
    %v9273 = vrcp.pop %v9251
    %v9274 = vrcp.pop %v9254
    %v9275 = vrcp.pop %v9257
    %v9276 = vrcp.pop %v9260
    %v9277 = vmul.f32 %v9182, %v9261
    %v9278 = vmul.f32 %v9184, %v9262
    %v9279 = vmul.f32 %v9186, %v9263
    %v9280 = vmul.f32 %v9188, %v9264
    %v9281 = vmul.f32 %v9190, %v9265
    %v9282 = vmul.f32 %v9192, %v9266
    %v9283 = vmul.f32 %v9194, %v9267
    %v9284 = vmul.f32 %v9196, %v9268
    %v9285 = vmul.f32 %v9198, %v9269
    %v9286 = vmul.f32 %v9200, %v9270
    %v9287 = vmul.f32 %v9202, %v9271
    %v9288 = vmul.f32 %v9204, %v9272
    %v9289 = vmul.f32 %v9206, %v9273
    %v9290 = vmul.f32 %v9208, %v9274
    %v9291 = vmul.f32 %v9210, %v9275
    %v9292 = vmul.f32 %v9212, %v9276
    %v9293 = vpack.c.bf16 %v9277, %v9277
    %v9294 = vpack.c.bf16 %v9278, %v9278
    %v9295 = vpack.c.bf16 %v9279, %v9279
    %v9296 = vpack.c.bf16 %v9280, %v9280
    %v9297 = vpack.c.bf16 %v9281, %v9281
    %v9298 = vpack.c.bf16 %v9282, %v9282
    %v9299 = vpack.c.bf16 %v9283, %v9283
    %v9300 = vpack.c.bf16 %v9284, %v9284
    %v9301 = vpack.c.bf16 %v9285, %v9285
    %v9302 = vpack.c.bf16 %v9286, %v9286
    %v9303 = vpack.c.bf16 %v9287, %v9287
    %v9304 = vpack.c.bf16 %v9288, %v9288
    %v9305 = vpack.c.bf16 %v9289, %v9289
    %v9306 = vpack.c.bf16 %v9290, %v9290
    %v9307 = vpack.c.bf16 %v9291, %v9291
    %v9308 = vpack.c.bf16 %v9292, %v9292
    %v9310 = vsel %vm9116, %v9293, 0
    %vm9312 = vcmask 1043456
    %v9314 = vsel %vm9312, %v8348, 0
    %9316 = vmatprep.subr.bf16.mxu0 0
    %9317 = vmatpush1.bf16.msra.mxu0 %v9314
    %9318 = vmatprep.subr.bf16.mxu0 0
    %9319 = vmatpush1.bf16.msra.mxu0 0
    %9320 = vmatprep.subr.bf16.mxu0 0
    %9321 = vmatpush1.bf16.msra.mxu0 0
    %9322 = vmatprep.subr.bf16.mxu0 0
    %9323 = vmatpush1.bf16.msra.mxu0 0
    %9324 = vmatprep.subr.bf16.mxu0 0
    %9325 = vmatpush1.bf16.msra.mxu0 0
    %9326 = vmatprep.subr.bf16.mxu0 0
    %9327 = vmatpush1.bf16.msra.mxu0 0
    %9328 = vmatprep.subr.bf16.mxu0 0
    %9329 = vmatpush1.bf16.msra.mxu0 0
    %9330 = vmatprep.subr.bf16.mxu0 0
    %9331 = vmatpush1.bf16.msra.mxu0 0
    %9332 = vmatprep.subr.bf16.mxu0 0
    %9333 = vmatpush1.bf16.msra.mxu0 0
    %9334 = vmatprep.subr.bf16.mxu0 0
    %9335 = vmatpush1.bf16.msra.mxu0 0
    %9336 = vmatprep.subr.bf16.mxu0 0
    %9337 = vmatpush1.bf16.msra.mxu0 0
    %9338 = vmatprep.subr.bf16.mxu0 0
    %9339 = vmatpush1.bf16.msra.mxu0 0
    %9340 = vmatprep.subr.bf16.mxu0 0
    %9341 = vmatpush1.bf16.msra.mxu0 0
    %9342 = vmatprep.subr.bf16.mxu0 0
    %9343 = vmatpush1.bf16.msra.mxu0 0
    %9344 = vmatprep.subr.bf16.mxu0 0
    %9345 = vmatpush1.bf16.msra.mxu0 0
    %9346 = vmatprep.subr.bf16.mxu0 0
    %9347 = vmatpush1.bf16.msra.mxu0 0
    %9348 = vmatprep.mubr.bf16.mxu0 0
    %9349 = vmatmul.mubr.bf16.gmra.mrb[0].mxu0 %v9310
    %v9350 = vpop.f32.mrb[0].mxu0
    %v9351 = vadd.f32 0.0, %v9350
    %v9352 = vpop.f32.mrb[0].mxu0
    %v9353 = vpop.f32.mrb[0].mxu0
    %v9354 = vpop.f32.mrb[0].mxu0
    %9355 = vdwg.mxu0
    %v9357 = vsel %vm9116, %v9294, 0
    %v9360 = vsel %vm9312, %v8349, 0
    %9362 = vmatprep.subr.bf16.mxu0 0
    %9363 = vmatpush1.bf16.msra.mxu0 %v9360
    %9364 = vmatprep.subr.bf16.mxu0 0
    %9365 = vmatpush1.bf16.msra.mxu0 0
    %9366 = vmatprep.subr.bf16.mxu0 0
    %9367 = vmatpush1.bf16.msra.mxu0 0
    %9368 = vmatprep.subr.bf16.mxu0 0
    %9369 = vmatpush1.bf16.msra.mxu0 0
    %9370 = vmatprep.subr.bf16.mxu0 0
    %9371 = vmatpush1.bf16.msra.mxu0 0
    %9372 = vmatprep.subr.bf16.mxu0 0
    %9373 = vmatpush1.bf16.msra.mxu0 0
    %9374 = vmatprep.subr.bf16.mxu0 0
    %9375 = vmatpush1.bf16.msra.mxu0 0
    %9376 = vmatprep.subr.bf16.mxu0 0
    %9377 = vmatpush1.bf16.msra.mxu0 0
    %9378 = vmatprep.subr.bf16.mxu0 0
    %9379 = vmatpush1.bf16.msra.mxu0 0
    %9380 = vmatprep.subr.bf16.mxu0 0
    %9381 = vmatpush1.bf16.msra.mxu0 0
    %9382 = vmatprep.subr.bf16.mxu0 0
    %9383 = vmatpush1.bf16.msra.mxu0 0
    %9384 = vmatprep.subr.bf16.mxu0 0
    %9385 = vmatpush1.bf16.msra.mxu0 0
    %9386 = vmatprep.subr.bf16.mxu0 0
    %9387 = vmatpush1.bf16.msra.mxu0 0
    %9388 = vmatprep.subr.bf16.mxu0 0
    %9389 = vmatpush1.bf16.msra.mxu0 0
    %9390 = vmatprep.subr.bf16.mxu0 0
    %9391 = vmatpush1.bf16.msra.mxu0 0
    %9392 = vmatprep.subr.bf16.mxu0 0
    %9393 = vmatpush1.bf16.msra.mxu0 0
    %9394 = vmatprep.mubr.bf16.mxu0 0
    %9395 = vmatmul.mubr.bf16.gmra.mrb[0].mxu0 %v9357
    %v9396 = vpop.f32.mrb[0].mxu0
    %v9397 = vadd.f32 0.0, %v9396
    %v9398 = vpop.f32.mrb[0].mxu0
    %v9399 = vpop.f32.mrb[0].mxu0
    %v9400 = vpop.f32.mrb[0].mxu0
    %9401 = vdwg.mxu0
    %v9403 = vsel %vm9116, %v9295, 0
    %v9406 = vsel %vm9312, %v8350, 0
    %9408 = vmatprep.subr.bf16.mxu0 0
    %9409 = vmatpush1.bf16.msra.mxu0 %v9406
    %9410 = vmatprep.subr.bf16.mxu0 0
    %9411 = vmatpush1.bf16.msra.mxu0 0
    %9412 = vmatprep.subr.bf16.mxu0 0
    %9413 = vmatpush1.bf16.msra.mxu0 0
    %9414 = vmatprep.subr.bf16.mxu0 0
    %9415 = vmatpush1.bf16.msra.mxu0 0
    %9416 = vmatprep.subr.bf16.mxu0 0
    %9417 = vmatpush1.bf16.msra.mxu0 0
    %9418 = vmatprep.subr.bf16.mxu0 0
    %9419 = vmatpush1.bf16.msra.mxu0 0
    %9420 = vmatprep.subr.bf16.mxu0 0
    %9421 = vmatpush1.bf16.msra.mxu0 0
    %9422 = vmatprep.subr.bf16.mxu0 0
    %9423 = vmatpush1.bf16.msra.mxu0 0
    %9424 = vmatprep.subr.bf16.mxu0 0
    %9425 = vmatpush1.bf16.msra.mxu0 0
    %9426 = vmatprep.subr.bf16.mxu0 0
    %9427 = vmatpush1.bf16.msra.mxu0 0
    %9428 = vmatprep.subr.bf16.mxu0 0
    %9429 = vmatpush1.bf16.msra.mxu0 0
    %9430 = vmatprep.subr.bf16.mxu0 0
    %9431 = vmatpush1.bf16.msra.mxu0 0
    %9432 = vmatprep.subr.bf16.mxu0 0
    %9433 = vmatpush1.bf16.msra.mxu0 0
    %9434 = vmatprep.subr.bf16.mxu0 0
    %9435 = vmatpush1.bf16.msra.mxu0 0
    %9436 = vmatprep.subr.bf16.mxu0 0
    %9437 = vmatpush1.bf16.msra.mxu0 0
    %9438 = vmatprep.subr.bf16.mxu0 0
    %9439 = vmatpush1.bf16.msra.mxu0 0
    %9440 = vmatprep.mubr.bf16.mxu0 0
    %9441 = vmatmul.mubr.bf16.gmra.mrb[0].mxu0 %v9403
    %v9442 = vpop.f32.mrb[0].mxu0
    %v9443 = vadd.f32 0.0, %v9442
    %v9444 = vpop.f32.mrb[0].mxu0
    %v9445 = vpop.f32.mrb[0].mxu0
    %v9446 = vpop.f32.mrb[0].mxu0
    %9447 = vdwg.mxu0
    %v9449 = vsel %vm9116, %v9296, 0
    %v9452 = vsel %vm9312, %v8351, 0
    %9454 = vmatprep.subr.bf16.mxu0 0
    %9455 = vmatpush1.bf16.msra.mxu0 %v9452
    %9456 = vmatprep.subr.bf16.mxu0 0
    %9457 = vmatpush1.bf16.msra.mxu0 0
    %9458 = vmatprep.subr.bf16.mxu0 0
    %9459 = vmatpush1.bf16.msra.mxu0 0
    %9460 = vmatprep.subr.bf16.mxu0 0
    %9461 = vmatpush1.bf16.msra.mxu0 0
    %9462 = vmatprep.subr.bf16.mxu0 0
    %9463 = vmatpush1.bf16.msra.mxu0 0
    %9464 = vmatprep.subr.bf16.mxu0 0
    %9465 = vmatpush1.bf16.msra.mxu0 0
    %9466 = vmatprep.subr.bf16.mxu0 0
    %9467 = vmatpush1.bf16.msra.mxu0 0
    %9468 = vmatprep.subr.bf16.mxu0 0
    %9469 = vmatpush1.bf16.msra.mxu0 0
    %9470 = vmatprep.subr.bf16.mxu0 0
    %9471 = vmatpush1.bf16.msra.mxu0 0
    %9472 = vmatprep.subr.bf16.mxu0 0
    %9473 = vmatpush1.bf16.msra.mxu0 0
    %9474 = vmatprep.subr.bf16.mxu0 0
    %9475 = vmatpush1.bf16.msra.mxu0 0
    %9476 = vmatprep.subr.bf16.mxu0 0
    %9477 = vmatpush1.bf16.msra.mxu0 0
    %9478 = vmatprep.subr.bf16.mxu0 0
    %9479 = vmatpush1.bf16.msra.mxu0 0
    %9480 = vmatprep.subr.bf16.mxu0 0
    %9481 = vmatpush1.bf16.msra.mxu0 0
    %9482 = vmatprep.subr.bf16.mxu0 0
    %9483 = vmatpush1.bf16.msra.mxu0 0
    %9484 = vmatprep.subr.bf16.mxu0 0
    %9485 = vmatpush1.bf16.msra.mxu0 0
    %9486 = vmatprep.mubr.bf16.mxu0 0
    %9487 = vmatmul.mubr.bf16.gmra.mrb[0].mxu0 %v9449
    %v9488 = vpop.f32.mrb[0].mxu0
    %v9489 = vadd.f32 0.0, %v9488
    %v9490 = vpop.f32.mrb[0].mxu0
    %v9491 = vpop.f32.mrb[0].mxu0
    %v9492 = vpop.f32.mrb[0].mxu0
    %9493 = vdwg.mxu0
    %v9495 = vsel %vm9116, %v9297, 0
    %v9498 = vsel %vm9312, %v8352, 0
    %9500 = vmatprep.subr.bf16.mxu0 0
    %9501 = vmatpush1.bf16.msra.mxu0 %v9498
    %9502 = vmatprep.subr.bf16.mxu0 0
    %9503 = vmatpush1.bf16.msra.mxu0 0
    %9504 = vmatprep.subr.bf16.mxu0 0
    %9505 = vmatpush1.bf16.msra.mxu0 0
    %9506 = vmatprep.subr.bf16.mxu0 0
    %9507 = vmatpush1.bf16.msra.mxu0 0
    %9508 = vmatprep.subr.bf16.mxu0 0
    %9509 = vmatpush1.bf16.msra.mxu0 0
    %9510 = vmatprep.subr.bf16.mxu0 0
    %9511 = vmatpush1.bf16.msra.mxu0 0
    %9512 = vmatprep.subr.bf16.mxu0 0
    %9513 = vmatpush1.bf16.msra.mxu0 0
    %9514 = vmatprep.subr.bf16.mxu0 0
    %9515 = vmatpush1.bf16.msra.mxu0 0
    %9516 = vmatprep.subr.bf16.mxu0 0
    %9517 = vmatpush1.bf16.msra.mxu0 0
    %9518 = vmatprep.subr.bf16.mxu0 0
    %9519 = vmatpush1.bf16.msra.mxu0 0
    %9520 = vmatprep.subr.bf16.mxu0 0
    %9521 = vmatpush1.bf16.msra.mxu0 0
    %9522 = vmatprep.subr.bf16.mxu0 0
    %9523 = vmatpush1.bf16.msra.mxu0 0
    %9524 = vmatprep.subr.bf16.mxu0 0
    %9525 = vmatpush1.bf16.msra.mxu0 0
    %9526 = vmatprep.subr.bf16.mxu0 0
    %9527 = vmatpush1.bf16.msra.mxu0 0
    %9528 = vmatprep.subr.bf16.mxu0 0
    %9529 = vmatpush1.bf16.msra.mxu0 0
    %9530 = vmatprep.subr.bf16.mxu0 0
    %9531 = vmatpush1.bf16.msra.mxu0 0
    %9532 = vmatprep.mubr.bf16.mxu0 0
    %9533 = vmatmul.mubr.bf16.gmra.mrb[0].mxu0 %v9495
    %v9534 = vpop.f32.mrb[0].mxu0
    %v9535 = vadd.f32 0.0, %v9534
    %v9536 = vpop.f32.mrb[0].mxu0
    %v9537 = vpop.f32.mrb[0].mxu0
    %v9538 = vpop.f32.mrb[0].mxu0
    %9539 = vdwg.mxu0
    %v9541 = vsel %vm9116, %v9298, 0
    %v9544 = vsel %vm9312, %v8353, 0
    %9546 = vmatprep.subr.bf16.mxu0 0
    %9547 = vmatpush1.bf16.msra.mxu0 %v9544
    %9548 = vmatprep.subr.bf16.mxu0 0
    %9549 = vmatpush1.bf16.msra.mxu0 0
    %9550 = vmatprep.subr.bf16.mxu0 0
    %9551 = vmatpush1.bf16.msra.mxu0 0
    %9552 = vmatprep.subr.bf16.mxu0 0
    %9553 = vmatpush1.bf16.msra.mxu0 0
    %9554 = vmatprep.subr.bf16.mxu0 0
    %9555 = vmatpush1.bf16.msra.mxu0 0
    %9556 = vmatprep.subr.bf16.mxu0 0
    %9557 = vmatpush1.bf16.msra.mxu0 0
    %9558 = vmatprep.subr.bf16.mxu0 0
    %9559 = vmatpush1.bf16.msra.mxu0 0
    %9560 = vmatprep.subr.bf16.mxu0 0
    %9561 = vmatpush1.bf16.msra.mxu0 0
    %9562 = vmatprep.subr.bf16.mxu0 0
    %9563 = vmatpush1.bf16.msra.mxu0 0
    %9564 = vmatprep.subr.bf16.mxu0 0
    %9565 = vmatpush1.bf16.msra.mxu0 0
    %9566 = vmatprep.subr.bf16.mxu0 0
    %9567 = vmatpush1.bf16.msra.mxu0 0
    %9568 = vmatprep.subr.bf16.mxu0 0
    %9569 = vmatpush1.bf16.msra.mxu0 0
    %9570 = vmatprep.subr.bf16.mxu0 0
    %9571 = vmatpush1.bf16.msra.mxu0 0
    %9572 = vmatprep.subr.bf16.mxu0 0
    %9573 = vmatpush1.bf16.msra.mxu0 0
    %9574 = vmatprep.subr.bf16.mxu0 0
    %9575 = vmatpush1.bf16.msra.mxu0 0
    %9576 = vmatprep.subr.bf16.mxu0 0
    %9577 = vmatpush1.bf16.msra.mxu0 0
    %9578 = vmatprep.mubr.bf16.mxu0 0
    %9579 = vmatmul.mubr.bf16.gmra.mrb[0].mxu0 %v9541
    %v9580 = vpop.f32.mrb[0].mxu0
    %v9581 = vadd.f32 0.0, %v9580
    %v9582 = vpop.f32.mrb[0].mxu0
    %v9583 = vpop.f32.mrb[0].mxu0
    %v9584 = vpop.f32.mrb[0].mxu0
    %9585 = vdwg.mxu0
    %v9587 = vsel %vm9116, %v9299, 0
    %v9590 = vsel %vm9312, %v8354, 0
    %9592 = vmatprep.subr.bf16.mxu0 0
    %9593 = vmatpush1.bf16.msra.mxu0 %v9590
    %9594 = vmatprep.subr.bf16.mxu0 0
    %9595 = vmatpush1.bf16.msra.mxu0 0
    %9596 = vmatprep.subr.bf16.mxu0 0
    %9597 = vmatpush1.bf16.msra.mxu0 0
    %9598 = vmatprep.subr.bf16.mxu0 0
    %9599 = vmatpush1.bf16.msra.mxu0 0
    %9600 = vmatprep.subr.bf16.mxu0 0
    %9601 = vmatpush1.bf16.msra.mxu0 0
    %9602 = vmatprep.subr.bf16.mxu0 0
    %9603 = vmatpush1.bf16.msra.mxu0 0
    %9604 = vmatprep.subr.bf16.mxu0 0
    %9605 = vmatpush1.bf16.msra.mxu0 0
    %9606 = vmatprep.subr.bf16.mxu0 0
    %9607 = vmatpush1.bf16.msra.mxu0 0
    %9608 = vmatprep.subr.bf16.mxu0 0
    %9609 = vmatpush1.bf16.msra.mxu0 0
    %9610 = vmatprep.subr.bf16.mxu0 0
    %9611 = vmatpush1.bf16.msra.mxu0 0
    %9612 = vmatprep.subr.bf16.mxu0 0
    %9613 = vmatpush1.bf16.msra.mxu0 0
    %9614 = vmatprep.subr.bf16.mxu0 0
    %9615 = vmatpush1.bf16.msra.mxu0 0
    %9616 = vmatprep.subr.bf16.mxu0 0
    %9617 = vmatpush1.bf16.msra.mxu0 0
    %9618 = vmatprep.subr.bf16.mxu0 0
    %9619 = vmatpush1.bf16.msra.mxu0 0
    %9620 = vmatprep.subr.bf16.mxu0 0
    %9621 = vmatpush1.bf16.msra.mxu0 0
    %9622 = vmatprep.subr.bf16.mxu0 0
    %9623 = vmatpush1.bf16.msra.mxu0 0
    %9624 = vmatprep.mubr.bf16.mxu0 0
    %9625 = vmatmul.mubr.bf16.gmra.mrb[0].mxu0 %v9587
    %v9626 = vpop.f32.mrb[0].mxu0
    %v9627 = vadd.f32 0.0, %v9626
    %v9628 = vpop.f32.mrb[0].mxu0
    %v9629 = vpop.f32.mrb[0].mxu0
    %v9630 = vpop.f32.mrb[0].mxu0
    %9631 = vdwg.mxu0
    %v9633 = vsel %vm9116, %v9300, 0
    %v9636 = vsel %vm9312, %v8355, 0
    %9638 = vmatprep.subr.bf16.mxu0 0
    %9639 = vmatpush1.bf16.msra.mxu0 %v9636
    %9640 = vmatprep.subr.bf16.mxu0 0
    %9641 = vmatpush1.bf16.msra.mxu0 0
    %9642 = vmatprep.subr.bf16.mxu0 0
    %9643 = vmatpush1.bf16.msra.mxu0 0
    %9644 = vmatprep.subr.bf16.mxu0 0
    %9645 = vmatpush1.bf16.msra.mxu0 0
    %9646 = vmatprep.subr.bf16.mxu0 0
    %9647 = vmatpush1.bf16.msra.mxu0 0
    %9648 = vmatprep.subr.bf16.mxu0 0
    %9649 = vmatpush1.bf16.msra.mxu0 0
    %9650 = vmatprep.subr.bf16.mxu0 0
    %9651 = vmatpush1.bf16.msra.mxu0 0
    %9652 = vmatprep.subr.bf16.mxu0 0
    %9653 = vmatpush1.bf16.msra.mxu0 0
    %9654 = vmatprep.subr.bf16.mxu0 0
    %9655 = vmatpush1.bf16.msra.mxu0 0
    %9656 = vmatprep.subr.bf16.mxu0 0
    %9657 = vmatpush1.bf16.msra.mxu0 0
    %9658 = vmatprep.subr.bf16.mxu0 0
    %9659 = vmatpush1.bf16.msra.mxu0 0
    %9660 = vmatprep.subr.bf16.mxu0 0
    %9661 = vmatpush1.bf16.msra.mxu0 0
    %9662 = vmatprep.subr.bf16.mxu0 0
    %9663 = vmatpush1.bf16.msra.mxu0 0
    %9664 = vmatprep.subr.bf16.mxu0 0
    %9665 = vmatpush1.bf16.msra.mxu0 0
    %9666 = vmatprep.subr.bf16.mxu0 0
    %9667 = vmatpush1.bf16.msra.mxu0 0
    %9668 = vmatprep.subr.bf16.mxu0 0
    %9669 = vmatpush1.bf16.msra.mxu0 0
    %9670 = vmatprep.mubr.bf16.mxu0 0
    %9671 = vmatmul.mubr.bf16.gmra.mrb[0].mxu0 %v9633
    %v9672 = vpop.f32.mrb[0].mxu0
    %v9673 = vadd.f32 0.0, %v9672
    %v9674 = vpop.f32.mrb[0].mxu0
    %v9675 = vpop.f32.mrb[0].mxu0
    %v9676 = vpop.f32.mrb[0].mxu0
    %9677 = vdwg.mxu0
    %v9679 = vsel %vm9116, %v9301, 0
    %v9682 = vsel %vm9312, %v8356, 0
    %9684 = vmatprep.subr.bf16.mxu0 0
    %9685 = vmatpush1.bf16.msra.mxu0 %v9682
    %9686 = vmatprep.subr.bf16.mxu0 0
    %9687 = vmatpush1.bf16.msra.mxu0 0
    %9688 = vmatprep.subr.bf16.mxu0 0
    %9689 = vmatpush1.bf16.msra.mxu0 0
    %9690 = vmatprep.subr.bf16.mxu0 0
    %9691 = vmatpush1.bf16.msra.mxu0 0
    %9692 = vmatprep.subr.bf16.mxu0 0
    %9693 = vmatpush1.bf16.msra.mxu0 0
    %9694 = vmatprep.subr.bf16.mxu0 0
    %9695 = vmatpush1.bf16.msra.mxu0 0
    %9696 = vmatprep.subr.bf16.mxu0 0
    %9697 = vmatpush1.bf16.msra.mxu0 0
    %9698 = vmatprep.subr.bf16.mxu0 0
    %9699 = vmatpush1.bf16.msra.mxu0 0
    %9700 = vmatprep.subr.bf16.mxu0 0
    %9701 = vmatpush1.bf16.msra.mxu0 0
    %9702 = vmatprep.subr.bf16.mxu0 0
    %9703 = vmatpush1.bf16.msra.mxu0 0
    %9704 = vmatprep.subr.bf16.mxu0 0
    %9705 = vmatpush1.bf16.msra.mxu0 0
    %9706 = vmatprep.subr.bf16.mxu0 0
    %9707 = vmatpush1.bf16.msra.mxu0 0
    %9708 = vmatprep.subr.bf16.mxu0 0
    %9709 = vmatpush1.bf16.msra.mxu0 0
    %9710 = vmatprep.subr.bf16.mxu0 0
    %9711 = vmatpush1.bf16.msra.mxu0 0
    %9712 = vmatprep.subr.bf16.mxu0 0
    %9713 = vmatpush1.bf16.msra.mxu0 0
    %9714 = vmatprep.subr.bf16.mxu0 0
    %9715 = vmatpush1.bf16.msra.mxu0 0
    %9716 = vmatprep.mubr.bf16.mxu0 0
    %9717 = vmatmul.mubr.bf16.gmra.mrb[0].mxu0 %v9679
    %v9718 = vpop.f32.mrb[0].mxu0
    %v9719 = vadd.f32 0.0, %v9718
    %v9720 = vpop.f32.mrb[0].mxu0
    %v9721 = vpop.f32.mrb[0].mxu0
    %v9722 = vpop.f32.mrb[0].mxu0
    %9723 = vdwg.mxu0
    %v9725 = vsel %vm9116, %v9302, 0
    %v9728 = vsel %vm9312, %v8357, 0
    %9730 = vmatprep.subr.bf16.mxu0 0
    %9731 = vmatpush1.bf16.msra.mxu0 %v9728
    %9732 = vmatprep.subr.bf16.mxu0 0
    %9733 = vmatpush1.bf16.msra.mxu0 0
    %9734 = vmatprep.subr.bf16.mxu0 0
    %9735 = vmatpush1.bf16.msra.mxu0 0
    %9736 = vmatprep.subr.bf16.mxu0 0
    %9737 = vmatpush1.bf16.msra.mxu0 0
    %9738 = vmatprep.subr.bf16.mxu0 0
    %9739 = vmatpush1.bf16.msra.mxu0 0
    %9740 = vmatprep.subr.bf16.mxu0 0
    %9741 = vmatpush1.bf16.msra.mxu0 0
    %9742 = vmatprep.subr.bf16.mxu0 0
    %9743 = vmatpush1.bf16.msra.mxu0 0
    %9744 = vmatprep.subr.bf16.mxu0 0
    %9745 = vmatpush1.bf16.msra.mxu0 0
    %9746 = vmatprep.subr.bf16.mxu0 0
    %9747 = vmatpush1.bf16.msra.mxu0 0
    %9748 = vmatprep.subr.bf16.mxu0 0
    %9749 = vmatpush1.bf16.msra.mxu0 0
    %9750 = vmatprep.subr.bf16.mxu0 0
    %9751 = vmatpush1.bf16.msra.mxu0 0
    %9752 = vmatprep.subr.bf16.mxu0 0
    %9753 = vmatpush1.bf16.msra.mxu0 0
    %9754 = vmatprep.subr.bf16.mxu0 0
    %9755 = vmatpush1.bf16.msra.mxu0 0
    %9756 = vmatprep.subr.bf16.mxu0 0
    %9757 = vmatpush1.bf16.msra.mxu0 0
    %9758 = vmatprep.subr.bf16.mxu0 0
    %9759 = vmatpush1.bf16.msra.mxu0 0
    %9760 = vmatprep.subr.bf16.mxu0 0
    %9761 = vmatpush1.bf16.msra.mxu0 0
    %9762 = vmatprep.mubr.bf16.mxu0 0
    %9763 = vmatmul.mubr.bf16.gmra.mrb[0].mxu0 %v9725
    %v9764 = vpop.f32.mrb[0].mxu0
    %v9765 = vadd.f32 0.0, %v9764
    %v9766 = vpop.f32.mrb[0].mxu0
    %v9767 = vpop.f32.mrb[0].mxu0
    %v9768 = vpop.f32.mrb[0].mxu0
    %9769 = vdwg.mxu0
    %v9771 = vsel %vm9116, %v9303, 0
    %v9774 = vsel %vm9312, %v8358, 0
    %9776 = vmatprep.subr.bf16.mxu0 0
    %9777 = vmatpush1.bf16.msra.mxu0 %v9774
    %9778 = vmatprep.subr.bf16.mxu0 0
    %9779 = vmatpush1.bf16.msra.mxu0 0
    %9780 = vmatprep.subr.bf16.mxu0 0
    %9781 = vmatpush1.bf16.msra.mxu0 0
    %9782 = vmatprep.subr.bf16.mxu0 0
    %9783 = vmatpush1.bf16.msra.mxu0 0
    %9784 = vmatprep.subr.bf16.mxu0 0
    %9785 = vmatpush1.bf16.msra.mxu0 0
    %9786 = vmatprep.subr.bf16.mxu0 0
    %9787 = vmatpush1.bf16.msra.mxu0 0
    %9788 = vmatprep.subr.bf16.mxu0 0
    %9789 = vmatpush1.bf16.msra.mxu0 0
    %9790 = vmatprep.subr.bf16.mxu0 0
    %9791 = vmatpush1.bf16.msra.mxu0 0
    %9792 = vmatprep.subr.bf16.mxu0 0
    %9793 = vmatpush1.bf16.msra.mxu0 0
    %9794 = vmatprep.subr.bf16.mxu0 0
    %9795 = vmatpush1.bf16.msra.mxu0 0
    %9796 = vmatprep.subr.bf16.mxu0 0
    %9797 = vmatpush1.bf16.msra.mxu0 0
    %9798 = vmatprep.subr.bf16.mxu0 0
    %9799 = vmatpush1.bf16.msra.mxu0 0
    %9800 = vmatprep.subr.bf16.mxu0 0
    %9801 = vmatpush1.bf16.msra.mxu0 0
    %9802 = vmatprep.subr.bf16.mxu0 0
    %9803 = vmatpush1.bf16.msra.mxu0 0
    %9804 = vmatprep.subr.bf16.mxu0 0
    %9805 = vmatpush1.bf16.msra.mxu0 0
    %9806 = vmatprep.subr.bf16.mxu0 0
    %9807 = vmatpush1.bf16.msra.mxu0 0
    %9808 = vmatprep.mubr.bf16.mxu0 0
    %9809 = vmatmul.mubr.bf16.gmra.mrb[0].mxu0 %v9771
    %v9810 = vpop.f32.mrb[0].mxu0
    %v9811 = vadd.f32 0.0, %v9810
    %v9812 = vpop.f32.mrb[0].mxu0
    %v9813 = vpop.f32.mrb[0].mxu0
    %v9814 = vpop.f32.mrb[0].mxu0
    %9815 = vdwg.mxu0
    %v9817 = vsel %vm9116, %v9304, 0
    %v9820 = vsel %vm9312, %v8359, 0
    %9822 = vmatprep.subr.bf16.mxu0 0
    %9823 = vmatpush1.bf16.msra.mxu0 %v9820
    %9824 = vmatprep.subr.bf16.mxu0 0
    %9825 = vmatpush1.bf16.msra.mxu0 0
    %9826 = vmatprep.subr.bf16.mxu0 0
    %9827 = vmatpush1.bf16.msra.mxu0 0
    %9828 = vmatprep.subr.bf16.mxu0 0
    %9829 = vmatpush1.bf16.msra.mxu0 0
    %9830 = vmatprep.subr.bf16.mxu0 0
    %9831 = vmatpush1.bf16.msra.mxu0 0
    %9832 = vmatprep.subr.bf16.mxu0 0
    %9833 = vmatpush1.bf16.msra.mxu0 0
    %9834 = vmatprep.subr.bf16.mxu0 0
    %9835 = vmatpush1.bf16.msra.mxu0 0
    %9836 = vmatprep.subr.bf16.mxu0 0
    %9837 = vmatpush1.bf16.msra.mxu0 0
    %9838 = vmatprep.subr.bf16.mxu0 0
    %9839 = vmatpush1.bf16.msra.mxu0 0
    %9840 = vmatprep.subr.bf16.mxu0 0
    %9841 = vmatpush1.bf16.msra.mxu0 0
    %9842 = vmatprep.subr.bf16.mxu0 0
    %9843 = vmatpush1.bf16.msra.mxu0 0
    %9844 = vmatprep.subr.bf16.mxu0 0
    %9845 = vmatpush1.bf16.msra.mxu0 0
    %9846 = vmatprep.subr.bf16.mxu0 0
    %9847 = vmatpush1.bf16.msra.mxu0 0
    %9848 = vmatprep.subr.bf16.mxu0 0
    %9849 = vmatpush1.bf16.msra.mxu0 0
    %9850 = vmatprep.subr.bf16.mxu0 0
    %9851 = vmatpush1.bf16.msra.mxu0 0
    %9852 = vmatprep.subr.bf16.mxu0 0
    %9853 = vmatpush1.bf16.msra.mxu0 0
    %9854 = vmatprep.mubr.bf16.mxu0 0
    %9855 = vmatmul.mubr.bf16.gmra.mrb[0].mxu0 %v9817
    %v9856 = vpop.f32.mrb[0].mxu0
    %v9857 = vadd.f32 0.0, %v9856
    %v9858 = vpop.f32.mrb[0].mxu0
    %v9859 = vpop.f32.mrb[0].mxu0
    %v9860 = vpop.f32.mrb[0].mxu0
    %9861 = vdwg.mxu0
    %v9863 = vsel %vm9116, %v9305, 0
    %v9866 = vsel %vm9312, %v8360, 0
    %9868 = vmatprep.subr.bf16.mxu0 0
    %9869 = vmatpush1.bf16.msra.mxu0 %v9866
    %9870 = vmatprep.subr.bf16.mxu0 0
    %9871 = vmatpush1.bf16.msra.mxu0 0
    %9872 = vmatprep.subr.bf16.mxu0 0
    %9873 = vmatpush1.bf16.msra.mxu0 0
    %9874 = vmatprep.subr.bf16.mxu0 0
    %9875 = vmatpush1.bf16.msra.mxu0 0
    %9876 = vmatprep.subr.bf16.mxu0 0
    %9877 = vmatpush1.bf16.msra.mxu0 0
    %9878 = vmatprep.subr.bf16.mxu0 0
    %9879 = vmatpush1.bf16.msra.mxu0 0
    %9880 = vmatprep.subr.bf16.mxu0 0
    %9881 = vmatpush1.bf16.msra.mxu0 0
    %9882 = vmatprep.subr.bf16.mxu0 0
    %9883 = vmatpush1.bf16.msra.mxu0 0
    %9884 = vmatprep.subr.bf16.mxu0 0
    %9885 = vmatpush1.bf16.msra.mxu0 0
    %9886 = vmatprep.subr.bf16.mxu0 0
    %9887 = vmatpush1.bf16.msra.mxu0 0
    %9888 = vmatprep.subr.bf16.mxu0 0
    %9889 = vmatpush1.bf16.msra.mxu0 0
    %9890 = vmatprep.subr.bf16.mxu0 0
    %9891 = vmatpush1.bf16.msra.mxu0 0
    %9892 = vmatprep.subr.bf16.mxu0 0
    %9893 = vmatpush1.bf16.msra.mxu0 0
    %9894 = vmatprep.subr.bf16.mxu0 0
    %9895 = vmatpush1.bf16.msra.mxu0 0
    %9896 = vmatprep.subr.bf16.mxu0 0
    %9897 = vmatpush1.bf16.msra.mxu0 0
    %9898 = vmatprep.subr.bf16.mxu0 0
    %9899 = vmatpush1.bf16.msra.mxu0 0
    %9900 = vmatprep.mubr.bf16.mxu0 0
    %9901 = vmatmul.mubr.bf16.gmra.mrb[0].mxu0 %v9863
    %v9902 = vpop.f32.mrb[0].mxu0
    %v9903 = vadd.f32 0.0, %v9902
    %v9904 = vpop.f32.mrb[0].mxu0
    %v9905 = vpop.f32.mrb[0].mxu0
    %v9906 = vpop.f32.mrb[0].mxu0
    %9907 = vdwg.mxu0
    %v9909 = vsel %vm9116, %v9306, 0
    %v9912 = vsel %vm9312, %v8361, 0
    %9914 = vmatprep.subr.bf16.mxu0 0
    %9915 = vmatpush1.bf16.msra.mxu0 %v9912
    %9916 = vmatprep.subr.bf16.mxu0 0
    %9917 = vmatpush1.bf16.msra.mxu0 0
    %9918 = vmatprep.subr.bf16.mxu0 0
    %9919 = vmatpush1.bf16.msra.mxu0 0
    %9920 = vmatprep.subr.bf16.mxu0 0
    %9921 = vmatpush1.bf16.msra.mxu0 0
    %9922 = vmatprep.subr.bf16.mxu0 0
    %9923 = vmatpush1.bf16.msra.mxu0 0
    %9924 = vmatprep.subr.bf16.mxu0 0
    %9925 = vmatpush1.bf16.msra.mxu0 0
    %9926 = vmatprep.subr.bf16.mxu0 0
    %9927 = vmatpush1.bf16.msra.mxu0 0
    %9928 = vmatprep.subr.bf16.mxu0 0
    %9929 = vmatpush1.bf16.msra.mxu0 0
    %9930 = vmatprep.subr.bf16.mxu0 0
    %9931 = vmatpush1.bf16.msra.mxu0 0
    %9932 = vmatprep.subr.bf16.mxu0 0
    %9933 = vmatpush1.bf16.msra.mxu0 0
    %9934 = vmatprep.subr.bf16.mxu0 0
    %9935 = vmatpush1.bf16.msra.mxu0 0
    %9936 = vmatprep.subr.bf16.mxu0 0
    %9937 = vmatpush1.bf16.msra.mxu0 0
    %9938 = vmatprep.subr.bf16.mxu0 0
    %9939 = vmatpush1.bf16.msra.mxu0 0
    %9940 = vmatprep.subr.bf16.mxu0 0
    %9941 = vmatpush1.bf16.msra.mxu0 0
    %9942 = vmatprep.subr.bf16.mxu0 0
    %9943 = vmatpush1.bf16.msra.mxu0 0
    %9944 = vmatprep.subr.bf16.mxu0 0
    %9945 = vmatpush1.bf16.msra.mxu0 0
    %9946 = vmatprep.mubr.bf16.mxu0 0
    %9947 = vmatmul.mubr.bf16.gmra.mrb[0].mxu0 %v9909
    %v9948 = vpop.f32.mrb[0].mxu0
    %v9949 = vadd.f32 0.0, %v9948
    %v9950 = vpop.f32.mrb[0].mxu0
    %v9951 = vpop.f32.mrb[0].mxu0
    %v9952 = vpop.f32.mrb[0].mxu0
    %9953 = vdwg.mxu0
    %v9955 = vsel %vm9116, %v9307, 0
    %v9958 = vsel %vm9312, %v8362, 0
    %9960 = vmatprep.subr.bf16.mxu0 0
    %9961 = vmatpush1.bf16.msra.mxu0 %v9958
    %9962 = vmatprep.subr.bf16.mxu0 0
    %9963 = vmatpush1.bf16.msra.mxu0 0
    %9964 = vmatprep.subr.bf16.mxu0 0
    %9965 = vmatpush1.bf16.msra.mxu0 0
    %9966 = vmatprep.subr.bf16.mxu0 0
    %9967 = vmatpush1.bf16.msra.mxu0 0
    %9968 = vmatprep.subr.bf16.mxu0 0
    %9969 = vmatpush1.bf16.msra.mxu0 0
    %9970 = vmatprep.subr.bf16.mxu0 0
    %9971 = vmatpush1.bf16.msra.mxu0 0
    %9972 = vmatprep.subr.bf16.mxu0 0
    %9973 = vmatpush1.bf16.msra.mxu0 0
    %9974 = vmatprep.subr.bf16.mxu0 0
    %9975 = vmatpush1.bf16.msra.mxu0 0
    %9976 = vmatprep.subr.bf16.mxu0 0
    %9977 = vmatpush1.bf16.msra.mxu0 0
    %9978 = vmatprep.subr.bf16.mxu0 0
    %9979 = vmatpush1.bf16.msra.mxu0 0
    %9980 = vmatprep.subr.bf16.mxu0 0
    %9981 = vmatpush1.bf16.msra.mxu0 0
    %9982 = vmatprep.subr.bf16.mxu0 0
    %9983 = vmatpush1.bf16.msra.mxu0 0
    %9984 = vmatprep.subr.bf16.mxu0 0
    %9985 = vmatpush1.bf16.msra.mxu0 0
    %9986 = vmatprep.subr.bf16.mxu0 0
    %9987 = vmatpush1.bf16.msra.mxu0 0
    %9988 = vmatprep.subr.bf16.mxu0 0
    %9989 = vmatpush1.bf16.msra.mxu0 0
    %9990 = vmatprep.subr.bf16.mxu0 0
    %9991 = vmatpush1.bf16.msra.mxu0 0
    %9992 = vmatprep.mubr.bf16.mxu0 0
    %9993 = vmatmul.mubr.bf16.gmra.mrb[0].mxu0 %v9955
    %v9994 = vpop.f32.mrb[0].mxu0
    %v9995 = vadd.f32 0.0, %v9994
    %v9996 = vpop.f32.mrb[0].mxu0
    %v9997 = vpop.f32.mrb[0].mxu0
    %v9998 = vpop.f32.mrb[0].mxu0
    %9999 = vdwg.mxu0
    %v10001 = vsel %vm9116, %v9308, 0
    %v10004 = vsel %vm9312, %v8363, 0
    %10006 = vmatprep.subr.bf16.mxu0 0
    %10007 = vmatpush1.bf16.msra.mxu0 %v10004
    %10008 = vmatprep.subr.bf16.mxu0 0
    %10009 = vmatpush1.bf16.msra.mxu0 0
    %10010 = vmatprep.subr.bf16.mxu0 0
    %10011 = vmatpush1.bf16.msra.mxu0 0
    %10012 = vmatprep.subr.bf16.mxu0 0
    %10013 = vmatpush1.bf16.msra.mxu0 0
    %10014 = vmatprep.subr.bf16.mxu0 0
    %10015 = vmatpush1.bf16.msra.mxu0 0
    %10016 = vmatprep.subr.bf16.mxu0 0
    %10017 = vmatpush1.bf16.msra.mxu0 0
    %10018 = vmatprep.subr.bf16.mxu0 0
    %10019 = vmatpush1.bf16.msra.mxu0 0
    %10020 = vmatprep.subr.bf16.mxu0 0
    %10021 = vmatpush1.bf16.msra.mxu0 0
    %10022 = vmatprep.subr.bf16.mxu0 0
    %10023 = vmatpush1.bf16.msra.mxu0 0
    %10024 = vmatprep.subr.bf16.mxu0 0
    %10025 = vmatpush1.bf16.msra.mxu0 0
    %10026 = vmatprep.subr.bf16.mxu0 0
    %10027 = vmatpush1.bf16.msra.mxu0 0
    %10028 = vmatprep.subr.bf16.mxu0 0
    %10029 = vmatpush1.bf16.msra.mxu0 0
    %10030 = vmatprep.subr.bf16.mxu0 0
    %10031 = vmatpush1.bf16.msra.mxu0 0
    %10032 = vmatprep.subr.bf16.mxu0 0
    %10033 = vmatpush1.bf16.msra.mxu0 0
    %10034 = vmatprep.subr.bf16.mxu0 0
    %10035 = vmatpush1.bf16.msra.mxu0 0
    %10036 = vmatprep.subr.bf16.mxu0 0
    %10037 = vmatpush1.bf16.msra.mxu0 0
    %10038 = vmatprep.mubr.bf16.mxu0 0
    %10039 = vmatmul.mubr.bf16.gmra.mrb[0].mxu0 %v10001
    %v10040 = vpop.f32.mrb[0].mxu0
    %v10041 = vadd.f32 0.0, %v10040
    %v10042 = vpop.f32.mrb[0].mxu0
    %v10043 = vpop.f32.mrb[0].mxu0
    %v10044 = vpop.f32.mrb[0].mxu0
    %10045 = vdwg.mxu0
    %10046 = vst.msk [vmem:[#allocation8] sm:$0xff] %vm7351, %v9351
    %10048 = vrot.lane.b32.xlu0 %v9397, 16
    %v10049 = vpop.permute.xlu0 %10048
    %10051 = vst.msk [vmem:[#allocation8] sm:$0xff] %vm7378, %v10049
    %10053 = vrot.lane.b32.xlu0 %v9443, 32
    %v10054 = vpop.permute.xlu0 %10053
    %10056 = vst.msk [vmem:[#allocation8] sm:$0xff] %vm7406, %v10054
    %10058 = vrot.lane.b32.xlu0 %v9489, 48
    %v10059 = vpop.permute.xlu0 %10058
    %10061 = vst.msk [vmem:[#allocation8] sm:$0xff] %vm7434, %v10059
    %10063 = vrot.lane.b32.xlu0 %v9535, 64
    %v10064 = vpop.permute.xlu0 %10063
    %10066 = vst.msk [vmem:[#allocation8] sm:$0xff] %vm7462, %v10064
    %10068 = vrot.lane.b32.xlu0 %v9581, 80
    %v10069 = vpop.permute.xlu0 %10068
    %10071 = vst.msk [vmem:[#allocation8] sm:$0xff] %vm7490, %v10069
    %10073 = vrot.lane.b32.xlu0 %v9627, 96
    %v10074 = vpop.permute.xlu0 %10073
    %10076 = vst.msk [vmem:[#allocation8] sm:$0xff] %vm7518, %v10074
    %10078 = vrot.lane.b32.xlu0 %v9673, 112
    %v10079 = vpop.permute.xlu0 %10078
    %10081 = vst.msk [vmem:[#allocation8] sm:$0xff] %vm7546, %v10079
    %10082 = vst.msk [vmem:[#allocation8 + $0x8] sm:$0xff] %vm7351, %v9719
    %10084 = vrot.lane.b32.xlu0 %v9765, 16
    %v10085 = vpop.permute.xlu0 %10084
    %10087 = vst.msk [vmem:[#allocation8 + $0x8] sm:$0xff] %vm7378, %v10085
    %10089 = vrot.lane.b32.xlu0 %v9811, 32
    %v10090 = vpop.permute.xlu0 %10089
    %10092 = vst.msk [vmem:[#allocation8 + $0x8] sm:$0xff] %vm7406, %v10090
    %10094 = vrot.lane.b32.xlu0 %v9857, 48
    %v10095 = vpop.permute.xlu0 %10094
    %10097 = vst.msk [vmem:[#allocation8 + $0x8] sm:$0xff] %vm7434, %v10095
    %10099 = vrot.lane.b32.xlu0 %v9903, 64
    %v10100 = vpop.permute.xlu0 %10099
    %10102 = vst.msk [vmem:[#allocation8 + $0x8] sm:$0xff] %vm7462, %v10100
    %10104 = vrot.lane.b32.xlu0 %v9949, 80
    %v10105 = vpop.permute.xlu0 %10104
    %10107 = vst.msk [vmem:[#allocation8 + $0x8] sm:$0xff] %vm7490, %v10105
    %10109 = vrot.lane.b32.xlu0 %v9995, 96
    %v10110 = vpop.permute.xlu0 %10109
    %10112 = vst.msk [vmem:[#allocation8 + $0x8] sm:$0xff] %vm7518, %v10110
    %10114 = vrot.lane.b32.xlu0 %v10041, 112
    %v10115 = vpop.permute.xlu0 %10114
    %10117 = vst.msk [vmem:[#allocation8 + $0x8] sm:$0xff] %vm7546, %v10115
    %v10118 = vld [vmem:[#allocation8] sm:$0xff]
    %v10119 = vld [vmem:[#allocation8 + $0x8] sm:$0xff]
    %v10120 = vpack.c.bf16 %v10119, %v10118
    %v10121 = vld [vmem:[%s41] sm:$0xf]
    %v10122 = vld [vmem:[%s41 + $0x4] sm:$0xf]
    %v10123 = vld [vmem:[%s41 + $0x8] sm:$0xf]
    %v10124 = vld [vmem:[%s41 + $0xc] sm:$0xf]
    %v10125 = vld [vmem:[%s41 + $0x10] sm:$0xf]
    %v10126 = vld [vmem:[%s41 + $0x14] sm:$0xf]
    %v10127 = vld [vmem:[%s41 + $0x18] sm:$0xf]
    %v10128 = vld [vmem:[%s41 + $0x1c] sm:$0xf]
    %v10129 = vld [vmem:[%s41 + $0x20] sm:$0xf]
    %v10130 = vld [vmem:[%s41 + $0x24] sm:$0xf]
    %v10131 = vld [vmem:[%s41 + $0x28] sm:$0xf]
    %v10132 = vld [vmem:[%s41 + $0x2c] sm:$0xf]
    %v10133 = vld [vmem:[%s41 + $0x30] sm:$0xf]
    %v10134 = vld [vmem:[%s41 + $0x34] sm:$0xf]
    %v10135 = vld [vmem:[%s41 + $0x38] sm:$0xf]
    %v10136 = vld [vmem:[%s41 + $0x3c] sm:$0xf]
    %v10137 = vld [vmem:[%s43] sm:$0x1]
    %v10139 = vlaneseq
    %v10140 = vshrl.u32 %v10139, 7
    %v10141 = vsub.s32 0, %v10140
    %v10142 = vrot.slane %v10137, %v10141
    %v10160 = vunpack.c.l.b16 %v10121
    %v10161 = vunpack.c.l.b16 %v10122
    %v10162 = vunpack.c.l.b16 %v10123
    %v10163 = vunpack.c.l.b16 %v10124
    %v10164 = vunpack.c.l.b16 %v10125
    %v10165 = vunpack.c.l.b16 %v10126
    %v10166 = vunpack.c.l.b16 %v10127
    %v10167 = vunpack.c.l.b16 %v10128
    %v10168 = vunpack.c.l.b16 %v10129
    %v10169 = vunpack.c.l.b16 %v10130
    %v10170 = vunpack.c.l.b16 %v10131
    %v10171 = vunpack.c.l.b16 %v10132
    %v10172 = vunpack.c.l.b16 %v10133
    %v10173 = vunpack.c.l.b16 %v10134
    %v10174 = vunpack.c.l.b16 %v10135
    %v10175 = vunpack.c.l.b16 %v10136
    %v10176 = vpack.c.b16 %v10161, %v10160
    %v10177 = vpack.c.b16 %v10163, %v10162
    %v10178 = vpack.c.b16 %v10165, %v10164
    %v10179 = vpack.c.b16 %v10167, %v10166
    %v10180 = vpack.c.b16 %v10169, %v10168
    %v10181 = vpack.c.b16 %v10171, %v10170
    %v10182 = vpack.c.b16 %v10173, %v10172
    %v10183 = vpack.c.b16 %v10175, %v10174
    %10192 = vmatprep.subr.bf16.mxu0 0
    %10193 = vmatpush1.bf16.msra.mxu0 %v10176
    %10194 = vmatprep.subr.bf16.mxu0 0
    %10195 = vmatpush1.bf16.msra.mxu0 %v10177
    %10196 = vmatprep.subr.bf16.mxu0 0
    %10197 = vmatpush1.bf16.msra.mxu0 %v10178
    %10198 = vmatprep.subr.bf16.mxu0 0
    %10199 = vmatpush1.bf16.msra.mxu0 %v10179
    %10200 = vmatprep.subr.bf16.mxu0 0
    %10201 = vmatpush1.bf16.msra.mxu0 %v10180
    %10202 = vmatprep.subr.bf16.mxu0 0
    %10203 = vmatpush1.bf16.msra.mxu0 %v10181
    %10204 = vmatprep.subr.bf16.mxu0 0
    %10205 = vmatpush1.bf16.msra.mxu0 %v10182
    %10206 = vmatprep.subr.bf16.mxu0 0
    %10207 = vmatpush1.bf16.msra.mxu0 %v10183
    %10208 = vmatprep.subr.bf16.mxu0 0
    %10209 = vmatpush1.bf16.msra.mxu0 0
    %10210 = vmatprep.subr.bf16.mxu0 0
    %10211 = vmatpush1.bf16.msra.mxu0 0
    %10212 = vmatprep.subr.bf16.mxu0 0
    %10213 = vmatpush1.bf16.msra.mxu0 0
    %10214 = vmatprep.subr.bf16.mxu0 0
    %10215 = vmatpush1.bf16.msra.mxu0 0
    %10216 = vmatprep.subr.bf16.mxu0 0
    %10217 = vmatpush1.bf16.msra.mxu0 0
    %10218 = vmatprep.subr.bf16.mxu0 0
    %10219 = vmatpush1.bf16.msra.mxu0 0
    %10220 = vmatprep.subr.bf16.mxu0 0
    %10221 = vmatpush1.bf16.msra.mxu0 0
    %10222 = vmatprep.subr.bf16.mxu0 0
    %10223 = vmatpush1.bf16.msra.mxu0 0
    %10224 = vmatprep.mubr.bf16.mxu0 0
    %10225 = vmatmul.mubr.bf16.gmra.mrb[0].mxu0 %v10120
    %v10226 = vpop.f32.mrb[0].mxu0
    %v10227 = vadd.f32 %v10142, %v10226
    %v10228 = vpop.f32.mrb[0].mxu0
    %v10229 = vpop.f32.mrb[0].mxu0
    %v10230 = vadd.f32 %v10142, %v10229
    %v10231 = vpop.f32.mrb[0].mxu0
    %10232 = vdwg.mxu0
    %v10233 = vadd.f32 %v7704, %v10227
    %v10234 = vadd.f32 %v7705, %v10230
    %v10235 = vld [vmem:[%s45] sm:$0x1]
    %v10236 = vld [vmem:[%s47] sm:$0x1]
    %10237 = vadd.xlane.f32.xlu0 %v10233
    %v10238 = vpop.xlane.xlu0 %10237
    %10239 = vadd.xlane.f32.xlu0 %v10234
    %v10240 = vpop.xlane.xlu0 %10239
    %v10241 = vmul.f32 %v10238, %v7671
    %v10242 = vmul.f32 %v10240, %v7671
    %v10243 = vsub.f32 %v10233, %v10241
    %v10244 = vsub.f32 %v10234, %v10242
    %v10245 = vmul.f32 %v10243, %v10243
    %v10246 = vmul.f32 %v10244, %v10244
    %10247 = vadd.xlane.f32.xlu0 %v10245
    %v10248 = vpop.xlane.xlu0 %10247
    %10249 = vadd.xlane.f32.xlu0 %v10246
    %v10250 = vpop.xlane.xlu0 %10249
    %v10251 = vmul.f32 %v10248, %v7671
    %v10252 = vmul.f32 %v10250, %v7671
    %v10253 = vadd.f32 %v10251, 1e-05
    %v10254 = vadd.f32 %v10252, 1e-05
    %v10255 = vrsqrt.pop %v10253
    %v10256 = vrsqrt.pop %v10254
    %v10257 = vmul.f32 %v10243, %v10255
    %v10258 = vmul.f32 %v10244, %v10256
    %v10260 = vlaneseq
    %v10261 = vshrl.u32 %v10260, 7
    %v10262 = vsub.s32 0, %v10261
    %v10263 = vrot.slane %v10235, %v10262
    %v10265 = vmul.f32 %v10257, %v10263
    %v10266 = vmul.f32 %v10258, %v10263
    %v10268 = vlaneseq
    %v10269 = vshrl.u32 %v10268, 7
    %v10270 = vsub.s32 0, %v10269
    %v10271 = vrot.slane %v10236, %v10270
    %v10273 = vadd.f32 %v10265, %v10271
    %v10274 = vadd.f32 %v10266, %v10271
    %v10275 = vpack.c.bf16 %v10274, %v10273
    %v10276 = vld [vmem:[%s49] sm:$0xff]
    %v10277 = vld [vmem:[%s49 + $0x8] sm:$0xff]
    %v10278 = vld [vmem:[%s49 + $0x10] sm:$0xff]
    %v10279 = vld [vmem:[%s49 + $0x18] sm:$0xff]
    %v10280 = vld [vmem:[%s49 + $0x20] sm:$0xff]
    %v10281 = vld [vmem:[%s49 + $0x28] sm:$0xff]
    %v10282 = vld [vmem:[%s49 + $0x30] sm:$0xff]
    %v10283 = vld [vmem:[%s49 + $0x38] sm:$0xff]
    %v10284 = vld [vmem:[%s49 + $0x40] sm:$0xff]
    %v10285 = vld [vmem:[%s49 + $0x48] sm:$0xff]
    %v10286 = vld [vmem:[%s49 + $0x50] sm:$0xff]
    %v10287 = vld [vmem:[%s49 + $0x58] sm:$0xff]
    %v10288 = vld [vmem:[%s49 + $0x60] sm:$0xff]
    %v10289 = vld [vmem:[%s49 + $0x68] sm:$0xff]
    %v10290 = vld [vmem:[%s49 + $0x70] sm:$0xff]
    %v10291 = vld [vmem:[%s49 + $0x78] sm:$0xff]
    %v10292 = vld [vmem:[%s51] sm:$0x3]
    %v10294 = vlaneseq
    %v10295 = vshrl.u32 %v10294, 7
    %v10296 = vsub.s32 0, %v10295
    %v10297 = vrot.slane %v10292, %v10296
    %v10298 = vlaneseq
    %v10299 = vshrl.u32 %v10298, 7
    %v10300 = vsub.s32 1, %v10299
    %v10301 = vrot.slane %v10292, %v10300
    %v10320 = vunpack.c.l.b16 %v10276
    %v10321 = vunpack.c.h.b16 %v10276
    %v10322 = vunpack.c.l.b16 %v10277
    %v10323 = vunpack.c.h.b16 %v10277
    %v10324 = vunpack.c.l.b16 %v10278
    %v10325 = vunpack.c.h.b16 %v10278
    %v10326 = vunpack.c.l.b16 %v10279
    %v10327 = vunpack.c.h.b16 %v10279
    %v10328 = vunpack.c.l.b16 %v10280
    %v10329 = vunpack.c.h.b16 %v10280
    %v10330 = vunpack.c.l.b16 %v10281
    %v10331 = vunpack.c.h.b16 %v10281
    %v10332 = vunpack.c.l.b16 %v10282
    %v10333 = vunpack.c.h.b16 %v10282
    %v10334 = vunpack.c.l.b16 %v10283
    %v10335 = vunpack.c.h.b16 %v10283
    %v10336 = vunpack.c.l.b16 %v10284
    %v10337 = vunpack.c.h.b16 %v10284
    %v10338 = vunpack.c.l.b16 %v10285
    %v10339 = vunpack.c.h.b16 %v10285
    %v10340 = vunpack.c.l.b16 %v10286
    %v10341 = vunpack.c.h.b16 %v10286
    %v10342 = vunpack.c.l.b16 %v10287
    %v10343 = vunpack.c.h.b16 %v10287
    %v10344 = vunpack.c.l.b16 %v10288
    %v10345 = vunpack.c.h.b16 %v10288
    %v10346 = vunpack.c.l.b16 %v10289
    %v10347 = vunpack.c.h.b16 %v10289
    %v10348 = vunpack.c.l.b16 %v10290
    %v10349 = vunpack.c.h.b16 %v10290
    %v10350 = vunpack.c.l.b16 %v10291
    %v10351 = vunpack.c.h.b16 %v10291
    %v10352 = vpack.c.b16 %v10322, %v10320
    %v10353 = vpack.c.b16 %v10323, %v10321
    %v10354 = vpack.c.b16 %v10326, %v10324
    %v10355 = vpack.c.b16 %v10327, %v10325
    %v10356 = vpack.c.b16 %v10330, %v10328
    %v10357 = vpack.c.b16 %v10331, %v10329
    %v10358 = vpack.c.b16 %v10334, %v10332
    %v10359 = vpack.c.b16 %v10335, %v10333
    %v10360 = vpack.c.b16 %v10338, %v10336
    %v10361 = vpack.c.b16 %v10339, %v10337
    %v10362 = vpack.c.b16 %v10342, %v10340
    %v10363 = vpack.c.b16 %v10343, %v10341
    %v10364 = vpack.c.b16 %v10346, %v10344
    %v10365 = vpack.c.b16 %v10347, %v10345
    %v10366 = vpack.c.b16 %v10350, %v10348
    %v10367 = vpack.c.b16 %v10351, %v10349
    %10384 = vmatprep.subr.bf16.mxu0 %v10353
    %10385 = vmatpush1.bf16.msra.mxu0 %v10352
    %10386 = vmatprep.subr.bf16.mxu0 %v10355
    %10387 = vmatpush1.bf16.msra.mxu0 %v10354
    %10388 = vmatprep.subr.bf16.mxu0 %v10357
    %10389 = vmatpush1.bf16.msra.mxu0 %v10356
    %10390 = vmatprep.subr.bf16.mxu0 %v10359
    %10391 = vmatpush1.bf16.msra.mxu0 %v10358
    %10392 = vmatprep.subr.bf16.mxu0 %v10361
    %10393 = vmatpush1.bf16.msra.mxu0 %v10360
    %10394 = vmatprep.subr.bf16.mxu0 %v10363
    %10395 = vmatpush1.bf16.msra.mxu0 %v10362
    %10396 = vmatprep.subr.bf16.mxu0 %v10365
    %10397 = vmatpush1.bf16.msra.mxu0 %v10364
    %10398 = vmatprep.subr.bf16.mxu0 %v10367
    %10399 = vmatpush1.bf16.msra.mxu0 %v10366
    %10400 = vmatprep.subr.bf16.mxu0 0
    %10401 = vmatpush1.bf16.msra.mxu0 0
    %10402 = vmatprep.subr.bf16.mxu0 0
    %10403 = vmatpush1.bf16.msra.mxu0 0
    %10404 = vmatprep.subr.bf16.mxu0 0
    %10405 = vmatpush1.bf16.msra.mxu0 0
    %10406 = vmatprep.subr.bf16.mxu0 0
    %10407 = vmatpush1.bf16.msra.mxu0 0
    %10408 = vmatprep.subr.bf16.mxu0 0
    %10409 = vmatpush1.bf16.msra.mxu0 0
    %10410 = vmatprep.subr.bf16.mxu0 0
    %10411 = vmatpush1.bf16.msra.mxu0 0
    %10412 = vmatprep.subr.bf16.mxu0 0
    %10413 = vmatpush1.bf16.msra.mxu0 0
    %10414 = vmatprep.subr.bf16.mxu0 0
    %10415 = vmatpush1.bf16.msra.mxu0 0
    %10416 = vmatprep.mubr.bf16.mxu0 0
    %10417 = vmatmul.mubr.bf16.gmra.mrb[0].mxu0 %v10275
    %v10418 = vpop.f32.mrb[0].mxu0
    %v10419 = vadd.f32 %v10297, %v10418
    %v10420 = vpop.f32.mrb[0].mxu0
    %v10421 = vadd.f32 %v10301, %v10420
    %v10422 = vpop.f32.mrb[0].mxu0
    %v10423 = vadd.f32 %v10297, %v10422
    %v10424 = vpop.f32.mrb[0].mxu0
    %v10425 = vadd.f32 %v10301, %v10424
    %10426 = vdwg.mxu0
    %v10427 = vmul.f32 %v10419, 0.5
    %v10428 = vmul.f32 %v10421, 0.5
    %v10429 = vmul.f32 %v10423, 0.5
    %v10430 = vmul.f32 %v10425, 0.5
    %v10431 = vmul.f32 %v10419, 0.70710677
    %v10432 = vmul.f32 %v10421, 0.70710677
    %v10433 = vmul.f32 %v10423, 0.70710677
    %v10434 = vmul.f32 %v10425, 0.70710677
    %v10435 = verf.f32.pop %v10431
    %v10436 = verf.f32.pop %v10432
    %v10437 = verf.f32.pop %v10433
    %v10438 = verf.f32.pop %v10434
    %v10439 = vadd.f32 %v10435, 1.0
    %v10440 = vadd.f32 %v10436, 1.0
    %v10441 = vadd.f32 %v10437, 1.0
    %v10442 = vadd.f32 %v10438, 1.0
    %v10443 = vmul.f32 %v10427, %v10439
    %v10444 = vmul.f32 %v10428, %v10440
    %v10445 = vmul.f32 %v10429, %v10441
    %v10446 = vmul.f32 %v10430, %v10442
    %v10447 = vpack.c.bf16 %v10445, %v10443
    %v10448 = vpack.c.bf16 %v10446, %v10444
    %v10449 = vld [vmem:[%s53] sm:$0xf]
    %v10450 = vld [vmem:[%s53 + $0x4] sm:$0xf]
    %v10451 = vld [vmem:[%s53 + $0x8] sm:$0xf]
    %v10452 = vld [vmem:[%s53 + $0xc] sm:$0xf]
    %v10453 = vld [vmem:[%s53 + $0x10] sm:$0xf]
    %v10454 = vld [vmem:[%s53 + $0x14] sm:$0xf]
    %v10455 = vld [vmem:[%s53 + $0x18] sm:$0xf]
    %v10456 = vld [vmem:[%s53 + $0x1c] sm:$0xf]
    %v10457 = vld [vmem:[%s53 + $0x20] sm:$0xf]
    %v10458 = vld [vmem:[%s53 + $0x24] sm:$0xf]
    %v10459 = vld [vmem:[%s53 + $0x28] sm:$0xf]
    %v10460 = vld [vmem:[%s53 + $0x2c] sm:$0xf]
    %v10461 = vld [vmem:[%s53 + $0x30] sm:$0xf]
    %v10462 = vld [vmem:[%s53 + $0x34] sm:$0xf]
    %v10463 = vld [vmem:[%s53 + $0x38] sm:$0xf]
    %v10464 = vld [vmem:[%s53 + $0x3c] sm:$0xf]
    %v10465 = vld [vmem:[%s53 + $0x40] sm:$0xf]
    %v10466 = vld [vmem:[%s53 + $0x44] sm:$0xf]
    %v10467 = vld [vmem:[%s53 + $0x48] sm:$0xf]
    %v10468 = vld [vmem:[%s53 + $0x4c] sm:$0xf]
    %v10469 = vld [vmem:[%s53 + $0x50] sm:$0xf]
    %v10470 = vld [vmem:[%s53 + $0x54] sm:$0xf]
    %v10471 = vld [vmem:[%s53 + $0x58] sm:$0xf]
    %v10472 = vld [vmem:[%s53 + $0x5c] sm:$0xf]
    %v10473 = vld [vmem:[%s53 + $0x60] sm:$0xf]
    %v10474 = vld [vmem:[%s53 + $0x64] sm:$0xf]
    %v10475 = vld [vmem:[%s53 + $0x68] sm:$0xf]
    %v10476 = vld [vmem:[%s53 + $0x6c] sm:$0xf]
    %v10477 = vld [vmem:[%s53 + $0x70] sm:$0xf]
    %v10478 = vld [vmem:[%s53 + $0x74] sm:$0xf]
    %v10479 = vld [vmem:[%s53 + $0x78] sm:$0xf]
    %v10480 = vld [vmem:[%s53 + $0x7c] sm:$0xf]
    %v10481 = vld [vmem:[%s55] sm:$0x1]
    %v10483 = vlaneseq
    %v10484 = vshrl.u32 %v10483, 7
    %v10485 = vsub.s32 0, %v10484
    %v10486 = vrot.slane %v10481, %v10485
    %v10520 = vunpack.c.l.b16 %v10449
    %v10521 = vunpack.c.l.b16 %v10450
    %v10522 = vunpack.c.l.b16 %v10451
    %v10523 = vunpack.c.l.b16 %v10452
    %v10524 = vunpack.c.l.b16 %v10453
    %v10525 = vunpack.c.l.b16 %v10454
    %v10526 = vunpack.c.l.b16 %v10455
    %v10527 = vunpack.c.l.b16 %v10456
    %v10528 = vunpack.c.l.b16 %v10457
    %v10529 = vunpack.c.l.b16 %v10458
    %v10530 = vunpack.c.l.b16 %v10459
    %v10531 = vunpack.c.l.b16 %v10460
    %v10532 = vunpack.c.l.b16 %v10461
    %v10533 = vunpack.c.l.b16 %v10462
    %v10534 = vunpack.c.l.b16 %v10463
    %v10535 = vunpack.c.l.b16 %v10464
    %v10536 = vunpack.c.l.b16 %v10465
    %v10537 = vunpack.c.l.b16 %v10466
    %v10538 = vunpack.c.l.b16 %v10467
    %v10539 = vunpack.c.l.b16 %v10468
    %v10540 = vunpack.c.l.b16 %v10469
    %v10541 = vunpack.c.l.b16 %v10470
    %v10542 = vunpack.c.l.b16 %v10471
    %v10543 = vunpack.c.l.b16 %v10472
    %v10544 = vunpack.c.l.b16 %v10473
    %v10545 = vunpack.c.l.b16 %v10474
    %v10546 = vunpack.c.l.b16 %v10475
    %v10547 = vunpack.c.l.b16 %v10476
    %v10548 = vunpack.c.l.b16 %v10477
    %v10549 = vunpack.c.l.b16 %v10478
    %v10550 = vunpack.c.l.b16 %v10479
    %v10551 = vunpack.c.l.b16 %v10480
    %v10552 = vpack.c.b16 %v10521, %v10520
    %v10553 = vpack.c.b16 %v10523, %v10522
    %v10554 = vpack.c.b16 %v10525, %v10524
    %v10555 = vpack.c.b16 %v10527, %v10526
    %v10556 = vpack.c.b16 %v10529, %v10528
    %v10557 = vpack.c.b16 %v10531, %v10530
    %v10558 = vpack.c.b16 %v10533, %v10532
    %v10559 = vpack.c.b16 %v10535, %v10534
    %v10560 = vpack.c.b16 %v10537, %v10536
    %v10561 = vpack.c.b16 %v10539, %v10538
    %v10562 = vpack.c.b16 %v10541, %v10540
    %v10563 = vpack.c.b16 %v10543, %v10542
    %v10564 = vpack.c.b16 %v10545, %v10544
    %v10565 = vpack.c.b16 %v10547, %v10546
    %v10566 = vpack.c.b16 %v10549, %v10548
    %v10567 = vpack.c.b16 %v10551, %v10550
    %10584 = vmatprep.subr.bf16.mxu0 0
    %10585 = vmatpush1.bf16.msra.mxu0 %v10552
    %10586 = vmatprep.subr.bf16.mxu0 0
    %10587 = vmatpush1.bf16.msra.mxu0 %v10553
    %10588 = vmatprep.subr.bf16.mxu0 0
    %10589 = vmatpush1.bf16.msra.mxu0 %v10554
    %10590 = vmatprep.subr.bf16.mxu0 0
    %10591 = vmatpush1.bf16.msra.mxu0 %v10555
    %10592 = vmatprep.subr.bf16.mxu0 0
    %10593 = vmatpush1.bf16.msra.mxu0 %v10556
    %10594 = vmatprep.subr.bf16.mxu0 0
    %10595 = vmatpush1.bf16.msra.mxu0 %v10557
    %10596 = vmatprep.subr.bf16.mxu0 0
    %10597 = vmatpush1.bf16.msra.mxu0 %v10558
    %10598 = vmatprep.subr.bf16.mxu0 0
    %10599 = vmatpush1.bf16.msra.mxu0 %v10559
    %10600 = vmatprep.subr.bf16.mxu0 0
    %10601 = vmatpush1.bf16.msra.mxu0 %v10560
    %10602 = vmatprep.subr.bf16.mxu0 0
    %10603 = vmatpush1.bf16.msra.mxu0 %v10561
    %10604 = vmatprep.subr.bf16.mxu0 0
    %10605 = vmatpush1.bf16.msra.mxu0 %v10562
    %10606 = vmatprep.subr.bf16.mxu0 0
    %10607 = vmatpush1.bf16.msra.mxu0 %v10563
    %10608 = vmatprep.subr.bf16.mxu0 0
    %10609 = vmatpush1.bf16.msra.mxu0 %v10564
    %10610 = vmatprep.subr.bf16.mxu0 0
    %10611 = vmatpush1.bf16.msra.mxu0 %v10565
    %10612 = vmatprep.subr.bf16.mxu0 0
    %10613 = vmatpush1.bf16.msra.mxu0 %v10566
    %10614 = vmatprep.subr.bf16.mxu0 0
    %10615 = vmatpush1.bf16.msra.mxu0 %v10567
    %10616 = vmatprep.mubr.bf16.mxu0 %v10448
    %10617 = vmatmul.mubr.bf16.gmra.mrb[0].mxu0 %v10447
    %v10618 = vpop.f32.mrb[0].mxu0
    %v10619 = vadd.f32 %v10486, %v10618
    %v10620 = vpop.f32.mrb[0].mxu0
    %v10621 = vpop.f32.mrb[0].mxu0
    %v10622 = vadd.f32 %v10486, %v10621
    %v10623 = vpop.f32.mrb[0].mxu0
    %10624 = vdwg.mxu0
    %v10625 = vadd.f32 %v10273, %v10619
    %v10626 = vadd.f32 %v10274, %v10622
    %v10627 = vld [vmem:[%s57] sm:$0x1]
    %v10628 = vld [vmem:[%s59] sm:$0x1]
    %10629 = vadd.xlane.f32.xlu0 %v10625
    %v10630 = vpop.xlane.xlu0 %10629
    %10631 = vadd.xlane.f32.xlu0 %v10626
    %v10632 = vpop.xlane.xlu0 %10631
    %v10633 = vmul.f32 %v10630, %v7671
    %v10634 = vmul.f32 %v10632, %v7671
    %v10635 = vsub.f32 %v10625, %v10633
    %v10636 = vsub.f32 %v10626, %v10634
    %v10637 = vmul.f32 %v10635, %v10635
    %v10638 = vmul.f32 %v10636, %v10636
    %10639 = vadd.xlane.f32.xlu0 %v10637
    %v10640 = vpop.xlane.xlu0 %10639
    %10641 = vadd.xlane.f32.xlu0 %v10638
    %v10642 = vpop.xlane.xlu0 %10641
    %v10643 = vmul.f32 %v10640, %v7671
    %v10644 = vmul.f32 %v10642, %v7671
    %v10645 = vadd.f32 %v10643, 1e-05
    %v10646 = vadd.f32 %v10644, 1e-05
    %v10647 = vrsqrt.pop %v10645
    %v10648 = vrsqrt.pop %v10646
    %v10649 = vmul.f32 %v10635, %v10647
    %v10650 = vmul.f32 %v10636, %v10648
    %v10652 = vlaneseq
    %v10653 = vshrl.u32 %v10652, 7
    %v10654 = vsub.s32 0, %v10653
    %v10655 = vrot.slane %v10627, %v10654
    %v10657 = vmul.f32 %v10649, %v10655
    %v10658 = vmul.f32 %v10650, %v10655
    %v10660 = vlaneseq
    %v10661 = vshrl.u32 %v10660, 7
    %v10662 = vsub.s32 0, %v10661
    %v10663 = vrot.slane %v10628, %v10662
    %v10665 = vadd.f32 %v10657, %v10663
    %v10666 = vadd.f32 %v10658, %v10663
    %10667 = vst [vmem:[#allocation9] sm:$0xff] %v10665
    %10668 = vst [vmem:[#allocation9 + $0x8] sm:$0xff] %v10666
    // Predicated region
    $region122: #{foveal_step.1} parent=1 // pred_check
      _
    $region123: #{foveal_step.1} parent=1 // pred_check_branch
      %10670 = sbr.rel (0) target = $region125
    $region124: #{foveal_step.1} parent=1 // pred_region
      %s10672 = ssub.s32 256, 256
      %10673 = vsyncadd [#allocation10], %s10672
      %s10674 = sshll.u32 [#allocation9], 4
      %s10675 = int_to_ptr.vmem [resolvable:$true] %s10674
      %10680 = dma.vmem_to_hbm [thread:$0]  %s10675, 256, %s61, [#allocation10], 128, 128, 8
    $region125: #{foveal_step.1} parent=1 // pred_fallthru
      _
    // Predicated region
    $region126: #{foveal_step.1} parent=1 // pred_check
      _
    $region127: #{foveal_step.1} parent=1 // pred_check_branch
      %10682 = sbr.rel (0) target = $region129
    $region128: #{foveal_step.1} parent=1 // pred_region
      %10683 = dma.done [#allocation10], 256
    $region129: #{foveal_step.1} parent=1 // pred_fallthru
      _
    %10684 = vsyncpa [#allocation10], 1

</llo_original>
